<compile_context>
chip_gen: v7x
topology: tpu7x:2x2x1
jax: 0.10.0
libtpu: 0.0.40
codegen_flags: <defaults>
</compile_context>

<pallas_src>
import functools

import jax
import jax.numpy as jnp
from jax.experimental import pallas as pl
from jax.experimental.pallas import tpu as pltpu

LEAKY_SLOPE = 0.2
BN_EPS = 1e-5
OUT_DIM = 784
OUT_PAD = 896  # next multiple of 128 -> lane-dense output stores (padded cols sliced off in wrapper)


# ----------------------------------------------------------------------------- kernel


def gnet_kernel(x_ref,
                w1_ref, b1_ref,
                w2_ref, b2_ref,
                w3_ref, b3_ref,
                w4_ref, b4_ref,
                out_ref,
                *, bf16_epilogue):
    """Fused MLP: (Linear[BN folded] -> LeakyReLU) x3 -> Linear -> Sigmoid.

    Weights are bf16 (BN scale folded in), biases f32 (BN offset folded in);
    every matmul accumulates in f32 on the MXU. Input arrives already bf16.
    """
    h = x_ref[...]  # bf16 (cast once in the wrapper, not per grid step)

    def layer(h, w_ref, b_ref):
        y = jnp.dot(h, w_ref[...], preferred_element_type=jnp.float32) + b_ref[...]
        if bf16_epilogue:
            # v6e/v7x: bf16 VALU packs 2 elems/lane -> cheaper LeakyReLU epilogue.
            yb = y.astype(jnp.bfloat16)
            return jnp.where(yb > 0, yb, LEAKY_SLOPE * yb)
        # v5e: no bf16 VALU -> keep the select in f32, downcast after.
        y = jnp.where(y > 0, y, LEAKY_SLOPE * y)
        return y.astype(jnp.bfloat16)

    h = layer(h, w1_ref, b1_ref)   # Dropout == identity in eval mode
    h = layer(h, w2_ref, b2_ref)
    h = layer(h, w3_ref, b3_ref)

    y = jnp.dot(h, w4_ref[...], preferred_element_type=jnp.float32) + b4_ref[...]
    # sigmoid(y) = 1 / (1 + exp(-y)); exp + approx reciprocal both issue on the (idle) EUP slot.
    out_ref[...] = pl.reciprocal(1.0 + jnp.exp(-y), approx=True)


# ----------------------------------------------------------------------------- params


def make_raw_params(input_size=256, seed=0):
    """Deterministic synthetic parameters matching the PyTorch module's shapes (f32 reference set)."""
    dims = [input_size, 256, 512, 1024, OUT_DIM]
    keys = jax.random.split(jax.random.PRNGKey(seed), 32)
    ki = iter(range(32))
    raw = {}
    for li in range(4):
        fan_in, fan_out = dims[li], dims[li + 1]
        # nn.Linear weight is (out, in); stored transposed (in, out) for x @ W.
        raw[f"w{li+1}"] = (0.05 * jax.random.normal(keys[next(ki)], (fan_in, fan_out))).astype(jnp.float32)
        raw[f"b{li+1}"] = (0.05 * jax.random.normal(keys[next(ki)], (1, fan_out))).astype(jnp.float32)
        if li < 3:  # BatchNorm1d after the first three linears
            raw[f"gamma{li+1}"] = (1.0 + 0.1 * jax.random.normal(keys[next(ki)], (1, fan_out))).astype(jnp.float32)
            raw[f"beta{li+1}"] = (0.1 * jax.random.normal(keys[next(ki)], (1, fan_out))).astype(jnp.float32)
            raw[f"rmean{li+1}"] = (0.1 * jax.random.normal(keys[next(ki)], (1, fan_out))).astype(jnp.float32)
            raw[f"rvar{li+1}"] = (1.0 + jnp.abs(0.1 * jax.random.normal(keys[next(ki)], (1, fan_out)))).astype(jnp.float32)
    return raw


def fold_params(raw):
    """Fold eval-mode BN into the linears; cast weights to bf16; pad layer-4 to 896 lanes."""
    kp = {}
    for li in range(1, 4):
        s = raw[f"gamma{li}"] / jnp.sqrt(raw[f"rvar{li}"] + BN_EPS)
        o = raw[f"beta{li}"] - raw[f"rmean{li}"] * s
        kp[f"w{li}"] = (raw[f"w{li}"] * s).astype(jnp.bfloat16)
        kp[f"b{li}"] = (raw[f"b{li}"] * s + o).astype(jnp.float32)
    kp["w4"] = jnp.pad(raw["w4"], ((0, 0), (0, OUT_PAD - OUT_DIM))).astype(jnp.bfloat16)
    kp["b4"] = jnp.pad(raw["b4"], ((0, 0), (0, OUT_PAD - OUT_DIM))).astype(jnp.float32)
    return kp


# ----------------------------------------------------------------------------- tiling / wrapper


def _tpu_generation():
    """Best-effort TPU generation (4/5/6/7); defaults to 6 if unknown."""
    try:
        kind = jax.devices()[0].device_kind.lower()
    except Exception:
        return 6
    for g in (7, 6, 5, 4):
        if f"v{g}" in kind:
            return g
    return 6


def _pick_batch_tile(batch, gen):
    """Batch tile: fill the MXU M dim and amortize ~0.35us/step grid overhead."""
    if gen >= 6:
        if batch >= 512:
            return 256       # fills the 2x256^2 MXU; grid still has >=2 steps for megacore sharding
        if batch >= 128:
            return 128
    else:                    # v5e/v4: 128-wide MXU, already MXU-time-bound at 128 rows
        if batch >= 128:
            return 128
    return max(8, ((batch + 7) // 8) * 8)


def _vmem_limit_bytes(tb, in_dim):
    """Actual footprint + headroom (covers the double-buffered-weight fallback too)."""
    wbytes = 2 * (in_dim * 256 + 256 * 512 + 512 * 1024 + 1024 * OUT_PAD)   # bf16 weights
    bbytes = 4 * (256 + 512 + 1024 + OUT_PAD)                               # f32 biases
    x_tile = 2 * tb * in_dim * 2                                            # bf16 x, double-buffered
    out_tile = 4 * tb * OUT_PAD * 2                                         # f32 out, double-buffered
    acts = 2 * tb * (256 + 512 + 1024) + 4 * tb * OUT_PAD                   # in-kernel working set
    total = 2 * wbytes + bbytes + x_tile + out_tile + acts
    return max(16 << 20, min(int(total * 2), 48 << 20))


@functools.partial(jax.jit, static_argnames=("tb", "single_buffer_weights", "bf16_epilogue"))
def _forward_impl(x, kparams, *, tb, single_buffer_weights, bf16_epilogue):
    batch, in_dim = x.shape
    b_pad = pl.cdiv(batch, tb) * tb

    xb = x.astype(jnp.bfloat16)                 # cast once here, not per grid step
    if b_pad != batch:
        xb = jnp.pad(xb, ((0, b_pad - batch), (0, 0)))

    w1, b1 = kparams["w1"], kparams["b1"]
    w2, b2 = kparams["w2"], kparams["b2"]
    w3, b3 = kparams["w3"], kparams["b3"]
    w4, b4 = kparams["w4"], kparams["b4"]

    const = lambda i: (0, 0)                    # constant block index -> weights stay VMEM-resident
    if single_buffer_weights:
        wspec = lambda a: pl.BlockSpec(a.shape, const, pipeline_mode=pl.Buffered(1))
    else:
        wspec = lambda a: pl.BlockSpec(a.shape, const)

    flops = 2 * b_pad * (in_dim * 256 + 256 * 512 + 512 * 1024 + 1024 * OUT_PAD)
    bytes_accessed = (b_pad * in_dim * 2
                      + sum(int(v.size) * v.dtype.itemsize for v in kparams.values())
                      + b_pad * OUT_PAD * 4)
    cost = pl.CostEstimate(flops=flops,
                           transcendentals=2 * b_pad * OUT_PAD,
                           bytes_accessed=bytes_accessed)

    kern = functools.partial(gnet_kernel, bf16_epilogue=bf16_epilogue)

    out = pl.pallas_call(
        kern,
        out_shape=jax.ShapeDtypeStruct((b_pad, OUT_PAD), jnp.float32),
        grid=(b_pad // tb,),
        in_specs=[
            pl.BlockSpec((tb, in_dim), lambda i: (i, 0)),
            wspec(w1), wspec(b1),
            wspec(w2), wspec(b2),
            wspec(w3), wspec(b3),
            wspec(w4), wspec(b4),
        ],
        out_specs=pl.BlockSpec((tb, OUT_PAD), lambda i: (i, 0)),
        compiler_params=pltpu.CompilerParams(
            dimension_semantics=("parallel",),
            vmem_limit_bytes=_vmem_limit_bytes(tb, in_dim),
        ),
        cost_estimate=cost,
    )(xb, w1, b1, w2, b2, w3, b3, w4, b4)

    # Drop batch padding and the 784->896 lane padding, then view as NCHW like PyTorch.
    return out[:batch, :OUT_DIM].reshape(-1, 1, 28, 28)


def g_net_linear_forward(x, kparams):
    """Pallas forward.  x: (B, input_size) float32 -> (B, 1, 28, 28) float32."""
    gen = _tpu_generation()
    tb = _pick_batch_tile(x.shape[0], gen)
    bf16_epi = gen >= 6
    try:
        return _forward_impl(x, kparams, tb=tb,
                             single_buffer_weights=True, bf16_epilogue=bf16_epi)
    except Exception:
        # Fallback if pipeline_mode=pl.Buffered(1) is rejected by this JAX/Mosaic version.
        return _forward_impl(x, kparams, tb=tb,
                             single_buffer_weights=False, bf16_epilogue=bf16_epi)


# ----------------------------------------------------------------------------- reference


def reference_forward(x, raw):
    """Pure-JAX f32 reference of the same eval-mode semantics."""
    h = x
    for li in range(1, 4):
        h = h @ raw[f"w{li}"] + raw[f"b{li}"]
        s = raw[f"gamma{li}"] / jnp.sqrt(raw[f"rvar{li}"] + BN_EPS)
        h = (h - raw[f"rmean{li}"]) * s + raw[f"beta{li}"]
        h = jnp.where(h > 0, h, LEAKY_SLOPE * h)
    h = h @ raw["w4"] + raw["b4"]
    return jax.nn.sigmoid(h).reshape(-1, 1, 28, 28)


if __name__ == "__main__":
    input_size = 256
    batch = 8

    raw = make_raw_params(input_size=input_size, seed=0)
    kparams = fold_params(raw)
    x = jax.random.normal(jax.random.PRNGKey(0), (batch, input_size), dtype=jnp.float32)

    y = g_net_linear_forward(x, kparams)
    y = jax.block_until_ready(y)

    assert y.shape == (batch, 1, 28, 28), y.shape

    y_ref = reference_forward(x, raw)
    # bf16 weights / activations + approx reciprocal -> loosened tolerance vs. the f32 reference.
    if not jnp.allclose(y, y_ref, atol=2.5e-2, rtol=2.5e-2):
        max_err = float(jnp.max(jnp.abs(y - y_ref)))
        raise AssertionError(f"Pallas output does not match JAX reference (max abs err {max_err:.4e})")

    print("KERNEL_OK")
</pallas_src>

<mosaic_0001>
module attributes {stable_mosaic.version = 11 : i64} {
  func.func @gnet_kernel(%arg0: i32, %arg1: memref<8x256xbf16, #tpu.memory_space<vmem>>, %arg2: memref<256x256xbf16, #tpu.memory_space<vmem>>, %arg3: memref<1x256xf32, #tpu.memory_space<vmem>>, %arg4: memref<256x512xbf16, #tpu.memory_space<vmem>>, %arg5: memref<1x512xf32, #tpu.memory_space<vmem>>, %arg6: memref<512x1024xbf16, #tpu.memory_space<vmem>>, %arg7: memref<1x1024xf32, #tpu.memory_space<vmem>>, %arg8: memref<1024x896xbf16, #tpu.memory_space<vmem>>, %arg9: memref<1x896xf32, #tpu.memory_space<vmem>>, %arg10: memref<8x896xf32, #tpu.memory_space<vmem>>) attributes {dimension_semantics = [#tpu.dimension_semantics<parallel>], iteration_bounds = array<i64: 1>, scalar_prefetch = 0 : i64, scratch_operands = 0 : i64, tpu.core_type = #tpu.core_type<tc>, window_params = [{transform_indices = @transform_0, window_bounds = array<i64: 8, 256>}, {pipeline_mode = #tpu.pipeline_mode<synchronous>, transform_indices = @transform_1, window_bounds = array<i64: 256, 256>}, {pipeline_mode = #tpu.pipeline_mode<synchronous>, transform_indices = @transform_2, window_bounds = array<i64: 1, 256>}, {pipeline_mode = #tpu.pipeline_mode<synchronous>, transform_indices = @transform_3, window_bounds = array<i64: 256, 512>}, {pipeline_mode = #tpu.pipeline_mode<synchronous>, transform_indices = @transform_4, window_bounds = array<i64: 1, 512>}, {pipeline_mode = #tpu.pipeline_mode<synchronous>, transform_indices = @transform_5, window_bounds = array<i64: 512, 1024>}, {pipeline_mode = #tpu.pipeline_mode<synchronous>, transform_indices = @transform_6, window_bounds = array<i64: 1, 1024>}, {pipeline_mode = #tpu.pipeline_mode<synchronous>, transform_indices = @transform_7, window_bounds = array<i64: 1024, 896>}, {pipeline_mode = #tpu.pipeline_mode<synchronous>, transform_indices = @transform_8, window_bounds = array<i64: 1, 896>}, {transform_indices = @transform_9, window_bounds = array<i64: 8, 896>}]} {
    %c0 = arith.constant 0 : index
    %c0_0 = arith.constant 0 : index
    %0 = vector.load %arg1[%c0, %c0_0] : memref<8x256xbf16, #tpu.memory_space<vmem>>, vector<8x256xbf16>
    %c0_1 = arith.constant 0 : index
    %c0_2 = arith.constant 0 : index
    %1 = vector.load %arg2[%c0_1, %c0_2] : memref<256x256xbf16, #tpu.memory_space<vmem>>, vector<256x256xbf16>
    %cst = arith.constant dense<0.000000e+00> : vector<8x256xf32>
    %2 = tpu.matmul %0, %1, %cst {dimension_numbers = #tpu.dot_dimension_numbers<[1], [0], [0], [1], [0, 0, 1, 1], [], []>} : vector<8x256xbf16>, vector<256x256xbf16>, vector<8x256xf32> -> vector<8x256xf32>
    %c0_3 = arith.constant 0 : index
    %c0_4 = arith.constant 0 : index
    %3 = vector.load %arg3[%c0_3, %c0_4] : memref<1x256xf32, #tpu.memory_space<vmem>>, vector<1x256xf32>
    %4 = vector.broadcast %3 : vector<1x256xf32> to vector<8x256xf32>
    %5 = arith.addf %2, %4 : vector<8x256xf32>
    %6 = arith.truncf %5 : vector<8x256xf32> to vector<8x256xbf16>
    %cst_5 = arith.constant 0.000000e+00 : bf16
    %7 = vector.broadcast %cst_5 : bf16 to vector<8x256xbf16>
    %8 = arith.cmpf ogt, %6, %7 : vector<8x256xbf16>
    %cst_6 = arith.constant 2.001950e-01 : bf16
    %9 = vector.broadcast %cst_6 : bf16 to vector<8x256xbf16>
    %10 = arith.mulf %9, %6 : vector<8x256xbf16>
    %11 = arith.select %8, %6, %10 : vector<8x256xi1>, vector<8x256xbf16>
    %c0_7 = arith.constant 0 : index
    %c0_8 = arith.constant 0 : index
    %12 = vector.load %arg4[%c0_7, %c0_8] : memref<256x512xbf16, #tpu.memory_space<vmem>>, vector<256x512xbf16>
    %cst_9 = arith.constant dense<0.000000e+00> : vector<8x512xf32>
    %13 = tpu.matmul %11, %12, %cst_9 {dimension_numbers = #tpu.dot_dimension_numbers<[1], [0], [0], [1], [0, 0, 1, 1], [], []>} : vector<8x256xbf16>, vector<256x512xbf16>, vector<8x512xf32> -> vector<8x512xf32>
    %c0_10 = arith.constant 0 : index
    %c0_11 = arith.constant 0 : index
    %14 = vector.load %arg5[%c0_10, %c0_11] : memref<1x512xf32, #tpu.memory_space<vmem>>, vector<1x512xf32>
    %15 = vector.broadcast %14 : vector<1x512xf32> to vector<8x512xf32>
    %16 = arith.addf %13, %15 : vector<8x512xf32>
    %17 = arith.truncf %16 : vector<8x512xf32> to vector<8x512xbf16>
    %cst_12 = arith.constant 0.000000e+00 : bf16
    %18 = vector.broadcast %cst_12 : bf16 to vector<8x512xbf16>
    %19 = arith.cmpf ogt, %17, %18 : vector<8x512xbf16>
    %cst_13 = arith.constant 2.001950e-01 : bf16
    %20 = vector.broadcast %cst_13 : bf16 to vector<8x512xbf16>
    %21 = arith.mulf %20, %17 : vector<8x512xbf16>
    %22 = arith.select %19, %17, %21 : vector<8x512xi1>, vector<8x512xbf16>
    %c0_14 = arith.constant 0 : index
    %c0_15 = arith.constant 0 : index
    %23 = vector.load %arg6[%c0_14, %c0_15] : memref<512x1024xbf16, #tpu.memory_space<vmem>>, vector<512x1024xbf16>
    %cst_16 = arith.constant dense<0.000000e+00> : vector<8x1024xf32>
    %24 = tpu.matmul %22, %23, %cst_16 {dimension_numbers = #tpu.dot_dimension_numbers<[1], [0], [0], [1], [0, 0, 1, 1], [], []>} : vector<8x512xbf16>, vector<512x1024xbf16>, vector<8x1024xf32> -> vector<8x1024xf32>
    %c0_17 = arith.constant 0 : index
    %c0_18 = arith.constant 0 : index
    %25 = vector.load %arg7[%c0_17, %c0_18] : memref<1x1024xf32, #tpu.memory_space<vmem>>, vector<1x1024xf32>
    %26 = vector.broadcast %25 : vector<1x1024xf32> to vector<8x1024xf32>
    %27 = arith.addf %24, %26 : vector<8x1024xf32>
    %28 = arith.truncf %27 : vector<8x1024xf32> to vector<8x1024xbf16>
    %cst_19 = arith.constant 0.000000e+00 : bf16
    %29 = vector.broadcast %cst_19 : bf16 to vector<8x1024xbf16>
    %30 = arith.cmpf ogt, %28, %29 : vector<8x1024xbf16>
    %cst_20 = arith.constant 2.001950e-01 : bf16
    %31 = vector.broadcast %cst_20 : bf16 to vector<8x1024xbf16>
    %32 = arith.mulf %31, %28 : vector<8x1024xbf16>
    %33 = arith.select %30, %28, %32 : vector<8x1024xi1>, vector<8x1024xbf16>
    %c0_21 = arith.constant 0 : index
    %c0_22 = arith.constant 0 : index
    %34 = vector.load %arg8[%c0_21, %c0_22] : memref<1024x896xbf16, #tpu.memory_space<vmem>>, vector<1024x896xbf16>
    %cst_23 = arith.constant dense<0.000000e+00> : vector<8x896xf32>
    %35 = tpu.matmul %33, %34, %cst_23 {dimension_numbers = #tpu.dot_dimension_numbers<[1], [0], [0], [1], [0, 0, 1, 1], [], []>} : vector<8x1024xbf16>, vector<1024x896xbf16>, vector<8x896xf32> -> vector<8x896xf32>
    %c0_24 = arith.constant 0 : index
    %c0_25 = arith.constant 0 : index
    %36 = vector.load %arg9[%c0_24, %c0_25] : memref<1x896xf32, #tpu.memory_space<vmem>>, vector<1x896xf32>
    %37 = vector.broadcast %36 : vector<1x896xf32> to vector<8x896xf32>
    %38 = arith.addf %35, %37 : vector<8x896xf32>
    %cst_26 = arith.constant 0.000000e+00 : f32
    %39 = vector.broadcast %cst_26 : f32 to vector<8x896xf32>
    %40 = arith.subf %39, %38 : vector<8x896xf32>
    %41 = math.exp %40 : vector<8x896xf32>
    %cst_27 = arith.constant 1.000000e+00 : f32
    %42 = vector.broadcast %cst_27 : f32 to vector<8x896xf32>
    %43 = arith.addf %42, %41 : vector<8x896xf32>
    %44 = tpu.reciprocal %43 {approx = true} : vector<8x896xf32> -> vector<8x896xf32>
    %c0_28 = arith.constant 0 : index
    %c0_29 = arith.constant 0 : index
    %45 = vector.load %arg10[%c0_28, %c0_29] : memref<8x896xf32, #tpu.memory_space<vmem>>, vector<8x896xf32>
    tpu.vector_store %arg10[%c0_28, %c0_29], %44 {strides = array<i32>} : memref<8x896xf32, #tpu.memory_space<vmem>>, vector<8x896xf32>,
    return
  }
  func.func @transform_0(%arg0: i32) -> (i32, i32) {
    %c0_i32 = arith.constant 0 : i32
    %c0_i32_0 = arith.constant 0 : i32
    return %arg0, %c0_i32 : i32, i32
  }
  func.func @transform_1(%arg0: i32) -> (i32, i32) {
    %c0_i32 = arith.constant 0 : i32
    %c0_i32_0 = arith.constant 0 : i32
    %c0_i32_1 = arith.constant 0 : i32
    return %c0_i32, %c0_i32_0 : i32, i32
  }
  func.func @transform_2(%arg0: i32) -> (i32, i32) {
    %c0_i32 = arith.constant 0 : i32
    %c0_i32_0 = arith.constant 0 : i32
    %c0_i32_1 = arith.constant 0 : i32
    return %c0_i32, %c0_i32_0 : i32, i32
  }
  func.func @transform_3(%arg0: i32) -> (i32, i32) {
    %c0_i32 = arith.constant 0 : i32
    %c0_i32_0 = arith.constant 0 : i32
    %c0_i32_1 = arith.constant 0 : i32
    return %c0_i32, %c0_i32_0 : i32, i32
  }
  func.func @transform_4(%arg0: i32) -> (i32, i32) {
    %c0_i32 = arith.constant 0 : i32
    %c0_i32_0 = arith.constant 0 : i32
    %c0_i32_1 = arith.constant 0 : i32
    return %c0_i32, %c0_i32_0 : i32, i32
  }
  func.func @transform_5(%arg0: i32) -> (i32, i32) {
    %c0_i32 = arith.constant 0 : i32
    %c0_i32_0 = arith.constant 0 : i32
    %c0_i32_1 = arith.constant 0 : i32
    return %c0_i32, %c0_i32_0 : i32, i32
  }
  func.func @transform_6(%arg0: i32) -> (i32, i32) {
    %c0_i32 = arith.constant 0 : i32
    %c0_i32_0 = arith.constant 0 : i32
    %c0_i32_1 = arith.constant 0 : i32
    return %c0_i32, %c0_i32_0 : i32, i32
  }
  func.func @transform_7(%arg0: i32) -> (i32, i32) {
    %c0_i32 = arith.constant 0 : i32
    %c0_i32_0 = arith.constant 0 : i32
    %c0_i32_1 = arith.constant 0 : i32
    return %c0_i32, %c0_i32_0 : i32, i32
  }
  func.func @transform_8(%arg0: i32) -> (i32, i32) {
    %c0_i32 = arith.constant 0 : i32
    %c0_i32_0 = arith.constant 0 : i32
    %c0_i32_1 = arith.constant 0 : i32
    return %c0_i32, %c0_i32_0 : i32, i32
  }
  func.func @transform_9(%arg0: i32) -> (i32, i32) {
    %c0_i32 = arith.constant 0 : i32
    %c0_i32_0 = arith.constant 0 : i32
    return %arg0, %c0_i32 : i32, i32
  }
}

module attributes {stable_mosaic.version = 11 : i64} {
  func.func @gnet_kernel(%arg0: i32, %arg1: memref<8x256xbf16, #tpu.memory_space<vmem>>, %arg2: memref<256x256xbf16, #tpu.memory_space<vmem>>, %arg3: memref<1x256xf32, #tpu.memory_space<vmem>>, %arg4: memref<256x512xbf16, #tpu.memory_space<vmem>>, %arg5: memref<1x512xf32, #tpu.memory_space<vmem>>, %arg6: memref<512x1024xbf16, #tpu.memory_space<vmem>>, %arg7: memref<1x1024xf32, #tpu.memory_space<vmem>>, %arg8: memref<1024x896xbf16, #tpu.memory_space<vmem>>, %arg9: memref<1x896xf32, #tpu.memory_space<vmem>>, %arg10: memref<8x896xf32, #tpu.memory_space<vmem>>) attributes {dimension_semantics = [#tpu.dimension_semantics<parallel>], iteration_bounds = array<i64: 1>, scalar_prefetch = 0 : i64, scratch_operands = 0 : i64, tpu.core_type = #tpu.core_type<tc>, window_params = [{transform_indices = @transform_0, window_bounds = array<i64: 8, 256>}, {pipeline_mode = #tpu.pipeline_mode<synchronous>, transform_indices = @transform_1, window_bounds = array<i64: 256, 256>}, {pipeline_mode = #tpu.pipeline_mode<synchronous>, transform_indices = @transform_2, window_bounds = array<i64: 1, 256>}, {pipeline_mode = #tpu.pipeline_mode<synchronous>, transform_indices = @transform_3, window_bounds = array<i64: 256, 512>}, {pipeline_mode = #tpu.pipeline_mode<synchronous>, transform_indices = @transform_4, window_bounds = array<i64: 1, 512>}, {pipeline_mode = #tpu.pipeline_mode<synchronous>, transform_indices = @transform_5, window_bounds = array<i64: 512, 1024>}, {pipeline_mode = #tpu.pipeline_mode<synchronous>, transform_indices = @transform_6, window_bounds = array<i64: 1, 1024>}, {pipeline_mode = #tpu.pipeline_mode<synchronous>, transform_indices = @transform_7, window_bounds = array<i64: 1024, 896>}, {pipeline_mode = #tpu.pipeline_mode<synchronous>, transform_indices = @transform_8, window_bounds = array<i64: 1, 896>}, {transform_indices = @transform_9, window_bounds = array<i64: 8, 896>}]} {
    %c0 = arith.constant 0 : index
    %c0_0 = arith.constant 0 : index
    %0 = vector.load %arg1[%c0, %c0_0] : memref<8x256xbf16, #tpu.memory_space<vmem>>, vector<8x256xbf16>
    %c0_1 = arith.constant 0 : index
    %c0_2 = arith.constant 0 : index
    %1 = vector.load %arg2[%c0_1, %c0_2] : memref<256x256xbf16, #tpu.memory_space<vmem>>, vector<256x256xbf16>
    %cst = arith.constant dense<0.000000e+00> : vector<8x256xf32>
    %2 = tpu.matmul %0, %1, %cst {dimension_numbers = #tpu.dot_dimension_numbers<[1], [0], [0], [1], [0, 0, 1, 1], [], []>} : vector<8x256xbf16>, vector<256x256xbf16>, vector<8x256xf32> -> vector<8x256xf32>
    %c0_3 = arith.constant 0 : index
    %c0_4 = arith.constant 0 : index
    %3 = vector.load %arg3[%c0_3, %c0_4] : memref<1x256xf32, #tpu.memory_space<vmem>>, vector<1x256xf32>
    %4 = vector.broadcast %3 : vector<1x256xf32> to vector<8x256xf32>
    %5 = arith.addf %2, %4 : vector<8x256xf32>
    %6 = arith.truncf %5 : vector<8x256xf32> to vector<8x256xbf16>
    %cst_5 = arith.constant 0.000000e+00 : bf16
    %7 = vector.broadcast %cst_5 : bf16 to vector<8x256xbf16>
    %8 = arith.cmpf ogt, %6, %7 : vector<8x256xbf16>
    %cst_6 = arith.constant 2.001950e-01 : bf16
    %9 = vector.broadcast %cst_6 : bf16 to vector<8x256xbf16>
    %10 = arith.mulf %9, %6 : vector<8x256xbf16>
    %11 = arith.select %8, %6, %10 : vector<8x256xi1>, vector<8x256xbf16>
    %c0_7 = arith.constant 0 : index
    %c0_8 = arith.constant 0 : index
    %12 = vector.load %arg4[%c0_7, %c0_8] : memref<256x512xbf16, #tpu.memory_space<vmem>>, vector<256x512xbf16>
    %cst_9 = arith.constant dense<0.000000e+00> : vector<8x512xf32>
    %13 = tpu.matmul %11, %12, %cst_9 {dimension_numbers = #tpu.dot_dimension_numbers<[1], [0], [0], [1], [0, 0, 1, 1], [], []>} : vector<8x256xbf16>, vector<256x512xbf16>, vector<8x512xf32> -> vector<8x512xf32>
    %c0_10 = arith.constant 0 : index
    %c0_11 = arith.constant 0 : index
    %14 = vector.load %arg5[%c0_10, %c0_11] : memref<1x512xf32, #tpu.memory_space<vmem>>, vector<1x512xf32>
    %15 = vector.broadcast %14 : vector<1x512xf32> to vector<8x512xf32>
    %16 = arith.addf %13, %15 : vector<8x512xf32>
    %17 = arith.truncf %16 : vector<8x512xf32> to vector<8x512xbf16>
    %cst_12 = arith.constant 0.000000e+00 : bf16
    %18 = vector.broadcast %cst_12 : bf16 to vector<8x512xbf16>
    %19 = arith.cmpf ogt, %17, %18 : vector<8x512xbf16>
    %cst_13 = arith.constant 2.001950e-01 : bf16
    %20 = vector.broadcast %cst_13 : bf16 to vector<8x512xbf16>
    %21 = arith.mulf %20, %17 : vector<8x512xbf16>
    %22 = arith.select %19, %17, %21 : vector<8x512xi1>, vector<8x512xbf16>
    %c0_14 = arith.constant 0 : index
    %c0_15 = arith.constant 0 : index
    %23 = vector.load %arg6[%c0_14, %c0_15] : memref<512x1024xbf16, #tpu.memory_space<vmem>>, vector<512x1024xbf16>
    %cst_16 = arith.constant dense<0.000000e+00> : vector<8x1024xf32>
    %24 = tpu.matmul %22, %23, %cst_16 {dimension_numbers = #tpu.dot_dimension_numbers<[1], [0], [0], [1], [0, 0, 1, 1], [], []>} : vector<8x512xbf16>, vector<512x1024xbf16>, vector<8x1024xf32> -> vector<8x1024xf32>
    %c0_17 = arith.constant 0 : index
    %c0_18 = arith.constant 0 : index
    %25 = vector.load %arg7[%c0_17, %c0_18] : memref<1x1024xf32, #tpu.memory_space<vmem>>, vector<1x1024xf32>
    %26 = vector.broadcast %25 : vector<1x1024xf32> to vector<8x1024xf32>
    %27 = arith.addf %24, %26 : vector<8x1024xf32>
    %28 = arith.truncf %27 : vector<8x1024xf32> to vector<8x1024xbf16>
    %cst_19 = arith.constant 0.000000e+00 : bf16
    %29 = vector.broadcast %cst_19 : bf16 to vector<8x1024xbf16>
    %30 = arith.cmpf ogt, %28, %29 : vector<8x1024xbf16>
    %cst_20 = arith.constant 2.001950e-01 : bf16
    %31 = vector.broadcast %cst_20 : bf16 to vector<8x1024xbf16>
    %32 = arith.mulf %31, %28 : vector<8x1024xbf16>
    %33 = arith.select %30, %28, %32 : vector<8x1024xi1>, vector<8x1024xbf16>
    %c0_21 = arith.constant 0 : index
    %c0_22 = arith.constant 0 : index
    %34 = vector.load %arg8[%c0_21, %c0_22] : memref<1024x896xbf16, #tpu.memory_space<vmem>>, vector<1024x896xbf16>
    %cst_23 = arith.constant dense<0.000000e+00> : vector<8x896xf32>
    %35 = tpu.matmul %33, %34, %cst_23 {dimension_numbers = #tpu.dot_dimension_numbers<[1], [0], [0], [1], [0, 0, 1, 1], [], []>} : vector<8x1024xbf16>, vector<1024x896xbf16>, vector<8x896xf32> -> vector<8x896xf32>
    %c0_24 = arith.constant 0 : index
    %c0_25 = arith.constant 0 : index
    %36 = vector.load %arg9[%c0_24, %c0_25] : memref<1x896xf32, #tpu.memory_space<vmem>>, vector<1x896xf32>
    %37 = vector.broadcast %36 : vector<1x896xf32> to vector<8x896xf32>
    %38 = arith.addf %35, %37 : vector<8x896xf32>
    %cst_26 = arith.constant 0.000000e+00 : f32
    %39 = vector.broadcast %cst_26 : f32 to vector<8x896xf32>
    %40 = arith.subf %39, %38 : vector<8x896xf32>
    %41 = math.exp %40 : vector<8x896xf32>
    %cst_27 = arith.constant 1.000000e+00 : f32
    %42 = vector.broadcast %cst_27 : f32 to vector<8x896xf32>
    %43 = arith.addf %42, %41 : vector<8x896xf32>
    %44 = tpu.reciprocal %43 {approx = true} : vector<8x896xf32> -> vector<8x896xf32>
    %c0_28 = arith.constant 0 : index
    %c0_29 = arith.constant 0 : index
    %45 = vector.load %arg10[%c0_28, %c0_29] : memref<8x896xf32, #tpu.memory_space<vmem>>, vector<8x896xf32>
    tpu.vector_store %arg10[%c0_28, %c0_29], %44 {strides = array<i32>} : memref<8x896xf32, #tpu.memory_space<vmem>>, vector<8x896xf32>,
    return
  }
  func.func @transform_0(%arg0: i32) -> (i32, i32) {
    %c0_i32 = arith.constant 0 : i32
    %c0_i32_0 = arith.constant 0 : i32
    return %arg0, %c0_i32 : i32, i32
  }
  func.func @transform_1(%arg0: i32) -> (i32, i32) {
    %c0_i32 = arith.constant 0 : i32
    %c0_i32_0 = arith.constant 0 : i32
    %c0_i32_1 = arith.constant 0 : i32
    return %c0_i32, %c0_i32_0 : i32, i32
  }
  func.func @transform_2(%arg0: i32) -> (i32, i32) {
    %c0_i32 = arith.constant 0 : i32
    %c0_i32_0 = arith.constant 0 : i32
    %c0_i32_1 = arith.constant 0 : i32
    return %c0_i32, %c0_i32_0 : i32, i32
  }
  func.func @transform_3(%arg0: i32) -> (i32, i32) {
    %c0_i32 = arith.constant 0 : i32
    %c0_i32_0 = arith.constant 0 : i32
    %c0_i32_1 = arith.constant 0 : i32
    return %c0_i32, %c0_i32_0 : i32, i32
  }
  func.func @transform_4(%arg0: i32) -> (i32, i32) {
    %c0_i32 = arith.constant 0 : i32
    %c0_i32_0 = arith.constant 0 : i32
    %c0_i32_1 = arith.constant 0 : i32
    return %c0_i32, %c0_i32_0 : i32, i32
  }
  func.func @transform_5(%arg0: i32) -> (i32, i32) {
    %c0_i32 = arith.constant 0 : i32
    %c0_i32_0 = arith.constant 0 : i32
    %c0_i32_1 = arith.constant 0 : i32
    return %c0_i32, %c0_i32_0 : i32, i32
  }
  func.func @transform_6(%arg0: i32) -> (i32, i32) {
    %c0_i32 = arith.constant 0 : i32
    %c0_i32_0 = arith.constant 0 : i32
    %c0_i32_1 = arith.constant 0 : i32
    return %c0_i32, %c0_i32_0 : i32, i32
  }
  func.func @transform_7(%arg0: i32) -> (i32, i32) {
    %c0_i32 = arith.constant 0 : i32
    %c0_i32_0 = arith.constant 0 : i32
    %c0_i32_1 = arith.constant 0 : i32
    return %c0_i32, %c0_i32_0 : i32, i32
  }
  func.func @transform_8(%arg0: i32) -> (i32, i32) {
    %c0_i32 = arith.constant 0 : i32
    %c0_i32_0 = arith.constant 0 : i32
    %c0_i32_1 = arith.constant 0 : i32
    return %c0_i32, %c0_i32_0 : i32, i32
  }
  func.func @transform_9(%arg0: i32) -> (i32, i32) {
    %c0_i32 = arith.constant 0 : i32
    %c0_i32_0 = arith.constant 0 : i32
    return %arg0, %c0_i32 : i32, i32
  }
}

</mosaic_0001>

<llo_original>
// kernel: _forward_impl.1
$region0: #{_forward_impl.1}
  #allocation0 [shape = 'u32[]', space=smem, size = 0x4, offset = 0x4, fixed_abs, tag = 'smem constant byte address 0x4 - core index']
  #allocation1 [shape = 'u32[144,128]{1,0:T(1,128)}', space=vmem, size = 0x12000, scoped, tag = 'internal scratch']
  %s0 = inlined_call_operand.vmem [shape: bf16[8,256], index: 0, kind: input, shape index: {}]
  %s1 = inlined_call_operand.hbm [shape: bf16[256,256], index: 1, kind: input, shape index: {}]
  %s2 = inlined_call_operand.hbm [shape: f32[1,256], index: 2, kind: input, shape index: {}]
  %s3 = inlined_call_operand.hbm [shape: bf16[256,512], index: 3, kind: input, shape index: {}]
  %s4 = inlined_call_operand.hbm [shape: f32[1,512], index: 4, kind: input, shape index: {}]
  %s5 = inlined_call_operand.hbm [shape: bf16[512,1024], index: 5, kind: input, shape index: {}]
  %s6 = inlined_call_operand.hbm [shape: f32[1,1024], index: 6, kind: input, shape index: {}]
  %s7 = inlined_call_operand.hbm [shape: bf16[1024,896], index: 7, kind: input, shape index: {}]
  %s8 = inlined_call_operand.hbm [shape: f32[1,896], index: 8, kind: input, shape index: {}]
  %s9 = inlined_call_operand.vmem [shape: f32[8,896], index: 9, kind: output, shape index: {}]
  %s10 = sld [smem:[#allocation0]]
  $region78: #{_forward_impl.1} parent=0
    _
  %s12 = ssub.s32 1, %s10
  %s13 = scalar_select 0, %s12, %s10
  $region1: #{_forward_impl.1} parent=0
    #allocation2 [shape = 'u8[131072]{0}', space=vmem, size = 0x20000, scoped, tag = 'input window, operand 1, single buffered']
    #allocation3 [shape = 's32[1]{0}', space=sflag, size = 0x4, scoped, tag = 'scoped memory for _forward_impl.1']
    #allocation4 [shape = 'u8[1024]{0}', space=vmem, size = 0x400, scoped, tag = 'input window, operand 2, single buffered']
    #allocation5 [shape = 's32[1]{0}', space=sflag, size = 0x4, scoped, tag = 'scoped memory for _forward_impl.1']
    #allocation6 [shape = 'u8[262144]{0}', space=vmem, size = 0x40000, scoped, tag = 'input window, operand 3, single buffered']
    #allocation7 [shape = 'u8[2048]{0}', space=vmem, size = 0x800, scoped, tag = 'input window, operand 4, single buffered']
    #allocation8 [shape = 's32[1]{0}', space=sflag, size = 0x4, scoped, tag = 'scoped memory for _forward_impl.1']
    #allocation9 [shape = 'u8[1048576]{0}', space=vmem, size = 0x100000, scoped, tag = 'input window, operand 5, single buffered']
    #allocation10 [shape = 'u8[4096]{0}', space=vmem, size = 0x1000, scoped, tag = 'input window, operand 6, single buffered']
    #allocation11 [shape = 's32[1]{0}', space=sflag, size = 0x4, scoped, tag = 'scoped memory for _forward_impl.1']
    #allocation12 [shape = 'u8[1835008]{0}', space=vmem, size = 0x1c0000, scoped, tag = 'input window, operand 7, single buffered']
    #allocation13 [shape = 'u8[3584]{0}', space=vmem, size = 0x1000, scoped, tag = 'input window, operand 8, single buffered']
    #allocation14 [shape = 's32[1]{0}', space=sflag, size = 0x4, scoped, tag = 'scoped memory for _forward_impl.1']
    %14 = vsyncpa [#allocation3], 0
    %15 = vsyncpa [#allocation5], 0
    %16 = vsyncpa [#allocation8], 0
    %17 = vsyncpa [#allocation11], 0
    %18 = vsyncpa [#allocation14], 0
    // Predicated region
    $region2: #{_forward_impl.1} parent=1 // pred_check
      _
    $region3: #{_forward_impl.1} parent=1 // pred_check_branch
      %20 = sbr.rel (0) target = $region5
    $region4: #{_forward_impl.1} parent=1 // pred_region
      _
    $region5: #{_forward_impl.1} parent=1 // pred_fallthru
      _
    // Predicated region
    $region6: #{_forward_impl.1} parent=1 // pred_check
      _
    $region7: #{_forward_impl.1} parent=1 // pred_check_branch
      %22 = sbr.rel (0) target = $region9
    $region8: #{_forward_impl.1} parent=1 // pred_region
      %s24 = ssub.s32 4096, 4096
      %25 = vsyncadd [#allocation3], %s24
      %s26 = sshll.u32 [#allocation2], 4
      %s27 = int_to_ptr.vmem [resolvable:$true] %s26
      %32 = dma.hbm_to_vmem [thread:$0]  %s1, 4096, %s27, [#allocation3], 128, 128, 8
    $region9: #{_forward_impl.1} parent=1 // pred_fallthru
      _
    // Predicated region
    $region10: #{_forward_impl.1} parent=1 // pred_check
      _
    $region11: #{_forward_impl.1} parent=1 // pred_check_branch
      %34 = sbr.rel (0) target = $region13
    $region12: #{_forward_impl.1} parent=1 // pred_region
      %s36 = ssub.s32 32, 32
      %37 = vsyncadd [#allocation5], %s36
      %s39 = sshll.u32 [#allocation4], 4
      %s40 = int_to_ptr.vmem [resolvable:$true] %s39
      %42 = dma.hbm_to_vmem [thread:$0]  %s2, 32, %s40, [#allocation5]
    $region13: #{_forward_impl.1} parent=1 // pred_fallthru
      _
    // Predicated region
    $region14: #{_forward_impl.1} parent=1 // pred_check
      _
    $region15: #{_forward_impl.1} parent=1 // pred_check_branch
      %44 = sbr.rel (0) target = $region17
    $region16: #{_forward_impl.1} parent=1 // pred_region
      %s46 = ssub.s32 8192, 8192
      %47 = vsyncadd [#allocation5], %s46
      %s48 = sshll.u32 [#allocation6], 4
      %s49 = int_to_ptr.vmem [resolvable:$true] %s48
      %54 = dma.hbm_to_vmem [thread:$0]  %s3, 8192, %s49, [#allocation5], 256, 256, 16
    $region17: #{_forward_impl.1} parent=1 // pred_fallthru
      _
    // Predicated region
    $region18: #{_forward_impl.1} parent=1 // pred_check
      _
    $region19: #{_forward_impl.1} parent=1 // pred_check_branch
      %56 = sbr.rel (0) target = $region21
    $region20: #{_forward_impl.1} parent=1 // pred_region
      %s58 = ssub.s32 64, 64
      %59 = vsyncadd [#allocation8], %s58
      %s61 = sshll.u32 [#allocation7], 4
      %s62 = int_to_ptr.vmem [resolvable:$true] %s61
      %64 = dma.hbm_to_vmem [thread:$0]  %s4, 64, %s62, [#allocation8]
    $region21: #{_forward_impl.1} parent=1 // pred_fallthru
      _
    // Predicated region
    $region22: #{_forward_impl.1} parent=1 // pred_check
      _
    $region23: #{_forward_impl.1} parent=1 // pred_check_branch
      %66 = sbr.rel (0) target = $region25
    $region24: #{_forward_impl.1} parent=1 // pred_region
      %s68 = ssub.s32 32768, 32768
      %69 = vsyncadd [#allocation8], %s68
      %s70 = sshll.u32 [#allocation9], 4
      %s71 = int_to_ptr.vmem [resolvable:$true] %s70
      %76 = dma.hbm_to_vmem [thread:$0]  %s5, 32768, %s71, [#allocation8], 512, 512, 32
    $region25: #{_forward_impl.1} parent=1 // pred_fallthru
      _
    // Predicated region
    $region26: #{_forward_impl.1} parent=1 // pred_check
      _
    $region27: #{_forward_impl.1} parent=1 // pred_check_branch
      %78 = sbr.rel (0) target = $region29
    $region28: #{_forward_impl.1} parent=1 // pred_region
      %s80 = ssub.s32 128, 128
      %81 = vsyncadd [#allocation11], %s80
      %s83 = sshll.u32 [#allocation10], 4
      %s84 = int_to_ptr.vmem [resolvable:$true] %s83
      %86 = dma.hbm_to_vmem [thread:$0]  %s6, 128, %s84, [#allocation11]
    $region29: #{_forward_impl.1} parent=1 // pred_fallthru
      _
    // Predicated region
    $region30: #{_forward_impl.1} parent=1 // pred_check
      _
    $region31: #{_forward_impl.1} parent=1 // pred_check_branch
      %88 = sbr.rel (0) target = $region33
    $region32: #{_forward_impl.1} parent=1 // pred_region
      %s90 = ssub.s32 57344, 57344
      %91 = vsyncadd [#allocation11], %s90
      %s92 = sshll.u32 [#allocation12], 4
      %s93 = int_to_ptr.vmem [resolvable:$true] %s92
      %98 = dma.hbm_to_vmem [thread:$0]  %s7, 57344, %s93, [#allocation11], 448, 448, 28
    $region33: #{_forward_impl.1} parent=1 // pred_fallthru
      _
    // Predicated region
    $region34: #{_forward_impl.1} parent=1 // pred_check
      _
    $region35: #{_forward_impl.1} parent=1 // pred_check_branch
      %100 = sbr.rel (0) target = $region37
    $region36: #{_forward_impl.1} parent=1 // pred_region
      %s102 = ssub.s32 112, 112
      %103 = vsyncadd [#allocation14], %s102
      %s105 = sshll.u32 [#allocation13], 4
      %s106 = int_to_ptr.vmem [resolvable:$true] %s105
      %108 = dma.hbm_to_vmem [thread:$0]  %s8, 112, %s106, [#allocation14]
    $region37: #{_forward_impl.1} parent=1 // pred_fallthru
      _
    // Predicated region
    $region38: #{_forward_impl.1} parent=1 // pred_check
      _
    $region39: #{_forward_impl.1} parent=1 // pred_check_branch
      %110 = sbr.rel (0) target = $region41
    $region40: #{_forward_impl.1} parent=1 // pred_region
      %111 = dma.done [#allocation3], 4096
    $region41: #{_forward_impl.1} parent=1 // pred_fallthru
      _
    // Predicated region
    $region42: #{_forward_impl.1} parent=1 // pred_check
      _
    $region43: #{_forward_impl.1} parent=1 // pred_check_branch
      %113 = sbr.rel (0) target = $region45
    $region44: #{_forward_impl.1} parent=1 // pred_region
      %114 = dma.done [#allocation5], 32
    $region45: #{_forward_impl.1} parent=1 // pred_fallthru
      _
    // Predicated region
    $region46: #{_forward_impl.1} parent=1 // pred_check
      _
    $region47: #{_forward_impl.1} parent=1 // pred_check_branch
      %116 = sbr.rel (0) target = $region49
    $region48: #{_forward_impl.1} parent=1 // pred_region
      %117 = dma.done [#allocation5], 8192
    $region49: #{_forward_impl.1} parent=1 // pred_fallthru
      _
    // Predicated region
    $region50: #{_forward_impl.1} parent=1 // pred_check
      _
    $region51: #{_forward_impl.1} parent=1 // pred_check_branch
      %119 = sbr.rel (0) target = $region53
    $region52: #{_forward_impl.1} parent=1 // pred_region
      %120 = dma.done [#allocation8], 64
    $region53: #{_forward_impl.1} parent=1 // pred_fallthru
      _
    // Predicated region
    $region54: #{_forward_impl.1} parent=1 // pred_check
      _
    $region55: #{_forward_impl.1} parent=1 // pred_check_branch
      %122 = sbr.rel (0) target = $region57
    $region56: #{_forward_impl.1} parent=1 // pred_region
      %123 = dma.done [#allocation8], 32768
    $region57: #{_forward_impl.1} parent=1 // pred_fallthru
      _
    // Predicated region
    $region58: #{_forward_impl.1} parent=1 // pred_check
      _
    $region59: #{_forward_impl.1} parent=1 // pred_check_branch
      %125 = sbr.rel (0) target = $region61
    $region60: #{_forward_impl.1} parent=1 // pred_region
      %126 = dma.done [#allocation11], 128
    $region61: #{_forward_impl.1} parent=1 // pred_fallthru
      _
    // Predicated region
    $region62: #{_forward_impl.1} parent=1 // pred_check
      _
    $region63: #{_forward_impl.1} parent=1 // pred_check_branch
      %128 = sbr.rel (0) target = $region65
    $region64: #{_forward_impl.1} parent=1 // pred_region
      %129 = dma.done [#allocation11], 57344
    $region65: #{_forward_impl.1} parent=1 // pred_fallthru
      _
    // Predicated region
    $region66: #{_forward_impl.1} parent=1 // pred_check
      _
    $region67: #{_forward_impl.1} parent=1 // pred_check_branch
      %131 = sbr.rel (0) target = $region69
    $region68: #{_forward_impl.1} parent=1 // pred_region
      %132 = dma.done [#allocation14], 112
    $region69: #{_forward_impl.1} parent=1 // pred_fallthru
      _
    %v135 = vld [vmem:[%s0] sm:$0xff]
    %v136 = vld [vmem:[#allocation2] sm:$0xff]
    %v137 = vld [vmem:[#allocation2 + $0x8] sm:$0xff]
    %v138 = vld [vmem:[#allocation2 + $0x10] sm:$0xff]
    %v139 = vld [vmem:[#allocation2 + $0x18] sm:$0xff]
    %v140 = vld [vmem:[#allocation2 + $0x20] sm:$0xff]
    %v141 = vld [vmem:[#allocation2 + $0x28] sm:$0xff]
    %v142 = vld [vmem:[#allocation2 + $0x30] sm:$0xff]
    %v143 = vld [vmem:[#allocation2 + $0x38] sm:$0xff]
    %v144 = vld [vmem:[#allocation2 + $0x40] sm:$0xff]
    %v145 = vld [vmem:[#allocation2 + $0x48] sm:$0xff]
    %v146 = vld [vmem:[#allocation2 + $0x50] sm:$0xff]
    %v147 = vld [vmem:[#allocation2 + $0x58] sm:$0xff]
    %v148 = vld [vmem:[#allocation2 + $0x60] sm:$0xff]
    %v149 = vld [vmem:[#allocation2 + $0x68] sm:$0xff]
    %v150 = vld [vmem:[#allocation2 + $0x70] sm:$0xff]
    %v151 = vld [vmem:[#allocation2 + $0x78] sm:$0xff]
    %v152 = vld [vmem:[#allocation2 + $0x80] sm:$0xff]
    %v153 = vld [vmem:[#allocation2 + $0x88] sm:$0xff]
    %v154 = vld [vmem:[#allocation2 + $0x90] sm:$0xff]
    %v155 = vld [vmem:[#allocation2 + $0x98] sm:$0xff]
    %v156 = vld [vmem:[#allocation2 + $0xa0] sm:$0xff]
    %v157 = vld [vmem:[#allocation2 + $0xa8] sm:$0xff]
    %v158 = vld [vmem:[#allocation2 + $0xb0] sm:$0xff]
    %v159 = vld [vmem:[#allocation2 + $0xb8] sm:$0xff]
    %v160 = vld [vmem:[#allocation2 + $0xc0] sm:$0xff]
    %v161 = vld [vmem:[#allocation2 + $0xc8] sm:$0xff]
    %v162 = vld [vmem:[#allocation2 + $0xd0] sm:$0xff]
    %v163 = vld [vmem:[#allocation2 + $0xd8] sm:$0xff]
    %v164 = vld [vmem:[#allocation2 + $0xe0] sm:$0xff]
    %v165 = vld [vmem:[#allocation2 + $0xe8] sm:$0xff]
    %v166 = vld [vmem:[#allocation2 + $0xf0] sm:$0xff]
    %v167 = vld [vmem:[#allocation2 + $0xf8] sm:$0xff]
    %v168 = vld [vmem:[#allocation4] sm:$0x3]
    %v170 = vlaneseq
    %v171 = vshrl.u32 %v170, 7
    %v172 = vsub.s32 0, %v171
    %v173 = vrot.slane %v168, %v172
    %v174 = vlaneseq
    %v175 = vshrl.u32 %v174, 7
    %v176 = vsub.s32 1, %v175
    %v177 = vrot.slane %v168, %v176
    %v181 = vunpack.c.l.b16 %v135
    %v182 = vunpack.c.h.b16 %v135
    %v183 = vpack.c.b16 %v181, %v181
    %v184 = vpack.c.b16 %v182, %v182
    %v219 = vunpack.c.l.b16 %v136
    %v220 = vunpack.c.h.b16 %v136
    %v221 = vunpack.c.l.b16 %v137
    %v222 = vunpack.c.h.b16 %v137
    %v223 = vunpack.c.l.b16 %v138
    %v224 = vunpack.c.h.b16 %v138
    %v225 = vunpack.c.l.b16 %v139
    %v226 = vunpack.c.h.b16 %v139
    %v227 = vunpack.c.l.b16 %v140
    %v228 = vunpack.c.h.b16 %v140
    %v229 = vunpack.c.l.b16 %v141
    %v230 = vunpack.c.h.b16 %v141
    %v231 = vunpack.c.l.b16 %v142
    %v232 = vunpack.c.h.b16 %v142
    %v233 = vunpack.c.l.b16 %v143
    %v234 = vunpack.c.h.b16 %v143
    %v235 = vunpack.c.l.b16 %v144
    %v236 = vunpack.c.h.b16 %v144
    %v237 = vunpack.c.l.b16 %v145
    %v238 = vunpack.c.h.b16 %v145
    %v239 = vunpack.c.l.b16 %v146
    %v240 = vunpack.c.h.b16 %v146
    %v241 = vunpack.c.l.b16 %v147
    %v242 = vunpack.c.h.b16 %v147
    %v243 = vunpack.c.l.b16 %v148
    %v244 = vunpack.c.h.b16 %v148
    %v245 = vunpack.c.l.b16 %v149
    %v246 = vunpack.c.h.b16 %v149
    %v247 = vunpack.c.l.b16 %v150
    %v248 = vunpack.c.h.b16 %v150
    %v249 = vunpack.c.l.b16 %v151
    %v250 = vunpack.c.h.b16 %v151
    %v251 = vunpack.c.l.b16 %v152
    %v252 = vunpack.c.h.b16 %v152
    %v253 = vunpack.c.l.b16 %v153
    %v254 = vunpack.c.h.b16 %v153
    %v255 = vunpack.c.l.b16 %v154
    %v256 = vunpack.c.h.b16 %v154
    %v257 = vunpack.c.l.b16 %v155
    %v258 = vunpack.c.h.b16 %v155
    %v259 = vunpack.c.l.b16 %v156
    %v260 = vunpack.c.h.b16 %v156
    %v261 = vunpack.c.l.b16 %v157
    %v262 = vunpack.c.h.b16 %v157
    %v263 = vunpack.c.l.b16 %v158
    %v264 = vunpack.c.h.b16 %v158
    %v265 = vunpack.c.l.b16 %v159
    %v266 = vunpack.c.h.b16 %v159
    %v267 = vunpack.c.l.b16 %v160
    %v268 = vunpack.c.h.b16 %v160
    %v269 = vunpack.c.l.b16 %v161
    %v270 = vunpack.c.h.b16 %v161
    %v271 = vunpack.c.l.b16 %v162
    %v272 = vunpack.c.h.b16 %v162
    %v273 = vunpack.c.l.b16 %v163
    %v274 = vunpack.c.h.b16 %v163
    %v275 = vunpack.c.l.b16 %v164
    %v276 = vunpack.c.h.b16 %v164
    %v277 = vunpack.c.l.b16 %v165
    %v278 = vunpack.c.h.b16 %v165
    %v279 = vunpack.c.l.b16 %v166
    %v280 = vunpack.c.h.b16 %v166
    %v281 = vunpack.c.l.b16 %v167
    %v282 = vunpack.c.h.b16 %v167
    %v283 = vpack.c.b16 %v221, %v219
    %v284 = vpack.c.b16 %v222, %v220
    %v285 = vpack.c.b16 %v225, %v223
    %v286 = vpack.c.b16 %v226, %v224
    %v287 = vpack.c.b16 %v229, %v227
    %v288 = vpack.c.b16 %v230, %v228
    %v289 = vpack.c.b16 %v233, %v231
    %v290 = vpack.c.b16 %v234, %v232
    %v291 = vpack.c.b16 %v237, %v235
    %v292 = vpack.c.b16 %v238, %v236
    %v293 = vpack.c.b16 %v241, %v239
    %v294 = vpack.c.b16 %v242, %v240
    %v295 = vpack.c.b16 %v245, %v243
    %v296 = vpack.c.b16 %v246, %v244
    %v297 = vpack.c.b16 %v249, %v247
    %v298 = vpack.c.b16 %v250, %v248
    %v299 = vpack.c.b16 %v253, %v251
    %v300 = vpack.c.b16 %v254, %v252
    %v301 = vpack.c.b16 %v257, %v255
    %v302 = vpack.c.b16 %v258, %v256
    %v303 = vpack.c.b16 %v261, %v259
    %v304 = vpack.c.b16 %v262, %v260
    %v305 = vpack.c.b16 %v265, %v263
    %v306 = vpack.c.b16 %v266, %v264
    %v307 = vpack.c.b16 %v269, %v267
    %v308 = vpack.c.b16 %v270, %v268
    %v309 = vpack.c.b16 %v273, %v271
    %v310 = vpack.c.b16 %v274, %v272
    %v311 = vpack.c.b16 %v277, %v275
    %v312 = vpack.c.b16 %v278, %v276
    %v313 = vpack.c.b16 %v281, %v279
    %v314 = vpack.c.b16 %v282, %v280
    %347 = vmatprep.subr.bf16.mxu0 %v284
    %348 = vmatpush1.bf16.msra.mxu0 %v283
    %349 = vmatprep.subr.bf16.mxu0 %v286
    %350 = vmatpush1.bf16.msra.mxu0 %v285
    %351 = vmatprep.subr.bf16.mxu0 %v288
    %352 = vmatpush1.bf16.msra.mxu0 %v287
    %353 = vmatprep.subr.bf16.mxu0 %v290
    %354 = vmatpush1.bf16.msra.mxu0 %v289
    %355 = vmatprep.subr.bf16.mxu0 %v292
    %356 = vmatpush1.bf16.msra.mxu0 %v291
    %357 = vmatprep.subr.bf16.mxu0 %v294
    %358 = vmatpush1.bf16.msra.mxu0 %v293
    %359 = vmatprep.subr.bf16.mxu0 %v296
    %360 = vmatpush1.bf16.msra.mxu0 %v295
    %361 = vmatprep.subr.bf16.mxu0 %v298
    %362 = vmatpush1.bf16.msra.mxu0 %v297
    %363 = vmatprep.subr.bf16.mxu0 %v300
    %364 = vmatpush1.bf16.msra.mxu0 %v299
    %365 = vmatprep.subr.bf16.mxu0 %v302
    %366 = vmatpush1.bf16.msra.mxu0 %v301
    %367 = vmatprep.subr.bf16.mxu0 %v304
    %368 = vmatpush1.bf16.msra.mxu0 %v303
    %369 = vmatprep.subr.bf16.mxu0 %v306
    %370 = vmatpush1.bf16.msra.mxu0 %v305
    %371 = vmatprep.subr.bf16.mxu0 %v308
    %372 = vmatpush1.bf16.msra.mxu0 %v307
    %373 = vmatprep.subr.bf16.mxu0 %v310
    %374 = vmatpush1.bf16.msra.mxu0 %v309
    %375 = vmatprep.subr.bf16.mxu0 %v312
    %376 = vmatpush1.bf16.msra.mxu0 %v311
    %377 = vmatprep.subr.bf16.mxu0 %v314
    %378 = vmatpush1.bf16.msra.mxu0 %v313
    %379 = vmatprep.mubr.bf16.mxu0 %v184
    %380 = vmatmul.mubr.bf16.gmra.mrb[0].mxu0 %v183
    %v381 = vpop.f32.mrb[0].mxu0
    %v382 = vadd.f32 %v173, %v381
    %v383 = vpop.f32.mrb[0].mxu0
    %v384 = vadd.f32 %v177, %v383
    %v385 = vpop.f32.mrb[0].mxu0
    %v386 = vpop.f32.mrb[0].mxu0
    %387 = vdwg.mxu0
    %v388 = vpack.c.bf16 %v382, %v382
    %v389 = vpack.c.bf16 %v384, %v384
    %vm390 = vcmp.gt.bf16.partialorder %v388, 0
    %vm391 = vcmp.gt.bf16.partialorder %v389, 0
    %v392 = vmul.bf16 %v388, 1045249613
    %v393 = vmul.bf16 %v389, 1045249613
    %v394 = vsel %vm390, %v388, %v392
    %v395 = vsel %vm391, %v389, %v393
    %v396 = vld [vmem:[#allocation6] sm:$0xff]
    %v397 = vld [vmem:[#allocation6 + $0x8] sm:$0xff]
    %v398 = vld [vmem:[#allocation6 + $0x10] sm:$0xff]
    %v399 = vld [vmem:[#allocation6 + $0x18] sm:$0xff]
    %v400 = vld [vmem:[#allocation6 + $0x20] sm:$0xff]
    %v401 = vld [vmem:[#allocation6 + $0x28] sm:$0xff]
    %v402 = vld [vmem:[#allocation6 + $0x30] sm:$0xff]
    %v403 = vld [vmem:[#allocation6 + $0x38] sm:$0xff]
    %v404 = vld [vmem:[#allocation6 + $0x40] sm:$0xff]
    %v405 = vld [vmem:[#allocation6 + $0x48] sm:$0xff]
    %v406 = vld [vmem:[#allocation6 + $0x50] sm:$0xff]
    %v407 = vld [vmem:[#allocation6 + $0x58] sm:$0xff]
    %v408 = vld [vmem:[#allocation6 + $0x60] sm:$0xff]
    %v409 = vld [vmem:[#allocation6 + $0x68] sm:$0xff]
    %v410 = vld [vmem:[#allocation6 + $0x70] sm:$0xff]
    %v411 = vld [vmem:[#allocation6 + $0x78] sm:$0xff]
    %v412 = vld [vmem:[#allocation6 + $0x80] sm:$0xff]
    %v413 = vld [vmem:[#allocation6 + $0x88] sm:$0xff]
    %v414 = vld [vmem:[#allocation6 + $0x90] sm:$0xff]
    %v415 = vld [vmem:[#allocation6 + $0x98] sm:$0xff]
    %v416 = vld [vmem:[#allocation6 + $0xa0] sm:$0xff]
    %v417 = vld [vmem:[#allocation6 + $0xa8] sm:$0xff]
    %v418 = vld [vmem:[#allocation6 + $0xb0] sm:$0xff]
    %v419 = vld [vmem:[#allocation6 + $0xb8] sm:$0xff]
    %v420 = vld [vmem:[#allocation6 + $0xc0] sm:$0xff]
    %v421 = vld [vmem:[#allocation6 + $0xc8] sm:$0xff]
    %v422 = vld [vmem:[#allocation6 + $0xd0] sm:$0xff]
    %v423 = vld [vmem:[#allocation6 + $0xd8] sm:$0xff]
    %v424 = vld [vmem:[#allocation6 + $0xe0] sm:$0xff]
    %v425 = vld [vmem:[#allocation6 + $0xe8] sm:$0xff]
    %v426 = vld [vmem:[#allocation6 + $0xf0] sm:$0xff]
    %v427 = vld [vmem:[#allocation6 + $0xf8] sm:$0xff]
    %v428 = vld [vmem:[#allocation6 + $0x100] sm:$0xff]
    %v429 = vld [vmem:[#allocation6 + $0x108] sm:$0xff]
    %v430 = vld [vmem:[#allocation6 + $0x110] sm:$0xff]
    %v431 = vld [vmem:[#allocation6 + $0x118] sm:$0xff]
    %v432 = vld [vmem:[#allocation6 + $0x120] sm:$0xff]
    %v433 = vld [vmem:[#allocation6 + $0x128] sm:$0xff]
    %v434 = vld [vmem:[#allocation6 + $0x130] sm:$0xff]
    %v435 = vld [vmem:[#allocation6 + $0x138] sm:$0xff]
    %v436 = vld [vmem:[#allocation6 + $0x140] sm:$0xff]
    %v437 = vld [vmem:[#allocation6 + $0x148] sm:$0xff]
    %v438 = vld [vmem:[#allocation6 + $0x150] sm:$0xff]
    %v439 = vld [vmem:[#allocation6 + $0x158] sm:$0xff]
    %v440 = vld [vmem:[#allocation6 + $0x160] sm:$0xff]
    %v441 = vld [vmem:[#allocation6 + $0x168] sm:$0xff]
    %v442 = vld [vmem:[#allocation6 + $0x170] sm:$0xff]
    %v443 = vld [vmem:[#allocation6 + $0x178] sm:$0xff]
    %v444 = vld [vmem:[#allocation6 + $0x180] sm:$0xff]
    %v445 = vld [vmem:[#allocation6 + $0x188] sm:$0xff]
    %v446 = vld [vmem:[#allocation6 + $0x190] sm:$0xff]
    %v447 = vld [vmem:[#allocation6 + $0x198] sm:$0xff]
    %v448 = vld [vmem:[#allocation6 + $0x1a0] sm:$0xff]
    %v449 = vld [vmem:[#allocation6 + $0x1a8] sm:$0xff]
    %v450 = vld [vmem:[#allocation6 + $0x1b0] sm:$0xff]
    %v451 = vld [vmem:[#allocation6 + $0x1b8] sm:$0xff]
    %v452 = vld [vmem:[#allocation6 + $0x1c0] sm:$0xff]
    %v453 = vld [vmem:[#allocation6 + $0x1c8] sm:$0xff]
    %v454 = vld [vmem:[#allocation6 + $0x1d0] sm:$0xff]
    %v455 = vld [vmem:[#allocation6 + $0x1d8] sm:$0xff]
    %v456 = vld [vmem:[#allocation6 + $0x1e0] sm:$0xff]
    %v457 = vld [vmem:[#allocation6 + $0x1e8] sm:$0xff]
    %v458 = vld [vmem:[#allocation6 + $0x1f0] sm:$0xff]
    %v459 = vld [vmem:[#allocation6 + $0x1f8] sm:$0xff]
    %v460 = vld [vmem:[#allocation7] sm:$0xf]
    %v462 = vlaneseq
    %v463 = vshrl.u32 %v462, 7
    %v464 = vsub.s32 0, %v463
    %v465 = vrot.slane %v460, %v464
    %v466 = vlaneseq
    %v467 = vshrl.u32 %v466, 7
    %v468 = vsub.s32 1, %v467
    %v469 = vrot.slane %v460, %v468
    %v470 = vlaneseq
    %v471 = vshrl.u32 %v470, 7
    %v472 = vsub.s32 2, %v471
    %v473 = vrot.slane %v460, %v472
    %v474 = vlaneseq
    %v475 = vshrl.u32 %v474, 7
    %v476 = vsub.s32 3, %v475
    %v477 = vrot.slane %v460, %v476
    %v546 = vunpack.c.l.b16 %v396
    %v547 = vunpack.c.h.b16 %v396
    %v548 = vunpack.c.l.b16 %v397
    %v549 = vunpack.c.h.b16 %v397
    %v550 = vunpack.c.l.b16 %v398
    %v551 = vunpack.c.h.b16 %v398
    %v552 = vunpack.c.l.b16 %v399
    %v553 = vunpack.c.h.b16 %v399
    %v554 = vunpack.c.l.b16 %v400
    %v555 = vunpack.c.h.b16 %v400
    %v556 = vunpack.c.l.b16 %v401
    %v557 = vunpack.c.h.b16 %v401
    %v558 = vunpack.c.l.b16 %v402
    %v559 = vunpack.c.h.b16 %v402
    %v560 = vunpack.c.l.b16 %v403
    %v561 = vunpack.c.h.b16 %v403
    %v562 = vunpack.c.l.b16 %v404
    %v563 = vunpack.c.h.b16 %v404
    %v564 = vunpack.c.l.b16 %v405
    %v565 = vunpack.c.h.b16 %v405
    %v566 = vunpack.c.l.b16 %v406
    %v567 = vunpack.c.h.b16 %v406
    %v568 = vunpack.c.l.b16 %v407
    %v569 = vunpack.c.h.b16 %v407
    %v570 = vunpack.c.l.b16 %v408
    %v571 = vunpack.c.h.b16 %v408
    %v572 = vunpack.c.l.b16 %v409
    %v573 = vunpack.c.h.b16 %v409
    %v574 = vunpack.c.l.b16 %v410
    %v575 = vunpack.c.h.b16 %v410
    %v576 = vunpack.c.l.b16 %v411
    %v577 = vunpack.c.h.b16 %v411
    %v578 = vunpack.c.l.b16 %v412
    %v579 = vunpack.c.h.b16 %v412
    %v580 = vunpack.c.l.b16 %v413
    %v581 = vunpack.c.h.b16 %v413
    %v582 = vunpack.c.l.b16 %v414
    %v583 = vunpack.c.h.b16 %v414
    %v584 = vunpack.c.l.b16 %v415
    %v585 = vunpack.c.h.b16 %v415
    %v586 = vunpack.c.l.b16 %v416
    %v587 = vunpack.c.h.b16 %v416
    %v588 = vunpack.c.l.b16 %v417
    %v589 = vunpack.c.h.b16 %v417
    %v590 = vunpack.c.l.b16 %v418
    %v591 = vunpack.c.h.b16 %v418
    %v592 = vunpack.c.l.b16 %v419
    %v593 = vunpack.c.h.b16 %v419
    %v594 = vunpack.c.l.b16 %v420
    %v595 = vunpack.c.h.b16 %v420
    %v596 = vunpack.c.l.b16 %v421
    %v597 = vunpack.c.h.b16 %v421
    %v598 = vunpack.c.l.b16 %v422
    %v599 = vunpack.c.h.b16 %v422
    %v600 = vunpack.c.l.b16 %v423
    %v601 = vunpack.c.h.b16 %v423
    %v602 = vunpack.c.l.b16 %v424
    %v603 = vunpack.c.h.b16 %v424
    %v604 = vunpack.c.l.b16 %v425
    %v605 = vunpack.c.h.b16 %v425
    %v606 = vunpack.c.l.b16 %v426
    %v607 = vunpack.c.h.b16 %v426
    %v608 = vunpack.c.l.b16 %v427
    %v609 = vunpack.c.h.b16 %v427
    %v610 = vunpack.c.l.b16 %v428
    %v611 = vunpack.c.h.b16 %v428
    %v612 = vunpack.c.l.b16 %v429
    %v613 = vunpack.c.h.b16 %v429
    %v614 = vunpack.c.l.b16 %v430
    %v615 = vunpack.c.h.b16 %v430
    %v616 = vunpack.c.l.b16 %v431
    %v617 = vunpack.c.h.b16 %v431
    %v618 = vunpack.c.l.b16 %v432
    %v619 = vunpack.c.h.b16 %v432
    %v620 = vunpack.c.l.b16 %v433
    %v621 = vunpack.c.h.b16 %v433
    %v622 = vunpack.c.l.b16 %v434
    %v623 = vunpack.c.h.b16 %v434
    %v624 = vunpack.c.l.b16 %v435
    %v625 = vunpack.c.h.b16 %v435
    %v626 = vunpack.c.l.b16 %v436
    %v627 = vunpack.c.h.b16 %v436
    %v628 = vunpack.c.l.b16 %v437
    %v629 = vunpack.c.h.b16 %v437
    %v630 = vunpack.c.l.b16 %v438
    %v631 = vunpack.c.h.b16 %v438
    %v632 = vunpack.c.l.b16 %v439
    %v633 = vunpack.c.h.b16 %v439
    %v634 = vunpack.c.l.b16 %v440
    %v635 = vunpack.c.h.b16 %v440
    %v636 = vunpack.c.l.b16 %v441
    %v637 = vunpack.c.h.b16 %v441
    %v638 = vunpack.c.l.b16 %v442
    %v639 = vunpack.c.h.b16 %v442
    %v640 = vunpack.c.l.b16 %v443
    %v641 = vunpack.c.h.b16 %v443
    %v642 = vunpack.c.l.b16 %v444
    %v643 = vunpack.c.h.b16 %v444
    %v644 = vunpack.c.l.b16 %v445
    %v645 = vunpack.c.h.b16 %v445
    %v646 = vunpack.c.l.b16 %v446
    %v647 = vunpack.c.h.b16 %v446
    %v648 = vunpack.c.l.b16 %v447
    %v649 = vunpack.c.h.b16 %v447
    %v650 = vunpack.c.l.b16 %v448
    %v651 = vunpack.c.h.b16 %v448
    %v652 = vunpack.c.l.b16 %v449
    %v653 = vunpack.c.h.b16 %v449
    %v654 = vunpack.c.l.b16 %v450
    %v655 = vunpack.c.h.b16 %v450
    %v656 = vunpack.c.l.b16 %v451
    %v657 = vunpack.c.h.b16 %v451
    %v658 = vunpack.c.l.b16 %v452
    %v659 = vunpack.c.h.b16 %v452
    %v660 = vunpack.c.l.b16 %v453
    %v661 = vunpack.c.h.b16 %v453
    %v662 = vunpack.c.l.b16 %v454
    %v663 = vunpack.c.h.b16 %v454
    %v664 = vunpack.c.l.b16 %v455
    %v665 = vunpack.c.h.b16 %v455
    %v666 = vunpack.c.l.b16 %v456
    %v667 = vunpack.c.h.b16 %v456
    %v668 = vunpack.c.l.b16 %v457
    %v669 = vunpack.c.h.b16 %v457
    %v670 = vunpack.c.l.b16 %v458
    %v671 = vunpack.c.h.b16 %v458
    %v672 = vunpack.c.l.b16 %v459
    %v673 = vunpack.c.h.b16 %v459
    %v674 = vpack.c.b16 %v550, %v546
    %v675 = vpack.c.b16 %v551, %v547
    %v676 = vpack.c.b16 %v552, %v548
    %v677 = vpack.c.b16 %v553, %v549
    %v678 = vpack.c.b16 %v558, %v554
    %v679 = vpack.c.b16 %v559, %v555
    %v680 = vpack.c.b16 %v560, %v556
    %v681 = vpack.c.b16 %v561, %v557
    %v682 = vpack.c.b16 %v566, %v562
    %v683 = vpack.c.b16 %v567, %v563
    %v684 = vpack.c.b16 %v568, %v564
    %v685 = vpack.c.b16 %v569, %v565
    %v686 = vpack.c.b16 %v574, %v570
    %v687 = vpack.c.b16 %v575, %v571
    %v688 = vpack.c.b16 %v576, %v572
    %v689 = vpack.c.b16 %v577, %v573
    %v690 = vpack.c.b16 %v582, %v578
    %v691 = vpack.c.b16 %v583, %v579
    %v692 = vpack.c.b16 %v584, %v580
    %v693 = vpack.c.b16 %v585, %v581
    %v694 = vpack.c.b16 %v590, %v586
    %v695 = vpack.c.b16 %v591, %v587
    %v696 = vpack.c.b16 %v592, %v588
    %v697 = vpack.c.b16 %v593, %v589
    %v698 = vpack.c.b16 %v598, %v594
    %v699 = vpack.c.b16 %v599, %v595
    %v700 = vpack.c.b16 %v600, %v596
    %v701 = vpack.c.b16 %v601, %v597
    %v702 = vpack.c.b16 %v606, %v602
    %v703 = vpack.c.b16 %v607, %v603
    %v704 = vpack.c.b16 %v608, %v604
    %v705 = vpack.c.b16 %v609, %v605
    %v706 = vpack.c.b16 %v614, %v610
    %v707 = vpack.c.b16 %v615, %v611
    %v708 = vpack.c.b16 %v616, %v612
    %v709 = vpack.c.b16 %v617, %v613
    %v710 = vpack.c.b16 %v622, %v618
    %v711 = vpack.c.b16 %v623, %v619
    %v712 = vpack.c.b16 %v624, %v620
    %v713 = vpack.c.b16 %v625, %v621
    %v714 = vpack.c.b16 %v630, %v626
    %v715 = vpack.c.b16 %v631, %v627
    %v716 = vpack.c.b16 %v632, %v628
    %v717 = vpack.c.b16 %v633, %v629
    %v718 = vpack.c.b16 %v638, %v634
    %v719 = vpack.c.b16 %v639, %v635
    %v720 = vpack.c.b16 %v640, %v636
    %v721 = vpack.c.b16 %v641, %v637
    %v722 = vpack.c.b16 %v646, %v642
    %v723 = vpack.c.b16 %v647, %v643
    %v724 = vpack.c.b16 %v648, %v644
    %v725 = vpack.c.b16 %v649, %v645
    %v726 = vpack.c.b16 %v654, %v650
    %v727 = vpack.c.b16 %v655, %v651
    %v728 = vpack.c.b16 %v656, %v652
    %v729 = vpack.c.b16 %v657, %v653
    %v730 = vpack.c.b16 %v662, %v658
    %v731 = vpack.c.b16 %v663, %v659
    %v732 = vpack.c.b16 %v664, %v660
    %v733 = vpack.c.b16 %v665, %v661
    %v734 = vpack.c.b16 %v670, %v666
    %v735 = vpack.c.b16 %v671, %v667
    %v736 = vpack.c.b16 %v672, %v668
    %v737 = vpack.c.b16 %v673, %v669
    %802 = vmatprep.subr.bf16.mxu0 %v675
    %803 = vmatpush1.bf16.msra.mxu0 %v674
    %804 = vmatprep.subr.bf16.mxu0 %v679
    %805 = vmatpush1.bf16.msra.mxu0 %v678
    %806 = vmatprep.subr.bf16.mxu0 %v683
    %807 = vmatpush1.bf16.msra.mxu0 %v682
    %808 = vmatprep.subr.bf16.mxu0 %v687
    %809 = vmatpush1.bf16.msra.mxu0 %v686
    %810 = vmatprep.subr.bf16.mxu0 %v691
    %811 = vmatpush1.bf16.msra.mxu0 %v690
    %812 = vmatprep.subr.bf16.mxu0 %v695
    %813 = vmatpush1.bf16.msra.mxu0 %v694
    %814 = vmatprep.subr.bf16.mxu0 %v699
    %815 = vmatpush1.bf16.msra.mxu0 %v698
    %816 = vmatprep.subr.bf16.mxu0 %v703
    %817 = vmatpush1.bf16.msra.mxu0 %v702
    %818 = vmatprep.subr.bf16.mxu0 %v707
    %819 = vmatpush1.bf16.msra.mxu0 %v706
    %820 = vmatprep.subr.bf16.mxu0 %v711
    %821 = vmatpush1.bf16.msra.mxu0 %v710
    %822 = vmatprep.subr.bf16.mxu0 %v715
    %823 = vmatpush1.bf16.msra.mxu0 %v714
    %824 = vmatprep.subr.bf16.mxu0 %v719
    %825 = vmatpush1.bf16.msra.mxu0 %v718
    %826 = vmatprep.subr.bf16.mxu0 %v723
    %827 = vmatpush1.bf16.msra.mxu0 %v722
    %828 = vmatprep.subr.bf16.mxu0 %v727
    %829 = vmatpush1.bf16.msra.mxu0 %v726
    %830 = vmatprep.subr.bf16.mxu0 %v731
    %831 = vmatpush1.bf16.msra.mxu0 %v730
    %832 = vmatprep.subr.bf16.mxu0 %v735
    %833 = vmatpush1.bf16.msra.mxu0 %v734
    %834 = vmatprep.mubr.bf16.mxu0 %v395
    %835 = vmatmul.mubr.bf16.gmra.mrb[0].mxu0 %v394
    %v836 = vpop.f32.mrb[0].mxu0
    %v837 = vadd.f32 %v465, %v836
    %v838 = vpop.f32.mrb[0].mxu0
    %v839 = vadd.f32 %v469, %v838
    %v840 = vpop.f32.mrb[0].mxu0
    %v841 = vpop.f32.mrb[0].mxu0
    %842 = vdwg.mxu0
    %843 = vmatprep.subr.bf16.mxu0 %v677
    %844 = vmatpush1.bf16.msra.mxu0 %v676
    %845 = vmatprep.subr.bf16.mxu0 %v681
    %846 = vmatpush1.bf16.msra.mxu0 %v680
    %847 = vmatprep.subr.bf16.mxu0 %v685
    %848 = vmatpush1.bf16.msra.mxu0 %v684
    %849 = vmatprep.subr.bf16.mxu0 %v689
    %850 = vmatpush1.bf16.msra.mxu0 %v688
    %851 = vmatprep.subr.bf16.mxu0 %v693
    %852 = vmatpush1.bf16.msra.mxu0 %v692
    %853 = vmatprep.subr.bf16.mxu0 %v697
    %854 = vmatpush1.bf16.msra.mxu0 %v696
    %855 = vmatprep.subr.bf16.mxu0 %v701
    %856 = vmatpush1.bf16.msra.mxu0 %v700
    %857 = vmatprep.subr.bf16.mxu0 %v705
    %858 = vmatpush1.bf16.msra.mxu0 %v704
    %859 = vmatprep.subr.bf16.mxu0 %v709
    %860 = vmatpush1.bf16.msra.mxu0 %v708
    %861 = vmatprep.subr.bf16.mxu0 %v713
    %862 = vmatpush1.bf16.msra.mxu0 %v712
    %863 = vmatprep.subr.bf16.mxu0 %v717
    %864 = vmatpush1.bf16.msra.mxu0 %v716
    %865 = vmatprep.subr.bf16.mxu0 %v721
    %866 = vmatpush1.bf16.msra.mxu0 %v720
    %867 = vmatprep.subr.bf16.mxu0 %v725
    %868 = vmatpush1.bf16.msra.mxu0 %v724
    %869 = vmatprep.subr.bf16.mxu0 %v729
    %870 = vmatpush1.bf16.msra.mxu0 %v728
    %871 = vmatprep.subr.bf16.mxu0 %v733
    %872 = vmatpush1.bf16.msra.mxu0 %v732
    %873 = vmatprep.subr.bf16.mxu0 %v737
    %874 = vmatpush1.bf16.msra.mxu0 %v736
    %875 = vmatprep.mubr.bf16.mxu0 %v395
    %876 = vmatmul.mubr.bf16.gmra.mrb[0].mxu0 %v394
    %v877 = vpop.f32.mrb[0].mxu0
    %v878 = vadd.f32 %v473, %v877
    %v879 = vpop.f32.mrb[0].mxu0
    %v880 = vadd.f32 %v477, %v879
    %v881 = vpop.f32.mrb[0].mxu0
    %v882 = vpop.f32.mrb[0].mxu0
    %883 = vdwg.mxu0
    %v884 = vpack.c.bf16 %v837, %v837
    %v885 = vpack.c.bf16 %v839, %v839
    %v886 = vpack.c.bf16 %v878, %v878
    %v887 = vpack.c.bf16 %v880, %v880
    %vm888 = vcmp.gt.bf16.partialorder %v884, 0
    %vm889 = vcmp.gt.bf16.partialorder %v885, 0
    %vm890 = vcmp.gt.bf16.partialorder %v886, 0
    %vm891 = vcmp.gt.bf16.partialorder %v887, 0
    %v892 = vmul.bf16 %v884, 1045249613
    %v893 = vmul.bf16 %v885, 1045249613
    %v894 = vmul.bf16 %v886, 1045249613
    %v895 = vmul.bf16 %v887, 1045249613
    %v896 = vsel %vm888, %v884, %v892
    %v897 = vsel %vm889, %v885, %v893
    %v898 = vsel %vm890, %v886, %v894
    %v899 = vsel %vm891, %v887, %v895
    %v900 = vld [vmem:[#allocation9] sm:$0xff]
    %v901 = vld [vmem:[#allocation9 + $0x8] sm:$0xff]
    %v902 = vld [vmem:[#allocation9 + $0x10] sm:$0xff]
    %v903 = vld [vmem:[#allocation9 + $0x18] sm:$0xff]
    %v904 = vld [vmem:[#allocation9 + $0x20] sm:$0xff]
    %v905 = vld [vmem:[#allocation9 + $0x28] sm:$0xff]
    %v906 = vld [vmem:[#allocation9 + $0x30] sm:$0xff]
    %v907 = vld [vmem:[#allocation9 + $0x38] sm:$0xff]
    %v908 = vld [vmem:[#allocation9 + $0x40] sm:$0xff]
    %v909 = vld [vmem:[#allocation9 + $0x48] sm:$0xff]
    %v910 = vld [vmem:[#allocation9 + $0x50] sm:$0xff]
    %v911 = vld [vmem:[#allocation9 + $0x58] sm:$0xff]
    %v912 = vld [vmem:[#allocation9 + $0x60] sm:$0xff]
    %v913 = vld [vmem:[#allocation9 + $0x68] sm:$0xff]
    %v914 = vld [vmem:[#allocation9 + $0x70] sm:$0xff]
    %v915 = vld [vmem:[#allocation9 + $0x78] sm:$0xff]
    %v916 = vld [vmem:[#allocation9 + $0x80] sm:$0xff]
    %v917 = vld [vmem:[#allocation9 + $0x88] sm:$0xff]
    %v918 = vld [vmem:[#allocation9 + $0x90] sm:$0xff]
    %v919 = vld [vmem:[#allocation9 + $0x98] sm:$0xff]
    %v920 = vld [vmem:[#allocation9 + $0xa0] sm:$0xff]
    %v921 = vld [vmem:[#allocation9 + $0xa8] sm:$0xff]
    %v922 = vld [vmem:[#allocation9 + $0xb0] sm:$0xff]
    %v923 = vld [vmem:[#allocation9 + $0xb8] sm:$0xff]
    %v924 = vld [vmem:[#allocation9 + $0xc0] sm:$0xff]
    %v925 = vld [vmem:[#allocation9 + $0xc8] sm:$0xff]
    %v926 = vld [vmem:[#allocation9 + $0xd0] sm:$0xff]
    %v927 = vld [vmem:[#allocation9 + $0xd8] sm:$0xff]
    %v928 = vld [vmem:[#allocation9 + $0xe0] sm:$0xff]
    %v929 = vld [vmem:[#allocation9 + $0xe8] sm:$0xff]
    %v930 = vld [vmem:[#allocation9 + $0xf0] sm:$0xff]
    %v931 = vld [vmem:[#allocation9 + $0xf8] sm:$0xff]
    %v932 = vld [vmem:[#allocation9 + $0x100] sm:$0xff]
    %v933 = vld [vmem:[#allocation9 + $0x108] sm:$0xff]
    %v934 = vld [vmem:[#allocation9 + $0x110] sm:$0xff]
    %v935 = vld [vmem:[#allocation9 + $0x118] sm:$0xff]
    %v936 = vld [vmem:[#allocation9 + $0x120] sm:$0xff]
    %v937 = vld [vmem:[#allocation9 + $0x128] sm:$0xff]
    %v938 = vld [vmem:[#allocation9 + $0x130] sm:$0xff]
    %v939 = vld [vmem:[#allocation9 + $0x138] sm:$0xff]
    %v940 = vld [vmem:[#allocation9 + $0x140] sm:$0xff]
    %v941 = vld [vmem:[#allocation9 + $0x148] sm:$0xff]
    %v942 = vld [vmem:[#allocation9 + $0x150] sm:$0xff]
    %v943 = vld [vmem:[#allocation9 + $0x158] sm:$0xff]
    %v944 = vld [vmem:[#allocation9 + $0x160] sm:$0xff]
    %v945 = vld [vmem:[#allocation9 + $0x168] sm:$0xff]
    %v946 = vld [vmem:[#allocation9 + $0x170] sm:$0xff]
    %v947 = vld [vmem:[#allocation9 + $0x178] sm:$0xff]
    %v948 = vld [vmem:[#allocation9 + $0x180] sm:$0xff]
    %v949 = vld [vmem:[#allocation9 + $0x188] sm:$0xff]
    %v950 = vld [vmem:[#allocation9 + $0x190] sm:$0xff]
    %v951 = vld [vmem:[#allocation9 + $0x198] sm:$0xff]
    %v952 = vld [vmem:[#allocation9 + $0x1a0] sm:$0xff]
    %v953 = vld [vmem:[#allocation9 + $0x1a8] sm:$0xff]
    %v954 = vld [vmem:[#allocation9 + $0x1b0] sm:$0xff]
    %v955 = vld [vmem:[#allocation9 + $0x1b8] sm:$0xff]
    %v956 = vld [vmem:[#allocation9 + $0x1c0] sm:$0xff]
    %v957 = vld [vmem:[#allocation9 + $0x1c8] sm:$0xff]
    %v958 = vld [vmem:[#allocation9 + $0x1d0] sm:$0xff]
    %v959 = vld [vmem:[#allocation9 + $0x1d8] sm:$0xff]
    %v960 = vld [vmem:[#allocation9 + $0x1e0] sm:$0xff]
    %v961 = vld [vmem:[#allocation9 + $0x1e8] sm:$0xff]
    %v962 = vld [vmem:[#allocation9 + $0x1f0] sm:$0xff]
    %v963 = vld [vmem:[#allocation9 + $0x1f8] sm:$0xff]
    %v964 = vld [vmem:[#allocation9 + $0x200] sm:$0xff]
    %v965 = vld [vmem:[#allocation9 + $0x208] sm:$0xff]
    %v966 = vld [vmem:[#allocation9 + $0x210] sm:$0xff]
    %v967 = vld [vmem:[#allocation9 + $0x218] sm:$0xff]
    %v968 = vld [vmem:[#allocation9 + $0x220] sm:$0xff]
    %v969 = vld [vmem:[#allocation9 + $0x228] sm:$0xff]
    %v970 = vld [vmem:[#allocation9 + $0x230] sm:$0xff]
    %v971 = vld [vmem:[#allocation9 + $0x238] sm:$0xff]
    %v972 = vld [vmem:[#allocation9 + $0x240] sm:$0xff]
    %v973 = vld [vmem:[#allocation9 + $0x248] sm:$0xff]
    %v974 = vld [vmem:[#allocation9 + $0x250] sm:$0xff]
    %v975 = vld [vmem:[#allocation9 + $0x258] sm:$0xff]
    %v976 = vld [vmem:[#allocation9 + $0x260] sm:$0xff]
    %v977 = vld [vmem:[#allocation9 + $0x268] sm:$0xff]
    %v978 = vld [vmem:[#allocation9 + $0x270] sm:$0xff]
    %v979 = vld [vmem:[#allocation9 + $0x278] sm:$0xff]
    %v980 = vld [vmem:[#allocation9 + $0x280] sm:$0xff]
    %v981 = vld [vmem:[#allocation9 + $0x288] sm:$0xff]
    %v982 = vld [vmem:[#allocation9 + $0x290] sm:$0xff]
    %v983 = vld [vmem:[#allocation9 + $0x298] sm:$0xff]
    %v984 = vld [vmem:[#allocation9 + $0x2a0] sm:$0xff]
    %v985 = vld [vmem:[#allocation9 + $0x2a8] sm:$0xff]
    %v986 = vld [vmem:[#allocation9 + $0x2b0] sm:$0xff]
    %v987 = vld [vmem:[#allocation9 + $0x2b8] sm:$0xff]
    %v988 = vld [vmem:[#allocation9 + $0x2c0] sm:$0xff]
    %v989 = vld [vmem:[#allocation9 + $0x2c8] sm:$0xff]
    %v990 = vld [vmem:[#allocation9 + $0x2d0] sm:$0xff]
    %v991 = vld [vmem:[#allocation9 + $0x2d8] sm:$0xff]
    %v992 = vld [vmem:[#allocation9 + $0x2e0] sm:$0xff]
    %v993 = vld [vmem:[#allocation9 + $0x2e8] sm:$0xff]
    %v994 = vld [vmem:[#allocation9 + $0x2f0] sm:$0xff]
    %v995 = vld [vmem:[#allocation9 + $0x2f8] sm:$0xff]
    %v996 = vld [vmem:[#allocation9 + $0x300] sm:$0xff]
    %v997 = vld [vmem:[#allocation9 + $0x308] sm:$0xff]
    %v998 = vld [vmem:[#allocation9 + $0x310] sm:$0xff]
    %v999 = vld [vmem:[#allocation9 + $0x318] sm:$0xff]
    %v1000 = vld [vmem:[#allocation9 + $0x320] sm:$0xff]
    %v1001 = vld [vmem:[#allocation9 + $0x328] sm:$0xff]
    %v1002 = vld [vmem:[#allocation9 + $0x330] sm:$0xff]
    %v1003 = vld [vmem:[#allocation9 + $0x338] sm:$0xff]
    %v1004 = vld [vmem:[#allocation9 + $0x340] sm:$0xff]
    %v1005 = vld [vmem:[#allocation9 + $0x348] sm:$0xff]
    %v1006 = vld [vmem:[#allocation9 + $0x350] sm:$0xff]
    %v1007 = vld [vmem:[#allocation9 + $0x358] sm:$0xff]
    %v1008 = vld [vmem:[#allocation9 + $0x360] sm:$0xff]
    %v1009 = vld [vmem:[#allocation9 + $0x368] sm:$0xff]
    %v1010 = vld [vmem:[#allocation9 + $0x370] sm:$0xff]
    %v1011 = vld [vmem:[#allocation9 + $0x378] sm:$0xff]
    %v1012 = vld [vmem:[#allocation9 + $0x380] sm:$0xff]
    %v1013 = vld [vmem:[#allocation9 + $0x388] sm:$0xff]
    %v1014 = vld [vmem:[#allocation9 + $0x390] sm:$0xff]
    %v1015 = vld [vmem:[#allocation9 + $0x398] sm:$0xff]
    %v1016 = vld [vmem:[#allocation9 + $0x3a0] sm:$0xff]
    %v1017 = vld [vmem:[#allocation9 + $0x3a8] sm:$0xff]
    %v1018 = vld [vmem:[#allocation9 + $0x3b0] sm:$0xff]
    %v1019 = vld [vmem:[#allocation9 + $0x3b8] sm:$0xff]
    %v1020 = vld [vmem:[#allocation9 + $0x3c0] sm:$0xff]
    %v1021 = vld [vmem:[#allocation9 + $0x3c8] sm:$0xff]
    %v1022 = vld [vmem:[#allocation9 + $0x3d0] sm:$0xff]
    %v1023 = vld [vmem:[#allocation9 + $0x3d8] sm:$0xff]
    %v1024 = vld [vmem:[#allocation9 + $0x3e0] sm:$0xff]
    %v1025 = vld [vmem:[#allocation9 + $0x3e8] sm:$0xff]
    %v1026 = vld [vmem:[#allocation9 + $0x3f0] sm:$0xff]
    %v1027 = vld [vmem:[#allocation9 + $0x3f8] sm:$0xff]
    %v1028 = vld [vmem:[#allocation9 + $0x400] sm:$0xff]
    %v1029 = vld [vmem:[#allocation9 + $0x408] sm:$0xff]
    %v1030 = vld [vmem:[#allocation9 + $0x410] sm:$0xff]
    %v1031 = vld [vmem:[#allocation9 + $0x418] sm:$0xff]
    %v1032 = vld [vmem:[#allocation9 + $0x420] sm:$0xff]
    %v1033 = vld [vmem:[#allocation9 + $0x428] sm:$0xff]
    %v1034 = vld [vmem:[#allocation9 + $0x430] sm:$0xff]
    %v1035 = vld [vmem:[#allocation9 + $0x438] sm:$0xff]
    %v1036 = vld [vmem:[#allocation9 + $0x440] sm:$0xff]
    %v1037 = vld [vmem:[#allocation9 + $0x448] sm:$0xff]
    %v1038 = vld [vmem:[#allocation9 + $0x450] sm:$0xff]
    %v1039 = vld [vmem:[#allocation9 + $0x458] sm:$0xff]
    %v1040 = vld [vmem:[#allocation9 + $0x460] sm:$0xff]
    %v1041 = vld [vmem:[#allocation9 + $0x468] sm:$0xff]
    %v1042 = vld [vmem:[#allocation9 + $0x470] sm:$0xff]
    %v1043 = vld [vmem:[#allocation9 + $0x478] sm:$0xff]
    %v1044 = vld [vmem:[#allocation9 + $0x480] sm:$0xff]
    %v1045 = vld [vmem:[#allocation9 + $0x488] sm:$0xff]
    %v1046 = vld [vmem:[#allocation9 + $0x490] sm:$0xff]
    %v1047 = vld [vmem:[#allocation9 + $0x498] sm:$0xff]
    %v1048 = vld [vmem:[#allocation9 + $0x4a0] sm:$0xff]
    %v1049 = vld [vmem:[#allocation9 + $0x4a8] sm:$0xff]
    %v1050 = vld [vmem:[#allocation9 + $0x4b0] sm:$0xff]
    %v1051 = vld [vmem:[#allocation9 + $0x4b8] sm:$0xff]
    %v1052 = vld [vmem:[#allocation9 + $0x4c0] sm:$0xff]
    %v1053 = vld [vmem:[#allocation9 + $0x4c8] sm:$0xff]
    %v1054 = vld [vmem:[#allocation9 + $0x4d0] sm:$0xff]
    %v1055 = vld [vmem:[#allocation9 + $0x4d8] sm:$0xff]
    %v1056 = vld [vmem:[#allocation9 + $0x4e0] sm:$0xff]
    %v1057 = vld [vmem:[#allocation9 + $0x4e8] sm:$0xff]
    %v1058 = vld [vmem:[#allocation9 + $0x4f0] sm:$0xff]
    %v1059 = vld [vmem:[#allocation9 + $0x4f8] sm:$0xff]
    %v1060 = vld [vmem:[#allocation9 + $0x500] sm:$0xff]
    %v1061 = vld [vmem:[#allocation9 + $0x508] sm:$0xff]
    %v1062 = vld [vmem:[#allocation9 + $0x510] sm:$0xff]
    %v1063 = vld [vmem:[#allocation9 + $0x518] sm:$0xff]
    %v1064 = vld [vmem:[#allocation9 + $0x520] sm:$0xff]
    %v1065 = vld [vmem:[#allocation9 + $0x528] sm:$0xff]
    %v1066 = vld [vmem:[#allocation9 + $0x530] sm:$0xff]
    %v1067 = vld [vmem:[#allocation9 + $0x538] sm:$0xff]
    %v1068 = vld [vmem:[#allocation9 + $0x540] sm:$0xff]
    %v1069 = vld [vmem:[#allocation9 + $0x548] sm:$0xff]
    %v1070 = vld [vmem:[#allocation9 + $0x550] sm:$0xff]
    %v1071 = vld [vmem:[#allocation9 + $0x558] sm:$0xff]
    %v1072 = vld [vmem:[#allocation9 + $0x560] sm:$0xff]
    %v1073 = vld [vmem:[#allocation9 + $0x568] sm:$0xff]
    %v1074 = vld [vmem:[#allocation9 + $0x570] sm:$0xff]
    %v1075 = vld [vmem:[#allocation9 + $0x578] sm:$0xff]
    %v1076 = vld [vmem:[#allocation9 + $0x580] sm:$0xff]
    %v1077 = vld [vmem:[#allocation9 + $0x588] sm:$0xff]
    %v1078 = vld [vmem:[#allocation9 + $0x590] sm:$0xff]
    %v1079 = vld [vmem:[#allocation9 + $0x598] sm:$0xff]
    %v1080 = vld [vmem:[#allocation9 + $0x5a0] sm:$0xff]
    %v1081 = vld [vmem:[#allocation9 + $0x5a8] sm:$0xff]
    %v1082 = vld [vmem:[#allocation9 + $0x5b0] sm:$0xff]
    %v1083 = vld [vmem:[#allocation9 + $0x5b8] sm:$0xff]
    %v1084 = vld [vmem:[#allocation9 + $0x5c0] sm:$0xff]
    %v1085 = vld [vmem:[#allocation9 + $0x5c8] sm:$0xff]
    %v1086 = vld [vmem:[#allocation9 + $0x5d0] sm:$0xff]
    %v1087 = vld [vmem:[#allocation9 + $0x5d8] sm:$0xff]
    %v1088 = vld [vmem:[#allocation9 + $0x5e0] sm:$0xff]
    %v1089 = vld [vmem:[#allocation9 + $0x5e8] sm:$0xff]
    %v1090 = vld [vmem:[#allocation9 + $0x5f0] sm:$0xff]
    %v1091 = vld [vmem:[#allocation9 + $0x5f8] sm:$0xff]
    %v1092 = vld [vmem:[#allocation9 + $0x600] sm:$0xff]
    %v1093 = vld [vmem:[#allocation9 + $0x608] sm:$0xff]
    %v1094 = vld [vmem:[#allocation9 + $0x610] sm:$0xff]
    %v1095 = vld [vmem:[#allocation9 + $0x618] sm:$0xff]
    %v1096 = vld [vmem:[#allocation9 + $0x620] sm:$0xff]
    %v1097 = vld [vmem:[#allocation9 + $0x628] sm:$0xff]
    %v1098 = vld [vmem:[#allocation9 + $0x630] sm:$0xff]
    %v1099 = vld [vmem:[#allocation9 + $0x638] sm:$0xff]
    %v1100 = vld [vmem:[#allocation9 + $0x640] sm:$0xff]
    %v1101 = vld [vmem:[#allocation9 + $0x648] sm:$0xff]
    %v1102 = vld [vmem:[#allocation9 + $0x650] sm:$0xff]
    %v1103 = vld [vmem:[#allocation9 + $0x658] sm:$0xff]
    %v1104 = vld [vmem:[#allocation9 + $0x660] sm:$0xff]
    %v1105 = vld [vmem:[#allocation9 + $0x668] sm:$0xff]
    %v1106 = vld [vmem:[#allocation9 + $0x670] sm:$0xff]
    %v1107 = vld [vmem:[#allocation9 + $0x678] sm:$0xff]
    %v1108 = vld [vmem:[#allocation9 + $0x680] sm:$0xff]
    %v1109 = vld [vmem:[#allocation9 + $0x688] sm:$0xff]
    %v1110 = vld [vmem:[#allocation9 + $0x690] sm:$0xff]
    %v1111 = vld [vmem:[#allocation9 + $0x698] sm:$0xff]
    %v1112 = vld [vmem:[#allocation9 + $0x6a0] sm:$0xff]
    %v1113 = vld [vmem:[#allocation9 + $0x6a8] sm:$0xff]
    %v1114 = vld [vmem:[#allocation9 + $0x6b0] sm:$0xff]
    %v1115 = vld [vmem:[#allocation9 + $0x6b8] sm:$0xff]
    %v1116 = vld [vmem:[#allocation9 + $0x6c0] sm:$0xff]
    %v1117 = vld [vmem:[#allocation9 + $0x6c8] sm:$0xff]
    %v1118 = vld [vmem:[#allocation9 + $0x6d0] sm:$0xff]
    %v1119 = vld [vmem:[#allocation9 + $0x6d8] sm:$0xff]
    %v1120 = vld [vmem:[#allocation9 + $0x6e0] sm:$0xff]
    %v1121 = vld [vmem:[#allocation9 + $0x6e8] sm:$0xff]
    %v1122 = vld [vmem:[#allocation9 + $0x6f0] sm:$0xff]
    %v1123 = vld [vmem:[#allocation9 + $0x6f8] sm:$0xff]
    %v1124 = vld [vmem:[#allocation9 + $0x700] sm:$0xff]
    %v1125 = vld [vmem:[#allocation9 + $0x708] sm:$0xff]
    %v1126 = vld [vmem:[#allocation9 + $0x710] sm:$0xff]
    %v1127 = vld [vmem:[#allocation9 + $0x718] sm:$0xff]
    %v1128 = vld [vmem:[#allocation9 + $0x720] sm:$0xff]
    %v1129 = vld [vmem:[#allocation9 + $0x728] sm:$0xff]
    %v1130 = vld [vmem:[#allocation9 + $0x730] sm:$0xff]
    %v1131 = vld [vmem:[#allocation9 + $0x738] sm:$0xff]
    %v1132 = vld [vmem:[#allocation9 + $0x740] sm:$0xff]
    %v1133 = vld [vmem:[#allocation9 + $0x748] sm:$0xff]
    %v1134 = vld [vmem:[#allocation9 + $0x750] sm:$0xff]
    %v1135 = vld [vmem:[#allocation9 + $0x758] sm:$0xff]
    %v1136 = vld [vmem:[#allocation9 + $0x760] sm:$0xff]
    %v1137 = vld [vmem:[#allocation9 + $0x768] sm:$0xff]
    %v1138 = vld [vmem:[#allocation9 + $0x770] sm:$0xff]
    %v1139 = vld [vmem:[#allocation9 + $0x778] sm:$0xff]
    %v1140 = vld [vmem:[#allocation9 + $0x780] sm:$0xff]
    %v1141 = vld [vmem:[#allocation9 + $0x788] sm:$0xff]
    %v1142 = vld [vmem:[#allocation9 + $0x790] sm:$0xff]
    %v1143 = vld [vmem:[#allocation9 + $0x798] sm:$0xff]
    %v1144 = vld [vmem:[#allocation9 + $0x7a0] sm:$0xff]
    %v1145 = vld [vmem:[#allocation9 + $0x7a8] sm:$0xff]
    %v1146 = vld [vmem:[#allocation9 + $0x7b0] sm:$0xff]
    %v1147 = vld [vmem:[#allocation9 + $0x7b8] sm:$0xff]
    %v1148 = vld [vmem:[#allocation9 + $0x7c0] sm:$0xff]
    %v1149 = vld [vmem:[#allocation9 + $0x7c8] sm:$0xff]
    %v1150 = vld [vmem:[#allocation9 + $0x7d0] sm:$0xff]
    %v1151 = vld [vmem:[#allocation9 + $0x7d8] sm:$0xff]
    %v1152 = vld [vmem:[#allocation9 + $0x7e0] sm:$0xff]
    %v1153 = vld [vmem:[#allocation9 + $0x7e8] sm:$0xff]
    %v1154 = vld [vmem:[#allocation9 + $0x7f0] sm:$0xff]
    %v1155 = vld [vmem:[#allocation9 + $0x7f8] sm:$0xff]
    %v1156 = vld [vmem:[#allocation10] sm:$0xff]
    %v1158 = vlaneseq
    %v1159 = vshrl.u32 %v1158, 7
    %v1160 = vsub.s32 0, %v1159
    %v1161 = vrot.slane %v1156, %v1160
    %v1162 = vlaneseq
    %v1163 = vshrl.u32 %v1162, 7
    %v1164 = vsub.s32 1, %v1163
    %v1165 = vrot.slane %v1156, %v1164
    %v1166 = vlaneseq
    %v1167 = vshrl.u32 %v1166, 7
    %v1168 = vsub.s32 2, %v1167
    %v1169 = vrot.slane %v1156, %v1168
    %v1170 = vlaneseq
    %v1171 = vshrl.u32 %v1170, 7
    %v1172 = vsub.s32 3, %v1171
    %v1173 = vrot.slane %v1156, %v1172
    %v1174 = vlaneseq
    %v1175 = vshrl.u32 %v1174, 7
    %v1176 = vsub.s32 4, %v1175
    %v1177 = vrot.slane %v1156, %v1176
    %v1178 = vlaneseq
    %v1179 = vshrl.u32 %v1178, 7
    %v1180 = vsub.s32 5, %v1179
    %v1181 = vrot.slane %v1156, %v1180
    %v1182 = vlaneseq
    %v1183 = vshrl.u32 %v1182, 7
    %v1184 = vsub.s32 6, %v1183
    %v1185 = vrot.slane %v1156, %v1184
    %v1186 = vlaneseq
    %v1187 = vshrl.u32 %v1186, 7
    %v1188 = vsub.s32 7, %v1187
    %v1189 = vrot.slane %v1156, %v1188
    %v1454 = vunpack.c.l.b16 %v900
    %v1455 = vunpack.c.h.b16 %v900
    %v1456 = vunpack.c.l.b16 %v901
    %v1457 = vunpack.c.h.b16 %v901
    %v1458 = vunpack.c.l.b16 %v902
    %v1459 = vunpack.c.h.b16 %v902
    %v1460 = vunpack.c.l.b16 %v903
    %v1461 = vunpack.c.h.b16 %v903
    %v1462 = vunpack.c.l.b16 %v904
    %v1463 = vunpack.c.h.b16 %v904
    %v1464 = vunpack.c.l.b16 %v905
    %v1465 = vunpack.c.h.b16 %v905
    %v1466 = vunpack.c.l.b16 %v906
    %v1467 = vunpack.c.h.b16 %v906
    %v1468 = vunpack.c.l.b16 %v907
    %v1469 = vunpack.c.h.b16 %v907
    %v1470 = vunpack.c.l.b16 %v908
    %v1471 = vunpack.c.h.b16 %v908
    %v1472 = vunpack.c.l.b16 %v909
    %v1473 = vunpack.c.h.b16 %v909
    %v1474 = vunpack.c.l.b16 %v910
    %v1475 = vunpack.c.h.b16 %v910
    %v1476 = vunpack.c.l.b16 %v911
    %v1477 = vunpack.c.h.b16 %v911
    %v1478 = vunpack.c.l.b16 %v912
    %v1479 = vunpack.c.h.b16 %v912
    %v1480 = vunpack.c.l.b16 %v913
    %v1481 = vunpack.c.h.b16 %v913
    %v1482 = vunpack.c.l.b16 %v914
    %v1483 = vunpack.c.h.b16 %v914
    %v1484 = vunpack.c.l.b16 %v915
    %v1485 = vunpack.c.h.b16 %v915
    %v1486 = vunpack.c.l.b16 %v916
    %v1487 = vunpack.c.h.b16 %v916
    %v1488 = vunpack.c.l.b16 %v917
    %v1489 = vunpack.c.h.b16 %v917
    %v1490 = vunpack.c.l.b16 %v918
    %v1491 = vunpack.c.h.b16 %v918
    %v1492 = vunpack.c.l.b16 %v919
    %v1493 = vunpack.c.h.b16 %v919
    %v1494 = vunpack.c.l.b16 %v920
    %v1495 = vunpack.c.h.b16 %v920
    %v1496 = vunpack.c.l.b16 %v921
    %v1497 = vunpack.c.h.b16 %v921
    %v1498 = vunpack.c.l.b16 %v922
    %v1499 = vunpack.c.h.b16 %v922
    %v1500 = vunpack.c.l.b16 %v923
    %v1501 = vunpack.c.h.b16 %v923
    %v1502 = vunpack.c.l.b16 %v924
    %v1503 = vunpack.c.h.b16 %v924
    %v1504 = vunpack.c.l.b16 %v925
    %v1505 = vunpack.c.h.b16 %v925
    %v1506 = vunpack.c.l.b16 %v926
    %v1507 = vunpack.c.h.b16 %v926
    %v1508 = vunpack.c.l.b16 %v927
    %v1509 = vunpack.c.h.b16 %v927
    %v1510 = vunpack.c.l.b16 %v928
    %v1511 = vunpack.c.h.b16 %v928
    %v1512 = vunpack.c.l.b16 %v929
    %v1513 = vunpack.c.h.b16 %v929
    %v1514 = vunpack.c.l.b16 %v930
    %v1515 = vunpack.c.h.b16 %v930
    %v1516 = vunpack.c.l.b16 %v931
    %v1517 = vunpack.c.h.b16 %v931
    %v1518 = vunpack.c.l.b16 %v932
    %v1519 = vunpack.c.h.b16 %v932
    %v1520 = vunpack.c.l.b16 %v933
    %v1521 = vunpack.c.h.b16 %v933
    %v1522 = vunpack.c.l.b16 %v934
    %v1523 = vunpack.c.h.b16 %v934
    %v1524 = vunpack.c.l.b16 %v935
    %v1525 = vunpack.c.h.b16 %v935
    %v1526 = vunpack.c.l.b16 %v936
    %v1527 = vunpack.c.h.b16 %v936
    %v1528 = vunpack.c.l.b16 %v937
    %v1529 = vunpack.c.h.b16 %v937
    %v1530 = vunpack.c.l.b16 %v938
    %v1531 = vunpack.c.h.b16 %v938
    %v1532 = vunpack.c.l.b16 %v939
    %v1533 = vunpack.c.h.b16 %v939
    %v1534 = vunpack.c.l.b16 %v940
    %v1535 = vunpack.c.h.b16 %v940
    %v1536 = vunpack.c.l.b16 %v941
    %v1537 = vunpack.c.h.b16 %v941
    %v1538 = vunpack.c.l.b16 %v942
    %v1539 = vunpack.c.h.b16 %v942
    %v1540 = vunpack.c.l.b16 %v943
    %v1541 = vunpack.c.h.b16 %v943
    %v1542 = vunpack.c.l.b16 %v944
    %v1543 = vunpack.c.h.b16 %v944
    %v1544 = vunpack.c.l.b16 %v945
    %v1545 = vunpack.c.h.b16 %v945
    %v1546 = vunpack.c.l.b16 %v946
    %v1547 = vunpack.c.h.b16 %v946
    %v1548 = vunpack.c.l.b16 %v947
    %v1549 = vunpack.c.h.b16 %v947
    %v1550 = vunpack.c.l.b16 %v948
    %v1551 = vunpack.c.h.b16 %v948
    %v1552 = vunpack.c.l.b16 %v949
    %v1553 = vunpack.c.h.b16 %v949
    %v1554 = vunpack.c.l.b16 %v950
    %v1555 = vunpack.c.h.b16 %v950
    %v1556 = vunpack.c.l.b16 %v951
    %v1557 = vunpack.c.h.b16 %v951
    %v1558 = vunpack.c.l.b16 %v952
    %v1559 = vunpack.c.h.b16 %v952
    %v1560 = vunpack.c.l.b16 %v953
    %v1561 = vunpack.c.h.b16 %v953
    %v1562 = vunpack.c.l.b16 %v954
    %v1563 = vunpack.c.h.b16 %v954
    %v1564 = vunpack.c.l.b16 %v955
    %v1565 = vunpack.c.h.b16 %v955
    %v1566 = vunpack.c.l.b16 %v956
    %v1567 = vunpack.c.h.b16 %v956
    %v1568 = vunpack.c.l.b16 %v957
    %v1569 = vunpack.c.h.b16 %v957
    %v1570 = vunpack.c.l.b16 %v958
    %v1571 = vunpack.c.h.b16 %v958
    %v1572 = vunpack.c.l.b16 %v959
    %v1573 = vunpack.c.h.b16 %v959
    %v1574 = vunpack.c.l.b16 %v960
    %v1575 = vunpack.c.h.b16 %v960
    %v1576 = vunpack.c.l.b16 %v961
    %v1577 = vunpack.c.h.b16 %v961
    %v1578 = vunpack.c.l.b16 %v962
    %v1579 = vunpack.c.h.b16 %v962
    %v1580 = vunpack.c.l.b16 %v963
    %v1581 = vunpack.c.h.b16 %v963
    %v1582 = vunpack.c.l.b16 %v964
    %v1583 = vunpack.c.h.b16 %v964
    %v1584 = vunpack.c.l.b16 %v965
    %v1585 = vunpack.c.h.b16 %v965
    %v1586 = vunpack.c.l.b16 %v966
    %v1587 = vunpack.c.h.b16 %v966
    %v1588 = vunpack.c.l.b16 %v967
    %v1589 = vunpack.c.h.b16 %v967
    %v1590 = vunpack.c.l.b16 %v968
    %v1591 = vunpack.c.h.b16 %v968
    %v1592 = vunpack.c.l.b16 %v969
    %v1593 = vunpack.c.h.b16 %v969
    %v1594 = vunpack.c.l.b16 %v970
    %v1595 = vunpack.c.h.b16 %v970
    %v1596 = vunpack.c.l.b16 %v971
    %v1597 = vunpack.c.h.b16 %v971
    %v1598 = vunpack.c.l.b16 %v972
    %v1599 = vunpack.c.h.b16 %v972
    %v1600 = vunpack.c.l.b16 %v973
    %v1601 = vunpack.c.h.b16 %v973
    %v1602 = vunpack.c.l.b16 %v974
    %v1603 = vunpack.c.h.b16 %v974
    %v1604 = vunpack.c.l.b16 %v975
    %v1605 = vunpack.c.h.b16 %v975
    %v1606 = vunpack.c.l.b16 %v976
    %v1607 = vunpack.c.h.b16 %v976
    %v1608 = vunpack.c.l.b16 %v977
    %v1609 = vunpack.c.h.b16 %v977
    %v1610 = vunpack.c.l.b16 %v978
    %v1611 = vunpack.c.h.b16 %v978
    %v1612 = vunpack.c.l.b16 %v979
    %v1613 = vunpack.c.h.b16 %v979
    %v1614 = vunpack.c.l.b16 %v980
    %v1615 = vunpack.c.h.b16 %v980
    %v1616 = vunpack.c.l.b16 %v981
    %v1617 = vunpack.c.h.b16 %v981
    %v1618 = vunpack.c.l.b16 %v982
    %v1619 = vunpack.c.h.b16 %v982
    %v1620 = vunpack.c.l.b16 %v983
    %v1621 = vunpack.c.h.b16 %v983
    %v1622 = vunpack.c.l.b16 %v984
    %v1623 = vunpack.c.h.b16 %v984
    %v1624 = vunpack.c.l.b16 %v985
    %v1625 = vunpack.c.h.b16 %v985
    %v1626 = vunpack.c.l.b16 %v986
    %v1627 = vunpack.c.h.b16 %v986
    %v1628 = vunpack.c.l.b16 %v987
    %v1629 = vunpack.c.h.b16 %v987
    %v1630 = vunpack.c.l.b16 %v988
    %v1631 = vunpack.c.h.b16 %v988
    %v1632 = vunpack.c.l.b16 %v989
    %v1633 = vunpack.c.h.b16 %v989
    %v1634 = vunpack.c.l.b16 %v990
    %v1635 = vunpack.c.h.b16 %v990
    %v1636 = vunpack.c.l.b16 %v991
    %v1637 = vunpack.c.h.b16 %v991
    %v1638 = vunpack.c.l.b16 %v992
    %v1639 = vunpack.c.h.b16 %v992
    %v1640 = vunpack.c.l.b16 %v993
    %v1641 = vunpack.c.h.b16 %v993
    %v1642 = vunpack.c.l.b16 %v994
    %v1643 = vunpack.c.h.b16 %v994
    %v1644 = vunpack.c.l.b16 %v995
    %v1645 = vunpack.c.h.b16 %v995
    %v1646 = vunpack.c.l.b16 %v996
    %v1647 = vunpack.c.h.b16 %v996
    %v1648 = vunpack.c.l.b16 %v997
    %v1649 = vunpack.c.h.b16 %v997
    %v1650 = vunpack.c.l.b16 %v998
    %v1651 = vunpack.c.h.b16 %v998
    %v1652 = vunpack.c.l.b16 %v999
    %v1653 = vunpack.c.h.b16 %v999
    %v1654 = vunpack.c.l.b16 %v1000
    %v1655 = vunpack.c.h.b16 %v1000
    %v1656 = vunpack.c.l.b16 %v1001
    %v1657 = vunpack.c.h.b16 %v1001
    %v1658 = vunpack.c.l.b16 %v1002
    %v1659 = vunpack.c.h.b16 %v1002
    %v1660 = vunpack.c.l.b16 %v1003
    %v1661 = vunpack.c.h.b16 %v1003
    %v1662 = vunpack.c.l.b16 %v1004
    %v1663 = vunpack.c.h.b16 %v1004
    %v1664 = vunpack.c.l.b16 %v1005
    %v1665 = vunpack.c.h.b16 %v1005
    %v1666 = vunpack.c.l.b16 %v1006
    %v1667 = vunpack.c.h.b16 %v1006
    %v1668 = vunpack.c.l.b16 %v1007
    %v1669 = vunpack.c.h.b16 %v1007
    %v1670 = vunpack.c.l.b16 %v1008
    %v1671 = vunpack.c.h.b16 %v1008
    %v1672 = vunpack.c.l.b16 %v1009
    %v1673 = vunpack.c.h.b16 %v1009
    %v1674 = vunpack.c.l.b16 %v1010
    %v1675 = vunpack.c.h.b16 %v1010
    %v1676 = vunpack.c.l.b16 %v1011
    %v1677 = vunpack.c.h.b16 %v1011
    %v1678 = vunpack.c.l.b16 %v1012
    %v1679 = vunpack.c.h.b16 %v1012
    %v1680 = vunpack.c.l.b16 %v1013
    %v1681 = vunpack.c.h.b16 %v1013
    %v1682 = vunpack.c.l.b16 %v1014
    %v1683 = vunpack.c.h.b16 %v1014
    %v1684 = vunpack.c.l.b16 %v1015
    %v1685 = vunpack.c.h.b16 %v1015
    %v1686 = vunpack.c.l.b16 %v1016
    %v1687 = vunpack.c.h.b16 %v1016
    %v1688 = vunpack.c.l.b16 %v1017
    %v1689 = vunpack.c.h.b16 %v1017
    %v1690 = vunpack.c.l.b16 %v1018
    %v1691 = vunpack.c.h.b16 %v1018
    %v1692 = vunpack.c.l.b16 %v1019
    %v1693 = vunpack.c.h.b16 %v1019
    %v1694 = vunpack.c.l.b16 %v1020
    %v1695 = vunpack.c.h.b16 %v1020
    %v1696 = vunpack.c.l.b16 %v1021
    %v1697 = vunpack.c.h.b16 %v1021
    %v1698 = vunpack.c.l.b16 %v1022
    %v1699 = vunpack.c.h.b16 %v1022
    %v1700 = vunpack.c.l.b16 %v1023
    %v1701 = vunpack.c.h.b16 %v1023
    %v1702 = vunpack.c.l.b16 %v1024
    %v1703 = vunpack.c.h.b16 %v1024
    %v1704 = vunpack.c.l.b16 %v1025
    %v1705 = vunpack.c.h.b16 %v1025
    %v1706 = vunpack.c.l.b16 %v1026
    %v1707 = vunpack.c.h.b16 %v1026
    %v1708 = vunpack.c.l.b16 %v1027
    %v1709 = vunpack.c.h.b16 %v1027
    %v1710 = vunpack.c.l.b16 %v1028
    %v1711 = vunpack.c.h.b16 %v1028
    %v1712 = vunpack.c.l.b16 %v1029
    %v1713 = vunpack.c.h.b16 %v1029
    %v1714 = vunpack.c.l.b16 %v1030
    %v1715 = vunpack.c.h.b16 %v1030
    %v1716 = vunpack.c.l.b16 %v1031
    %v1717 = vunpack.c.h.b16 %v1031
    %v1718 = vunpack.c.l.b16 %v1032
    %v1719 = vunpack.c.h.b16 %v1032
    %v1720 = vunpack.c.l.b16 %v1033
    %v1721 = vunpack.c.h.b16 %v1033
    %v1722 = vunpack.c.l.b16 %v1034
    %v1723 = vunpack.c.h.b16 %v1034
    %v1724 = vunpack.c.l.b16 %v1035
    %v1725 = vunpack.c.h.b16 %v1035
    %v1726 = vunpack.c.l.b16 %v1036
    %v1727 = vunpack.c.h.b16 %v1036
    %v1728 = vunpack.c.l.b16 %v1037
    %v1729 = vunpack.c.h.b16 %v1037
    %v1730 = vunpack.c.l.b16 %v1038
    %v1731 = vunpack.c.h.b16 %v1038
    %v1732 = vunpack.c.l.b16 %v1039
    %v1733 = vunpack.c.h.b16 %v1039
    %v1734 = vunpack.c.l.b16 %v1040
    %v1735 = vunpack.c.h.b16 %v1040
    %v1736 = vunpack.c.l.b16 %v1041
    %v1737 = vunpack.c.h.b16 %v1041
    %v1738 = vunpack.c.l.b16 %v1042
    %v1739 = vunpack.c.h.b16 %v1042
    %v1740 = vunpack.c.l.b16 %v1043
    %v1741 = vunpack.c.h.b16 %v1043
    %v1742 = vunpack.c.l.b16 %v1044
    %v1743 = vunpack.c.h.b16 %v1044
    %v1744 = vunpack.c.l.b16 %v1045
    %v1745 = vunpack.c.h.b16 %v1045
    %v1746 = vunpack.c.l.b16 %v1046
    %v1747 = vunpack.c.h.b16 %v1046
    %v1748 = vunpack.c.l.b16 %v1047
    %v1749 = vunpack.c.h.b16 %v1047
    %v1750 = vunpack.c.l.b16 %v1048
    %v1751 = vunpack.c.h.b16 %v1048
    %v1752 = vunpack.c.l.b16 %v1049
    %v1753 = vunpack.c.h.b16 %v1049
    %v1754 = vunpack.c.l.b16 %v1050
    %v1755 = vunpack.c.h.b16 %v1050
    %v1756 = vunpack.c.l.b16 %v1051
    %v1757 = vunpack.c.h.b16 %v1051
    %v1758 = vunpack.c.l.b16 %v1052
    %v1759 = vunpack.c.h.b16 %v1052
    %v1760 = vunpack.c.l.b16 %v1053
    %v1761 = vunpack.c.h.b16 %v1053
    %v1762 = vunpack.c.l.b16 %v1054
    %v1763 = vunpack.c.h.b16 %v1054
    %v1764 = vunpack.c.l.b16 %v1055
    %v1765 = vunpack.c.h.b16 %v1055
    %v1766 = vunpack.c.l.b16 %v1056
    %v1767 = vunpack.c.h.b16 %v1056
    %v1768 = vunpack.c.l.b16 %v1057
    %v1769 = vunpack.c.h.b16 %v1057
    %v1770 = vunpack.c.l.b16 %v1058
    %v1771 = vunpack.c.h.b16 %v1058
    %v1772 = vunpack.c.l.b16 %v1059
    %v1773 = vunpack.c.h.b16 %v1059
    %v1774 = vunpack.c.l.b16 %v1060
    %v1775 = vunpack.c.h.b16 %v1060
    %v1776 = vunpack.c.l.b16 %v1061
    %v1777 = vunpack.c.h.b16 %v1061
    %v1778 = vunpack.c.l.b16 %v1062
    %v1779 = vunpack.c.h.b16 %v1062
    %v1780 = vunpack.c.l.b16 %v1063
    %v1781 = vunpack.c.h.b16 %v1063
    %v1782 = vunpack.c.l.b16 %v1064
    %v1783 = vunpack.c.h.b16 %v1064
    %v1784 = vunpack.c.l.b16 %v1065
    %v1785 = vunpack.c.h.b16 %v1065
    %v1786 = vunpack.c.l.b16 %v1066
    %v1787 = vunpack.c.h.b16 %v1066
    %v1788 = vunpack.c.l.b16 %v1067
    %v1789 = vunpack.c.h.b16 %v1067
    %v1790 = vunpack.c.l.b16 %v1068
    %v1791 = vunpack.c.h.b16 %v1068
    %v1792 = vunpack.c.l.b16 %v1069
    %v1793 = vunpack.c.h.b16 %v1069
    %v1794 = vunpack.c.l.b16 %v1070
    %v1795 = vunpack.c.h.b16 %v1070
    %v1796 = vunpack.c.l.b16 %v1071
    %v1797 = vunpack.c.h.b16 %v1071
    %v1798 = vunpack.c.l.b16 %v1072
    %v1799 = vunpack.c.h.b16 %v1072
    %v1800 = vunpack.c.l.b16 %v1073
    %v1801 = vunpack.c.h.b16 %v1073
    %v1802 = vunpack.c.l.b16 %v1074
    %v1803 = vunpack.c.h.b16 %v1074
    %v1804 = vunpack.c.l.b16 %v1075
    %v1805 = vunpack.c.h.b16 %v1075
    %v1806 = vunpack.c.l.b16 %v1076
    %v1807 = vunpack.c.h.b16 %v1076
    %v1808 = vunpack.c.l.b16 %v1077
    %v1809 = vunpack.c.h.b16 %v1077
    %v1810 = vunpack.c.l.b16 %v1078
    %v1811 = vunpack.c.h.b16 %v1078
    %v1812 = vunpack.c.l.b16 %v1079
    %v1813 = vunpack.c.h.b16 %v1079
    %v1814 = vunpack.c.l.b16 %v1080
    %v1815 = vunpack.c.h.b16 %v1080
    %v1816 = vunpack.c.l.b16 %v1081
    %v1817 = vunpack.c.h.b16 %v1081
    %v1818 = vunpack.c.l.b16 %v1082
    %v1819 = vunpack.c.h.b16 %v1082
    %v1820 = vunpack.c.l.b16 %v1083
    %v1821 = vunpack.c.h.b16 %v1083
    %v1822 = vunpack.c.l.b16 %v1084
    %v1823 = vunpack.c.h.b16 %v1084
    %v1824 = vunpack.c.l.b16 %v1085
    %v1825 = vunpack.c.h.b16 %v1085
    %v1826 = vunpack.c.l.b16 %v1086
    %v1827 = vunpack.c.h.b16 %v1086
    %v1828 = vunpack.c.l.b16 %v1087
    %v1829 = vunpack.c.h.b16 %v1087
    %v1830 = vunpack.c.l.b16 %v1088
    %v1831 = vunpack.c.h.b16 %v1088
    %v1832 = vunpack.c.l.b16 %v1089
    %v1833 = vunpack.c.h.b16 %v1089
    %v1834 = vunpack.c.l.b16 %v1090
    %v1835 = vunpack.c.h.b16 %v1090
    %v1836 = vunpack.c.l.b16 %v1091
    %v1837 = vunpack.c.h.b16 %v1091
    %v1838 = vunpack.c.l.b16 %v1092
    %v1839 = vunpack.c.h.b16 %v1092
    %v1840 = vunpack.c.l.b16 %v1093
    %v1841 = vunpack.c.h.b16 %v1093
    %v1842 = vunpack.c.l.b16 %v1094
    %v1843 = vunpack.c.h.b16 %v1094
    %v1844 = vunpack.c.l.b16 %v1095
    %v1845 = vunpack.c.h.b16 %v1095
    %v1846 = vunpack.c.l.b16 %v1096
    %v1847 = vunpack.c.h.b16 %v1096
    %v1848 = vunpack.c.l.b16 %v1097
    %v1849 = vunpack.c.h.b16 %v1097
    %v1850 = vunpack.c.l.b16 %v1098
    %v1851 = vunpack.c.h.b16 %v1098
    %v1852 = vunpack.c.l.b16 %v1099
    %v1853 = vunpack.c.h.b16 %v1099
    %v1854 = vunpack.c.l.b16 %v1100
    %v1855 = vunpack.c.h.b16 %v1100
    %v1856 = vunpack.c.l.b16 %v1101
    %v1857 = vunpack.c.h.b16 %v1101
    %v1858 = vunpack.c.l.b16 %v1102
    %v1859 = vunpack.c.h.b16 %v1102
    %v1860 = vunpack.c.l.b16 %v1103
    %v1861 = vunpack.c.h.b16 %v1103
    %v1862 = vunpack.c.l.b16 %v1104
    %v1863 = vunpack.c.h.b16 %v1104
    %v1864 = vunpack.c.l.b16 %v1105
    %v1865 = vunpack.c.h.b16 %v1105
    %v1866 = vunpack.c.l.b16 %v1106
    %v1867 = vunpack.c.h.b16 %v1106
    %v1868 = vunpack.c.l.b16 %v1107
    %v1869 = vunpack.c.h.b16 %v1107
    %v1870 = vunpack.c.l.b16 %v1108
    %v1871 = vunpack.c.h.b16 %v1108
    %v1872 = vunpack.c.l.b16 %v1109
    %v1873 = vunpack.c.h.b16 %v1109
    %v1874 = vunpack.c.l.b16 %v1110
    %v1875 = vunpack.c.h.b16 %v1110
    %v1876 = vunpack.c.l.b16 %v1111
    %v1877 = vunpack.c.h.b16 %v1111
    %v1878 = vunpack.c.l.b16 %v1112
    %v1879 = vunpack.c.h.b16 %v1112
    %v1880 = vunpack.c.l.b16 %v1113
    %v1881 = vunpack.c.h.b16 %v1113
    %v1882 = vunpack.c.l.b16 %v1114
    %v1883 = vunpack.c.h.b16 %v1114
    %v1884 = vunpack.c.l.b16 %v1115
    %v1885 = vunpack.c.h.b16 %v1115
    %v1886 = vunpack.c.l.b16 %v1116
    %v1887 = vunpack.c.h.b16 %v1116
    %v1888 = vunpack.c.l.b16 %v1117
    %v1889 = vunpack.c.h.b16 %v1117
    %v1890 = vunpack.c.l.b16 %v1118
    %v1891 = vunpack.c.h.b16 %v1118
    %v1892 = vunpack.c.l.b16 %v1119
    %v1893 = vunpack.c.h.b16 %v1119
    %v1894 = vunpack.c.l.b16 %v1120
    %v1895 = vunpack.c.h.b16 %v1120
    %v1896 = vunpack.c.l.b16 %v1121
    %v1897 = vunpack.c.h.b16 %v1121
    %v1898 = vunpack.c.l.b16 %v1122
    %v1899 = vunpack.c.h.b16 %v1122
    %v1900 = vunpack.c.l.b16 %v1123
    %v1901 = vunpack.c.h.b16 %v1123
    %v1902 = vunpack.c.l.b16 %v1124
    %v1903 = vunpack.c.h.b16 %v1124
    %v1904 = vunpack.c.l.b16 %v1125
    %v1905 = vunpack.c.h.b16 %v1125
    %v1906 = vunpack.c.l.b16 %v1126
    %v1907 = vunpack.c.h.b16 %v1126
    %v1908 = vunpack.c.l.b16 %v1127
    %v1909 = vunpack.c.h.b16 %v1127
    %v1910 = vunpack.c.l.b16 %v1128
    %v1911 = vunpack.c.h.b16 %v1128
    %v1912 = vunpack.c.l.b16 %v1129
    %v1913 = vunpack.c.h.b16 %v1129
    %v1914 = vunpack.c.l.b16 %v1130
    %v1915 = vunpack.c.h.b16 %v1130
    %v1916 = vunpack.c.l.b16 %v1131
    %v1917 = vunpack.c.h.b16 %v1131
    %v1918 = vunpack.c.l.b16 %v1132
    %v1919 = vunpack.c.h.b16 %v1132
    %v1920 = vunpack.c.l.b16 %v1133
    %v1921 = vunpack.c.h.b16 %v1133
    %v1922 = vunpack.c.l.b16 %v1134
    %v1923 = vunpack.c.h.b16 %v1134
    %v1924 = vunpack.c.l.b16 %v1135
    %v1925 = vunpack.c.h.b16 %v1135
    %v1926 = vunpack.c.l.b16 %v1136
    %v1927 = vunpack.c.h.b16 %v1136
    %v1928 = vunpack.c.l.b16 %v1137
    %v1929 = vunpack.c.h.b16 %v1137
    %v1930 = vunpack.c.l.b16 %v1138
    %v1931 = vunpack.c.h.b16 %v1138
    %v1932 = vunpack.c.l.b16 %v1139
    %v1933 = vunpack.c.h.b16 %v1139
    %v1934 = vunpack.c.l.b16 %v1140
    %v1935 = vunpack.c.h.b16 %v1140
    %v1936 = vunpack.c.l.b16 %v1141
    %v1937 = vunpack.c.h.b16 %v1141
    %v1938 = vunpack.c.l.b16 %v1142
    %v1939 = vunpack.c.h.b16 %v1142
    %v1940 = vunpack.c.l.b16 %v1143
    %v1941 = vunpack.c.h.b16 %v1143
    %v1942 = vunpack.c.l.b16 %v1144
    %v1943 = vunpack.c.h.b16 %v1144
    %v1944 = vunpack.c.l.b16 %v1145
    %v1945 = vunpack.c.h.b16 %v1145
    %v1946 = vunpack.c.l.b16 %v1146
    %v1947 = vunpack.c.h.b16 %v1146
    %v1948 = vunpack.c.l.b16 %v1147
    %v1949 = vunpack.c.h.b16 %v1147
    %v1950 = vunpack.c.l.b16 %v1148
    %v1951 = vunpack.c.h.b16 %v1148
    %v1952 = vunpack.c.l.b16 %v1149
    %v1953 = vunpack.c.h.b16 %v1149
    %v1954 = vunpack.c.l.b16 %v1150
    %v1955 = vunpack.c.h.b16 %v1150
    %v1956 = vunpack.c.l.b16 %v1151
    %v1957 = vunpack.c.h.b16 %v1151
    %v1958 = vunpack.c.l.b16 %v1152
    %v1959 = vunpack.c.h.b16 %v1152
    %v1960 = vunpack.c.l.b16 %v1153
    %v1961 = vunpack.c.h.b16 %v1153
    %v1962 = vunpack.c.l.b16 %v1154
    %v1963 = vunpack.c.h.b16 %v1154
    %v1964 = vunpack.c.l.b16 %v1155
    %v1965 = vunpack.c.h.b16 %v1155
    %v1966 = vpack.c.b16 %v1462, %v1454
    %v1967 = vpack.c.b16 %v1463, %v1455
    %v1968 = vpack.c.b16 %v1464, %v1456
    %v1969 = vpack.c.b16 %v1465, %v1457
    %v1970 = vpack.c.b16 %v1466, %v1458
    %v1971 = vpack.c.b16 %v1467, %v1459
    %v1972 = vpack.c.b16 %v1468, %v1460
    %v1973 = vpack.c.b16 %v1469, %v1461
    %v1974 = vpack.c.b16 %v1478, %v1470
    %v1975 = vpack.c.b16 %v1479, %v1471
    %v1976 = vpack.c.b16 %v1480, %v1472
    %v1977 = vpack.c.b16 %v1481, %v1473
    %v1978 = vpack.c.b16 %v1482, %v1474
    %v1979 = vpack.c.b16 %v1483, %v1475
    %v1980 = vpack.c.b16 %v1484, %v1476
    %v1981 = vpack.c.b16 %v1485, %v1477
    %v1982 = vpack.c.b16 %v1494, %v1486
    %v1983 = vpack.c.b16 %v1495, %v1487
    %v1984 = vpack.c.b16 %v1496, %v1488
    %v1985 = vpack.c.b16 %v1497, %v1489
    %v1986 = vpack.c.b16 %v1498, %v1490
    %v1987 = vpack.c.b16 %v1499, %v1491
    %v1988 = vpack.c.b16 %v1500, %v1492
    %v1989 = vpack.c.b16 %v1501, %v1493
    %v1990 = vpack.c.b16 %v1510, %v1502
    %v1991 = vpack.c.b16 %v1511, %v1503
    %v1992 = vpack.c.b16 %v1512, %v1504
    %v1993 = vpack.c.b16 %v1513, %v1505
    %v1994 = vpack.c.b16 %v1514, %v1506
    %v1995 = vpack.c.b16 %v1515, %v1507
    %v1996 = vpack.c.b16 %v1516, %v1508
    %v1997 = vpack.c.b16 %v1517, %v1509
    %v1998 = vpack.c.b16 %v1526, %v1518
    %v1999 = vpack.c.b16 %v1527, %v1519
    %v2000 = vpack.c.b16 %v1528, %v1520
    %v2001 = vpack.c.b16 %v1529, %v1521
    %v2002 = vpack.c.b16 %v1530, %v1522
    %v2003 = vpack.c.b16 %v1531, %v1523
    %v2004 = vpack.c.b16 %v1532, %v1524
    %v2005 = vpack.c.b16 %v1533, %v1525
    %v2006 = vpack.c.b16 %v1542, %v1534
    %v2007 = vpack.c.b16 %v1543, %v1535
    %v2008 = vpack.c.b16 %v1544, %v1536
    %v2009 = vpack.c.b16 %v1545, %v1537
    %v2010 = vpack.c.b16 %v1546, %v1538
    %v2011 = vpack.c.b16 %v1547, %v1539
    %v2012 = vpack.c.b16 %v1548, %v1540
    %v2013 = vpack.c.b16 %v1549, %v1541
    %v2014 = vpack.c.b16 %v1558, %v1550
    %v2015 = vpack.c.b16 %v1559, %v1551
    %v2016 = vpack.c.b16 %v1560, %v1552
    %v2017 = vpack.c.b16 %v1561, %v1553
    %v2018 = vpack.c.b16 %v1562, %v1554
    %v2019 = vpack.c.b16 %v1563, %v1555
    %v2020 = vpack.c.b16 %v1564, %v1556
    %v2021 = vpack.c.b16 %v1565, %v1557
    %v2022 = vpack.c.b16 %v1574, %v1566
    %v2023 = vpack.c.b16 %v1575, %v1567
    %v2024 = vpack.c.b16 %v1576, %v1568
    %v2025 = vpack.c.b16 %v1577, %v1569
    %v2026 = vpack.c.b16 %v1578, %v1570
    %v2027 = vpack.c.b16 %v1579, %v1571
    %v2028 = vpack.c.b16 %v1580, %v1572
    %v2029 = vpack.c.b16 %v1581, %v1573
    %v2030 = vpack.c.b16 %v1590, %v1582
    %v2031 = vpack.c.b16 %v1591, %v1583
    %v2032 = vpack.c.b16 %v1592, %v1584
    %v2033 = vpack.c.b16 %v1593, %v1585
    %v2034 = vpack.c.b16 %v1594, %v1586
    %v2035 = vpack.c.b16 %v1595, %v1587
    %v2036 = vpack.c.b16 %v1596, %v1588
    %v2037 = vpack.c.b16 %v1597, %v1589
    %v2038 = vpack.c.b16 %v1606, %v1598
    %v2039 = vpack.c.b16 %v1607, %v1599
    %v2040 = vpack.c.b16 %v1608, %v1600
    %v2041 = vpack.c.b16 %v1609, %v1601
    %v2042 = vpack.c.b16 %v1610, %v1602
    %v2043 = vpack.c.b16 %v1611, %v1603
    %v2044 = vpack.c.b16 %v1612, %v1604
    %v2045 = vpack.c.b16 %v1613, %v1605
    %v2046 = vpack.c.b16 %v1622, %v1614
    %v2047 = vpack.c.b16 %v1623, %v1615
    %v2048 = vpack.c.b16 %v1624, %v1616
    %v2049 = vpack.c.b16 %v1625, %v1617
    %v2050 = vpack.c.b16 %v1626, %v1618
    %v2051 = vpack.c.b16 %v1627, %v1619
    %v2052 = vpack.c.b16 %v1628, %v1620
    %v2053 = vpack.c.b16 %v1629, %v1621
    %v2054 = vpack.c.b16 %v1638, %v1630
    %v2055 = vpack.c.b16 %v1639, %v1631
    %v2056 = vpack.c.b16 %v1640, %v1632
    %v2057 = vpack.c.b16 %v1641, %v1633
    %v2058 = vpack.c.b16 %v1642, %v1634
    %v2059 = vpack.c.b16 %v1643, %v1635
    %v2060 = vpack.c.b16 %v1644, %v1636
    %v2061 = vpack.c.b16 %v1645, %v1637
    %v2062 = vpack.c.b16 %v1654, %v1646
    %v2063 = vpack.c.b16 %v1655, %v1647
    %v2064 = vpack.c.b16 %v1656, %v1648
    %v2065 = vpack.c.b16 %v1657, %v1649
    %v2066 = vpack.c.b16 %v1658, %v1650
    %v2067 = vpack.c.b16 %v1659, %v1651
    %v2068 = vpack.c.b16 %v1660, %v1652
    %v2069 = vpack.c.b16 %v1661, %v1653
    %v2070 = vpack.c.b16 %v1670, %v1662
    %v2071 = vpack.c.b16 %v1671, %v1663
    %v2072 = vpack.c.b16 %v1672, %v1664
    %v2073 = vpack.c.b16 %v1673, %v1665
    %v2074 = vpack.c.b16 %v1674, %v1666
    %v2075 = vpack.c.b16 %v1675, %v1667
    %v2076 = vpack.c.b16 %v1676, %v1668
    %v2077 = vpack.c.b16 %v1677, %v1669
    %v2078 = vpack.c.b16 %v1686, %v1678
    %v2079 = vpack.c.b16 %v1687, %v1679
    %v2080 = vpack.c.b16 %v1688, %v1680
    %v2081 = vpack.c.b16 %v1689, %v1681
    %v2082 = vpack.c.b16 %v1690, %v1682
    %v2083 = vpack.c.b16 %v1691, %v1683
    %v2084 = vpack.c.b16 %v1692, %v1684
    %v2085 = vpack.c.b16 %v1693, %v1685
    %v2086 = vpack.c.b16 %v1702, %v1694
    %v2087 = vpack.c.b16 %v1703, %v1695
    %v2088 = vpack.c.b16 %v1704, %v1696
    %v2089 = vpack.c.b16 %v1705, %v1697
    %v2090 = vpack.c.b16 %v1706, %v1698
    %v2091 = vpack.c.b16 %v1707, %v1699
    %v2092 = vpack.c.b16 %v1708, %v1700
    %v2093 = vpack.c.b16 %v1709, %v1701
    %v2094 = vpack.c.b16 %v1718, %v1710
    %v2095 = vpack.c.b16 %v1719, %v1711
    %v2096 = vpack.c.b16 %v1720, %v1712
    %v2097 = vpack.c.b16 %v1721, %v1713
    %v2098 = vpack.c.b16 %v1722, %v1714
    %v2099 = vpack.c.b16 %v1723, %v1715
    %v2100 = vpack.c.b16 %v1724, %v1716
    %v2101 = vpack.c.b16 %v1725, %v1717
    %v2102 = vpack.c.b16 %v1734, %v1726
    %v2103 = vpack.c.b16 %v1735, %v1727
    %v2104 = vpack.c.b16 %v1736, %v1728
    %v2105 = vpack.c.b16 %v1737, %v1729
    %v2106 = vpack.c.b16 %v1738, %v1730
    %v2107 = vpack.c.b16 %v1739, %v1731
    %v2108 = vpack.c.b16 %v1740, %v1732
    %v2109 = vpack.c.b16 %v1741, %v1733
    %v2110 = vpack.c.b16 %v1750, %v1742
    %v2111 = vpack.c.b16 %v1751, %v1743
    %v2112 = vpack.c.b16 %v1752, %v1744
    %v2113 = vpack.c.b16 %v1753, %v1745
    %v2114 = vpack.c.b16 %v1754, %v1746
    %v2115 = vpack.c.b16 %v1755, %v1747
    %v2116 = vpack.c.b16 %v1756, %v1748
    %v2117 = vpack.c.b16 %v1757, %v1749
    %v2118 = vpack.c.b16 %v1766, %v1758
    %v2119 = vpack.c.b16 %v1767, %v1759
    %v2120 = vpack.c.b16 %v1768, %v1760
    %v2121 = vpack.c.b16 %v1769, %v1761
    %v2122 = vpack.c.b16 %v1770, %v1762
    %v2123 = vpack.c.b16 %v1771, %v1763
    %v2124 = vpack.c.b16 %v1772, %v1764
    %v2125 = vpack.c.b16 %v1773, %v1765
    %v2126 = vpack.c.b16 %v1782, %v1774
    %v2127 = vpack.c.b16 %v1783, %v1775
    %v2128 = vpack.c.b16 %v1784, %v1776
    %v2129 = vpack.c.b16 %v1785, %v1777
    %v2130 = vpack.c.b16 %v1786, %v1778
    %v2131 = vpack.c.b16 %v1787, %v1779
    %v2132 = vpack.c.b16 %v1788, %v1780
    %v2133 = vpack.c.b16 %v1789, %v1781
    %v2134 = vpack.c.b16 %v1798, %v1790
    %v2135 = vpack.c.b16 %v1799, %v1791
    %v2136 = vpack.c.b16 %v1800, %v1792
    %v2137 = vpack.c.b16 %v1801, %v1793
    %v2138 = vpack.c.b16 %v1802, %v1794
    %v2139 = vpack.c.b16 %v1803, %v1795
    %v2140 = vpack.c.b16 %v1804, %v1796
    %v2141 = vpack.c.b16 %v1805, %v1797
    %v2142 = vpack.c.b16 %v1814, %v1806
    %v2143 = vpack.c.b16 %v1815, %v1807
    %v2144 = vpack.c.b16 %v1816, %v1808
    %v2145 = vpack.c.b16 %v1817, %v1809
    %v2146 = vpack.c.b16 %v1818, %v1810
    %v2147 = vpack.c.b16 %v1819, %v1811
    %v2148 = vpack.c.b16 %v1820, %v1812
    %v2149 = vpack.c.b16 %v1821, %v1813
    %v2150 = vpack.c.b16 %v1830, %v1822
    %v2151 = vpack.c.b16 %v1831, %v1823
    %v2152 = vpack.c.b16 %v1832, %v1824
    %v2153 = vpack.c.b16 %v1833, %v1825
    %v2154 = vpack.c.b16 %v1834, %v1826
    %v2155 = vpack.c.b16 %v1835, %v1827
    %v2156 = vpack.c.b16 %v1836, %v1828
    %v2157 = vpack.c.b16 %v1837, %v1829
    %v2158 = vpack.c.b16 %v1846, %v1838
    %v2159 = vpack.c.b16 %v1847, %v1839
    %v2160 = vpack.c.b16 %v1848, %v1840
    %v2161 = vpack.c.b16 %v1849, %v1841
    %v2162 = vpack.c.b16 %v1850, %v1842
    %v2163 = vpack.c.b16 %v1851, %v1843
    %v2164 = vpack.c.b16 %v1852, %v1844
    %v2165 = vpack.c.b16 %v1853, %v1845
    %v2166 = vpack.c.b16 %v1862, %v1854
    %v2167 = vpack.c.b16 %v1863, %v1855
    %v2168 = vpack.c.b16 %v1864, %v1856
    %v2169 = vpack.c.b16 %v1865, %v1857
    %v2170 = vpack.c.b16 %v1866, %v1858
    %v2171 = vpack.c.b16 %v1867, %v1859
    %v2172 = vpack.c.b16 %v1868, %v1860
    %v2173 = vpack.c.b16 %v1869, %v1861
    %v2174 = vpack.c.b16 %v1878, %v1870
    %v2175 = vpack.c.b16 %v1879, %v1871
    %v2176 = vpack.c.b16 %v1880, %v1872
    %v2177 = vpack.c.b16 %v1881, %v1873
    %v2178 = vpack.c.b16 %v1882, %v1874
    %v2179 = vpack.c.b16 %v1883, %v1875
    %v2180 = vpack.c.b16 %v1884, %v1876
    %v2181 = vpack.c.b16 %v1885, %v1877
    %v2182 = vpack.c.b16 %v1894, %v1886
    %v2183 = vpack.c.b16 %v1895, %v1887
    %v2184 = vpack.c.b16 %v1896, %v1888
    %v2185 = vpack.c.b16 %v1897, %v1889
    %v2186 = vpack.c.b16 %v1898, %v1890
    %v2187 = vpack.c.b16 %v1899, %v1891
    %v2188 = vpack.c.b16 %v1900, %v1892
    %v2189 = vpack.c.b16 %v1901, %v1893
    %v2190 = vpack.c.b16 %v1910, %v1902
    %v2191 = vpack.c.b16 %v1911, %v1903
    %v2192 = vpack.c.b16 %v1912, %v1904
    %v2193 = vpack.c.b16 %v1913, %v1905
    %v2194 = vpack.c.b16 %v1914, %v1906
    %v2195 = vpack.c.b16 %v1915, %v1907
    %v2196 = vpack.c.b16 %v1916, %v1908
    %v2197 = vpack.c.b16 %v1917, %v1909
    %v2198 = vpack.c.b16 %v1926, %v1918
    %v2199 = vpack.c.b16 %v1927, %v1919
    %v2200 = vpack.c.b16 %v1928, %v1920
    %v2201 = vpack.c.b16 %v1929, %v1921
    %v2202 = vpack.c.b16 %v1930, %v1922
    %v2203 = vpack.c.b16 %v1931, %v1923
    %v2204 = vpack.c.b16 %v1932, %v1924
    %v2205 = vpack.c.b16 %v1933, %v1925
    %v2206 = vpack.c.b16 %v1942, %v1934
    %v2207 = vpack.c.b16 %v1943, %v1935
    %v2208 = vpack.c.b16 %v1944, %v1936
    %v2209 = vpack.c.b16 %v1945, %v1937
    %v2210 = vpack.c.b16 %v1946, %v1938
    %v2211 = vpack.c.b16 %v1947, %v1939
    %v2212 = vpack.c.b16 %v1948, %v1940
    %v2213 = vpack.c.b16 %v1949, %v1941
    %v2214 = vpack.c.b16 %v1958, %v1950
    %v2215 = vpack.c.b16 %v1959, %v1951
    %v2216 = vpack.c.b16 %v1960, %v1952
    %v2217 = vpack.c.b16 %v1961, %v1953
    %v2218 = vpack.c.b16 %v1962, %v1954
    %v2219 = vpack.c.b16 %v1963, %v1955
    %v2220 = vpack.c.b16 %v1964, %v1956
    %v2221 = vpack.c.b16 %v1965, %v1957
    %2478 = vmatprep.subr.bf16.mxu0 %v1967
    %2479 = vmatpush1.bf16.msra.mxu0 %v1966
    %2480 = vmatprep.subr.bf16.mxu0 %v1975
    %2481 = vmatpush1.bf16.msra.mxu0 %v1974
    %2482 = vmatprep.subr.bf16.mxu0 %v1983
    %2483 = vmatpush1.bf16.msra.mxu0 %v1982
    %2484 = vmatprep.subr.bf16.mxu0 %v1991
    %2485 = vmatpush1.bf16.msra.mxu0 %v1990
    %2486 = vmatprep.subr.bf16.mxu0 %v1999
    %2487 = vmatpush1.bf16.msra.mxu0 %v1998
    %2488 = vmatprep.subr.bf16.mxu0 %v2007
    %2489 = vmatpush1.bf16.msra.mxu0 %v2006
    %2490 = vmatprep.subr.bf16.mxu0 %v2015
    %2491 = vmatpush1.bf16.msra.mxu0 %v2014
    %2492 = vmatprep.subr.bf16.mxu0 %v2023
    %2493 = vmatpush1.bf16.msra.mxu0 %v2022
    %2494 = vmatprep.subr.bf16.mxu0 %v2031
    %2495 = vmatpush1.bf16.msra.mxu0 %v2030
    %2496 = vmatprep.subr.bf16.mxu0 %v2039
    %2497 = vmatpush1.bf16.msra.mxu0 %v2038
    %2498 = vmatprep.subr.bf16.mxu0 %v2047
    %2499 = vmatpush1.bf16.msra.mxu0 %v2046
    %2500 = vmatprep.subr.bf16.mxu0 %v2055
    %2501 = vmatpush1.bf16.msra.mxu0 %v2054
    %2502 = vmatprep.subr.bf16.mxu0 %v2063
    %2503 = vmatpush1.bf16.msra.mxu0 %v2062
    %2504 = vmatprep.subr.bf16.mxu0 %v2071
    %2505 = vmatpush1.bf16.msra.mxu0 %v2070
    %2506 = vmatprep.subr.bf16.mxu0 %v2079
    %2507 = vmatpush1.bf16.msra.mxu0 %v2078
    %2508 = vmatprep.subr.bf16.mxu0 %v2087
    %2509 = vmatpush1.bf16.msra.mxu0 %v2086
    %2510 = vmatprep.mubr.bf16.mxu0 %v897
    %2511 = vmatmul.mubr.bf16.gmra.mrb[0].mxu0 %v896
    %v2512 = vpop.f32.mrb[0].mxu0
    %v2513 = vadd.f32 %v1161, %v2512
    %v2514 = vpop.f32.mrb[0].mxu0
    %v2515 = vadd.f32 %v1165, %v2514
    %v2516 = vpop.f32.mrb[0].mxu0
    %v2517 = vpop.f32.mrb[0].mxu0
    %2518 = vdwg.mxu0
    %2519 = vmatprep.subr.bf16.mxu0 %v2095
    %2520 = vmatpush1.bf16.msra.mxu0 %v2094
    %2521 = vmatprep.subr.bf16.mxu0 %v2103
    %2522 = vmatpush1.bf16.msra.mxu0 %v2102
    %2523 = vmatprep.subr.bf16.mxu0 %v2111
    %2524 = vmatpush1.bf16.msra.mxu0 %v2110
    %2525 = vmatprep.subr.bf16.mxu0 %v2119
    %2526 = vmatpush1.bf16.msra.mxu0 %v2118
    %2527 = vmatprep.subr.bf16.mxu0 %v2127
    %2528 = vmatpush1.bf16.msra.mxu0 %v2126
    %2529 = vmatprep.subr.bf16.mxu0 %v2135
    %2530 = vmatpush1.bf16.msra.mxu0 %v2134
    %2531 = vmatprep.subr.bf16.mxu0 %v2143
    %2532 = vmatpush1.bf16.msra.mxu0 %v2142
    %2533 = vmatprep.subr.bf16.mxu0 %v2151
    %2534 = vmatpush1.bf16.msra.mxu0 %v2150
    %2535 = vmatprep.subr.bf16.mxu0 %v2159
    %2536 = vmatpush1.bf16.msra.mxu0 %v2158
    %2537 = vmatprep.subr.bf16.mxu0 %v2167
    %2538 = vmatpush1.bf16.msra.mxu0 %v2166
    %2539 = vmatprep.subr.bf16.mxu0 %v2175
    %2540 = vmatpush1.bf16.msra.mxu0 %v2174
    %2541 = vmatprep.subr.bf16.mxu0 %v2183
    %2542 = vmatpush1.bf16.msra.mxu0 %v2182
    %2543 = vmatprep.subr.bf16.mxu0 %v2191
    %2544 = vmatpush1.bf16.msra.mxu0 %v2190
    %2545 = vmatprep.subr.bf16.mxu0 %v2199
    %2546 = vmatpush1.bf16.msra.mxu0 %v2198
    %2547 = vmatprep.subr.bf16.mxu0 %v2207
    %2548 = vmatpush1.bf16.msra.mxu0 %v2206
    %2549 = vmatprep.subr.bf16.mxu0 %v2215
    %2550 = vmatpush1.bf16.msra.mxu0 %v2214
    %2551 = vmatprep.mubr.bf16.mxu0 %v899
    %2552 = vmatmul.mubr.bf16.gmra.mrb[0].mxu0 %v898
    %v2553 = vpop.f32.mrb[0].mxu0
    %v2554 = vadd.f32 %v2513, %v2553
    %v2555 = vpop.f32.mrb[0].mxu0
    %v2556 = vadd.f32 %v2515, %v2555
    %v2557 = vpop.f32.mrb[0].mxu0
    %v2558 = vpop.f32.mrb[0].mxu0
    %2559 = vdwg.mxu0
    %2560 = vmatprep.subr.bf16.mxu0 %v1969
    %2561 = vmatpush1.bf16.msra.mxu0 %v1968
    %2562 = vmatprep.subr.bf16.mxu0 %v1977
    %2563 = vmatpush1.bf16.msra.mxu0 %v1976
    %2564 = vmatprep.subr.bf16.mxu0 %v1985
    %2565 = vmatpush1.bf16.msra.mxu0 %v1984
    %2566 = vmatprep.subr.bf16.mxu0 %v1993
    %2567 = vmatpush1.bf16.msra.mxu0 %v1992
    %2568 = vmatprep.subr.bf16.mxu0 %v2001
    %2569 = vmatpush1.bf16.msra.mxu0 %v2000
    %2570 = vmatprep.subr.bf16.mxu0 %v2009
    %2571 = vmatpush1.bf16.msra.mxu0 %v2008
    %2572 = vmatprep.subr.bf16.mxu0 %v2017
    %2573 = vmatpush1.bf16.msra.mxu0 %v2016
    %2574 = vmatprep.subr.bf16.mxu0 %v2025
    %2575 = vmatpush1.bf16.msra.mxu0 %v2024
    %2576 = vmatprep.subr.bf16.mxu0 %v2033
    %2577 = vmatpush1.bf16.msra.mxu0 %v2032
    %2578 = vmatprep.subr.bf16.mxu0 %v2041
    %2579 = vmatpush1.bf16.msra.mxu0 %v2040
    %2580 = vmatprep.subr.bf16.mxu0 %v2049
    %2581 = vmatpush1.bf16.msra.mxu0 %v2048
    %2582 = vmatprep.subr.bf16.mxu0 %v2057
    %2583 = vmatpush1.bf16.msra.mxu0 %v2056
    %2584 = vmatprep.subr.bf16.mxu0 %v2065
    %2585 = vmatpush1.bf16.msra.mxu0 %v2064
    %2586 = vmatprep.subr.bf16.mxu0 %v2073
    %2587 = vmatpush1.bf16.msra.mxu0 %v2072
    %2588 = vmatprep.subr.bf16.mxu0 %v2081
    %2589 = vmatpush1.bf16.msra.mxu0 %v2080
    %2590 = vmatprep.subr.bf16.mxu0 %v2089
    %2591 = vmatpush1.bf16.msra.mxu0 %v2088
    %2592 = vmatprep.mubr.bf16.mxu0 %v897
    %2593 = vmatmul.mubr.bf16.gmra.mrb[0].mxu0 %v896
    %v2594 = vpop.f32.mrb[0].mxu0
    %v2595 = vadd.f32 %v1169, %v2594
    %v2596 = vpop.f32.mrb[0].mxu0
    %v2597 = vadd.f32 %v1173, %v2596
    %v2598 = vpop.f32.mrb[0].mxu0
    %v2599 = vpop.f32.mrb[0].mxu0
    %2600 = vdwg.mxu0
    %2601 = vmatprep.subr.bf16.mxu0 %v2097
    %2602 = vmatpush1.bf16.msra.mxu0 %v2096
    %2603 = vmatprep.subr.bf16.mxu0 %v2105
    %2604 = vmatpush1.bf16.msra.mxu0 %v2104
    %2605 = vmatprep.subr.bf16.mxu0 %v2113
    %2606 = vmatpush1.bf16.msra.mxu0 %v2112
    %2607 = vmatprep.subr.bf16.mxu0 %v2121
    %2608 = vmatpush1.bf16.msra.mxu0 %v2120
    %2609 = vmatprep.subr.bf16.mxu0 %v2129
    %2610 = vmatpush1.bf16.msra.mxu0 %v2128
    %2611 = vmatprep.subr.bf16.mxu0 %v2137
    %2612 = vmatpush1.bf16.msra.mxu0 %v2136
    %2613 = vmatprep.subr.bf16.mxu0 %v2145
    %2614 = vmatpush1.bf16.msra.mxu0 %v2144
    %2615 = vmatprep.subr.bf16.mxu0 %v2153
    %2616 = vmatpush1.bf16.msra.mxu0 %v2152
    %2617 = vmatprep.subr.bf16.mxu0 %v2161
    %2618 = vmatpush1.bf16.msra.mxu0 %v2160
    %2619 = vmatprep.subr.bf16.mxu0 %v2169
    %2620 = vmatpush1.bf16.msra.mxu0 %v2168
    %2621 = vmatprep.subr.bf16.mxu0 %v2177
    %2622 = vmatpush1.bf16.msra.mxu0 %v2176
    %2623 = vmatprep.subr.bf16.mxu0 %v2185
    %2624 = vmatpush1.bf16.msra.mxu0 %v2184
    %2625 = vmatprep.subr.bf16.mxu0 %v2193
    %2626 = vmatpush1.bf16.msra.mxu0 %v2192
    %2627 = vmatprep.subr.bf16.mxu0 %v2201
    %2628 = vmatpush1.bf16.msra.mxu0 %v2200
    %2629 = vmatprep.subr.bf16.mxu0 %v2209
    %2630 = vmatpush1.bf16.msra.mxu0 %v2208
    %2631 = vmatprep.subr.bf16.mxu0 %v2217
    %2632 = vmatpush1.bf16.msra.mxu0 %v2216
    %2633 = vmatprep.mubr.bf16.mxu0 %v899
    %2634 = vmatmul.mubr.bf16.gmra.mrb[0].mxu0 %v898
    %v2635 = vpop.f32.mrb[0].mxu0
    %v2636 = vadd.f32 %v2595, %v2635
    %v2637 = vpop.f32.mrb[0].mxu0
    %v2638 = vadd.f32 %v2597, %v2637
    %v2639 = vpop.f32.mrb[0].mxu0
    %v2640 = vpop.f32.mrb[0].mxu0
    %2641 = vdwg.mxu0
    %2642 = vmatprep.subr.bf16.mxu0 %v1971
    %2643 = vmatpush1.bf16.msra.mxu0 %v1970
    %2644 = vmatprep.subr.bf16.mxu0 %v1979
    %2645 = vmatpush1.bf16.msra.mxu0 %v1978
    %2646 = vmatprep.subr.bf16.mxu0 %v1987
    %2647 = vmatpush1.bf16.msra.mxu0 %v1986
    %2648 = vmatprep.subr.bf16.mxu0 %v1995
    %2649 = vmatpush1.bf16.msra.mxu0 %v1994
    %2650 = vmatprep.subr.bf16.mxu0 %v2003
    %2651 = vmatpush1.bf16.msra.mxu0 %v2002
    %2652 = vmatprep.subr.bf16.mxu0 %v2011
    %2653 = vmatpush1.bf16.msra.mxu0 %v2010
    %2654 = vmatprep.subr.bf16.mxu0 %v2019
    %2655 = vmatpush1.bf16.msra.mxu0 %v2018
    %2656 = vmatprep.subr.bf16.mxu0 %v2027
    %2657 = vmatpush1.bf16.msra.mxu0 %v2026
    %2658 = vmatprep.subr.bf16.mxu0 %v2035
    %2659 = vmatpush1.bf16.msra.mxu0 %v2034
    %2660 = vmatprep.subr.bf16.mxu0 %v2043
    %2661 = vmatpush1.bf16.msra.mxu0 %v2042
    %2662 = vmatprep.subr.bf16.mxu0 %v2051
    %2663 = vmatpush1.bf16.msra.mxu0 %v2050
    %2664 = vmatprep.subr.bf16.mxu0 %v2059
    %2665 = vmatpush1.bf16.msra.mxu0 %v2058
    %2666 = vmatprep.subr.bf16.mxu0 %v2067
    %2667 = vmatpush1.bf16.msra.mxu0 %v2066
    %2668 = vmatprep.subr.bf16.mxu0 %v2075
    %2669 = vmatpush1.bf16.msra.mxu0 %v2074
    %2670 = vmatprep.subr.bf16.mxu0 %v2083
    %2671 = vmatpush1.bf16.msra.mxu0 %v2082
    %2672 = vmatprep.subr.bf16.mxu0 %v2091
    %2673 = vmatpush1.bf16.msra.mxu0 %v2090
    %2674 = vmatprep.mubr.bf16.mxu0 %v897
    %2675 = vmatmul.mubr.bf16.gmra.mrb[0].mxu0 %v896
    %v2676 = vpop.f32.mrb[0].mxu0
    %v2677 = vadd.f32 %v1177, %v2676
    %v2678 = vpop.f32.mrb[0].mxu0
    %v2679 = vadd.f32 %v1181, %v2678
    %v2680 = vpop.f32.mrb[0].mxu0
    %v2681 = vpop.f32.mrb[0].mxu0
    %2682 = vdwg.mxu0
    %2683 = vmatprep.subr.bf16.mxu0 %v2099
    %2684 = vmatpush1.bf16.msra.mxu0 %v2098
    %2685 = vmatprep.subr.bf16.mxu0 %v2107
    %2686 = vmatpush1.bf16.msra.mxu0 %v2106
    %2687 = vmatprep.subr.bf16.mxu0 %v2115
    %2688 = vmatpush1.bf16.msra.mxu0 %v2114
    %2689 = vmatprep.subr.bf16.mxu0 %v2123
    %2690 = vmatpush1.bf16.msra.mxu0 %v2122
    %2691 = vmatprep.subr.bf16.mxu0 %v2131
    %2692 = vmatpush1.bf16.msra.mxu0 %v2130
    %2693 = vmatprep.subr.bf16.mxu0 %v2139
    %2694 = vmatpush1.bf16.msra.mxu0 %v2138
    %2695 = vmatprep.subr.bf16.mxu0 %v2147
    %2696 = vmatpush1.bf16.msra.mxu0 %v2146
    %2697 = vmatprep.subr.bf16.mxu0 %v2155
    %2698 = vmatpush1.bf16.msra.mxu0 %v2154
    %2699 = vmatprep.subr.bf16.mxu0 %v2163
    %2700 = vmatpush1.bf16.msra.mxu0 %v2162
    %2701 = vmatprep.subr.bf16.mxu0 %v2171
    %2702 = vmatpush1.bf16.msra.mxu0 %v2170
    %2703 = vmatprep.subr.bf16.mxu0 %v2179
    %2704 = vmatpush1.bf16.msra.mxu0 %v2178
    %2705 = vmatprep.subr.bf16.mxu0 %v2187
    %2706 = vmatpush1.bf16.msra.mxu0 %v2186
    %2707 = vmatprep.subr.bf16.mxu0 %v2195
    %2708 = vmatpush1.bf16.msra.mxu0 %v2194
    %2709 = vmatprep.subr.bf16.mxu0 %v2203
    %2710 = vmatpush1.bf16.msra.mxu0 %v2202
    %2711 = vmatprep.subr.bf16.mxu0 %v2211
    %2712 = vmatpush1.bf16.msra.mxu0 %v2210
    %2713 = vmatprep.subr.bf16.mxu0 %v2219
    %2714 = vmatpush1.bf16.msra.mxu0 %v2218
    %2715 = vmatprep.mubr.bf16.mxu0 %v899
    %2716 = vmatmul.mubr.bf16.gmra.mrb[0].mxu0 %v898
    %v2717 = vpop.f32.mrb[0].mxu0
    %v2718 = vadd.f32 %v2677, %v2717
    %v2719 = vpop.f32.mrb[0].mxu0
    %v2720 = vadd.f32 %v2679, %v2719
    %v2721 = vpop.f32.mrb[0].mxu0
    %v2722 = vpop.f32.mrb[0].mxu0
    %2723 = vdwg.mxu0
    %2724 = vmatprep.subr.bf16.mxu0 %v1973
    %2725 = vmatpush1.bf16.msra.mxu0 %v1972
    %2726 = vmatprep.subr.bf16.mxu0 %v1981
    %2727 = vmatpush1.bf16.msra.mxu0 %v1980
    %2728 = vmatprep.subr.bf16.mxu0 %v1989
    %2729 = vmatpush1.bf16.msra.mxu0 %v1988
    %2730 = vmatprep.subr.bf16.mxu0 %v1997
    %2731 = vmatpush1.bf16.msra.mxu0 %v1996
    %2732 = vmatprep.subr.bf16.mxu0 %v2005
    %2733 = vmatpush1.bf16.msra.mxu0 %v2004
    %2734 = vmatprep.subr.bf16.mxu0 %v2013
    %2735 = vmatpush1.bf16.msra.mxu0 %v2012
    %2736 = vmatprep.subr.bf16.mxu0 %v2021
    %2737 = vmatpush1.bf16.msra.mxu0 %v2020
    %2738 = vmatprep.subr.bf16.mxu0 %v2029
    %2739 = vmatpush1.bf16.msra.mxu0 %v2028
    %2740 = vmatprep.subr.bf16.mxu0 %v2037
    %2741 = vmatpush1.bf16.msra.mxu0 %v2036
    %2742 = vmatprep.subr.bf16.mxu0 %v2045
    %2743 = vmatpush1.bf16.msra.mxu0 %v2044
    %2744 = vmatprep.subr.bf16.mxu0 %v2053
    %2745 = vmatpush1.bf16.msra.mxu0 %v2052
    %2746 = vmatprep.subr.bf16.mxu0 %v2061
    %2747 = vmatpush1.bf16.msra.mxu0 %v2060
    %2748 = vmatprep.subr.bf16.mxu0 %v2069
    %2749 = vmatpush1.bf16.msra.mxu0 %v2068
    %2750 = vmatprep.subr.bf16.mxu0 %v2077
    %2751 = vmatpush1.bf16.msra.mxu0 %v2076
    %2752 = vmatprep.subr.bf16.mxu0 %v2085
    %2753 = vmatpush1.bf16.msra.mxu0 %v2084
    %2754 = vmatprep.subr.bf16.mxu0 %v2093
    %2755 = vmatpush1.bf16.msra.mxu0 %v2092
    %2756 = vmatprep.mubr.bf16.mxu0 %v897
    %2757 = vmatmul.mubr.bf16.gmra.mrb[0].mxu0 %v896
    %v2758 = vpop.f32.mrb[0].mxu0
    %v2759 = vadd.f32 %v1185, %v2758
    %v2760 = vpop.f32.mrb[0].mxu0
    %v2761 = vadd.f32 %v1189, %v2760
    %v2762 = vpop.f32.mrb[0].mxu0
    %v2763 = vpop.f32.mrb[0].mxu0
    %2764 = vdwg.mxu0
    %2765 = vmatprep.subr.bf16.mxu0 %v2101
    %2766 = vmatpush1.bf16.msra.mxu0 %v2100
    %2767 = vmatprep.subr.bf16.mxu0 %v2109
    %2768 = vmatpush1.bf16.msra.mxu0 %v2108
    %2769 = vmatprep.subr.bf16.mxu0 %v2117
    %2770 = vmatpush1.bf16.msra.mxu0 %v2116
    %2771 = vmatprep.subr.bf16.mxu0 %v2125
    %2772 = vmatpush1.bf16.msra.mxu0 %v2124
    %2773 = vmatprep.subr.bf16.mxu0 %v2133
    %2774 = vmatpush1.bf16.msra.mxu0 %v2132
    %2775 = vmatprep.subr.bf16.mxu0 %v2141
    %2776 = vmatpush1.bf16.msra.mxu0 %v2140
    %2777 = vmatprep.subr.bf16.mxu0 %v2149
    %2778 = vmatpush1.bf16.msra.mxu0 %v2148
    %2779 = vmatprep.subr.bf16.mxu0 %v2157
    %2780 = vmatpush1.bf16.msra.mxu0 %v2156
    %2781 = vmatprep.subr.bf16.mxu0 %v2165
    %2782 = vmatpush1.bf16.msra.mxu0 %v2164
    %2783 = vmatprep.subr.bf16.mxu0 %v2173
    %2784 = vmatpush1.bf16.msra.mxu0 %v2172
    %2785 = vmatprep.subr.bf16.mxu0 %v2181
    %2786 = vmatpush1.bf16.msra.mxu0 %v2180
    %2787 = vmatprep.subr.bf16.mxu0 %v2189
    %2788 = vmatpush1.bf16.msra.mxu0 %v2188
    %2789 = vmatprep.subr.bf16.mxu0 %v2197
    %2790 = vmatpush1.bf16.msra.mxu0 %v2196
    %2791 = vmatprep.subr.bf16.mxu0 %v2205
    %2792 = vmatpush1.bf16.msra.mxu0 %v2204
    %2793 = vmatprep.subr.bf16.mxu0 %v2213
    %2794 = vmatpush1.bf16.msra.mxu0 %v2212
    %2795 = vmatprep.subr.bf16.mxu0 %v2221
    %2796 = vmatpush1.bf16.msra.mxu0 %v2220
    %2797 = vmatprep.mubr.bf16.mxu0 %v899
    %2798 = vmatmul.mubr.bf16.gmra.mrb[0].mxu0 %v898
    %v2799 = vpop.f32.mrb[0].mxu0
    %v2800 = vadd.f32 %v2759, %v2799
    %v2801 = vpop.f32.mrb[0].mxu0
    %v2802 = vadd.f32 %v2761, %v2801
    %v2803 = vpop.f32.mrb[0].mxu0
    %v2804 = vpop.f32.mrb[0].mxu0
    %2805 = vdwg.mxu0
    %v2806 = vpack.c.bf16 %v2554, %v2554
    %v2807 = vpack.c.bf16 %v2556, %v2556
    %v2808 = vpack.c.bf16 %v2636, %v2636
    %v2809 = vpack.c.bf16 %v2638, %v2638
    %v2810 = vpack.c.bf16 %v2718, %v2718
    %v2811 = vpack.c.bf16 %v2720, %v2720
    %v2812 = vpack.c.bf16 %v2800, %v2800
    %v2813 = vpack.c.bf16 %v2802, %v2802
    %vm2814 = vcmp.gt.bf16.partialorder %v2806, 0
    %vm2815 = vcmp.gt.bf16.partialorder %v2807, 0
    %vm2816 = vcmp.gt.bf16.partialorder %v2808, 0
    %vm2817 = vcmp.gt.bf16.partialorder %v2809, 0
    %vm2818 = vcmp.gt.bf16.partialorder %v2810, 0
    %vm2819 = vcmp.gt.bf16.partialorder %v2811, 0
    %vm2820 = vcmp.gt.bf16.partialorder %v2812, 0
    %vm2821 = vcmp.gt.bf16.partialorder %v2813, 0
    %v2822 = vmul.bf16 %v2806, 1045249613
    %v2823 = vmul.bf16 %v2807, 1045249613
    %v2824 = vmul.bf16 %v2808, 1045249613
    %v2825 = vmul.bf16 %v2809, 1045249613
    %v2826 = vmul.bf16 %v2810, 1045249613
    %v2827 = vmul.bf16 %v2811, 1045249613
    %v2828 = vmul.bf16 %v2812, 1045249613
    %v2829 = vmul.bf16 %v2813, 1045249613
    %v2830 = vsel %vm2814, %v2806, %v2822
    %v2831 = vsel %vm2815, %v2807, %v2823
    %v2832 = vsel %vm2816, %v2808, %v2824
    %v2833 = vsel %vm2817, %v2809, %v2825
    %v2834 = vsel %vm2818, %v2810, %v2826
    %v2835 = vsel %vm2819, %v2811, %v2827
    %v2836 = vsel %vm2820, %v2812, %v2828
    %v2837 = vsel %vm2821, %v2813, %v2829
    %v2838 = vld [vmem:[#allocation12] sm:$0xff]
    %v2839 = vld [vmem:[#allocation12 + $0x8] sm:$0xff]
    %v2840 = vld [vmem:[#allocation12 + $0x10] sm:$0xff]
    %v2841 = vld [vmem:[#allocation12 + $0x18] sm:$0xf]
    %v2842 = vld [vmem:[#allocation12 + $0x1c] sm:$0xff]
    %v2843 = vld [vmem:[#allocation12 + $0x24] sm:$0xff]
    %v2844 = vld [vmem:[#allocation12 + $0x2c] sm:$0xff]
    %v2845 = vld [vmem:[#allocation12 + $0x34] sm:$0xf]
    %v2846 = vld [vmem:[#allocation12 + $0x38] sm:$0xff]
    %v2847 = vld [vmem:[#allocation12 + $0x40] sm:$0xff]
    %v2848 = vld [vmem:[#allocation12 + $0x48] sm:$0xff]
    %v2849 = vld [vmem:[#allocation12 + $0x50] sm:$0xf]
    %v2850 = vld [vmem:[#allocation12 + $0x54] sm:$0xff]
    %v2851 = vld [vmem:[#allocation12 + $0x5c] sm:$0xff]
    %v2852 = vld [vmem:[#allocation12 + $0x64] sm:$0xff]
    %v2853 = vld [vmem:[#allocation12 + $0x6c] sm:$0xf]
    %v2854 = vld [vmem:[#allocation12 + $0x70] sm:$0xff]
    %v2855 = vld [vmem:[#allocation12 + $0x78] sm:$0xff]
    %v2856 = vld [vmem:[#allocation12 + $0x80] sm:$0xff]
    %v2857 = vld [vmem:[#allocation12 + $0x88] sm:$0xf]
    %v2858 = vld [vmem:[#allocation12 + $0x8c] sm:$0xff]
    %v2859 = vld [vmem:[#allocation12 + $0x94] sm:$0xff]
    %v2860 = vld [vmem:[#allocation12 + $0x9c] sm:$0xff]
    %v2861 = vld [vmem:[#allocation12 + $0xa4] sm:$0xf]
    %v2862 = vld [vmem:[#allocation12 + $0xa8] sm:$0xff]
    %v2863 = vld [vmem:[#allocation12 + $0xb0] sm:$0xff]
    %v2864 = vld [vmem:[#allocation12 + $0xb8] sm:$0xff]
    %v2865 = vld [vmem:[#allocation12 + $0xc0] sm:$0xf]
    %v2866 = vld [vmem:[#allocation12 + $0xc4] sm:$0xff]
    %v2867 = vld [vmem:[#allocation12 + $0xcc] sm:$0xff]
    %v2868 = vld [vmem:[#allocation12 + $0xd4] sm:$0xff]
    %v2869 = vld [vmem:[#allocation12 + $0xdc] sm:$0xf]
    %v2870 = vld [vmem:[#allocation12 + $0xe0] sm:$0xff]
    %v2871 = vld [vmem:[#allocation12 + $0xe8] sm:$0xff]
    %v2872 = vld [vmem:[#allocation12 + $0xf0] sm:$0xff]
    %v2873 = vld [vmem:[#allocation12 + $0xf8] sm:$0xf]
    %v2874 = vld [vmem:[#allocation12 + $0xfc] sm:$0xff]
    %v2875 = vld [vmem:[#allocation12 + $0x104] sm:$0xff]
    %v2876 = vld [vmem:[#allocation12 + $0x10c] sm:$0xff]
    %v2877 = vld [vmem:[#allocation12 + $0x114] sm:$0xf]
    %v2878 = vld [vmem:[#allocation12 + $0x118] sm:$0xff]
    %v2879 = vld [vmem:[#allocation12 + $0x120] sm:$0xff]
    %v2880 = vld [vmem:[#allocation12 + $0x128] sm:$0xff]
    %v2881 = vld [vmem:[#allocation12 + $0x130] sm:$0xf]
    %v2882 = vld [vmem:[#allocation12 + $0x134] sm:$0xff]
    %v2883 = vld [vmem:[#allocation12 + $0x13c] sm:$0xff]
    %v2884 = vld [vmem:[#allocation12 + $0x144] sm:$0xff]
    %v2885 = vld [vmem:[#allocation12 + $0x14c] sm:$0xf]
    %v2886 = vld [vmem:[#allocation12 + $0x150] sm:$0xff]
    %v2887 = vld [vmem:[#allocation12 + $0x158] sm:$0xff]
    %v2888 = vld [vmem:[#allocation12 + $0x160] sm:$0xff]
    %v2889 = vld [vmem:[#allocation12 + $0x168] sm:$0xf]
    %v2890 = vld [vmem:[#allocation12 + $0x16c] sm:$0xff]
    %v2891 = vld [vmem:[#allocation12 + $0x174] sm:$0xff]
    %v2892 = vld [vmem:[#allocation12 + $0x17c] sm:$0xff]
    %v2893 = vld [vmem:[#allocation12 + $0x184] sm:$0xf]
    %v2894 = vld [vmem:[#allocation12 + $0x188] sm:$0xff]
    %v2895 = vld [vmem:[#allocation12 + $0x190] sm:$0xff]
    %v2896 = vld [vmem:[#allocation12 + $0x198] sm:$0xff]
    %v2897 = vld [vmem:[#allocation12 + $0x1a0] sm:$0xf]
    %v2898 = vld [vmem:[#allocation12 + $0x1a4] sm:$0xff]
    %v2899 = vld [vmem:[#allocation12 + $0x1ac] sm:$0xff]
    %v2900 = vld [vmem:[#allocation12 + $0x1b4] sm:$0xff]
    %v2901 = vld [vmem:[#allocation12 + $0x1bc] sm:$0xf]
    %v2902 = vld [vmem:[#allocation12 + $0x1c0] sm:$0xff]
    %v2903 = vld [vmem:[#allocation12 + $0x1c8] sm:$0xff]
    %v2904 = vld [vmem:[#allocation12 + $0x1d0] sm:$0xff]
    %v2905 = vld [vmem:[#allocation12 + $0x1d8] sm:$0xf]
    %v2906 = vld [vmem:[#allocation12 + $0x1dc] sm:$0xff]
    %v2907 = vld [vmem:[#allocation12 + $0x1e4] sm:$0xff]
    %v2908 = vld [vmem:[#allocation12 + $0x1ec] sm:$0xff]
    %v2909 = vld [vmem:[#allocation12 + $0x1f4] sm:$0xf]
    %v2910 = vld [vmem:[#allocation12 + $0x1f8] sm:$0xff]
    %v2911 = vld [vmem:[#allocation12 + $0x200] sm:$0xff]
    %v2912 = vld [vmem:[#allocation12 + $0x208] sm:$0xff]
    %v2913 = vld [vmem:[#allocation12 + $0x210] sm:$0xf]
    %v2914 = vld [vmem:[#allocation12 + $0x214] sm:$0xff]
    %v2915 = vld [vmem:[#allocation12 + $0x21c] sm:$0xff]
    %v2916 = vld [vmem:[#allocation12 + $0x224] sm:$0xff]
    %v2917 = vld [vmem:[#allocation12 + $0x22c] sm:$0xf]
    %v2918 = vld [vmem:[#allocation12 + $0x230] sm:$0xff]
    %v2919 = vld [vmem:[#allocation12 + $0x238] sm:$0xff]
    %v2920 = vld [vmem:[#allocation12 + $0x240] sm:$0xff]
    %v2921 = vld [vmem:[#allocation12 + $0x248] sm:$0xf]
    %v2922 = vld [vmem:[#allocation12 + $0x24c] sm:$0xff]
    %v2923 = vld [vmem:[#allocation12 + $0x254] sm:$0xff]
    %v2924 = vld [vmem:[#allocation12 + $0x25c] sm:$0xff]
    %v2925 = vld [vmem:[#allocation12 + $0x264] sm:$0xf]
    %v2926 = vld [vmem:[#allocation12 + $0x268] sm:$0xff]
    %v2927 = vld [vmem:[#allocation12 + $0x270] sm:$0xff]
    %v2928 = vld [vmem:[#allocation12 + $0x278] sm:$0xff]
    %v2929 = vld [vmem:[#allocation12 + $0x280] sm:$0xf]
    %v2930 = vld [vmem:[#allocation12 + $0x284] sm:$0xff]
    %v2931 = vld [vmem:[#allocation12 + $0x28c] sm:$0xff]
    %v2932 = vld [vmem:[#allocation12 + $0x294] sm:$0xff]
    %v2933 = vld [vmem:[#allocation12 + $0x29c] sm:$0xf]
    %v2934 = vld [vmem:[#allocation12 + $0x2a0] sm:$0xff]
    %v2935 = vld [vmem:[#allocation12 + $0x2a8] sm:$0xff]
    %v2936 = vld [vmem:[#allocation12 + $0x2b0] sm:$0xff]
    %v2937 = vld [vmem:[#allocation12 + $0x2b8] sm:$0xf]
    %v2938 = vld [vmem:[#allocation12 + $0x2bc] sm:$0xff]
    %v2939 = vld [vmem:[#allocation12 + $0x2c4] sm:$0xff]
    %v2940 = vld [vmem:[#allocation12 + $0x2cc] sm:$0xff]
    %v2941 = vld [vmem:[#allocation12 + $0x2d4] sm:$0xf]
    %v2942 = vld [vmem:[#allocation12 + $0x2d8] sm:$0xff]
    %v2943 = vld [vmem:[#allocation12 + $0x2e0] sm:$0xff]
    %v2944 = vld [vmem:[#allocation12 + $0x2e8] sm:$0xff]
    %v2945 = vld [vmem:[#allocation12 + $0x2f0] sm:$0xf]
    %v2946 = vld [vmem:[#allocation12 + $0x2f4] sm:$0xff]
    %v2947 = vld [vmem:[#allocation12 + $0x2fc] sm:$0xff]
    %v2948 = vld [vmem:[#allocation12 + $0x304] sm:$0xff]
    %v2949 = vld [vmem:[#allocation12 + $0x30c] sm:$0xf]
    %v2950 = vld [vmem:[#allocation12 + $0x310] sm:$0xff]
    %v2951 = vld [vmem:[#allocation12 + $0x318] sm:$0xff]
    %v2952 = vld [vmem:[#allocation12 + $0x320] sm:$0xff]
    %v2953 = vld [vmem:[#allocation12 + $0x328] sm:$0xf]
    %v2954 = vld [vmem:[#allocation12 + $0x32c] sm:$0xff]
    %v2955 = vld [vmem:[#allocation12 + $0x334] sm:$0xff]
    %v2956 = vld [vmem:[#allocation12 + $0x33c] sm:$0xff]
    %v2957 = vld [vmem:[#allocation12 + $0x344] sm:$0xf]
    %v2958 = vld [vmem:[#allocation12 + $0x348] sm:$0xff]
    %v2959 = vld [vmem:[#allocation12 + $0x350] sm:$0xff]
    %v2960 = vld [vmem:[#allocation12 + $0x358] sm:$0xff]
    %v2961 = vld [vmem:[#allocation12 + $0x360] sm:$0xf]
    %v2962 = vld [vmem:[#allocation12 + $0x364] sm:$0xff]
    %v2963 = vld [vmem:[#allocation12 + $0x36c] sm:$0xff]
    %v2964 = vld [vmem:[#allocation12 + $0x374] sm:$0xff]
    %v2965 = vld [vmem:[#allocation12 + $0x37c] sm:$0xf]
    %v2966 = vld [vmem:[#allocation12 + $0x380] sm:$0xff]
    %v2967 = vld [vmem:[#allocation12 + $0x388] sm:$0xff]
    %v2968 = vld [vmem:[#allocation12 + $0x390] sm:$0xff]
    %v2969 = vld [vmem:[#allocation12 + $0x398] sm:$0xf]
    %v2970 = vld [vmem:[#allocation12 + $0x39c] sm:$0xff]
    %v2971 = vld [vmem:[#allocation12 + $0x3a4] sm:$0xff]
    %v2972 = vld [vmem:[#allocation12 + $0x3ac] sm:$0xff]
    %v2973 = vld [vmem:[#allocation12 + $0x3b4] sm:$0xf]
    %v2974 = vld [vmem:[#allocation12 + $0x3b8] sm:$0xff]
    %v2975 = vld [vmem:[#allocation12 + $0x3c0] sm:$0xff]
    %v2976 = vld [vmem:[#allocation12 + $0x3c8] sm:$0xff]
    %v2977 = vld [vmem:[#allocation12 + $0x3d0] sm:$0xf]
    %v2978 = vld [vmem:[#allocation12 + $0x3d4] sm:$0xff]
    %v2979 = vld [vmem:[#allocation12 + $0x3dc] sm:$0xff]
    %v2980 = vld [vmem:[#allocation12 + $0x3e4] sm:$0xff]
    %v2981 = vld [vmem:[#allocation12 + $0x3ec] sm:$0xf]
    %v2982 = vld [vmem:[#allocation12 + $0x3f0] sm:$0xff]
    %v2983 = vld [vmem:[#allocation12 + $0x3f8] sm:$0xff]
    %v2984 = vld [vmem:[#allocation12 + $0x400] sm:$0xff]
    %v2985 = vld [vmem:[#allocation12 + $0x408] sm:$0xf]
    %v2986 = vld [vmem:[#allocation12 + $0x40c] sm:$0xff]
    %v2987 = vld [vmem:[#allocation12 + $0x414] sm:$0xff]
    %v2988 = vld [vmem:[#allocation12 + $0x41c] sm:$0xff]
    %v2989 = vld [vmem:[#allocation12 + $0x424] sm:$0xf]
    %v2990 = vld [vmem:[#allocation12 + $0x428] sm:$0xff]
    %v2991 = vld [vmem:[#allocation12 + $0x430] sm:$0xff]
    %v2992 = vld [vmem:[#allocation12 + $0x438] sm:$0xff]
    %v2993 = vld [vmem:[#allocation12 + $0x440] sm:$0xf]
    %v2994 = vld [vmem:[#allocation12 + $0x444] sm:$0xff]
    %v2995 = vld [vmem:[#allocation12 + $0x44c] sm:$0xff]
    %v2996 = vld [vmem:[#allocation12 + $0x454] sm:$0xff]
    %v2997 = vld [vmem:[#allocation12 + $0x45c] sm:$0xf]
    %v2998 = vld [vmem:[#allocation12 + $0x460] sm:$0xff]
    %v2999 = vld [vmem:[#allocation12 + $0x468] sm:$0xff]
    %v3000 = vld [vmem:[#allocation12 + $0x470] sm:$0xff]
    %v3001 = vld [vmem:[#allocation12 + $0x478] sm:$0xf]
    %v3002 = vld [vmem:[#allocation12 + $0x47c] sm:$0xff]
    %v3003 = vld [vmem:[#allocation12 + $0x484] sm:$0xff]
    %v3004 = vld [vmem:[#allocation12 + $0x48c] sm:$0xff]
    %v3005 = vld [vmem:[#allocation12 + $0x494] sm:$0xf]
    %v3006 = vld [vmem:[#allocation12 + $0x498] sm:$0xff]
    %v3007 = vld [vmem:[#allocation12 + $0x4a0] sm:$0xff]
    %v3008 = vld [vmem:[#allocation12 + $0x4a8] sm:$0xff]
    %v3009 = vld [vmem:[#allocation12 + $0x4b0] sm:$0xf]
    %v3010 = vld [vmem:[#allocation12 + $0x4b4] sm:$0xff]
    %v3011 = vld [vmem:[#allocation12 + $0x4bc] sm:$0xff]
    %v3012 = vld [vmem:[#allocation12 + $0x4c4] sm:$0xff]
    %v3013 = vld [vmem:[#allocation12 + $0x4cc] sm:$0xf]
    %v3014 = vld [vmem:[#allocation12 + $0x4d0] sm:$0xff]
    %v3015 = vld [vmem:[#allocation12 + $0x4d8] sm:$0xff]
    %v3016 = vld [vmem:[#allocation12 + $0x4e0] sm:$0xff]
    %v3017 = vld [vmem:[#allocation12 + $0x4e8] sm:$0xf]
    %v3018 = vld [vmem:[#allocation12 + $0x4ec] sm:$0xff]
    %v3019 = vld [vmem:[#allocation12 + $0x4f4] sm:$0xff]
    %v3020 = vld [vmem:[#allocation12 + $0x4fc] sm:$0xff]
    %v3021 = vld [vmem:[#allocation12 + $0x504] sm:$0xf]
    %v3022 = vld [vmem:[#allocation12 + $0x508] sm:$0xff]
    %v3023 = vld [vmem:[#allocation12 + $0x510] sm:$0xff]
    %v3024 = vld [vmem:[#allocation12 + $0x518] sm:$0xff]
    %v3025 = vld [vmem:[#allocation12 + $0x520] sm:$0xf]
    %v3026 = vld [vmem:[#allocation12 + $0x524] sm:$0xff]
    %v3027 = vld [vmem:[#allocation12 + $0x52c] sm:$0xff]
    %v3028 = vld [vmem:[#allocation12 + $0x534] sm:$0xff]
    %v3029 = vld [vmem:[#allocation12 + $0x53c] sm:$0xf]
    %v3030 = vld [vmem:[#allocation12 + $0x540] sm:$0xff]
    %v3031 = vld [vmem:[#allocation12 + $0x548] sm:$0xff]
    %v3032 = vld [vmem:[#allocation12 + $0x550] sm:$0xff]
    %v3033 = vld [vmem:[#allocation12 + $0x558] sm:$0xf]
    %v3034 = vld [vmem:[#allocation12 + $0x55c] sm:$0xff]
    %v3035 = vld [vmem:[#allocation12 + $0x564] sm:$0xff]
    %v3036 = vld [vmem:[#allocation12 + $0x56c] sm:$0xff]
    %v3037 = vld [vmem:[#allocation12 + $0x574] sm:$0xf]
    %v3038 = vld [vmem:[#allocation12 + $0x578] sm:$0xff]
    %v3039 = vld [vmem:[#allocation12 + $0x580] sm:$0xff]
    %v3040 = vld [vmem:[#allocation12 + $0x588] sm:$0xff]
    %v3041 = vld [vmem:[#allocation12 + $0x590] sm:$0xf]
    %v3042 = vld [vmem:[#allocation12 + $0x594] sm:$0xff]
    %v3043 = vld [vmem:[#allocation12 + $0x59c] sm:$0xff]
    %v3044 = vld [vmem:[#allocation12 + $0x5a4] sm:$0xff]
    %v3045 = vld [vmem:[#allocation12 + $0x5ac] sm:$0xf]
    %v3046 = vld [vmem:[#allocation12 + $0x5b0] sm:$0xff]
    %v3047 = vld [vmem:[#allocation12 + $0x5b8] sm:$0xff]
    %v3048 = vld [vmem:[#allocation12 + $0x5c0] sm:$0xff]
    %v3049 = vld [vmem:[#allocation12 + $0x5c8] sm:$0xf]
    %v3050 = vld [vmem:[#allocation12 + $0x5cc] sm:$0xff]
    %v3051 = vld [vmem:[#allocation12 + $0x5d4] sm:$0xff]
    %v3052 = vld [vmem:[#allocation12 + $0x5dc] sm:$0xff]
    %v3053 = vld [vmem:[#allocation12 + $0x5e4] sm:$0xf]
    %v3054 = vld [vmem:[#allocation12 + $0x5e8] sm:$0xff]
    %v3055 = vld [vmem:[#allocation12 + $0x5f0] sm:$0xff]
    %v3056 = vld [vmem:[#allocation12 + $0x5f8] sm:$0xff]
    %v3057 = vld [vmem:[#allocation12 + $0x600] sm:$0xf]
    %v3058 = vld [vmem:[#allocation12 + $0x604] sm:$0xff]
    %v3059 = vld [vmem:[#allocation12 + $0x60c] sm:$0xff]
    %v3060 = vld [vmem:[#allocation12 + $0x614] sm:$0xff]
    %v3061 = vld [vmem:[#allocation12 + $0x61c] sm:$0xf]
    %v3062 = vld [vmem:[#allocation12 + $0x620] sm:$0xff]
    %v3063 = vld [vmem:[#allocation12 + $0x628] sm:$0xff]
    %v3064 = vld [vmem:[#allocation12 + $0x630] sm:$0xff]
    %v3065 = vld [vmem:[#allocation12 + $0x638] sm:$0xf]
    %v3066 = vld [vmem:[#allocation12 + $0x63c] sm:$0xff]
    %v3067 = vld [vmem:[#allocation12 + $0x644] sm:$0xff]
    %v3068 = vld [vmem:[#allocation12 + $0x64c] sm:$0xff]
    %v3069 = vld [vmem:[#allocation12 + $0x654] sm:$0xf]
    %v3070 = vld [vmem:[#allocation12 + $0x658] sm:$0xff]
    %v3071 = vld [vmem:[#allocation12 + $0x660] sm:$0xff]
    %v3072 = vld [vmem:[#allocation12 + $0x668] sm:$0xff]
    %v3073 = vld [vmem:[#allocation12 + $0x670] sm:$0xf]
    %v3074 = vld [vmem:[#allocation12 + $0x674] sm:$0xff]
    %v3075 = vld [vmem:[#allocation12 + $0x67c] sm:$0xff]
    %v3076 = vld [vmem:[#allocation12 + $0x684] sm:$0xff]
    %v3077 = vld [vmem:[#allocation12 + $0x68c] sm:$0xf]
    %v3078 = vld [vmem:[#allocation12 + $0x690] sm:$0xff]
    %v3079 = vld [vmem:[#allocation12 + $0x698] sm:$0xff]
    %v3080 = vld [vmem:[#allocation12 + $0x6a0] sm:$0xff]
    %v3081 = vld [vmem:[#allocation12 + $0x6a8] sm:$0xf]
    %v3082 = vld [vmem:[#allocation12 + $0x6ac] sm:$0xff]
    %v3083 = vld [vmem:[#allocation12 + $0x6b4] sm:$0xff]
    %v3084 = vld [vmem:[#allocation12 + $0x6bc] sm:$0xff]
    %v3085 = vld [vmem:[#allocation12 + $0x6c4] sm:$0xf]
    %v3086 = vld [vmem:[#allocation12 + $0x6c8] sm:$0xff]
    %v3087 = vld [vmem:[#allocation12 + $0x6d0] sm:$0xff]
    %v3088 = vld [vmem:[#allocation12 + $0x6d8] sm:$0xff]
    %v3089 = vld [vmem:[#allocation12 + $0x6e0] sm:$0xf]
    %v3090 = vld [vmem:[#allocation12 + $0x6e4] sm:$0xff]
    %v3091 = vld [vmem:[#allocation12 + $0x6ec] sm:$0xff]
    %v3092 = vld [vmem:[#allocation12 + $0x6f4] sm:$0xff]
    %v3093 = vld [vmem:[#allocation12 + $0x6fc] sm:$0xf]
    %v3094 = vld [vmem:[#allocation12 + $0x700] sm:$0xff]
    %v3095 = vld [vmem:[#allocation12 + $0x708] sm:$0xff]
    %v3096 = vld [vmem:[#allocation12 + $0x710] sm:$0xff]
    %v3097 = vld [vmem:[#allocation12 + $0x718] sm:$0xf]
    %v3098 = vld [vmem:[#allocation12 + $0x71c] sm:$0xff]
    %v3099 = vld [vmem:[#allocation12 + $0x724] sm:$0xff]
    %v3100 = vld [vmem:[#allocation12 + $0x72c] sm:$0xff]
    %v3101 = vld [vmem:[#allocation12 + $0x734] sm:$0xf]
    %v3102 = vld [vmem:[#allocation12 + $0x738] sm:$0xff]
    %v3103 = vld [vmem:[#allocation12 + $0x740] sm:$0xff]
    %v3104 = vld [vmem:[#allocation12 + $0x748] sm:$0xff]
    %v3105 = vld [vmem:[#allocation12 + $0x750] sm:$0xf]
    %v3106 = vld [vmem:[#allocation12 + $0x754] sm:$0xff]
    %v3107 = vld [vmem:[#allocation12 + $0x75c] sm:$0xff]
    %v3108 = vld [vmem:[#allocation12 + $0x764] sm:$0xff]
    %v3109 = vld [vmem:[#allocation12 + $0x76c] sm:$0xf]
    %v3110 = vld [vmem:[#allocation12 + $0x770] sm:$0xff]
    %v3111 = vld [vmem:[#allocation12 + $0x778] sm:$0xff]
    %v3112 = vld [vmem:[#allocation12 + $0x780] sm:$0xff]
    %v3113 = vld [vmem:[#allocation12 + $0x788] sm:$0xf]
    %v3114 = vld [vmem:[#allocation12 + $0x78c] sm:$0xff]
    %v3115 = vld [vmem:[#allocation12 + $0x794] sm:$0xff]
    %v3116 = vld [vmem:[#allocation12 + $0x79c] sm:$0xff]
    %v3117 = vld [vmem:[#allocation12 + $0x7a4] sm:$0xf]
    %v3118 = vld [vmem:[#allocation12 + $0x7a8] sm:$0xff]
    %v3119 = vld [vmem:[#allocation12 + $0x7b0] sm:$0xff]
    %v3120 = vld [vmem:[#allocation12 + $0x7b8] sm:$0xff]
    %v3121 = vld [vmem:[#allocation12 + $0x7c0] sm:$0xf]
    %v3122 = vld [vmem:[#allocation12 + $0x7c4] sm:$0xff]
    %v3123 = vld [vmem:[#allocation12 + $0x7cc] sm:$0xff]
    %v3124 = vld [vmem:[#allocation12 + $0x7d4] sm:$0xff]
    %v3125 = vld [vmem:[#allocation12 + $0x7dc] sm:$0xf]
    %v3126 = vld [vmem:[#allocation12 + $0x7e0] sm:$0xff]
    %v3127 = vld [vmem:[#allocation12 + $0x7e8] sm:$0xff]
    %v3128 = vld [vmem:[#allocation12 + $0x7f0] sm:$0xff]
    %v3129 = vld [vmem:[#allocation12 + $0x7f8] sm:$0xf]
    %v3130 = vld [vmem:[#allocation12 + $0x7fc] sm:$0xff]
    %v3131 = vld [vmem:[#allocation12 + $0x804] sm:$0xff]
    %v3132 = vld [vmem:[#allocation12 + $0x80c] sm:$0xff]
    %v3133 = vld [vmem:[#allocation12 + $0x814] sm:$0xf]
    %v3134 = vld [vmem:[#allocation12 + $0x818] sm:$0xff]
    %v3135 = vld [vmem:[#allocation12 + $0x820] sm:$0xff]
    %v3136 = vld [vmem:[#allocation12 + $0x828] sm:$0xff]
    %v3137 = vld [vmem:[#allocation12 + $0x830] sm:$0xf]
    %v3138 = vld [vmem:[#allocation12 + $0x834] sm:$0xff]
    %v3139 = vld [vmem:[#allocation12 + $0x83c] sm:$0xff]
    %v3140 = vld [vmem:[#allocation12 + $0x844] sm:$0xff]
    %v3141 = vld [vmem:[#allocation12 + $0x84c] sm:$0xf]
    %v3142 = vld [vmem:[#allocation12 + $0x850] sm:$0xff]
    %v3143 = vld [vmem:[#allocation12 + $0x858] sm:$0xff]
    %v3144 = vld [vmem:[#allocation12 + $0x860] sm:$0xff]
    %v3145 = vld [vmem:[#allocation12 + $0x868] sm:$0xf]
    %v3146 = vld [vmem:[#allocation12 + $0x86c] sm:$0xff]
    %v3147 = vld [vmem:[#allocation12 + $0x874] sm:$0xff]
    %v3148 = vld [vmem:[#allocation12 + $0x87c] sm:$0xff]
    %v3149 = vld [vmem:[#allocation12 + $0x884] sm:$0xf]
    %v3150 = vld [vmem:[#allocation12 + $0x888] sm:$0xff]
    %v3151 = vld [vmem:[#allocation12 + $0x890] sm:$0xff]
    %v3152 = vld [vmem:[#allocation12 + $0x898] sm:$0xff]
    %v3153 = vld [vmem:[#allocation12 + $0x8a0] sm:$0xf]
    %v3154 = vld [vmem:[#allocation12 + $0x8a4] sm:$0xff]
    %v3155 = vld [vmem:[#allocation12 + $0x8ac] sm:$0xff]
    %v3156 = vld [vmem:[#allocation12 + $0x8b4] sm:$0xff]
    %v3157 = vld [vmem:[#allocation12 + $0x8bc] sm:$0xf]
    %v3158 = vld [vmem:[#allocation12 + $0x8c0] sm:$0xff]
    %v3159 = vld [vmem:[#allocation12 + $0x8c8] sm:$0xff]
    %v3160 = vld [vmem:[#allocation12 + $0x8d0] sm:$0xff]
    %v3161 = vld [vmem:[#allocation12 + $0x8d8] sm:$0xf]
    %v3162 = vld [vmem:[#allocation12 + $0x8dc] sm:$0xff]
    %v3163 = vld [vmem:[#allocation12 + $0x8e4] sm:$0xff]
    %v3164 = vld [vmem:[#allocation12 + $0x8ec] sm:$0xff]
    %v3165 = vld [vmem:[#allocation12 + $0x8f4] sm:$0xf]
    %v3166 = vld [vmem:[#allocation12 + $0x8f8] sm:$0xff]
    %v3167 = vld [vmem:[#allocation12 + $0x900] sm:$0xff]
    %v3168 = vld [vmem:[#allocation12 + $0x908] sm:$0xff]
    %v3169 = vld [vmem:[#allocation12 + $0x910] sm:$0xf]
    %v3170 = vld [vmem:[#allocation12 + $0x914] sm:$0xff]
    %v3171 = vld [vmem:[#allocation12 + $0x91c] sm:$0xff]
    %v3172 = vld [vmem:[#allocation12 + $0x924] sm:$0xff]
    %v3173 = vld [vmem:[#allocation12 + $0x92c] sm:$0xf]
    %v3174 = vld [vmem:[#allocation12 + $0x930] sm:$0xff]
    %v3175 = vld [vmem:[#allocation12 + $0x938] sm:$0xff]
    %v3176 = vld [vmem:[#allocation12 + $0x940] sm:$0xff]
    %v3177 = vld [vmem:[#allocation12 + $0x948] sm:$0xf]
    %v3178 = vld [vmem:[#allocation12 + $0x94c] sm:$0xff]
    %v3179 = vld [vmem:[#allocation12 + $0x954] sm:$0xff]
    %v3180 = vld [vmem:[#allocation12 + $0x95c] sm:$0xff]
    %v3181 = vld [vmem:[#allocation12 + $0x964] sm:$0xf]
    %v3182 = vld [vmem:[#allocation12 + $0x968] sm:$0xff]
    %v3183 = vld [vmem:[#allocation12 + $0x970] sm:$0xff]
    %v3184 = vld [vmem:[#allocation12 + $0x978] sm:$0xff]
    %v3185 = vld [vmem:[#allocation12 + $0x980] sm:$0xf]
    %v3186 = vld [vmem:[#allocation12 + $0x984] sm:$0xff]
    %v3187 = vld [vmem:[#allocation12 + $0x98c] sm:$0xff]
    %v3188 = vld [vmem:[#allocation12 + $0x994] sm:$0xff]
    %v3189 = vld [vmem:[#allocation12 + $0x99c] sm:$0xf]
    %v3190 = vld [vmem:[#allocation12 + $0x9a0] sm:$0xff]
    %v3191 = vld [vmem:[#allocation12 + $0x9a8] sm:$0xff]
    %v3192 = vld [vmem:[#allocation12 + $0x9b0] sm:$0xff]
    %v3193 = vld [vmem:[#allocation12 + $0x9b8] sm:$0xf]
    %v3194 = vld [vmem:[#allocation12 + $0x9bc] sm:$0xff]
    %v3195 = vld [vmem:[#allocation12 + $0x9c4] sm:$0xff]
    %v3196 = vld [vmem:[#allocation12 + $0x9cc] sm:$0xff]
    %v3197 = vld [vmem:[#allocation12 + $0x9d4] sm:$0xf]
    %v3198 = vld [vmem:[#allocation12 + $0x9d8] sm:$0xff]
    %v3199 = vld [vmem:[#allocation12 + $0x9e0] sm:$0xff]
    %v3200 = vld [vmem:[#allocation12 + $0x9e8] sm:$0xff]
    %v3201 = vld [vmem:[#allocation12 + $0x9f0] sm:$0xf]
    %v3202 = vld [vmem:[#allocation12 + $0x9f4] sm:$0xff]
    %v3203 = vld [vmem:[#allocation12 + $0x9fc] sm:$0xff]
    %v3204 = vld [vmem:[#allocation12 + $0xa04] sm:$0xff]
    %v3205 = vld [vmem:[#allocation12 + $0xa0c] sm:$0xf]
    %v3206 = vld [vmem:[#allocation12 + $0xa10] sm:$0xff]
    %v3207 = vld [vmem:[#allocation12 + $0xa18] sm:$0xff]
    %v3208 = vld [vmem:[#allocation12 + $0xa20] sm:$0xff]
    %v3209 = vld [vmem:[#allocation12 + $0xa28] sm:$0xf]
    %v3210 = vld [vmem:[#allocation12 + $0xa2c] sm:$0xff]
    %v3211 = vld [vmem:[#allocation12 + $0xa34] sm:$0xff]
    %v3212 = vld [vmem:[#allocation12 + $0xa3c] sm:$0xff]
    %v3213 = vld [vmem:[#allocation12 + $0xa44] sm:$0xf]
    %v3214 = vld [vmem:[#allocation12 + $0xa48] sm:$0xff]
    %v3215 = vld [vmem:[#allocation12 + $0xa50] sm:$0xff]
    %v3216 = vld [vmem:[#allocation12 + $0xa58] sm:$0xff]
    %v3217 = vld [vmem:[#allocation12 + $0xa60] sm:$0xf]
    %v3218 = vld [vmem:[#allocation12 + $0xa64] sm:$0xff]
    %v3219 = vld [vmem:[#allocation12 + $0xa6c] sm:$0xff]
    %v3220 = vld [vmem:[#allocation12 + $0xa74] sm:$0xff]
    %v3221 = vld [vmem:[#allocation12 + $0xa7c] sm:$0xf]
    %v3222 = vld [vmem:[#allocation12 + $0xa80] sm:$0xff]
    %v3223 = vld [vmem:[#allocation12 + $0xa88] sm:$0xff]
    %v3224 = vld [vmem:[#allocation12 + $0xa90] sm:$0xff]
    %v3225 = vld [vmem:[#allocation12 + $0xa98] sm:$0xf]
    %v3226 = vld [vmem:[#allocation12 + $0xa9c] sm:$0xff]
    %v3227 = vld [vmem:[#allocation12 + $0xaa4] sm:$0xff]
    %v3228 = vld [vmem:[#allocation12 + $0xaac] sm:$0xff]
    %v3229 = vld [vmem:[#allocation12 + $0xab4] sm:$0xf]
    %v3230 = vld [vmem:[#allocation12 + $0xab8] sm:$0xff]
    %v3231 = vld [vmem:[#allocation12 + $0xac0] sm:$0xff]
    %v3232 = vld [vmem:[#allocation12 + $0xac8] sm:$0xff]
    %v3233 = vld [vmem:[#allocation12 + $0xad0] sm:$0xf]
    %v3234 = vld [vmem:[#allocation12 + $0xad4] sm:$0xff]
    %v3235 = vld [vmem:[#allocation12 + $0xadc] sm:$0xff]
    %v3236 = vld [vmem:[#allocation12 + $0xae4] sm:$0xff]
    %v3237 = vld [vmem:[#allocation12 + $0xaec] sm:$0xf]
    %v3238 = vld [vmem:[#allocation12 + $0xaf0] sm:$0xff]
    %v3239 = vld [vmem:[#allocation12 + $0xaf8] sm:$0xff]
    %v3240 = vld [vmem:[#allocation12 + $0xb00] sm:$0xff]
    %v3241 = vld [vmem:[#allocation12 + $0xb08] sm:$0xf]
    %v3242 = vld [vmem:[#allocation12 + $0xb0c] sm:$0xff]
    %v3243 = vld [vmem:[#allocation12 + $0xb14] sm:$0xff]
    %v3244 = vld [vmem:[#allocation12 + $0xb1c] sm:$0xff]
    %v3245 = vld [vmem:[#allocation12 + $0xb24] sm:$0xf]
    %v3246 = vld [vmem:[#allocation12 + $0xb28] sm:$0xff]
    %v3247 = vld [vmem:[#allocation12 + $0xb30] sm:$0xff]
    %v3248 = vld [vmem:[#allocation12 + $0xb38] sm:$0xff]
    %v3249 = vld [vmem:[#allocation12 + $0xb40] sm:$0xf]
    %v3250 = vld [vmem:[#allocation12 + $0xb44] sm:$0xff]
    %v3251 = vld [vmem:[#allocation12 + $0xb4c] sm:$0xff]
    %v3252 = vld [vmem:[#allocation12 + $0xb54] sm:$0xff]
    %v3253 = vld [vmem:[#allocation12 + $0xb5c] sm:$0xf]
    %v3254 = vld [vmem:[#allocation12 + $0xb60] sm:$0xff]
    %v3255 = vld [vmem:[#allocation12 + $0xb68] sm:$0xff]
    %v3256 = vld [vmem:[#allocation12 + $0xb70] sm:$0xff]
    %v3257 = vld [vmem:[#allocation12 + $0xb78] sm:$0xf]
    %v3258 = vld [vmem:[#allocation12 + $0xb7c] sm:$0xff]
    %v3259 = vld [vmem:[#allocation12 + $0xb84] sm:$0xff]
    %v3260 = vld [vmem:[#allocation12 + $0xb8c] sm:$0xff]
    %v3261 = vld [vmem:[#allocation12 + $0xb94] sm:$0xf]
    %v3262 = vld [vmem:[#allocation12 + $0xb98] sm:$0xff]
    %v3263 = vld [vmem:[#allocation12 + $0xba0] sm:$0xff]
    %v3264 = vld [vmem:[#allocation12 + $0xba8] sm:$0xff]
    %v3265 = vld [vmem:[#allocation12 + $0xbb0] sm:$0xf]
    %v3266 = vld [vmem:[#allocation12 + $0xbb4] sm:$0xff]
    %v3267 = vld [vmem:[#allocation12 + $0xbbc] sm:$0xff]
    %v3268 = vld [vmem:[#allocation12 + $0xbc4] sm:$0xff]
    %v3269 = vld [vmem:[#allocation12 + $0xbcc] sm:$0xf]
    %v3270 = vld [vmem:[#allocation12 + $0xbd0] sm:$0xff]
    %v3271 = vld [vmem:[#allocation12 + $0xbd8] sm:$0xff]
    %v3272 = vld [vmem:[#allocation12 + $0xbe0] sm:$0xff]
    %v3273 = vld [vmem:[#allocation12 + $0xbe8] sm:$0xf]
    %v3274 = vld [vmem:[#allocation12 + $0xbec] sm:$0xff]
    %v3275 = vld [vmem:[#allocation12 + $0xbf4] sm:$0xff]
    %v3276 = vld [vmem:[#allocation12 + $0xbfc] sm:$0xff]
    %v3277 = vld [vmem:[#allocation12 + $0xc04] sm:$0xf]
    %v3278 = vld [vmem:[#allocation12 + $0xc08] sm:$0xff]
    %v3279 = vld [vmem:[#allocation12 + $0xc10] sm:$0xff]
    %v3280 = vld [vmem:[#allocation12 + $0xc18] sm:$0xff]
    %v3281 = vld [vmem:[#allocation12 + $0xc20] sm:$0xf]
    %v3282 = vld [vmem:[#allocation12 + $0xc24] sm:$0xff]
    %v3283 = vld [vmem:[#allocation12 + $0xc2c] sm:$0xff]
    %v3284 = vld [vmem:[#allocation12 + $0xc34] sm:$0xff]
    %v3285 = vld [vmem:[#allocation12 + $0xc3c] sm:$0xf]
    %v3286 = vld [vmem:[#allocation12 + $0xc40] sm:$0xff]
    %v3287 = vld [vmem:[#allocation12 + $0xc48] sm:$0xff]
    %v3288 = vld [vmem:[#allocation12 + $0xc50] sm:$0xff]
    %v3289 = vld [vmem:[#allocation12 + $0xc58] sm:$0xf]
    %v3290 = vld [vmem:[#allocation12 + $0xc5c] sm:$0xff]
    %v3291 = vld [vmem:[#allocation12 + $0xc64] sm:$0xff]
    %v3292 = vld [vmem:[#allocation12 + $0xc6c] sm:$0xff]
    %v3293 = vld [vmem:[#allocation12 + $0xc74] sm:$0xf]
    %v3294 = vld [vmem:[#allocation12 + $0xc78] sm:$0xff]
    %v3295 = vld [vmem:[#allocation12 + $0xc80] sm:$0xff]
    %v3296 = vld [vmem:[#allocation12 + $0xc88] sm:$0xff]
    %v3297 = vld [vmem:[#allocation12 + $0xc90] sm:$0xf]
    %v3298 = vld [vmem:[#allocation12 + $0xc94] sm:$0xff]
    %v3299 = vld [vmem:[#allocation12 + $0xc9c] sm:$0xff]
    %v3300 = vld [vmem:[#allocation12 + $0xca4] sm:$0xff]
    %v3301 = vld [vmem:[#allocation12 + $0xcac] sm:$0xf]
    %v3302 = vld [vmem:[#allocation12 + $0xcb0] sm:$0xff]
    %v3303 = vld [vmem:[#allocation12 + $0xcb8] sm:$0xff]
    %v3304 = vld [vmem:[#allocation12 + $0xcc0] sm:$0xff]
    %v3305 = vld [vmem:[#allocation12 + $0xcc8] sm:$0xf]
    %v3306 = vld [vmem:[#allocation12 + $0xccc] sm:$0xff]
    %v3307 = vld [vmem:[#allocation12 + $0xcd4] sm:$0xff]
    %v3308 = vld [vmem:[#allocation12 + $0xcdc] sm:$0xff]
    %v3309 = vld [vmem:[#allocation12 + $0xce4] sm:$0xf]
    %v3310 = vld [vmem:[#allocation12 + $0xce8] sm:$0xff]
    %v3311 = vld [vmem:[#allocation12 + $0xcf0] sm:$0xff]
    %v3312 = vld [vmem:[#allocation12 + $0xcf8] sm:$0xff]
    %v3313 = vld [vmem:[#allocation12 + $0xd00] sm:$0xf]
    %v3314 = vld [vmem:[#allocation12 + $0xd04] sm:$0xff]
    %v3315 = vld [vmem:[#allocation12 + $0xd0c] sm:$0xff]
    %v3316 = vld [vmem:[#allocation12 + $0xd14] sm:$0xff]
    %v3317 = vld [vmem:[#allocation12 + $0xd1c] sm:$0xf]
    %v3318 = vld [vmem:[#allocation12 + $0xd20] sm:$0xff]
    %v3319 = vld [vmem:[#allocation12 + $0xd28] sm:$0xff]
    %v3320 = vld [vmem:[#allocation12 + $0xd30] sm:$0xff]
    %v3321 = vld [vmem:[#allocation12 + $0xd38] sm:$0xf]
    %v3322 = vld [vmem:[#allocation12 + $0xd3c] sm:$0xff]
    %v3323 = vld [vmem:[#allocation12 + $0xd44] sm:$0xff]
    %v3324 = vld [vmem:[#allocation12 + $0xd4c] sm:$0xff]
    %v3325 = vld [vmem:[#allocation12 + $0xd54] sm:$0xf]
    %v3326 = vld [vmem:[#allocation12 + $0xd58] sm:$0xff]
    %v3327 = vld [vmem:[#allocation12 + $0xd60] sm:$0xff]
    %v3328 = vld [vmem:[#allocation12 + $0xd68] sm:$0xff]
    %v3329 = vld [vmem:[#allocation12 + $0xd70] sm:$0xf]
    %v3330 = vld [vmem:[#allocation12 + $0xd74] sm:$0xff]
    %v3331 = vld [vmem:[#allocation12 + $0xd7c] sm:$0xff]
    %v3332 = vld [vmem:[#allocation12 + $0xd84] sm:$0xff]
    %v3333 = vld [vmem:[#allocation12 + $0xd8c] sm:$0xf]
    %v3334 = vld [vmem:[#allocation12 + $0xd90] sm:$0xff]
    %v3335 = vld [vmem:[#allocation12 + $0xd98] sm:$0xff]
    %v3336 = vld [vmem:[#allocation12 + $0xda0] sm:$0xff]
    %v3337 = vld [vmem:[#allocation12 + $0xda8] sm:$0xf]
    %v3338 = vld [vmem:[#allocation12 + $0xdac] sm:$0xff]
    %v3339 = vld [vmem:[#allocation12 + $0xdb4] sm:$0xff]
    %v3340 = vld [vmem:[#allocation12 + $0xdbc] sm:$0xff]
    %v3341 = vld [vmem:[#allocation12 + $0xdc4] sm:$0xf]
    %v3342 = vld [vmem:[#allocation12 + $0xdc8] sm:$0xff]
    %v3343 = vld [vmem:[#allocation12 + $0xdd0] sm:$0xff]
    %v3344 = vld [vmem:[#allocation12 + $0xdd8] sm:$0xff]
    %v3345 = vld [vmem:[#allocation12 + $0xde0] sm:$0xf]
    %v3346 = vld [vmem:[#allocation12 + $0xde4] sm:$0xff]
    %v3347 = vld [vmem:[#allocation12 + $0xdec] sm:$0xff]
    %v3348 = vld [vmem:[#allocation12 + $0xdf4] sm:$0xff]
    %v3349 = vld [vmem:[#allocation12 + $0xdfc] sm:$0xf]
    %v3350 = vld [vmem:[#allocation13] sm:$0xff]
    %v3352 = vlaneseq
    %v3353 = vshrl.u32 %v3352, 7
    %v3354 = vsub.s32 0, %v3353
    %v3355 = vrot.slane %v3350, %v3354
    %v3356 = vlaneseq
    %v3357 = vshrl.u32 %v3356, 7
    %v3358 = vsub.s32 1, %v3357
    %v3359 = vrot.slane %v3350, %v3358
    %v3360 = vlaneseq
    %v3361 = vshrl.u32 %v3360, 7
    %v3362 = vsub.s32 2, %v3361
    %v3363 = vrot.slane %v3350, %v3362
    %v3364 = vlaneseq
    %v3365 = vshrl.u32 %v3364, 7
    %v3366 = vsub.s32 3, %v3365
    %v3367 = vrot.slane %v3350, %v3366
    %v3368 = vlaneseq
    %v3369 = vshrl.u32 %v3368, 7
    %v3370 = vsub.s32 4, %v3369
    %v3371 = vrot.slane %v3350, %v3370
    %v3372 = vlaneseq
    %v3373 = vshrl.u32 %v3372, 7
    %v3374 = vsub.s32 5, %v3373
    %v3375 = vrot.slane %v3350, %v3374
    %v3376 = vlaneseq
    %v3377 = vshrl.u32 %v3376, 7
    %v3378 = vsub.s32 6, %v3377
    %v3379 = vrot.slane %v3350, %v3378
    %v3899 = vunpack.c.l.b16 %v2838
    %v3900 = vunpack.c.h.b16 %v2838
    %v3901 = vunpack.c.l.b16 %v2839
    %v3902 = vunpack.c.h.b16 %v2839
    %v3903 = vunpack.c.l.b16 %v2840
    %v3904 = vunpack.c.h.b16 %v2840
    %v3905 = vunpack.c.l.b16 %v2841
    %v3906 = vunpack.c.l.b16 %v2842
    %v3907 = vunpack.c.h.b16 %v2842
    %v3908 = vunpack.c.l.b16 %v2843
    %v3909 = vunpack.c.h.b16 %v2843
    %v3910 = vunpack.c.l.b16 %v2844
    %v3911 = vunpack.c.h.b16 %v2844
    %v3912 = vunpack.c.l.b16 %v2845
    %v3913 = vunpack.c.l.b16 %v2846
    %v3914 = vunpack.c.h.b16 %v2846
    %v3915 = vunpack.c.l.b16 %v2847
    %v3916 = vunpack.c.h.b16 %v2847
    %v3917 = vunpack.c.l.b16 %v2848
    %v3918 = vunpack.c.h.b16 %v2848
    %v3919 = vunpack.c.l.b16 %v2849
    %v3920 = vunpack.c.l.b16 %v2850
    %v3921 = vunpack.c.h.b16 %v2850
    %v3922 = vunpack.c.l.b16 %v2851
    %v3923 = vunpack.c.h.b16 %v2851
    %v3924 = vunpack.c.l.b16 %v2852
    %v3925 = vunpack.c.h.b16 %v2852
    %v3926 = vunpack.c.l.b16 %v2853
    %v3927 = vunpack.c.l.b16 %v2854
    %v3928 = vunpack.c.h.b16 %v2854
    %v3929 = vunpack.c.l.b16 %v2855
    %v3930 = vunpack.c.h.b16 %v2855
    %v3931 = vunpack.c.l.b16 %v2856
    %v3932 = vunpack.c.h.b16 %v2856
    %v3933 = vunpack.c.l.b16 %v2857
    %v3934 = vunpack.c.l.b16 %v2858
    %v3935 = vunpack.c.h.b16 %v2858
    %v3936 = vunpack.c.l.b16 %v2859
    %v3937 = vunpack.c.h.b16 %v2859
    %v3938 = vunpack.c.l.b16 %v2860
    %v3939 = vunpack.c.h.b16 %v2860
    %v3940 = vunpack.c.l.b16 %v2861
    %v3941 = vunpack.c.l.b16 %v2862
    %v3942 = vunpack.c.h.b16 %v2862
    %v3943 = vunpack.c.l.b16 %v2863
    %v3944 = vunpack.c.h.b16 %v2863
    %v3945 = vunpack.c.l.b16 %v2864
    %v3946 = vunpack.c.h.b16 %v2864
    %v3947 = vunpack.c.l.b16 %v2865
    %v3948 = vunpack.c.l.b16 %v2866
    %v3949 = vunpack.c.h.b16 %v2866
    %v3950 = vunpack.c.l.b16 %v2867
    %v3951 = vunpack.c.h.b16 %v2867
    %v3952 = vunpack.c.l.b16 %v2868
    %v3953 = vunpack.c.h.b16 %v2868
    %v3954 = vunpack.c.l.b16 %v2869
    %v3955 = vunpack.c.l.b16 %v2870
    %v3956 = vunpack.c.h.b16 %v2870
    %v3957 = vunpack.c.l.b16 %v2871
    %v3958 = vunpack.c.h.b16 %v2871
    %v3959 = vunpack.c.l.b16 %v2872
    %v3960 = vunpack.c.h.b16 %v2872
    %v3961 = vunpack.c.l.b16 %v2873
    %v3962 = vunpack.c.l.b16 %v2874
    %v3963 = vunpack.c.h.b16 %v2874
    %v3964 = vunpack.c.l.b16 %v2875
    %v3965 = vunpack.c.h.b16 %v2875
    %v3966 = vunpack.c.l.b16 %v2876
    %v3967 = vunpack.c.h.b16 %v2876
    %v3968 = vunpack.c.l.b16 %v2877
    %v3969 = vunpack.c.l.b16 %v2878
    %v3970 = vunpack.c.h.b16 %v2878
    %v3971 = vunpack.c.l.b16 %v2879
    %v3972 = vunpack.c.h.b16 %v2879
    %v3973 = vunpack.c.l.b16 %v2880
    %v3974 = vunpack.c.h.b16 %v2880
    %v3975 = vunpack.c.l.b16 %v2881
    %v3976 = vunpack.c.l.b16 %v2882
    %v3977 = vunpack.c.h.b16 %v2882
    %v3978 = vunpack.c.l.b16 %v2883
    %v3979 = vunpack.c.h.b16 %v2883
    %v3980 = vunpack.c.l.b16 %v2884
    %v3981 = vunpack.c.h.b16 %v2884
    %v3982 = vunpack.c.l.b16 %v2885
    %v3983 = vunpack.c.l.b16 %v2886
    %v3984 = vunpack.c.h.b16 %v2886
    %v3985 = vunpack.c.l.b16 %v2887
    %v3986 = vunpack.c.h.b16 %v2887
    %v3987 = vunpack.c.l.b16 %v2888
    %v3988 = vunpack.c.h.b16 %v2888
    %v3989 = vunpack.c.l.b16 %v2889
    %v3990 = vunpack.c.l.b16 %v2890
    %v3991 = vunpack.c.h.b16 %v2890
    %v3992 = vunpack.c.l.b16 %v2891
    %v3993 = vunpack.c.h.b16 %v2891
    %v3994 = vunpack.c.l.b16 %v2892
    %v3995 = vunpack.c.h.b16 %v2892
    %v3996 = vunpack.c.l.b16 %v2893
    %v3997 = vunpack.c.l.b16 %v2894
    %v3998 = vunpack.c.h.b16 %v2894
    %v3999 = vunpack.c.l.b16 %v2895
    %v4000 = vunpack.c.h.b16 %v2895
    %v4001 = vunpack.c.l.b16 %v2896
    %v4002 = vunpack.c.h.b16 %v2896
    %v4003 = vunpack.c.l.b16 %v2897
    %v4004 = vunpack.c.l.b16 %v2898
    %v4005 = vunpack.c.h.b16 %v2898
    %v4006 = vunpack.c.l.b16 %v2899
    %v4007 = vunpack.c.h.b16 %v2899
    %v4008 = vunpack.c.l.b16 %v2900
    %v4009 = vunpack.c.h.b16 %v2900
    %v4010 = vunpack.c.l.b16 %v2901
    %v4011 = vunpack.c.l.b16 %v2902
    %v4012 = vunpack.c.h.b16 %v2902
    %v4013 = vunpack.c.l.b16 %v2903
    %v4014 = vunpack.c.h.b16 %v2903
    %v4015 = vunpack.c.l.b16 %v2904
    %v4016 = vunpack.c.h.b16 %v2904
    %v4017 = vunpack.c.l.b16 %v2905
    %v4018 = vunpack.c.l.b16 %v2906
    %v4019 = vunpack.c.h.b16 %v2906
    %v4020 = vunpack.c.l.b16 %v2907
    %v4021 = vunpack.c.h.b16 %v2907
    %v4022 = vunpack.c.l.b16 %v2908
    %v4023 = vunpack.c.h.b16 %v2908
    %v4024 = vunpack.c.l.b16 %v2909
    %v4025 = vunpack.c.l.b16 %v2910
    %v4026 = vunpack.c.h.b16 %v2910
    %v4027 = vunpack.c.l.b16 %v2911
    %v4028 = vunpack.c.h.b16 %v2911
    %v4029 = vunpack.c.l.b16 %v2912
    %v4030 = vunpack.c.h.b16 %v2912
    %v4031 = vunpack.c.l.b16 %v2913
    %v4032 = vunpack.c.l.b16 %v2914
    %v4033 = vunpack.c.h.b16 %v2914
    %v4034 = vunpack.c.l.b16 %v2915
    %v4035 = vunpack.c.h.b16 %v2915
    %v4036 = vunpack.c.l.b16 %v2916
    %v4037 = vunpack.c.h.b16 %v2916
    %v4038 = vunpack.c.l.b16 %v2917
    %v4039 = vunpack.c.l.b16 %v2918
    %v4040 = vunpack.c.h.b16 %v2918
    %v4041 = vunpack.c.l.b16 %v2919
    %v4042 = vunpack.c.h.b16 %v2919
    %v4043 = vunpack.c.l.b16 %v2920
    %v4044 = vunpack.c.h.b16 %v2920
    %v4045 = vunpack.c.l.b16 %v2921
    %v4046 = vunpack.c.l.b16 %v2922
    %v4047 = vunpack.c.h.b16 %v2922
    %v4048 = vunpack.c.l.b16 %v2923
    %v4049 = vunpack.c.h.b16 %v2923
    %v4050 = vunpack.c.l.b16 %v2924
    %v4051 = vunpack.c.h.b16 %v2924
    %v4052 = vunpack.c.l.b16 %v2925
    %v4053 = vunpack.c.l.b16 %v2926
    %v4054 = vunpack.c.h.b16 %v2926
    %v4055 = vunpack.c.l.b16 %v2927
    %v4056 = vunpack.c.h.b16 %v2927
    %v4057 = vunpack.c.l.b16 %v2928
    %v4058 = vunpack.c.h.b16 %v2928
    %v4059 = vunpack.c.l.b16 %v2929
    %v4060 = vunpack.c.l.b16 %v2930
    %v4061 = vunpack.c.h.b16 %v2930
    %v4062 = vunpack.c.l.b16 %v2931
    %v4063 = vunpack.c.h.b16 %v2931
    %v4064 = vunpack.c.l.b16 %v2932
    %v4065 = vunpack.c.h.b16 %v2932
    %v4066 = vunpack.c.l.b16 %v2933
    %v4067 = vunpack.c.l.b16 %v2934
    %v4068 = vunpack.c.h.b16 %v2934
    %v4069 = vunpack.c.l.b16 %v2935
    %v4070 = vunpack.c.h.b16 %v2935
    %v4071 = vunpack.c.l.b16 %v2936
    %v4072 = vunpack.c.h.b16 %v2936
    %v4073 = vunpack.c.l.b16 %v2937
    %v4074 = vunpack.c.l.b16 %v2938
    %v4075 = vunpack.c.h.b16 %v2938
    %v4076 = vunpack.c.l.b16 %v2939
    %v4077 = vunpack.c.h.b16 %v2939
    %v4078 = vunpack.c.l.b16 %v2940
    %v4079 = vunpack.c.h.b16 %v2940
    %v4080 = vunpack.c.l.b16 %v2941
    %v4081 = vunpack.c.l.b16 %v2942
    %v4082 = vunpack.c.h.b16 %v2942
    %v4083 = vunpack.c.l.b16 %v2943
    %v4084 = vunpack.c.h.b16 %v2943
    %v4085 = vunpack.c.l.b16 %v2944
    %v4086 = vunpack.c.h.b16 %v2944
    %v4087 = vunpack.c.l.b16 %v2945
    %v4088 = vunpack.c.l.b16 %v2946
    %v4089 = vunpack.c.h.b16 %v2946
    %v4090 = vunpack.c.l.b16 %v2947
    %v4091 = vunpack.c.h.b16 %v2947
    %v4092 = vunpack.c.l.b16 %v2948
    %v4093 = vunpack.c.h.b16 %v2948
    %v4094 = vunpack.c.l.b16 %v2949
    %v4095 = vunpack.c.l.b16 %v2950
    %v4096 = vunpack.c.h.b16 %v2950
    %v4097 = vunpack.c.l.b16 %v2951
    %v4098 = vunpack.c.h.b16 %v2951
    %v4099 = vunpack.c.l.b16 %v2952
    %v4100 = vunpack.c.h.b16 %v2952
    %v4101 = vunpack.c.l.b16 %v2953
    %v4102 = vunpack.c.l.b16 %v2954
    %v4103 = vunpack.c.h.b16 %v2954
    %v4104 = vunpack.c.l.b16 %v2955
    %v4105 = vunpack.c.h.b16 %v2955
    %v4106 = vunpack.c.l.b16 %v2956
    %v4107 = vunpack.c.h.b16 %v2956
    %v4108 = vunpack.c.l.b16 %v2957
    %v4109 = vunpack.c.l.b16 %v2958
    %v4110 = vunpack.c.h.b16 %v2958
    %v4111 = vunpack.c.l.b16 %v2959
    %v4112 = vunpack.c.h.b16 %v2959
    %v4113 = vunpack.c.l.b16 %v2960
    %v4114 = vunpack.c.h.b16 %v2960
    %v4115 = vunpack.c.l.b16 %v2961
    %v4116 = vunpack.c.l.b16 %v2962
    %v4117 = vunpack.c.h.b16 %v2962
    %v4118 = vunpack.c.l.b16 %v2963
    %v4119 = vunpack.c.h.b16 %v2963
    %v4120 = vunpack.c.l.b16 %v2964
    %v4121 = vunpack.c.h.b16 %v2964
    %v4122 = vunpack.c.l.b16 %v2965
    %v4123 = vunpack.c.l.b16 %v2966
    %v4124 = vunpack.c.h.b16 %v2966
    %v4125 = vunpack.c.l.b16 %v2967
    %v4126 = vunpack.c.h.b16 %v2967
    %v4127 = vunpack.c.l.b16 %v2968
    %v4128 = vunpack.c.h.b16 %v2968
    %v4129 = vunpack.c.l.b16 %v2969
    %v4130 = vunpack.c.l.b16 %v2970
    %v4131 = vunpack.c.h.b16 %v2970
    %v4132 = vunpack.c.l.b16 %v2971
    %v4133 = vunpack.c.h.b16 %v2971
    %v4134 = vunpack.c.l.b16 %v2972
    %v4135 = vunpack.c.h.b16 %v2972
    %v4136 = vunpack.c.l.b16 %v2973
    %v4137 = vunpack.c.l.b16 %v2974
    %v4138 = vunpack.c.h.b16 %v2974
    %v4139 = vunpack.c.l.b16 %v2975
    %v4140 = vunpack.c.h.b16 %v2975
    %v4141 = vunpack.c.l.b16 %v2976
    %v4142 = vunpack.c.h.b16 %v2976
    %v4143 = vunpack.c.l.b16 %v2977
    %v4144 = vunpack.c.l.b16 %v2978
    %v4145 = vunpack.c.h.b16 %v2978
    %v4146 = vunpack.c.l.b16 %v2979
    %v4147 = vunpack.c.h.b16 %v2979
    %v4148 = vunpack.c.l.b16 %v2980
    %v4149 = vunpack.c.h.b16 %v2980
    %v4150 = vunpack.c.l.b16 %v2981
    %v4151 = vunpack.c.l.b16 %v2982
    %v4152 = vunpack.c.h.b16 %v2982
    %v4153 = vunpack.c.l.b16 %v2983
    %v4154 = vunpack.c.h.b16 %v2983
    %v4155 = vunpack.c.l.b16 %v2984
    %v4156 = vunpack.c.h.b16 %v2984
    %v4157 = vunpack.c.l.b16 %v2985
    %v4158 = vunpack.c.l.b16 %v2986
    %v4159 = vunpack.c.h.b16 %v2986
    %v4160 = vunpack.c.l.b16 %v2987
    %v4161 = vunpack.c.h.b16 %v2987
    %v4162 = vunpack.c.l.b16 %v2988
    %v4163 = vunpack.c.h.b16 %v2988
    %v4164 = vunpack.c.l.b16 %v2989
    %v4165 = vunpack.c.l.b16 %v2990
    %v4166 = vunpack.c.h.b16 %v2990
    %v4167 = vunpack.c.l.b16 %v2991
    %v4168 = vunpack.c.h.b16 %v2991
    %v4169 = vunpack.c.l.b16 %v2992
    %v4170 = vunpack.c.h.b16 %v2992
    %v4171 = vunpack.c.l.b16 %v2993
    %v4172 = vunpack.c.l.b16 %v2994
    %v4173 = vunpack.c.h.b16 %v2994
    %v4174 = vunpack.c.l.b16 %v2995
    %v4175 = vunpack.c.h.b16 %v2995
    %v4176 = vunpack.c.l.b16 %v2996
    %v4177 = vunpack.c.h.b16 %v2996
    %v4178 = vunpack.c.l.b16 %v2997
    %v4179 = vunpack.c.l.b16 %v2998
    %v4180 = vunpack.c.h.b16 %v2998
    %v4181 = vunpack.c.l.b16 %v2999
    %v4182 = vunpack.c.h.b16 %v2999
    %v4183 = vunpack.c.l.b16 %v3000
    %v4184 = vunpack.c.h.b16 %v3000
    %v4185 = vunpack.c.l.b16 %v3001
    %v4186 = vunpack.c.l.b16 %v3002
    %v4187 = vunpack.c.h.b16 %v3002
    %v4188 = vunpack.c.l.b16 %v3003
    %v4189 = vunpack.c.h.b16 %v3003
    %v4190 = vunpack.c.l.b16 %v3004
    %v4191 = vunpack.c.h.b16 %v3004
    %v4192 = vunpack.c.l.b16 %v3005
    %v4193 = vunpack.c.l.b16 %v3006
    %v4194 = vunpack.c.h.b16 %v3006
    %v4195 = vunpack.c.l.b16 %v3007
    %v4196 = vunpack.c.h.b16 %v3007
    %v4197 = vunpack.c.l.b16 %v3008
    %v4198 = vunpack.c.h.b16 %v3008
    %v4199 = vunpack.c.l.b16 %v3009
    %v4200 = vunpack.c.l.b16 %v3010
    %v4201 = vunpack.c.h.b16 %v3010
    %v4202 = vunpack.c.l.b16 %v3011
    %v4203 = vunpack.c.h.b16 %v3011
    %v4204 = vunpack.c.l.b16 %v3012
    %v4205 = vunpack.c.h.b16 %v3012
    %v4206 = vunpack.c.l.b16 %v3013
    %v4207 = vunpack.c.l.b16 %v3014
    %v4208 = vunpack.c.h.b16 %v3014
    %v4209 = vunpack.c.l.b16 %v3015
    %v4210 = vunpack.c.h.b16 %v3015
    %v4211 = vunpack.c.l.b16 %v3016
    %v4212 = vunpack.c.h.b16 %v3016
    %v4213 = vunpack.c.l.b16 %v3017
    %v4214 = vunpack.c.l.b16 %v3018
    %v4215 = vunpack.c.h.b16 %v3018
    %v4216 = vunpack.c.l.b16 %v3019
    %v4217 = vunpack.c.h.b16 %v3019
    %v4218 = vunpack.c.l.b16 %v3020
    %v4219 = vunpack.c.h.b16 %v3020
    %v4220 = vunpack.c.l.b16 %v3021
    %v4221 = vunpack.c.l.b16 %v3022
    %v4222 = vunpack.c.h.b16 %v3022
    %v4223 = vunpack.c.l.b16 %v3023
    %v4224 = vunpack.c.h.b16 %v3023
    %v4225 = vunpack.c.l.b16 %v3024
    %v4226 = vunpack.c.h.b16 %v3024
    %v4227 = vunpack.c.l.b16 %v3025
    %v4228 = vunpack.c.l.b16 %v3026
    %v4229 = vunpack.c.h.b16 %v3026
    %v4230 = vunpack.c.l.b16 %v3027
    %v4231 = vunpack.c.h.b16 %v3027
    %v4232 = vunpack.c.l.b16 %v3028
    %v4233 = vunpack.c.h.b16 %v3028
    %v4234 = vunpack.c.l.b16 %v3029
    %v4235 = vunpack.c.l.b16 %v3030
    %v4236 = vunpack.c.h.b16 %v3030
    %v4237 = vunpack.c.l.b16 %v3031
    %v4238 = vunpack.c.h.b16 %v3031
    %v4239 = vunpack.c.l.b16 %v3032
    %v4240 = vunpack.c.h.b16 %v3032
    %v4241 = vunpack.c.l.b16 %v3033
    %v4242 = vunpack.c.l.b16 %v3034
    %v4243 = vunpack.c.h.b16 %v3034
    %v4244 = vunpack.c.l.b16 %v3035
    %v4245 = vunpack.c.h.b16 %v3035
    %v4246 = vunpack.c.l.b16 %v3036
    %v4247 = vunpack.c.h.b16 %v3036
    %v4248 = vunpack.c.l.b16 %v3037
    %v4249 = vunpack.c.l.b16 %v3038
    %v4250 = vunpack.c.h.b16 %v3038
    %v4251 = vunpack.c.l.b16 %v3039
    %v4252 = vunpack.c.h.b16 %v3039
    %v4253 = vunpack.c.l.b16 %v3040
    %v4254 = vunpack.c.h.b16 %v3040
    %v4255 = vunpack.c.l.b16 %v3041
    %v4256 = vunpack.c.l.b16 %v3042
    %v4257 = vunpack.c.h.b16 %v3042
    %v4258 = vunpack.c.l.b16 %v3043
    %v4259 = vunpack.c.h.b16 %v3043
    %v4260 = vunpack.c.l.b16 %v3044
    %v4261 = vunpack.c.h.b16 %v3044
    %v4262 = vunpack.c.l.b16 %v3045
    %v4263 = vunpack.c.l.b16 %v3046
    %v4264 = vunpack.c.h.b16 %v3046
    %v4265 = vunpack.c.l.b16 %v3047
    %v4266 = vunpack.c.h.b16 %v3047
    %v4267 = vunpack.c.l.b16 %v3048
    %v4268 = vunpack.c.h.b16 %v3048
    %v4269 = vunpack.c.l.b16 %v3049
    %v4270 = vunpack.c.l.b16 %v3050
    %v4271 = vunpack.c.h.b16 %v3050
    %v4272 = vunpack.c.l.b16 %v3051
    %v4273 = vunpack.c.h.b16 %v3051
    %v4274 = vunpack.c.l.b16 %v3052
    %v4275 = vunpack.c.h.b16 %v3052
    %v4276 = vunpack.c.l.b16 %v3053
    %v4277 = vunpack.c.l.b16 %v3054
    %v4278 = vunpack.c.h.b16 %v3054
    %v4279 = vunpack.c.l.b16 %v3055
    %v4280 = vunpack.c.h.b16 %v3055
    %v4281 = vunpack.c.l.b16 %v3056
    %v4282 = vunpack.c.h.b16 %v3056
    %v4283 = vunpack.c.l.b16 %v3057
    %v4284 = vunpack.c.l.b16 %v3058
    %v4285 = vunpack.c.h.b16 %v3058
    %v4286 = vunpack.c.l.b16 %v3059
    %v4287 = vunpack.c.h.b16 %v3059
    %v4288 = vunpack.c.l.b16 %v3060
    %v4289 = vunpack.c.h.b16 %v3060
    %v4290 = vunpack.c.l.b16 %v3061
    %v4291 = vunpack.c.l.b16 %v3062
    %v4292 = vunpack.c.h.b16 %v3062
    %v4293 = vunpack.c.l.b16 %v3063
    %v4294 = vunpack.c.h.b16 %v3063
    %v4295 = vunpack.c.l.b16 %v3064
    %v4296 = vunpack.c.h.b16 %v3064
    %v4297 = vunpack.c.l.b16 %v3065
    %v4298 = vunpack.c.l.b16 %v3066
    %v4299 = vunpack.c.h.b16 %v3066
    %v4300 = vunpack.c.l.b16 %v3067
    %v4301 = vunpack.c.h.b16 %v3067
    %v4302 = vunpack.c.l.b16 %v3068
    %v4303 = vunpack.c.h.b16 %v3068
    %v4304 = vunpack.c.l.b16 %v3069
    %v4305 = vunpack.c.l.b16 %v3070
    %v4306 = vunpack.c.h.b16 %v3070
    %v4307 = vunpack.c.l.b16 %v3071
    %v4308 = vunpack.c.h.b16 %v3071
    %v4309 = vunpack.c.l.b16 %v3072
    %v4310 = vunpack.c.h.b16 %v3072
    %v4311 = vunpack.c.l.b16 %v3073
    %v4312 = vunpack.c.l.b16 %v3074
    %v4313 = vunpack.c.h.b16 %v3074
    %v4314 = vunpack.c.l.b16 %v3075
    %v4315 = vunpack.c.h.b16 %v3075
    %v4316 = vunpack.c.l.b16 %v3076
    %v4317 = vunpack.c.h.b16 %v3076
    %v4318 = vunpack.c.l.b16 %v3077
    %v4319 = vunpack.c.l.b16 %v3078
    %v4320 = vunpack.c.h.b16 %v3078
    %v4321 = vunpack.c.l.b16 %v3079
    %v4322 = vunpack.c.h.b16 %v3079
    %v4323 = vunpack.c.l.b16 %v3080
    %v4324 = vunpack.c.h.b16 %v3080
    %v4325 = vunpack.c.l.b16 %v3081
    %v4326 = vunpack.c.l.b16 %v3082
    %v4327 = vunpack.c.h.b16 %v3082
    %v4328 = vunpack.c.l.b16 %v3083
    %v4329 = vunpack.c.h.b16 %v3083
    %v4330 = vunpack.c.l.b16 %v3084
    %v4331 = vunpack.c.h.b16 %v3084
    %v4332 = vunpack.c.l.b16 %v3085
    %v4333 = vunpack.c.l.b16 %v3086
    %v4334 = vunpack.c.h.b16 %v3086
    %v4335 = vunpack.c.l.b16 %v3087
    %v4336 = vunpack.c.h.b16 %v3087
    %v4337 = vunpack.c.l.b16 %v3088
    %v4338 = vunpack.c.h.b16 %v3088
    %v4339 = vunpack.c.l.b16 %v3089
    %v4340 = vunpack.c.l.b16 %v3090
    %v4341 = vunpack.c.h.b16 %v3090
    %v4342 = vunpack.c.l.b16 %v3091
    %v4343 = vunpack.c.h.b16 %v3091
    %v4344 = vunpack.c.l.b16 %v3092
    %v4345 = vunpack.c.h.b16 %v3092
    %v4346 = vunpack.c.l.b16 %v3093
    %v4347 = vunpack.c.l.b16 %v3094
    %v4348 = vunpack.c.h.b16 %v3094
    %v4349 = vunpack.c.l.b16 %v3095
    %v4350 = vunpack.c.h.b16 %v3095
    %v4351 = vunpack.c.l.b16 %v3096
    %v4352 = vunpack.c.h.b16 %v3096
    %v4353 = vunpack.c.l.b16 %v3097
    %v4354 = vunpack.c.l.b16 %v3098
    %v4355 = vunpack.c.h.b16 %v3098
    %v4356 = vunpack.c.l.b16 %v3099
    %v4357 = vunpack.c.h.b16 %v3099
    %v4358 = vunpack.c.l.b16 %v3100
    %v4359 = vunpack.c.h.b16 %v3100
    %v4360 = vunpack.c.l.b16 %v3101
    %v4361 = vunpack.c.l.b16 %v3102
    %v4362 = vunpack.c.h.b16 %v3102
    %v4363 = vunpack.c.l.b16 %v3103
    %v4364 = vunpack.c.h.b16 %v3103
    %v4365 = vunpack.c.l.b16 %v3104
    %v4366 = vunpack.c.h.b16 %v3104
    %v4367 = vunpack.c.l.b16 %v3105
    %v4368 = vunpack.c.l.b16 %v3106
    %v4369 = vunpack.c.h.b16 %v3106
    %v4370 = vunpack.c.l.b16 %v3107
    %v4371 = vunpack.c.h.b16 %v3107
    %v4372 = vunpack.c.l.b16 %v3108
    %v4373 = vunpack.c.h.b16 %v3108
    %v4374 = vunpack.c.l.b16 %v3109
    %v4375 = vunpack.c.l.b16 %v3110
    %v4376 = vunpack.c.h.b16 %v3110
    %v4377 = vunpack.c.l.b16 %v3111
    %v4378 = vunpack.c.h.b16 %v3111
    %v4379 = vunpack.c.l.b16 %v3112
    %v4380 = vunpack.c.h.b16 %v3112
    %v4381 = vunpack.c.l.b16 %v3113
    %v4382 = vunpack.c.l.b16 %v3114
    %v4383 = vunpack.c.h.b16 %v3114
    %v4384 = vunpack.c.l.b16 %v3115
    %v4385 = vunpack.c.h.b16 %v3115
    %v4386 = vunpack.c.l.b16 %v3116
    %v4387 = vunpack.c.h.b16 %v3116
    %v4388 = vunpack.c.l.b16 %v3117
    %v4389 = vunpack.c.l.b16 %v3118
    %v4390 = vunpack.c.h.b16 %v3118
    %v4391 = vunpack.c.l.b16 %v3119
    %v4392 = vunpack.c.h.b16 %v3119
    %v4393 = vunpack.c.l.b16 %v3120
    %v4394 = vunpack.c.h.b16 %v3120
    %v4395 = vunpack.c.l.b16 %v3121
    %v4396 = vunpack.c.l.b16 %v3122
    %v4397 = vunpack.c.h.b16 %v3122
    %v4398 = vunpack.c.l.b16 %v3123
    %v4399 = vunpack.c.h.b16 %v3123
    %v4400 = vunpack.c.l.b16 %v3124
    %v4401 = vunpack.c.h.b16 %v3124
    %v4402 = vunpack.c.l.b16 %v3125
    %v4403 = vunpack.c.l.b16 %v3126
    %v4404 = vunpack.c.h.b16 %v3126
    %v4405 = vunpack.c.l.b16 %v3127
    %v4406 = vunpack.c.h.b16 %v3127
    %v4407 = vunpack.c.l.b16 %v3128
    %v4408 = vunpack.c.h.b16 %v3128
    %v4409 = vunpack.c.l.b16 %v3129
    %v4410 = vunpack.c.l.b16 %v3130
    %v4411 = vunpack.c.h.b16 %v3130
    %v4412 = vunpack.c.l.b16 %v3131
    %v4413 = vunpack.c.h.b16 %v3131
    %v4414 = vunpack.c.l.b16 %v3132
    %v4415 = vunpack.c.h.b16 %v3132
    %v4416 = vunpack.c.l.b16 %v3133
    %v4417 = vunpack.c.l.b16 %v3134
    %v4418 = vunpack.c.h.b16 %v3134
    %v4419 = vunpack.c.l.b16 %v3135
    %v4420 = vunpack.c.h.b16 %v3135
    %v4421 = vunpack.c.l.b16 %v3136
    %v4422 = vunpack.c.h.b16 %v3136
    %v4423 = vunpack.c.l.b16 %v3137
    %v4424 = vunpack.c.l.b16 %v3138
    %v4425 = vunpack.c.h.b16 %v3138
    %v4426 = vunpack.c.l.b16 %v3139
    %v4427 = vunpack.c.h.b16 %v3139
    %v4428 = vunpack.c.l.b16 %v3140
    %v4429 = vunpack.c.h.b16 %v3140
    %v4430 = vunpack.c.l.b16 %v3141
    %v4431 = vunpack.c.l.b16 %v3142
    %v4432 = vunpack.c.h.b16 %v3142
    %v4433 = vunpack.c.l.b16 %v3143
    %v4434 = vunpack.c.h.b16 %v3143
    %v4435 = vunpack.c.l.b16 %v3144
    %v4436 = vunpack.c.h.b16 %v3144
    %v4437 = vunpack.c.l.b16 %v3145
    %v4438 = vunpack.c.l.b16 %v3146
    %v4439 = vunpack.c.h.b16 %v3146
    %v4440 = vunpack.c.l.b16 %v3147
    %v4441 = vunpack.c.h.b16 %v3147
    %v4442 = vunpack.c.l.b16 %v3148
    %v4443 = vunpack.c.h.b16 %v3148
    %v4444 = vunpack.c.l.b16 %v3149
    %v4445 = vunpack.c.l.b16 %v3150
    %v4446 = vunpack.c.h.b16 %v3150
    %v4447 = vunpack.c.l.b16 %v3151
    %v4448 = vunpack.c.h.b16 %v3151
    %v4449 = vunpack.c.l.b16 %v3152
    %v4450 = vunpack.c.h.b16 %v3152
    %v4451 = vunpack.c.l.b16 %v3153
    %v4452 = vunpack.c.l.b16 %v3154
    %v4453 = vunpack.c.h.b16 %v3154
    %v4454 = vunpack.c.l.b16 %v3155
    %v4455 = vunpack.c.h.b16 %v3155
    %v4456 = vunpack.c.l.b16 %v3156
    %v4457 = vunpack.c.h.b16 %v3156
    %v4458 = vunpack.c.l.b16 %v3157
    %v4459 = vunpack.c.l.b16 %v3158
    %v4460 = vunpack.c.h.b16 %v3158
    %v4461 = vunpack.c.l.b16 %v3159
    %v4462 = vunpack.c.h.b16 %v3159
    %v4463 = vunpack.c.l.b16 %v3160
    %v4464 = vunpack.c.h.b16 %v3160
    %v4465 = vunpack.c.l.b16 %v3161
    %v4466 = vunpack.c.l.b16 %v3162
    %v4467 = vunpack.c.h.b16 %v3162
    %v4468 = vunpack.c.l.b16 %v3163
    %v4469 = vunpack.c.h.b16 %v3163
    %v4470 = vunpack.c.l.b16 %v3164
    %v4471 = vunpack.c.h.b16 %v3164
    %v4472 = vunpack.c.l.b16 %v3165
    %v4473 = vunpack.c.l.b16 %v3166
    %v4474 = vunpack.c.h.b16 %v3166
    %v4475 = vunpack.c.l.b16 %v3167
    %v4476 = vunpack.c.h.b16 %v3167
    %v4477 = vunpack.c.l.b16 %v3168
    %v4478 = vunpack.c.h.b16 %v3168
    %v4479 = vunpack.c.l.b16 %v3169
    %v4480 = vunpack.c.l.b16 %v3170
    %v4481 = vunpack.c.h.b16 %v3170
    %v4482 = vunpack.c.l.b16 %v3171
    %v4483 = vunpack.c.h.b16 %v3171
    %v4484 = vunpack.c.l.b16 %v3172
    %v4485 = vunpack.c.h.b16 %v3172
    %v4486 = vunpack.c.l.b16 %v3173
    %v4487 = vunpack.c.l.b16 %v3174
    %v4488 = vunpack.c.h.b16 %v3174
    %v4489 = vunpack.c.l.b16 %v3175
    %v4490 = vunpack.c.h.b16 %v3175
    %v4491 = vunpack.c.l.b16 %v3176
    %v4492 = vunpack.c.h.b16 %v3176
    %v4493 = vunpack.c.l.b16 %v3177
    %v4494 = vunpack.c.l.b16 %v3178
    %v4495 = vunpack.c.h.b16 %v3178
    %v4496 = vunpack.c.l.b16 %v3179
    %v4497 = vunpack.c.h.b16 %v3179
    %v4498 = vunpack.c.l.b16 %v3180
    %v4499 = vunpack.c.h.b16 %v3180
    %v4500 = vunpack.c.l.b16 %v3181
    %v4501 = vunpack.c.l.b16 %v3182
    %v4502 = vunpack.c.h.b16 %v3182
    %v4503 = vunpack.c.l.b16 %v3183
    %v4504 = vunpack.c.h.b16 %v3183
    %v4505 = vunpack.c.l.b16 %v3184
    %v4506 = vunpack.c.h.b16 %v3184
    %v4507 = vunpack.c.l.b16 %v3185
    %v4508 = vunpack.c.l.b16 %v3186
    %v4509 = vunpack.c.h.b16 %v3186
    %v4510 = vunpack.c.l.b16 %v3187
    %v4511 = vunpack.c.h.b16 %v3187
    %v4512 = vunpack.c.l.b16 %v3188
    %v4513 = vunpack.c.h.b16 %v3188
    %v4514 = vunpack.c.l.b16 %v3189
    %v4515 = vunpack.c.l.b16 %v3190
    %v4516 = vunpack.c.h.b16 %v3190
    %v4517 = vunpack.c.l.b16 %v3191
    %v4518 = vunpack.c.h.b16 %v3191
    %v4519 = vunpack.c.l.b16 %v3192
    %v4520 = vunpack.c.h.b16 %v3192
    %v4521 = vunpack.c.l.b16 %v3193
    %v4522 = vunpack.c.l.b16 %v3194
    %v4523 = vunpack.c.h.b16 %v3194
    %v4524 = vunpack.c.l.b16 %v3195
    %v4525 = vunpack.c.h.b16 %v3195
    %v4526 = vunpack.c.l.b16 %v3196
    %v4527 = vunpack.c.h.b16 %v3196
    %v4528 = vunpack.c.l.b16 %v3197
    %v4529 = vunpack.c.l.b16 %v3198
    %v4530 = vunpack.c.h.b16 %v3198
    %v4531 = vunpack.c.l.b16 %v3199
    %v4532 = vunpack.c.h.b16 %v3199
    %v4533 = vunpack.c.l.b16 %v3200
    %v4534 = vunpack.c.h.b16 %v3200
    %v4535 = vunpack.c.l.b16 %v3201
    %v4536 = vunpack.c.l.b16 %v3202
    %v4537 = vunpack.c.h.b16 %v3202
    %v4538 = vunpack.c.l.b16 %v3203
    %v4539 = vunpack.c.h.b16 %v3203
    %v4540 = vunpack.c.l.b16 %v3204
    %v4541 = vunpack.c.h.b16 %v3204
    %v4542 = vunpack.c.l.b16 %v3205
    %v4543 = vunpack.c.l.b16 %v3206
    %v4544 = vunpack.c.h.b16 %v3206
    %v4545 = vunpack.c.l.b16 %v3207
    %v4546 = vunpack.c.h.b16 %v3207
    %v4547 = vunpack.c.l.b16 %v3208
    %v4548 = vunpack.c.h.b16 %v3208
    %v4549 = vunpack.c.l.b16 %v3209
    %v4550 = vunpack.c.l.b16 %v3210
    %v4551 = vunpack.c.h.b16 %v3210
    %v4552 = vunpack.c.l.b16 %v3211
    %v4553 = vunpack.c.h.b16 %v3211
    %v4554 = vunpack.c.l.b16 %v3212
    %v4555 = vunpack.c.h.b16 %v3212
    %v4556 = vunpack.c.l.b16 %v3213
    %v4557 = vunpack.c.l.b16 %v3214
    %v4558 = vunpack.c.h.b16 %v3214
    %v4559 = vunpack.c.l.b16 %v3215
    %v4560 = vunpack.c.h.b16 %v3215
    %v4561 = vunpack.c.l.b16 %v3216
    %v4562 = vunpack.c.h.b16 %v3216
    %v4563 = vunpack.c.l.b16 %v3217
    %v4564 = vunpack.c.l.b16 %v3218
    %v4565 = vunpack.c.h.b16 %v3218
    %v4566 = vunpack.c.l.b16 %v3219
    %v4567 = vunpack.c.h.b16 %v3219
    %v4568 = vunpack.c.l.b16 %v3220
    %v4569 = vunpack.c.h.b16 %v3220
    %v4570 = vunpack.c.l.b16 %v3221
    %v4571 = vunpack.c.l.b16 %v3222
    %v4572 = vunpack.c.h.b16 %v3222
    %v4573 = vunpack.c.l.b16 %v3223
    %v4574 = vunpack.c.h.b16 %v3223
    %v4575 = vunpack.c.l.b16 %v3224
    %v4576 = vunpack.c.h.b16 %v3224
    %v4577 = vunpack.c.l.b16 %v3225
    %v4578 = vunpack.c.l.b16 %v3226
    %v4579 = vunpack.c.h.b16 %v3226
    %v4580 = vunpack.c.l.b16 %v3227
    %v4581 = vunpack.c.h.b16 %v3227
    %v4582 = vunpack.c.l.b16 %v3228
    %v4583 = vunpack.c.h.b16 %v3228
    %v4584 = vunpack.c.l.b16 %v3229
    %v4585 = vunpack.c.l.b16 %v3230
    %v4586 = vunpack.c.h.b16 %v3230
    %v4587 = vunpack.c.l.b16 %v3231
    %v4588 = vunpack.c.h.b16 %v3231
    %v4589 = vunpack.c.l.b16 %v3232
    %v4590 = vunpack.c.h.b16 %v3232
    %v4591 = vunpack.c.l.b16 %v3233
    %v4592 = vunpack.c.l.b16 %v3234
    %v4593 = vunpack.c.h.b16 %v3234
    %v4594 = vunpack.c.l.b16 %v3235
    %v4595 = vunpack.c.h.b16 %v3235
    %v4596 = vunpack.c.l.b16 %v3236
    %v4597 = vunpack.c.h.b16 %v3236
    %v4598 = vunpack.c.l.b16 %v3237
    %v4599 = vunpack.c.l.b16 %v3238
    %v4600 = vunpack.c.h.b16 %v3238
    %v4601 = vunpack.c.l.b16 %v3239
    %v4602 = vunpack.c.h.b16 %v3239
    %v4603 = vunpack.c.l.b16 %v3240
    %v4604 = vunpack.c.h.b16 %v3240
    %v4605 = vunpack.c.l.b16 %v3241
    %v4606 = vunpack.c.l.b16 %v3242
    %v4607 = vunpack.c.h.b16 %v3242
    %v4608 = vunpack.c.l.b16 %v3243
    %v4609 = vunpack.c.h.b16 %v3243
    %v4610 = vunpack.c.l.b16 %v3244
    %v4611 = vunpack.c.h.b16 %v3244
    %v4612 = vunpack.c.l.b16 %v3245
    %v4613 = vunpack.c.l.b16 %v3246
    %v4614 = vunpack.c.h.b16 %v3246
    %v4615 = vunpack.c.l.b16 %v3247
    %v4616 = vunpack.c.h.b16 %v3247
    %v4617 = vunpack.c.l.b16 %v3248
    %v4618 = vunpack.c.h.b16 %v3248
    %v4619 = vunpack.c.l.b16 %v3249
    %v4620 = vunpack.c.l.b16 %v3250
    %v4621 = vunpack.c.h.b16 %v3250
    %v4622 = vunpack.c.l.b16 %v3251
    %v4623 = vunpack.c.h.b16 %v3251
    %v4624 = vunpack.c.l.b16 %v3252
    %v4625 = vunpack.c.h.b16 %v3252
    %v4626 = vunpack.c.l.b16 %v3253
    %v4627 = vunpack.c.l.b16 %v3254
    %v4628 = vunpack.c.h.b16 %v3254
    %v4629 = vunpack.c.l.b16 %v3255
    %v4630 = vunpack.c.h.b16 %v3255
    %v4631 = vunpack.c.l.b16 %v3256
    %v4632 = vunpack.c.h.b16 %v3256
    %v4633 = vunpack.c.l.b16 %v3257
    %v4634 = vunpack.c.l.b16 %v3258
    %v4635 = vunpack.c.h.b16 %v3258
    %v4636 = vunpack.c.l.b16 %v3259
    %v4637 = vunpack.c.h.b16 %v3259
    %v4638 = vunpack.c.l.b16 %v3260
    %v4639 = vunpack.c.h.b16 %v3260
    %v4640 = vunpack.c.l.b16 %v3261
    %v4641 = vunpack.c.l.b16 %v3262
    %v4642 = vunpack.c.h.b16 %v3262
    %v4643 = vunpack.c.l.b16 %v3263
    %v4644 = vunpack.c.h.b16 %v3263
    %v4645 = vunpack.c.l.b16 %v3264
    %v4646 = vunpack.c.h.b16 %v3264
    %v4647 = vunpack.c.l.b16 %v3265
    %v4648 = vunpack.c.l.b16 %v3266
    %v4649 = vunpack.c.h.b16 %v3266
    %v4650 = vunpack.c.l.b16 %v3267
    %v4651 = vunpack.c.h.b16 %v3267
    %v4652 = vunpack.c.l.b16 %v3268
    %v4653 = vunpack.c.h.b16 %v3268
    %v4654 = vunpack.c.l.b16 %v3269
    %v4655 = vunpack.c.l.b16 %v3270
    %v4656 = vunpack.c.h.b16 %v3270
    %v4657 = vunpack.c.l.b16 %v3271
    %v4658 = vunpack.c.h.b16 %v3271
    %v4659 = vunpack.c.l.b16 %v3272
    %v4660 = vunpack.c.h.b16 %v3272
    %v4661 = vunpack.c.l.b16 %v3273
    %v4662 = vunpack.c.l.b16 %v3274
    %v4663 = vunpack.c.h.b16 %v3274
    %v4664 = vunpack.c.l.b16 %v3275
    %v4665 = vunpack.c.h.b16 %v3275
    %v4666 = vunpack.c.l.b16 %v3276
    %v4667 = vunpack.c.h.b16 %v3276
    %v4668 = vunpack.c.l.b16 %v3277
    %v4669 = vunpack.c.l.b16 %v3278
    %v4670 = vunpack.c.h.b16 %v3278
    %v4671 = vunpack.c.l.b16 %v3279
    %v4672 = vunpack.c.h.b16 %v3279
    %v4673 = vunpack.c.l.b16 %v3280
    %v4674 = vunpack.c.h.b16 %v3280
    %v4675 = vunpack.c.l.b16 %v3281
    %v4676 = vunpack.c.l.b16 %v3282
    %v4677 = vunpack.c.h.b16 %v3282
    %v4678 = vunpack.c.l.b16 %v3283
    %v4679 = vunpack.c.h.b16 %v3283
    %v4680 = vunpack.c.l.b16 %v3284
    %v4681 = vunpack.c.h.b16 %v3284
    %v4682 = vunpack.c.l.b16 %v3285
    %v4683 = vunpack.c.l.b16 %v3286
    %v4684 = vunpack.c.h.b16 %v3286
    %v4685 = vunpack.c.l.b16 %v3287
    %v4686 = vunpack.c.h.b16 %v3287
    %v4687 = vunpack.c.l.b16 %v3288
    %v4688 = vunpack.c.h.b16 %v3288
    %v4689 = vunpack.c.l.b16 %v3289
    %v4690 = vunpack.c.l.b16 %v3290
    %v4691 = vunpack.c.h.b16 %v3290
    %v4692 = vunpack.c.l.b16 %v3291
    %v4693 = vunpack.c.h.b16 %v3291
    %v4694 = vunpack.c.l.b16 %v3292
    %v4695 = vunpack.c.h.b16 %v3292
    %v4696 = vunpack.c.l.b16 %v3293
    %v4697 = vunpack.c.l.b16 %v3294
    %v4698 = vunpack.c.h.b16 %v3294
    %v4699 = vunpack.c.l.b16 %v3295
    %v4700 = vunpack.c.h.b16 %v3295
    %v4701 = vunpack.c.l.b16 %v3296
    %v4702 = vunpack.c.h.b16 %v3296
    %v4703 = vunpack.c.l.b16 %v3297
    %v4704 = vunpack.c.l.b16 %v3298
    %v4705 = vunpack.c.h.b16 %v3298
    %v4706 = vunpack.c.l.b16 %v3299
    %v4707 = vunpack.c.h.b16 %v3299
    %v4708 = vunpack.c.l.b16 %v3300
    %v4709 = vunpack.c.h.b16 %v3300
    %v4710 = vunpack.c.l.b16 %v3301
    %v4711 = vunpack.c.l.b16 %v3302
    %v4712 = vunpack.c.h.b16 %v3302
    %v4713 = vunpack.c.l.b16 %v3303
    %v4714 = vunpack.c.h.b16 %v3303
    %v4715 = vunpack.c.l.b16 %v3304
    %v4716 = vunpack.c.h.b16 %v3304
    %v4717 = vunpack.c.l.b16 %v3305
    %v4718 = vunpack.c.l.b16 %v3306
    %v4719 = vunpack.c.h.b16 %v3306
    %v4720 = vunpack.c.l.b16 %v3307
    %v4721 = vunpack.c.h.b16 %v3307
    %v4722 = vunpack.c.l.b16 %v3308
    %v4723 = vunpack.c.h.b16 %v3308
    %v4724 = vunpack.c.l.b16 %v3309
    %v4725 = vunpack.c.l.b16 %v3310
    %v4726 = vunpack.c.h.b16 %v3310
    %v4727 = vunpack.c.l.b16 %v3311
    %v4728 = vunpack.c.h.b16 %v3311
    %v4729 = vunpack.c.l.b16 %v3312
    %v4730 = vunpack.c.h.b16 %v3312
    %v4731 = vunpack.c.l.b16 %v3313
    %v4732 = vunpack.c.l.b16 %v3314
    %v4733 = vunpack.c.h.b16 %v3314
    %v4734 = vunpack.c.l.b16 %v3315
    %v4735 = vunpack.c.h.b16 %v3315
    %v4736 = vunpack.c.l.b16 %v3316
    %v4737 = vunpack.c.h.b16 %v3316
    %v4738 = vunpack.c.l.b16 %v3317
    %v4739 = vunpack.c.l.b16 %v3318
    %v4740 = vunpack.c.h.b16 %v3318
    %v4741 = vunpack.c.l.b16 %v3319
    %v4742 = vunpack.c.h.b16 %v3319
    %v4743 = vunpack.c.l.b16 %v3320
    %v4744 = vunpack.c.h.b16 %v3320
    %v4745 = vunpack.c.l.b16 %v3321
    %v4746 = vunpack.c.l.b16 %v3322
    %v4747 = vunpack.c.h.b16 %v3322
    %v4748 = vunpack.c.l.b16 %v3323
    %v4749 = vunpack.c.h.b16 %v3323
    %v4750 = vunpack.c.l.b16 %v3324
    %v4751 = vunpack.c.h.b16 %v3324
    %v4752 = vunpack.c.l.b16 %v3325
    %v4753 = vunpack.c.l.b16 %v3326
    %v4754 = vunpack.c.h.b16 %v3326
    %v4755 = vunpack.c.l.b16 %v3327
    %v4756 = vunpack.c.h.b16 %v3327
    %v4757 = vunpack.c.l.b16 %v3328
    %v4758 = vunpack.c.h.b16 %v3328
    %v4759 = vunpack.c.l.b16 %v3329
    %v4760 = vunpack.c.l.b16 %v3330
    %v4761 = vunpack.c.h.b16 %v3330
    %v4762 = vunpack.c.l.b16 %v3331
    %v4763 = vunpack.c.h.b16 %v3331
    %v4764 = vunpack.c.l.b16 %v3332
    %v4765 = vunpack.c.h.b16 %v3332
    %v4766 = vunpack.c.l.b16 %v3333
    %v4767 = vunpack.c.l.b16 %v3334
    %v4768 = vunpack.c.h.b16 %v3334
    %v4769 = vunpack.c.l.b16 %v3335
    %v4770 = vunpack.c.h.b16 %v3335
    %v4771 = vunpack.c.l.b16 %v3336
    %v4772 = vunpack.c.h.b16 %v3336
    %v4773 = vunpack.c.l.b16 %v3337
    %v4774 = vunpack.c.l.b16 %v3338
    %v4775 = vunpack.c.h.b16 %v3338
    %v4776 = vunpack.c.l.b16 %v3339
    %v4777 = vunpack.c.h.b16 %v3339
    %v4778 = vunpack.c.l.b16 %v3340
    %v4779 = vunpack.c.h.b16 %v3340
    %v4780 = vunpack.c.l.b16 %v3341
    %v4781 = vunpack.c.l.b16 %v3342
    %v4782 = vunpack.c.h.b16 %v3342
    %v4783 = vunpack.c.l.b16 %v3343
    %v4784 = vunpack.c.h.b16 %v3343
    %v4785 = vunpack.c.l.b16 %v3344
    %v4786 = vunpack.c.h.b16 %v3344
    %v4787 = vunpack.c.l.b16 %v3345
    %v4788 = vunpack.c.l.b16 %v3346
    %v4789 = vunpack.c.h.b16 %v3346
    %v4790 = vunpack.c.l.b16 %v3347
    %v4791 = vunpack.c.h.b16 %v3347
    %v4792 = vunpack.c.l.b16 %v3348
    %v4793 = vunpack.c.h.b16 %v3348
    %v4794 = vunpack.c.l.b16 %v3349
    %v4795 = vpack.c.b16 %v3906, %v3899
    %v4796 = vpack.c.b16 %v3907, %v3900
    %v4797 = vpack.c.b16 %v3908, %v3901
    %v4798 = vpack.c.b16 %v3909, %v3902
    %v4799 = vpack.c.b16 %v3910, %v3903
    %v4800 = vpack.c.b16 %v3911, %v3904
    %v4801 = vpack.c.b16 %v3912, %v3905
    %v4802 = vpack.c.b16 %v3920, %v3913
    %v4803 = vpack.c.b16 %v3921, %v3914
    %v4804 = vpack.c.b16 %v3922, %v3915
    %v4805 = vpack.c.b16 %v3923, %v3916
    %v4806 = vpack.c.b16 %v3924, %v3917
    %v4807 = vpack.c.b16 %v3925, %v3918
    %v4808 = vpack.c.b16 %v3926, %v3919
    %v4809 = vpack.c.b16 %v3934, %v3927
    %v4810 = vpack.c.b16 %v3935, %v3928
    %v4811 = vpack.c.b16 %v3936, %v3929
    %v4812 = vpack.c.b16 %v3937, %v3930
    %v4813 = vpack.c.b16 %v3938, %v3931
    %v4814 = vpack.c.b16 %v3939, %v3932
    %v4815 = vpack.c.b16 %v3940, %v3933
    %v4816 = vpack.c.b16 %v3948, %v3941
    %v4817 = vpack.c.b16 %v3949, %v3942
    %v4818 = vpack.c.b16 %v3950, %v3943
    %v4819 = vpack.c.b16 %v3951, %v3944
    %v4820 = vpack.c.b16 %v3952, %v3945
    %v4821 = vpack.c.b16 %v3953, %v3946
    %v4822 = vpack.c.b16 %v3954, %v3947
    %v4823 = vpack.c.b16 %v3962, %v3955
    %v4824 = vpack.c.b16 %v3963, %v3956
    %v4825 = vpack.c.b16 %v3964, %v3957
    %v4826 = vpack.c.b16 %v3965, %v3958
    %v4827 = vpack.c.b16 %v3966, %v3959
    %v4828 = vpack.c.b16 %v3967, %v3960
    %v4829 = vpack.c.b16 %v3968, %v3961
    %v4830 = vpack.c.b16 %v3976, %v3969
    %v4831 = vpack.c.b16 %v3977, %v3970
    %v4832 = vpack.c.b16 %v3978, %v3971
    %v4833 = vpack.c.b16 %v3979, %v3972
    %v4834 = vpack.c.b16 %v3980, %v3973
    %v4835 = vpack.c.b16 %v3981, %v3974
    %v4836 = vpack.c.b16 %v3982, %v3975
    %v4837 = vpack.c.b16 %v3990, %v3983
    %v4838 = vpack.c.b16 %v3991, %v3984
    %v4839 = vpack.c.b16 %v3992, %v3985
    %v4840 = vpack.c.b16 %v3993, %v3986
    %v4841 = vpack.c.b16 %v3994, %v3987
    %v4842 = vpack.c.b16 %v3995, %v3988
    %v4843 = vpack.c.b16 %v3996, %v3989
    %v4844 = vpack.c.b16 %v4004, %v3997
    %v4845 = vpack.c.b16 %v4005, %v3998
    %v4846 = vpack.c.b16 %v4006, %v3999
    %v4847 = vpack.c.b16 %v4007, %v4000
    %v4848 = vpack.c.b16 %v4008, %v4001
    %v4849 = vpack.c.b16 %v4009, %v4002
    %v4850 = vpack.c.b16 %v4010, %v4003
    %v4851 = vpack.c.b16 %v4018, %v4011
    %v4852 = vpack.c.b16 %v4019, %v4012
    %v4853 = vpack.c.b16 %v4020, %v4013
    %v4854 = vpack.c.b16 %v4021, %v4014
    %v4855 = vpack.c.b16 %v4022, %v4015
    %v4856 = vpack.c.b16 %v4023, %v4016
    %v4857 = vpack.c.b16 %v4024, %v4017
    %v4858 = vpack.c.b16 %v4032, %v4025
    %v4859 = vpack.c.b16 %v4033, %v4026
    %v4860 = vpack.c.b16 %v4034, %v4027
    %v4861 = vpack.c.b16 %v4035, %v4028
    %v4862 = vpack.c.b16 %v4036, %v4029
    %v4863 = vpack.c.b16 %v4037, %v4030
    %v4864 = vpack.c.b16 %v4038, %v4031
    %v4865 = vpack.c.b16 %v4046, %v4039
    %v4866 = vpack.c.b16 %v4047, %v4040
    %v4867 = vpack.c.b16 %v4048, %v4041
    %v4868 = vpack.c.b16 %v4049, %v4042
    %v4869 = vpack.c.b16 %v4050, %v4043
    %v4870 = vpack.c.b16 %v4051, %v4044
    %v4871 = vpack.c.b16 %v4052, %v4045
    %v4872 = vpack.c.b16 %v4060, %v4053
    %v4873 = vpack.c.b16 %v4061, %v4054
    %v4874 = vpack.c.b16 %v4062, %v4055
    %v4875 = vpack.c.b16 %v4063, %v4056
    %v4876 = vpack.c.b16 %v4064, %v4057
    %v4877 = vpack.c.b16 %v4065, %v4058
    %v4878 = vpack.c.b16 %v4066, %v4059
    %v4879 = vpack.c.b16 %v4074, %v4067
    %v4880 = vpack.c.b16 %v4075, %v4068
    %v4881 = vpack.c.b16 %v4076, %v4069
    %v4882 = vpack.c.b16 %v4077, %v4070
    %v4883 = vpack.c.b16 %v4078, %v4071
    %v4884 = vpack.c.b16 %v4079, %v4072
    %v4885 = vpack.c.b16 %v4080, %v4073
    %v4886 = vpack.c.b16 %v4088, %v4081
    %v4887 = vpack.c.b16 %v4089, %v4082
    %v4888 = vpack.c.b16 %v4090, %v4083
    %v4889 = vpack.c.b16 %v4091, %v4084
    %v4890 = vpack.c.b16 %v4092, %v4085
    %v4891 = vpack.c.b16 %v4093, %v4086
    %v4892 = vpack.c.b16 %v4094, %v4087
    %v4893 = vpack.c.b16 %v4102, %v4095
    %v4894 = vpack.c.b16 %v4103, %v4096
    %v4895 = vpack.c.b16 %v4104, %v4097
    %v4896 = vpack.c.b16 %v4105, %v4098
    %v4897 = vpack.c.b16 %v4106, %v4099
    %v4898 = vpack.c.b16 %v4107, %v4100
    %v4899 = vpack.c.b16 %v4108, %v4101
    %v4900 = vpack.c.b16 %v4116, %v4109
    %v4901 = vpack.c.b16 %v4117, %v4110
    %v4902 = vpack.c.b16 %v4118, %v4111
    %v4903 = vpack.c.b16 %v4119, %v4112
    %v4904 = vpack.c.b16 %v4120, %v4113
    %v4905 = vpack.c.b16 %v4121, %v4114
    %v4906 = vpack.c.b16 %v4122, %v4115
    %v4907 = vpack.c.b16 %v4130, %v4123
    %v4908 = vpack.c.b16 %v4131, %v4124
    %v4909 = vpack.c.b16 %v4132, %v4125
    %v4910 = vpack.c.b16 %v4133, %v4126
    %v4911 = vpack.c.b16 %v4134, %v4127
    %v4912 = vpack.c.b16 %v4135, %v4128
    %v4913 = vpack.c.b16 %v4136, %v4129
    %v4914 = vpack.c.b16 %v4144, %v4137
    %v4915 = vpack.c.b16 %v4145, %v4138
    %v4916 = vpack.c.b16 %v4146, %v4139
    %v4917 = vpack.c.b16 %v4147, %v4140
    %v4918 = vpack.c.b16 %v4148, %v4141
    %v4919 = vpack.c.b16 %v4149, %v4142
    %v4920 = vpack.c.b16 %v4150, %v4143
    %v4921 = vpack.c.b16 %v4158, %v4151
    %v4922 = vpack.c.b16 %v4159, %v4152
    %v4923 = vpack.c.b16 %v4160, %v4153
    %v4924 = vpack.c.b16 %v4161, %v4154
    %v4925 = vpack.c.b16 %v4162, %v4155
    %v4926 = vpack.c.b16 %v4163, %v4156
    %v4927 = vpack.c.b16 %v4164, %v4157
    %v4928 = vpack.c.b16 %v4172, %v4165
    %v4929 = vpack.c.b16 %v4173, %v4166
    %v4930 = vpack.c.b16 %v4174, %v4167
    %v4931 = vpack.c.b16 %v4175, %v4168
    %v4932 = vpack.c.b16 %v4176, %v4169
    %v4933 = vpack.c.b16 %v4177, %v4170
    %v4934 = vpack.c.b16 %v4178, %v4171
    %v4935 = vpack.c.b16 %v4186, %v4179
    %v4936 = vpack.c.b16 %v4187, %v4180
    %v4937 = vpack.c.b16 %v4188, %v4181
    %v4938 = vpack.c.b16 %v4189, %v4182
    %v4939 = vpack.c.b16 %v4190, %v4183
    %v4940 = vpack.c.b16 %v4191, %v4184
    %v4941 = vpack.c.b16 %v4192, %v4185
    %v4942 = vpack.c.b16 %v4200, %v4193
    %v4943 = vpack.c.b16 %v4201, %v4194
    %v4944 = vpack.c.b16 %v4202, %v4195
    %v4945 = vpack.c.b16 %v4203, %v4196
    %v4946 = vpack.c.b16 %v4204, %v4197
    %v4947 = vpack.c.b16 %v4205, %v4198
    %v4948 = vpack.c.b16 %v4206, %v4199
    %v4949 = vpack.c.b16 %v4214, %v4207
    %v4950 = vpack.c.b16 %v4215, %v4208
    %v4951 = vpack.c.b16 %v4216, %v4209
    %v4952 = vpack.c.b16 %v4217, %v4210
    %v4953 = vpack.c.b16 %v4218, %v4211
    %v4954 = vpack.c.b16 %v4219, %v4212
    %v4955 = vpack.c.b16 %v4220, %v4213
    %v4956 = vpack.c.b16 %v4228, %v4221
    %v4957 = vpack.c.b16 %v4229, %v4222
    %v4958 = vpack.c.b16 %v4230, %v4223
    %v4959 = vpack.c.b16 %v4231, %v4224
    %v4960 = vpack.c.b16 %v4232, %v4225
    %v4961 = vpack.c.b16 %v4233, %v4226
    %v4962 = vpack.c.b16 %v4234, %v4227
    %v4963 = vpack.c.b16 %v4242, %v4235
    %v4964 = vpack.c.b16 %v4243, %v4236
    %v4965 = vpack.c.b16 %v4244, %v4237
    %v4966 = vpack.c.b16 %v4245, %v4238
    %v4967 = vpack.c.b16 %v4246, %v4239
    %v4968 = vpack.c.b16 %v4247, %v4240
    %v4969 = vpack.c.b16 %v4248, %v4241
    %v4970 = vpack.c.b16 %v4256, %v4249
    %v4971 = vpack.c.b16 %v4257, %v4250
    %v4972 = vpack.c.b16 %v4258, %v4251
    %v4973 = vpack.c.b16 %v4259, %v4252
    %v4974 = vpack.c.b16 %v4260, %v4253
    %v4975 = vpack.c.b16 %v4261, %v4254
    %v4976 = vpack.c.b16 %v4262, %v4255
    %v4977 = vpack.c.b16 %v4270, %v4263
    %v4978 = vpack.c.b16 %v4271, %v4264
    %v4979 = vpack.c.b16 %v4272, %v4265
    %v4980 = vpack.c.b16 %v4273, %v4266
    %v4981 = vpack.c.b16 %v4274, %v4267
    %v4982 = vpack.c.b16 %v4275, %v4268
    %v4983 = vpack.c.b16 %v4276, %v4269
    %v4984 = vpack.c.b16 %v4284, %v4277
    %v4985 = vpack.c.b16 %v4285, %v4278
    %v4986 = vpack.c.b16 %v4286, %v4279
    %v4987 = vpack.c.b16 %v4287, %v4280
    %v4988 = vpack.c.b16 %v4288, %v4281
    %v4989 = vpack.c.b16 %v4289, %v4282
    %v4990 = vpack.c.b16 %v4290, %v4283
    %v4991 = vpack.c.b16 %v4298, %v4291
    %v4992 = vpack.c.b16 %v4299, %v4292
    %v4993 = vpack.c.b16 %v4300, %v4293
    %v4994 = vpack.c.b16 %v4301, %v4294
    %v4995 = vpack.c.b16 %v4302, %v4295
    %v4996 = vpack.c.b16 %v4303, %v4296
    %v4997 = vpack.c.b16 %v4304, %v4297
    %v4998 = vpack.c.b16 %v4312, %v4305
    %v4999 = vpack.c.b16 %v4313, %v4306
    %v5000 = vpack.c.b16 %v4314, %v4307
    %v5001 = vpack.c.b16 %v4315, %v4308
    %v5002 = vpack.c.b16 %v4316, %v4309
    %v5003 = vpack.c.b16 %v4317, %v4310
    %v5004 = vpack.c.b16 %v4318, %v4311
    %v5005 = vpack.c.b16 %v4326, %v4319
    %v5006 = vpack.c.b16 %v4327, %v4320
    %v5007 = vpack.c.b16 %v4328, %v4321
    %v5008 = vpack.c.b16 %v4329, %v4322
    %v5009 = vpack.c.b16 %v4330, %v4323
    %v5010 = vpack.c.b16 %v4331, %v4324
    %v5011 = vpack.c.b16 %v4332, %v4325
    %v5012 = vpack.c.b16 %v4340, %v4333
    %v5013 = vpack.c.b16 %v4341, %v4334
    %v5014 = vpack.c.b16 %v4342, %v4335
    %v5015 = vpack.c.b16 %v4343, %v4336
    %v5016 = vpack.c.b16 %v4344, %v4337
    %v5017 = vpack.c.b16 %v4345, %v4338
    %v5018 = vpack.c.b16 %v4346, %v4339
    %v5019 = vpack.c.b16 %v4354, %v4347
    %v5020 = vpack.c.b16 %v4355, %v4348
    %v5021 = vpack.c.b16 %v4356, %v4349
    %v5022 = vpack.c.b16 %v4357, %v4350
    %v5023 = vpack.c.b16 %v4358, %v4351
    %v5024 = vpack.c.b16 %v4359, %v4352
    %v5025 = vpack.c.b16 %v4360, %v4353
    %v5026 = vpack.c.b16 %v4368, %v4361
    %v5027 = vpack.c.b16 %v4369, %v4362
    %v5028 = vpack.c.b16 %v4370, %v4363
    %v5029 = vpack.c.b16 %v4371, %v4364
    %v5030 = vpack.c.b16 %v4372, %v4365
    %v5031 = vpack.c.b16 %v4373, %v4366
    %v5032 = vpack.c.b16 %v4374, %v4367
    %v5033 = vpack.c.b16 %v4382, %v4375
    %v5034 = vpack.c.b16 %v4383, %v4376
    %v5035 = vpack.c.b16 %v4384, %v4377
    %v5036 = vpack.c.b16 %v4385, %v4378
    %v5037 = vpack.c.b16 %v4386, %v4379
    %v5038 = vpack.c.b16 %v4387, %v4380
    %v5039 = vpack.c.b16 %v4388, %v4381
    %v5040 = vpack.c.b16 %v4396, %v4389
    %v5041 = vpack.c.b16 %v4397, %v4390
    %v5042 = vpack.c.b16 %v4398, %v4391
    %v5043 = vpack.c.b16 %v4399, %v4392
    %v5044 = vpack.c.b16 %v4400, %v4393
    %v5045 = vpack.c.b16 %v4401, %v4394
    %v5046 = vpack.c.b16 %v4402, %v4395
    %v5047 = vpack.c.b16 %v4410, %v4403
    %v5048 = vpack.c.b16 %v4411, %v4404
    %v5049 = vpack.c.b16 %v4412, %v4405
    %v5050 = vpack.c.b16 %v4413, %v4406
    %v5051 = vpack.c.b16 %v4414, %v4407
    %v5052 = vpack.c.b16 %v4415, %v4408
    %v5053 = vpack.c.b16 %v4416, %v4409
    %v5054 = vpack.c.b16 %v4424, %v4417
    %v5055 = vpack.c.b16 %v4425, %v4418
    %v5056 = vpack.c.b16 %v4426, %v4419
    %v5057 = vpack.c.b16 %v4427, %v4420
    %v5058 = vpack.c.b16 %v4428, %v4421
    %v5059 = vpack.c.b16 %v4429, %v4422
    %v5060 = vpack.c.b16 %v4430, %v4423
    %v5061 = vpack.c.b16 %v4438, %v4431
    %v5062 = vpack.c.b16 %v4439, %v4432
    %v5063 = vpack.c.b16 %v4440, %v4433
    %v5064 = vpack.c.b16 %v4441, %v4434
    %v5065 = vpack.c.b16 %v4442, %v4435
    %v5066 = vpack.c.b16 %v4443, %v4436
    %v5067 = vpack.c.b16 %v4444, %v4437
    %v5068 = vpack.c.b16 %v4452, %v4445
    %v5069 = vpack.c.b16 %v4453, %v4446
    %v5070 = vpack.c.b16 %v4454, %v4447
    %v5071 = vpack.c.b16 %v4455, %v4448
    %v5072 = vpack.c.b16 %v4456, %v4449
    %v5073 = vpack.c.b16 %v4457, %v4450
    %v5074 = vpack.c.b16 %v4458, %v4451
    %v5075 = vpack.c.b16 %v4466, %v4459
    %v5076 = vpack.c.b16 %v4467, %v4460
    %v5077 = vpack.c.b16 %v4468, %v4461
    %v5078 = vpack.c.b16 %v4469, %v4462
    %v5079 = vpack.c.b16 %v4470, %v4463
    %v5080 = vpack.c.b16 %v4471, %v4464
    %v5081 = vpack.c.b16 %v4472, %v4465
    %v5082 = vpack.c.b16 %v4480, %v4473
    %v5083 = vpack.c.b16 %v4481, %v4474
    %v5084 = vpack.c.b16 %v4482, %v4475
    %v5085 = vpack.c.b16 %v4483, %v4476
    %v5086 = vpack.c.b16 %v4484, %v4477
    %v5087 = vpack.c.b16 %v4485, %v4478
    %v5088 = vpack.c.b16 %v4486, %v4479
    %v5089 = vpack.c.b16 %v4494, %v4487
    %v5090 = vpack.c.b16 %v4495, %v4488
    %v5091 = vpack.c.b16 %v4496, %v4489
    %v5092 = vpack.c.b16 %v4497, %v4490
    %v5093 = vpack.c.b16 %v4498, %v4491
    %v5094 = vpack.c.b16 %v4499, %v4492
    %v5095 = vpack.c.b16 %v4500, %v4493
    %v5096 = vpack.c.b16 %v4508, %v4501
    %v5097 = vpack.c.b16 %v4509, %v4502
    %v5098 = vpack.c.b16 %v4510, %v4503
    %v5099 = vpack.c.b16 %v4511, %v4504
    %v5100 = vpack.c.b16 %v4512, %v4505
    %v5101 = vpack.c.b16 %v4513, %v4506
    %v5102 = vpack.c.b16 %v4514, %v4507
    %v5103 = vpack.c.b16 %v4522, %v4515
    %v5104 = vpack.c.b16 %v4523, %v4516
    %v5105 = vpack.c.b16 %v4524, %v4517
    %v5106 = vpack.c.b16 %v4525, %v4518
    %v5107 = vpack.c.b16 %v4526, %v4519
    %v5108 = vpack.c.b16 %v4527, %v4520
    %v5109 = vpack.c.b16 %v4528, %v4521
    %v5110 = vpack.c.b16 %v4536, %v4529
    %v5111 = vpack.c.b16 %v4537, %v4530
    %v5112 = vpack.c.b16 %v4538, %v4531
    %v5113 = vpack.c.b16 %v4539, %v4532
    %v5114 = vpack.c.b16 %v4540, %v4533
    %v5115 = vpack.c.b16 %v4541, %v4534
    %v5116 = vpack.c.b16 %v4542, %v4535
    %v5117 = vpack.c.b16 %v4550, %v4543
    %v5118 = vpack.c.b16 %v4551, %v4544
    %v5119 = vpack.c.b16 %v4552, %v4545
    %v5120 = vpack.c.b16 %v4553, %v4546
    %v5121 = vpack.c.b16 %v4554, %v4547
    %v5122 = vpack.c.b16 %v4555, %v4548
    %v5123 = vpack.c.b16 %v4556, %v4549
    %v5124 = vpack.c.b16 %v4564, %v4557
    %v5125 = vpack.c.b16 %v4565, %v4558
    %v5126 = vpack.c.b16 %v4566, %v4559
    %v5127 = vpack.c.b16 %v4567, %v4560
    %v5128 = vpack.c.b16 %v4568, %v4561
    %v5129 = vpack.c.b16 %v4569, %v4562
    %v5130 = vpack.c.b16 %v4570, %v4563
    %v5131 = vpack.c.b16 %v4578, %v4571
    %v5132 = vpack.c.b16 %v4579, %v4572
    %v5133 = vpack.c.b16 %v4580, %v4573
    %v5134 = vpack.c.b16 %v4581, %v4574
    %v5135 = vpack.c.b16 %v4582, %v4575
    %v5136 = vpack.c.b16 %v4583, %v4576
    %v5137 = vpack.c.b16 %v4584, %v4577
    %v5138 = vpack.c.b16 %v4592, %v4585
    %v5139 = vpack.c.b16 %v4593, %v4586
    %v5140 = vpack.c.b16 %v4594, %v4587
    %v5141 = vpack.c.b16 %v4595, %v4588
    %v5142 = vpack.c.b16 %v4596, %v4589
    %v5143 = vpack.c.b16 %v4597, %v4590
    %v5144 = vpack.c.b16 %v4598, %v4591
    %v5145 = vpack.c.b16 %v4606, %v4599
    %v5146 = vpack.c.b16 %v4607, %v4600
    %v5147 = vpack.c.b16 %v4608, %v4601
    %v5148 = vpack.c.b16 %v4609, %v4602
    %v5149 = vpack.c.b16 %v4610, %v4603
    %v5150 = vpack.c.b16 %v4611, %v4604
    %v5151 = vpack.c.b16 %v4612, %v4605
    %v5152 = vpack.c.b16 %v4620, %v4613
    %v5153 = vpack.c.b16 %v4621, %v4614
    %v5154 = vpack.c.b16 %v4622, %v4615
    %v5155 = vpack.c.b16 %v4623, %v4616
    %v5156 = vpack.c.b16 %v4624, %v4617
    %v5157 = vpack.c.b16 %v4625, %v4618
    %v5158 = vpack.c.b16 %v4626, %v4619
    %v5159 = vpack.c.b16 %v4634, %v4627
    %v5160 = vpack.c.b16 %v4635, %v4628
    %v5161 = vpack.c.b16 %v4636, %v4629
    %v5162 = vpack.c.b16 %v4637, %v4630
    %v5163 = vpack.c.b16 %v4638, %v4631
    %v5164 = vpack.c.b16 %v4639, %v4632
    %v5165 = vpack.c.b16 %v4640, %v4633
    %v5166 = vpack.c.b16 %v4648, %v4641
    %v5167 = vpack.c.b16 %v4649, %v4642
    %v5168 = vpack.c.b16 %v4650, %v4643
    %v5169 = vpack.c.b16 %v4651, %v4644
    %v5170 = vpack.c.b16 %v4652, %v4645
    %v5171 = vpack.c.b16 %v4653, %v4646
    %v5172 = vpack.c.b16 %v4654, %v4647
    %v5173 = vpack.c.b16 %v4662, %v4655
    %v5174 = vpack.c.b16 %v4663, %v4656
    %v5175 = vpack.c.b16 %v4664, %v4657
    %v5176 = vpack.c.b16 %v4665, %v4658
    %v5177 = vpack.c.b16 %v4666, %v4659
    %v5178 = vpack.c.b16 %v4667, %v4660
    %v5179 = vpack.c.b16 %v4668, %v4661
    %v5180 = vpack.c.b16 %v4676, %v4669
    %v5181 = vpack.c.b16 %v4677, %v4670
    %v5182 = vpack.c.b16 %v4678, %v4671
    %v5183 = vpack.c.b16 %v4679, %v4672
    %v5184 = vpack.c.b16 %v4680, %v4673
    %v5185 = vpack.c.b16 %v4681, %v4674
    %v5186 = vpack.c.b16 %v4682, %v4675
    %v5187 = vpack.c.b16 %v4690, %v4683
    %v5188 = vpack.c.b16 %v4691, %v4684
    %v5189 = vpack.c.b16 %v4692, %v4685
    %v5190 = vpack.c.b16 %v4693, %v4686
    %v5191 = vpack.c.b16 %v4694, %v4687
    %v5192 = vpack.c.b16 %v4695, %v4688
    %v5193 = vpack.c.b16 %v4696, %v4689
    %v5194 = vpack.c.b16 %v4704, %v4697
    %v5195 = vpack.c.b16 %v4705, %v4698
    %v5196 = vpack.c.b16 %v4706, %v4699
    %v5197 = vpack.c.b16 %v4707, %v4700
    %v5198 = vpack.c.b16 %v4708, %v4701
    %v5199 = vpack.c.b16 %v4709, %v4702
    %v5200 = vpack.c.b16 %v4710, %v4703
    %v5201 = vpack.c.b16 %v4718, %v4711
    %v5202 = vpack.c.b16 %v4719, %v4712
    %v5203 = vpack.c.b16 %v4720, %v4713
    %v5204 = vpack.c.b16 %v4721, %v4714
    %v5205 = vpack.c.b16 %v4722, %v4715
    %v5206 = vpack.c.b16 %v4723, %v4716
    %v5207 = vpack.c.b16 %v4724, %v4717
    %v5208 = vpack.c.b16 %v4732, %v4725
    %v5209 = vpack.c.b16 %v4733, %v4726
    %v5210 = vpack.c.b16 %v4734, %v4727
    %v5211 = vpack.c.b16 %v4735, %v4728
    %v5212 = vpack.c.b16 %v4736, %v4729
    %v5213 = vpack.c.b16 %v4737, %v4730
    %v5214 = vpack.c.b16 %v4738, %v4731
    %v5215 = vpack.c.b16 %v4746, %v4739
    %v5216 = vpack.c.b16 %v4747, %v4740
    %v5217 = vpack.c.b16 %v4748, %v4741
    %v5218 = vpack.c.b16 %v4749, %v4742
    %v5219 = vpack.c.b16 %v4750, %v4743
    %v5220 = vpack.c.b16 %v4751, %v4744
    %v5221 = vpack.c.b16 %v4752, %v4745
    %v5222 = vpack.c.b16 %v4760, %v4753
    %v5223 = vpack.c.b16 %v4761, %v4754
    %v5224 = vpack.c.b16 %v4762, %v4755
    %v5225 = vpack.c.b16 %v4763, %v4756
    %v5226 = vpack.c.b16 %v4764, %v4757
    %v5227 = vpack.c.b16 %v4765, %v4758
    %v5228 = vpack.c.b16 %v4766, %v4759
    %v5229 = vpack.c.b16 %v4774, %v4767
    %v5230 = vpack.c.b16 %v4775, %v4768
    %v5231 = vpack.c.b16 %v4776, %v4769
    %v5232 = vpack.c.b16 %v4777, %v4770
    %v5233 = vpack.c.b16 %v4778, %v4771
    %v5234 = vpack.c.b16 %v4779, %v4772
    %v5235 = vpack.c.b16 %v4780, %v4773
    %v5236 = vpack.c.b16 %v4788, %v4781
    %v5237 = vpack.c.b16 %v4789, %v4782
    %v5238 = vpack.c.b16 %v4790, %v4783
    %v5239 = vpack.c.b16 %v4791, %v4784
    %v5240 = vpack.c.b16 %v4792, %v4785
    %v5241 = vpack.c.b16 %v4793, %v4786
    %v5242 = vpack.c.b16 %v4794, %v4787
    %5691 = vmatprep.subr.bf16.mxu0 %v4796
    %5692 = vmatpush1.bf16.msra.mxu0 %v4795
    %5693 = vmatprep.subr.bf16.mxu0 %v4803
    %5694 = vmatpush1.bf16.msra.mxu0 %v4802
    %5695 = vmatprep.subr.bf16.mxu0 %v4810
    %5696 = vmatpush1.bf16.msra.mxu0 %v4809
    %5697 = vmatprep.subr.bf16.mxu0 %v4817
    %5698 = vmatpush1.bf16.msra.mxu0 %v4816
    %5699 = vmatprep.subr.bf16.mxu0 %v4824
    %5700 = vmatpush1.bf16.msra.mxu0 %v4823
    %5701 = vmatprep.subr.bf16.mxu0 %v4831
    %5702 = vmatpush1.bf16.msra.mxu0 %v4830
    %5703 = vmatprep.subr.bf16.mxu0 %v4838
    %5704 = vmatpush1.bf16.msra.mxu0 %v4837
    %5705 = vmatprep.subr.bf16.mxu0 %v4845
    %5706 = vmatpush1.bf16.msra.mxu0 %v4844
    %5707 = vmatprep.subr.bf16.mxu0 %v4852
    %5708 = vmatpush1.bf16.msra.mxu0 %v4851
    %5709 = vmatprep.subr.bf16.mxu0 %v4859
    %5710 = vmatpush1.bf16.msra.mxu0 %v4858
    %5711 = vmatprep.subr.bf16.mxu0 %v4866
    %5712 = vmatpush1.bf16.msra.mxu0 %v4865
    %5713 = vmatprep.subr.bf16.mxu0 %v4873
    %5714 = vmatpush1.bf16.msra.mxu0 %v4872
    %5715 = vmatprep.subr.bf16.mxu0 %v4880
    %5716 = vmatpush1.bf16.msra.mxu0 %v4879
    %5717 = vmatprep.subr.bf16.mxu0 %v4887
    %5718 = vmatpush1.bf16.msra.mxu0 %v4886
    %5719 = vmatprep.subr.bf16.mxu0 %v4894
    %5720 = vmatpush1.bf16.msra.mxu0 %v4893
    %5721 = vmatprep.subr.bf16.mxu0 %v4901
    %5722 = vmatpush1.bf16.msra.mxu0 %v4900
    %5723 = vmatprep.mubr.bf16.mxu0 %v2831
    %5724 = vmatmul.mubr.bf16.gmra.mrb[0].mxu0 %v2830
    %v5725 = vpop.f32.mrb[0].mxu0
    %v5726 = vadd.f32 %v3355, %v5725
    %v5727 = vpop.f32.mrb[0].mxu0
    %v5728 = vadd.f32 %v3359, %v5727
    %v5729 = vpop.f32.mrb[0].mxu0
    %v5730 = vpop.f32.mrb[0].mxu0
    %5731 = vdwg.mxu0
    %5732 = vmatprep.subr.bf16.mxu0 %v4908
    %5733 = vmatpush1.bf16.msra.mxu0 %v4907
    %5734 = vmatprep.subr.bf16.mxu0 %v4915
    %5735 = vmatpush1.bf16.msra.mxu0 %v4914
    %5736 = vmatprep.subr.bf16.mxu0 %v4922
    %5737 = vmatpush1.bf16.msra.mxu0 %v4921
    %5738 = vmatprep.subr.bf16.mxu0 %v4929
    %5739 = vmatpush1.bf16.msra.mxu0 %v4928
    %5740 = vmatprep.subr.bf16.mxu0 %v4936
    %5741 = vmatpush1.bf16.msra.mxu0 %v4935
    %5742 = vmatprep.subr.bf16.mxu0 %v4943
    %5743 = vmatpush1.bf16.msra.mxu0 %v4942
    %5744 = vmatprep.subr.bf16.mxu0 %v4950
    %5745 = vmatpush1.bf16.msra.mxu0 %v4949
    %5746 = vmatprep.subr.bf16.mxu0 %v4957
    %5747 = vmatpush1.bf16.msra.mxu0 %v4956
    %5748 = vmatprep.subr.bf16.mxu0 %v4964
    %5749 = vmatpush1.bf16.msra.mxu0 %v4963
    %5750 = vmatprep.subr.bf16.mxu0 %v4971
    %5751 = vmatpush1.bf16.msra.mxu0 %v4970
    %5752 = vmatprep.subr.bf16.mxu0 %v4978
    %5753 = vmatpush1.bf16.msra.mxu0 %v4977
    %5754 = vmatprep.subr.bf16.mxu0 %v4985
    %5755 = vmatpush1.bf16.msra.mxu0 %v4984
    %5756 = vmatprep.subr.bf16.mxu0 %v4992
    %5757 = vmatpush1.bf16.msra.mxu0 %v4991
    %5758 = vmatprep.subr.bf16.mxu0 %v4999
    %5759 = vmatpush1.bf16.msra.mxu0 %v4998
    %5760 = vmatprep.subr.bf16.mxu0 %v5006
    %5761 = vmatpush1.bf16.msra.mxu0 %v5005
    %5762 = vmatprep.subr.bf16.mxu0 %v5013
    %5763 = vmatpush1.bf16.msra.mxu0 %v5012
    %5764 = vmatprep.mubr.bf16.mxu0 %v2833
    %5765 = vmatmul.mubr.bf16.gmra.mrb[0].mxu0 %v2832
    %v5766 = vpop.f32.mrb[0].mxu0
    %v5767 = vadd.f32 %v5726, %v5766
    %v5768 = vpop.f32.mrb[0].mxu0
    %v5769 = vadd.f32 %v5728, %v5768
    %v5770 = vpop.f32.mrb[0].mxu0
    %v5771 = vpop.f32.mrb[0].mxu0
    %5772 = vdwg.mxu0
    %5773 = vmatprep.subr.bf16.mxu0 %v5020
    %5774 = vmatpush1.bf16.msra.mxu0 %v5019
    %5775 = vmatprep.subr.bf16.mxu0 %v5027
    %5776 = vmatpush1.bf16.msra.mxu0 %v5026
    %5777 = vmatprep.subr.bf16.mxu0 %v5034
    %5778 = vmatpush1.bf16.msra.mxu0 %v5033
    %5779 = vmatprep.subr.bf16.mxu0 %v5041
    %5780 = vmatpush1.bf16.msra.mxu0 %v5040
    %5781 = vmatprep.subr.bf16.mxu0 %v5048
    %5782 = vmatpush1.bf16.msra.mxu0 %v5047
    %5783 = vmatprep.subr.bf16.mxu0 %v5055
    %5784 = vmatpush1.bf16.msra.mxu0 %v5054
    %5785 = vmatprep.subr.bf16.mxu0 %v5062
    %5786 = vmatpush1.bf16.msra.mxu0 %v5061
    %5787 = vmatprep.subr.bf16.mxu0 %v5069
    %5788 = vmatpush1.bf16.msra.mxu0 %v5068
    %5789 = vmatprep.subr.bf16.mxu0 %v5076
    %5790 = vmatpush1.bf16.msra.mxu0 %v5075
    %5791 = vmatprep.subr.bf16.mxu0 %v5083
    %5792 = vmatpush1.bf16.msra.mxu0 %v5082
    %5793 = vmatprep.subr.bf16.mxu0 %v5090
    %5794 = vmatpush1.bf16.msra.mxu0 %v5089
    %5795 = vmatprep.subr.bf16.mxu0 %v5097
    %5796 = vmatpush1.bf16.msra.mxu0 %v5096
    %5797 = vmatprep.subr.bf16.mxu0 %v5104
    %5798 = vmatpush1.bf16.msra.mxu0 %v5103
    %5799 = vmatprep.subr.bf16.mxu0 %v5111
    %5800 = vmatpush1.bf16.msra.mxu0 %v5110
    %5801 = vmatprep.subr.bf16.mxu0 %v5118
    %5802 = vmatpush1.bf16.msra.mxu0 %v5117
    %5803 = vmatprep.subr.bf16.mxu0 %v5125
    %5804 = vmatpush1.bf16.msra.mxu0 %v5124
    %5805 = vmatprep.mubr.bf16.mxu0 %v2835
    %5806 = vmatmul.mubr.bf16.gmra.mrb[0].mxu0 %v2834
    %v5807 = vpop.f32.mrb[0].mxu0
    %v5808 = vadd.f32 %v5767, %v5807
    %v5809 = vpop.f32.mrb[0].mxu0
    %v5810 = vadd.f32 %v5769, %v5809
    %v5811 = vpop.f32.mrb[0].mxu0
    %v5812 = vpop.f32.mrb[0].mxu0
    %5813 = vdwg.mxu0
    %5814 = vmatprep.subr.bf16.mxu0 %v5132
    %5815 = vmatpush1.bf16.msra.mxu0 %v5131
    %5816 = vmatprep.subr.bf16.mxu0 %v5139
    %5817 = vmatpush1.bf16.msra.mxu0 %v5138
    %5818 = vmatprep.subr.bf16.mxu0 %v5146
    %5819 = vmatpush1.bf16.msra.mxu0 %v5145
    %5820 = vmatprep.subr.bf16.mxu0 %v5153
    %5821 = vmatpush1.bf16.msra.mxu0 %v5152
    %5822 = vmatprep.subr.bf16.mxu0 %v5160
    %5823 = vmatpush1.bf16.msra.mxu0 %v5159
    %5824 = vmatprep.subr.bf16.mxu0 %v5167
    %5825 = vmatpush1.bf16.msra.mxu0 %v5166
    %5826 = vmatprep.subr.bf16.mxu0 %v5174
    %5827 = vmatpush1.bf16.msra.mxu0 %v5173
    %5828 = vmatprep.subr.bf16.mxu0 %v5181
    %5829 = vmatpush1.bf16.msra.mxu0 %v5180
    %5830 = vmatprep.subr.bf16.mxu0 %v5188
    %5831 = vmatpush1.bf16.msra.mxu0 %v5187
    %5832 = vmatprep.subr.bf16.mxu0 %v5195
    %5833 = vmatpush1.bf16.msra.mxu0 %v5194
    %5834 = vmatprep.subr.bf16.mxu0 %v5202
    %5835 = vmatpush1.bf16.msra.mxu0 %v5201
    %5836 = vmatprep.subr.bf16.mxu0 %v5209
    %5837 = vmatpush1.bf16.msra.mxu0 %v5208
    %5838 = vmatprep.subr.bf16.mxu0 %v5216
    %5839 = vmatpush1.bf16.msra.mxu0 %v5215
    %5840 = vmatprep.subr.bf16.mxu0 %v5223
    %5841 = vmatpush1.bf16.msra.mxu0 %v5222
    %5842 = vmatprep.subr.bf16.mxu0 %v5230
    %5843 = vmatpush1.bf16.msra.mxu0 %v5229
    %5844 = vmatprep.subr.bf16.mxu0 %v5237
    %5845 = vmatpush1.bf16.msra.mxu0 %v5236
    %5846 = vmatprep.mubr.bf16.mxu0 %v2837
    %5847 = vmatmul.mubr.bf16.gmra.mrb[0].mxu0 %v2836
    %v5848 = vpop.f32.mrb[0].mxu0
    %v5849 = vadd.f32 %v5808, %v5848
    %v5850 = vpop.f32.mrb[0].mxu0
    %v5851 = vadd.f32 %v5810, %v5850
    %v5852 = vpop.f32.mrb[0].mxu0
    %v5853 = vpop.f32.mrb[0].mxu0
    %5854 = vdwg.mxu0
    %5855 = vmatprep.subr.bf16.mxu0 %v4798
    %5856 = vmatpush1.bf16.msra.mxu0 %v4797
    %5857 = vmatprep.subr.bf16.mxu0 %v4805
    %5858 = vmatpush1.bf16.msra.mxu0 %v4804
    %5859 = vmatprep.subr.bf16.mxu0 %v4812
    %5860 = vmatpush1.bf16.msra.mxu0 %v4811
    %5861 = vmatprep.subr.bf16.mxu0 %v4819
    %5862 = vmatpush1.bf16.msra.mxu0 %v4818
    %5863 = vmatprep.subr.bf16.mxu0 %v4826
    %5864 = vmatpush1.bf16.msra.mxu0 %v4825
    %5865 = vmatprep.subr.bf16.mxu0 %v4833
    %5866 = vmatpush1.bf16.msra.mxu0 %v4832
    %5867 = vmatprep.subr.bf16.mxu0 %v4840
    %5868 = vmatpush1.bf16.msra.mxu0 %v4839
    %5869 = vmatprep.subr.bf16.mxu0 %v4847
    %5870 = vmatpush1.bf16.msra.mxu0 %v4846
    %5871 = vmatprep.subr.bf16.mxu0 %v4854
    %5872 = vmatpush1.bf16.msra.mxu0 %v4853
    %5873 = vmatprep.subr.bf16.mxu0 %v4861
    %5874 = vmatpush1.bf16.msra.mxu0 %v4860
    %5875 = vmatprep.subr.bf16.mxu0 %v4868
    %5876 = vmatpush1.bf16.msra.mxu0 %v4867
    %5877 = vmatprep.subr.bf16.mxu0 %v4875
    %5878 = vmatpush1.bf16.msra.mxu0 %v4874
    %5879 = vmatprep.subr.bf16.mxu0 %v4882
    %5880 = vmatpush1.bf16.msra.mxu0 %v4881
    %5881 = vmatprep.subr.bf16.mxu0 %v4889
    %5882 = vmatpush1.bf16.msra.mxu0 %v4888
    %5883 = vmatprep.subr.bf16.mxu0 %v4896
    %5884 = vmatpush1.bf16.msra.mxu0 %v4895
    %5885 = vmatprep.subr.bf16.mxu0 %v4903
    %5886 = vmatpush1.bf16.msra.mxu0 %v4902
    %5887 = vmatprep.mubr.bf16.mxu0 %v2831
    %5888 = vmatmul.mubr.bf16.gmra.mrb[0].mxu0 %v2830
    %v5889 = vpop.f32.mrb[0].mxu0
    %v5890 = vadd.f32 %v3363, %v5889
    %v5891 = vpop.f32.mrb[0].mxu0
    %v5892 = vadd.f32 %v3367, %v5891
    %v5893 = vpop.f32.mrb[0].mxu0
    %v5894 = vpop.f32.mrb[0].mxu0
    %5895 = vdwg.mxu0
    %5896 = vmatprep.subr.bf16.mxu0 %v4910
    %5897 = vmatpush1.bf16.msra.mxu0 %v4909
    %5898 = vmatprep.subr.bf16.mxu0 %v4917
    %5899 = vmatpush1.bf16.msra.mxu0 %v4916
    %5900 = vmatprep.subr.bf16.mxu0 %v4924
    %5901 = vmatpush1.bf16.msra.mxu0 %v4923
    %5902 = vmatprep.subr.bf16.mxu0 %v4931
    %5903 = vmatpush1.bf16.msra.mxu0 %v4930
    %5904 = vmatprep.subr.bf16.mxu0 %v4938
    %5905 = vmatpush1.bf16.msra.mxu0 %v4937
    %5906 = vmatprep.subr.bf16.mxu0 %v4945
    %5907 = vmatpush1.bf16.msra.mxu0 %v4944
    %5908 = vmatprep.subr.bf16.mxu0 %v4952
    %5909 = vmatpush1.bf16.msra.mxu0 %v4951
    %5910 = vmatprep.subr.bf16.mxu0 %v4959
    %5911 = vmatpush1.bf16.msra.mxu0 %v4958
    %5912 = vmatprep.subr.bf16.mxu0 %v4966
    %5913 = vmatpush1.bf16.msra.mxu0 %v4965
    %5914 = vmatprep.subr.bf16.mxu0 %v4973
    %5915 = vmatpush1.bf16.msra.mxu0 %v4972
    %5916 = vmatprep.subr.bf16.mxu0 %v4980
    %5917 = vmatpush1.bf16.msra.mxu0 %v4979
    %5918 = vmatprep.subr.bf16.mxu0 %v4987
    %5919 = vmatpush1.bf16.msra.mxu0 %v4986
    %5920 = vmatprep.subr.bf16.mxu0 %v4994
    %5921 = vmatpush1.bf16.msra.mxu0 %v4993
    %5922 = vmatprep.subr.bf16.mxu0 %v5001
    %5923 = vmatpush1.bf16.msra.mxu0 %v5000
    %5924 = vmatprep.subr.bf16.mxu0 %v5008
    %5925 = vmatpush1.bf16.msra.mxu0 %v5007
    %5926 = vmatprep.subr.bf16.mxu0 %v5015
    %5927 = vmatpush1.bf16.msra.mxu0 %v5014
    %5928 = vmatprep.mubr.bf16.mxu0 %v2833
    %5929 = vmatmul.mubr.bf16.gmra.mrb[0].mxu0 %v2832
    %v5930 = vpop.f32.mrb[0].mxu0
    %v5931 = vadd.f32 %v5890, %v5930
    %v5932 = vpop.f32.mrb[0].mxu0
    %v5933 = vadd.f32 %v5892, %v5932
    %v5934 = vpop.f32.mrb[0].mxu0
    %v5935 = vpop.f32.mrb[0].mxu0
    %5936 = vdwg.mxu0
    %5937 = vmatprep.subr.bf16.mxu0 %v5022
    %5938 = vmatpush1.bf16.msra.mxu0 %v5021
    %5939 = vmatprep.subr.bf16.mxu0 %v5029
    %5940 = vmatpush1.bf16.msra.mxu0 %v5028
    %5941 = vmatprep.subr.bf16.mxu0 %v5036
    %5942 = vmatpush1.bf16.msra.mxu0 %v5035
    %5943 = vmatprep.subr.bf16.mxu0 %v5043
    %5944 = vmatpush1.bf16.msra.mxu0 %v5042
    %5945 = vmatprep.subr.bf16.mxu0 %v5050
    %5946 = vmatpush1.bf16.msra.mxu0 %v5049
    %5947 = vmatprep.subr.bf16.mxu0 %v5057
    %5948 = vmatpush1.bf16.msra.mxu0 %v5056
    %5949 = vmatprep.subr.bf16.mxu0 %v5064
    %5950 = vmatpush1.bf16.msra.mxu0 %v5063
    %5951 = vmatprep.subr.bf16.mxu0 %v5071
    %5952 = vmatpush1.bf16.msra.mxu0 %v5070
    %5953 = vmatprep.subr.bf16.mxu0 %v5078
    %5954 = vmatpush1.bf16.msra.mxu0 %v5077
    %5955 = vmatprep.subr.bf16.mxu0 %v5085
    %5956 = vmatpush1.bf16.msra.mxu0 %v5084
    %5957 = vmatprep.subr.bf16.mxu0 %v5092
    %5958 = vmatpush1.bf16.msra.mxu0 %v5091
    %5959 = vmatprep.subr.bf16.mxu0 %v5099
    %5960 = vmatpush1.bf16.msra.mxu0 %v5098
    %5961 = vmatprep.subr.bf16.mxu0 %v5106
    %5962 = vmatpush1.bf16.msra.mxu0 %v5105
    %5963 = vmatprep.subr.bf16.mxu0 %v5113
    %5964 = vmatpush1.bf16.msra.mxu0 %v5112
    %5965 = vmatprep.subr.bf16.mxu0 %v5120
    %5966 = vmatpush1.bf16.msra.mxu0 %v5119
    %5967 = vmatprep.subr.bf16.mxu0 %v5127
    %5968 = vmatpush1.bf16.msra.mxu0 %v5126
    %5969 = vmatprep.mubr.bf16.mxu0 %v2835
    %5970 = vmatmul.mubr.bf16.gmra.mrb[0].mxu0 %v2834
    %v5971 = vpop.f32.mrb[0].mxu0
    %v5972 = vadd.f32 %v5931, %v5971
    %v5973 = vpop.f32.mrb[0].mxu0
    %v5974 = vadd.f32 %v5933, %v5973
    %v5975 = vpop.f32.mrb[0].mxu0
    %v5976 = vpop.f32.mrb[0].mxu0
    %5977 = vdwg.mxu0
    %5978 = vmatprep.subr.bf16.mxu0 %v5134
    %5979 = vmatpush1.bf16.msra.mxu0 %v5133
    %5980 = vmatprep.subr.bf16.mxu0 %v5141
    %5981 = vmatpush1.bf16.msra.mxu0 %v5140
    %5982 = vmatprep.subr.bf16.mxu0 %v5148
    %5983 = vmatpush1.bf16.msra.mxu0 %v5147
    %5984 = vmatprep.subr.bf16.mxu0 %v5155
    %5985 = vmatpush1.bf16.msra.mxu0 %v5154
    %5986 = vmatprep.subr.bf16.mxu0 %v5162
    %5987 = vmatpush1.bf16.msra.mxu0 %v5161
    %5988 = vmatprep.subr.bf16.mxu0 %v5169
    %5989 = vmatpush1.bf16.msra.mxu0 %v5168
    %5990 = vmatprep.subr.bf16.mxu0 %v5176
    %5991 = vmatpush1.bf16.msra.mxu0 %v5175
    %5992 = vmatprep.subr.bf16.mxu0 %v5183
    %5993 = vmatpush1.bf16.msra.mxu0 %v5182
    %5994 = vmatprep.subr.bf16.mxu0 %v5190
    %5995 = vmatpush1.bf16.msra.mxu0 %v5189
    %5996 = vmatprep.subr.bf16.mxu0 %v5197
    %5997 = vmatpush1.bf16.msra.mxu0 %v5196
    %5998 = vmatprep.subr.bf16.mxu0 %v5204
    %5999 = vmatpush1.bf16.msra.mxu0 %v5203
    %6000 = vmatprep.subr.bf16.mxu0 %v5211
    %6001 = vmatpush1.bf16.msra.mxu0 %v5210
    %6002 = vmatprep.subr.bf16.mxu0 %v5218
    %6003 = vmatpush1.bf16.msra.mxu0 %v5217
    %6004 = vmatprep.subr.bf16.mxu0 %v5225
    %6005 = vmatpush1.bf16.msra.mxu0 %v5224
    %6006 = vmatprep.subr.bf16.mxu0 %v5232
    %6007 = vmatpush1.bf16.msra.mxu0 %v5231
    %6008 = vmatprep.subr.bf16.mxu0 %v5239
    %6009 = vmatpush1.bf16.msra.mxu0 %v5238
    %6010 = vmatprep.mubr.bf16.mxu0 %v2837
    %6011 = vmatmul.mubr.bf16.gmra.mrb[0].mxu0 %v2836
    %v6012 = vpop.f32.mrb[0].mxu0
    %v6013 = vadd.f32 %v5972, %v6012
    %v6014 = vpop.f32.mrb[0].mxu0
    %v6015 = vadd.f32 %v5974, %v6014
    %v6016 = vpop.f32.mrb[0].mxu0
    %v6017 = vpop.f32.mrb[0].mxu0
    %6018 = vdwg.mxu0
    %6019 = vmatprep.subr.bf16.mxu0 %v4800
    %6020 = vmatpush1.bf16.msra.mxu0 %v4799
    %6021 = vmatprep.subr.bf16.mxu0 %v4807
    %6022 = vmatpush1.bf16.msra.mxu0 %v4806
    %6023 = vmatprep.subr.bf16.mxu0 %v4814
    %6024 = vmatpush1.bf16.msra.mxu0 %v4813
    %6025 = vmatprep.subr.bf16.mxu0 %v4821
    %6026 = vmatpush1.bf16.msra.mxu0 %v4820
    %6027 = vmatprep.subr.bf16.mxu0 %v4828
    %6028 = vmatpush1.bf16.msra.mxu0 %v4827
    %6029 = vmatprep.subr.bf16.mxu0 %v4835
    %6030 = vmatpush1.bf16.msra.mxu0 %v4834
    %6031 = vmatprep.subr.bf16.mxu0 %v4842
    %6032 = vmatpush1.bf16.msra.mxu0 %v4841
    %6033 = vmatprep.subr.bf16.mxu0 %v4849
    %6034 = vmatpush1.bf16.msra.mxu0 %v4848
    %6035 = vmatprep.subr.bf16.mxu0 %v4856
    %6036 = vmatpush1.bf16.msra.mxu0 %v4855
    %6037 = vmatprep.subr.bf16.mxu0 %v4863
    %6038 = vmatpush1.bf16.msra.mxu0 %v4862
    %6039 = vmatprep.subr.bf16.mxu0 %v4870
    %6040 = vmatpush1.bf16.msra.mxu0 %v4869
    %6041 = vmatprep.subr.bf16.mxu0 %v4877
    %6042 = vmatpush1.bf16.msra.mxu0 %v4876
    %6043 = vmatprep.subr.bf16.mxu0 %v4884
    %6044 = vmatpush1.bf16.msra.mxu0 %v4883
    %6045 = vmatprep.subr.bf16.mxu0 %v4891
    %6046 = vmatpush1.bf16.msra.mxu0 %v4890
    %6047 = vmatprep.subr.bf16.mxu0 %v4898
    %6048 = vmatpush1.bf16.msra.mxu0 %v4897
    %6049 = vmatprep.subr.bf16.mxu0 %v4905
    %6050 = vmatpush1.bf16.msra.mxu0 %v4904
    %6051 = vmatprep.mubr.bf16.mxu0 %v2831
    %6052 = vmatmul.mubr.bf16.gmra.mrb[0].mxu0 %v2830
    %v6053 = vpop.f32.mrb[0].mxu0
    %v6054 = vadd.f32 %v3371, %v6053
    %v6055 = vpop.f32.mrb[0].mxu0
    %v6056 = vadd.f32 %v3375, %v6055
    %v6057 = vpop.f32.mrb[0].mxu0
    %v6058 = vpop.f32.mrb[0].mxu0
    %6059 = vdwg.mxu0
    %6060 = vmatprep.subr.bf16.mxu0 %v4912
    %6061 = vmatpush1.bf16.msra.mxu0 %v4911
    %6062 = vmatprep.subr.bf16.mxu0 %v4919
    %6063 = vmatpush1.bf16.msra.mxu0 %v4918
    %6064 = vmatprep.subr.bf16.mxu0 %v4926
    %6065 = vmatpush1.bf16.msra.mxu0 %v4925
    %6066 = vmatprep.subr.bf16.mxu0 %v4933
    %6067 = vmatpush1.bf16.msra.mxu0 %v4932
    %6068 = vmatprep.subr.bf16.mxu0 %v4940
    %6069 = vmatpush1.bf16.msra.mxu0 %v4939
    %6070 = vmatprep.subr.bf16.mxu0 %v4947
    %6071 = vmatpush1.bf16.msra.mxu0 %v4946
    %6072 = vmatprep.subr.bf16.mxu0 %v4954
    %6073 = vmatpush1.bf16.msra.mxu0 %v4953
    %6074 = vmatprep.subr.bf16.mxu0 %v4961
    %6075 = vmatpush1.bf16.msra.mxu0 %v4960
    %6076 = vmatprep.subr.bf16.mxu0 %v4968
    %6077 = vmatpush1.bf16.msra.mxu0 %v4967
    %6078 = vmatprep.subr.bf16.mxu0 %v4975
    %6079 = vmatpush1.bf16.msra.mxu0 %v4974
    %6080 = vmatprep.subr.bf16.mxu0 %v4982
    %6081 = vmatpush1.bf16.msra.mxu0 %v4981
    %6082 = vmatprep.subr.bf16.mxu0 %v4989
    %6083 = vmatpush1.bf16.msra.mxu0 %v4988
    %6084 = vmatprep.subr.bf16.mxu0 %v4996
    %6085 = vmatpush1.bf16.msra.mxu0 %v4995
    %6086 = vmatprep.subr.bf16.mxu0 %v5003
    %6087 = vmatpush1.bf16.msra.mxu0 %v5002
    %6088 = vmatprep.subr.bf16.mxu0 %v5010
    %6089 = vmatpush1.bf16.msra.mxu0 %v5009
    %6090 = vmatprep.subr.bf16.mxu0 %v5017
    %6091 = vmatpush1.bf16.msra.mxu0 %v5016
    %6092 = vmatprep.mubr.bf16.mxu0 %v2833
    %6093 = vmatmul.mubr.bf16.gmra.mrb[0].mxu0 %v2832
    %v6094 = vpop.f32.mrb[0].mxu0
    %v6095 = vadd.f32 %v6054, %v6094
    %v6096 = vpop.f32.mrb[0].mxu0
    %v6097 = vadd.f32 %v6056, %v6096
    %v6098 = vpop.f32.mrb[0].mxu0
    %v6099 = vpop.f32.mrb[0].mxu0
    %6100 = vdwg.mxu0
    %6101 = vmatprep.subr.bf16.mxu0 %v5024
    %6102 = vmatpush1.bf16.msra.mxu0 %v5023
    %6103 = vmatprep.subr.bf16.mxu0 %v5031
    %6104 = vmatpush1.bf16.msra.mxu0 %v5030
    %6105 = vmatprep.subr.bf16.mxu0 %v5038
    %6106 = vmatpush1.bf16.msra.mxu0 %v5037
    %6107 = vmatprep.subr.bf16.mxu0 %v5045
    %6108 = vmatpush1.bf16.msra.mxu0 %v5044
    %6109 = vmatprep.subr.bf16.mxu0 %v5052
    %6110 = vmatpush1.bf16.msra.mxu0 %v5051
    %6111 = vmatprep.subr.bf16.mxu0 %v5059
    %6112 = vmatpush1.bf16.msra.mxu0 %v5058
    %6113 = vmatprep.subr.bf16.mxu0 %v5066
    %6114 = vmatpush1.bf16.msra.mxu0 %v5065
    %6115 = vmatprep.subr.bf16.mxu0 %v5073
    %6116 = vmatpush1.bf16.msra.mxu0 %v5072
    %6117 = vmatprep.subr.bf16.mxu0 %v5080
    %6118 = vmatpush1.bf16.msra.mxu0 %v5079
    %6119 = vmatprep.subr.bf16.mxu0 %v5087
    %6120 = vmatpush1.bf16.msra.mxu0 %v5086
    %6121 = vmatprep.subr.bf16.mxu0 %v5094
    %6122 = vmatpush1.bf16.msra.mxu0 %v5093
    %6123 = vmatprep.subr.bf16.mxu0 %v5101
    %6124 = vmatpush1.bf16.msra.mxu0 %v5100
    %6125 = vmatprep.subr.bf16.mxu0 %v5108
    %6126 = vmatpush1.bf16.msra.mxu0 %v5107
    %6127 = vmatprep.subr.bf16.mxu0 %v5115
    %6128 = vmatpush1.bf16.msra.mxu0 %v5114
    %6129 = vmatprep.subr.bf16.mxu0 %v5122
    %6130 = vmatpush1.bf16.msra.mxu0 %v5121
    %6131 = vmatprep.subr.bf16.mxu0 %v5129
    %6132 = vmatpush1.bf16.msra.mxu0 %v5128
    %6133 = vmatprep.mubr.bf16.mxu0 %v2835
    %6134 = vmatmul.mubr.bf16.gmra.mrb[0].mxu0 %v2834
    %v6135 = vpop.f32.mrb[0].mxu0
    %v6136 = vadd.f32 %v6095, %v6135
    %v6137 = vpop.f32.mrb[0].mxu0
    %v6138 = vadd.f32 %v6097, %v6137
    %v6139 = vpop.f32.mrb[0].mxu0
    %v6140 = vpop.f32.mrb[0].mxu0
    %6141 = vdwg.mxu0
    %6142 = vmatprep.subr.bf16.mxu0 %v5136
    %6143 = vmatpush1.bf16.msra.mxu0 %v5135
    %6144 = vmatprep.subr.bf16.mxu0 %v5143
    %6145 = vmatpush1.bf16.msra.mxu0 %v5142
    %6146 = vmatprep.subr.bf16.mxu0 %v5150
    %6147 = vmatpush1.bf16.msra.mxu0 %v5149
    %6148 = vmatprep.subr.bf16.mxu0 %v5157
    %6149 = vmatpush1.bf16.msra.mxu0 %v5156
    %6150 = vmatprep.subr.bf16.mxu0 %v5164
    %6151 = vmatpush1.bf16.msra.mxu0 %v5163
    %6152 = vmatprep.subr.bf16.mxu0 %v5171
    %6153 = vmatpush1.bf16.msra.mxu0 %v5170
    %6154 = vmatprep.subr.bf16.mxu0 %v5178
    %6155 = vmatpush1.bf16.msra.mxu0 %v5177
    %6156 = vmatprep.subr.bf16.mxu0 %v5185
    %6157 = vmatpush1.bf16.msra.mxu0 %v5184
    %6158 = vmatprep.subr.bf16.mxu0 %v5192
    %6159 = vmatpush1.bf16.msra.mxu0 %v5191
    %6160 = vmatprep.subr.bf16.mxu0 %v5199
    %6161 = vmatpush1.bf16.msra.mxu0 %v5198
    %6162 = vmatprep.subr.bf16.mxu0 %v5206
    %6163 = vmatpush1.bf16.msra.mxu0 %v5205
    %6164 = vmatprep.subr.bf16.mxu0 %v5213
    %6165 = vmatpush1.bf16.msra.mxu0 %v5212
    %6166 = vmatprep.subr.bf16.mxu0 %v5220
    %6167 = vmatpush1.bf16.msra.mxu0 %v5219
    %6168 = vmatprep.subr.bf16.mxu0 %v5227
    %6169 = vmatpush1.bf16.msra.mxu0 %v5226
    %6170 = vmatprep.subr.bf16.mxu0 %v5234
    %6171 = vmatpush1.bf16.msra.mxu0 %v5233
    %6172 = vmatprep.subr.bf16.mxu0 %v5241
    %6173 = vmatpush1.bf16.msra.mxu0 %v5240
    %6174 = vmatprep.mubr.bf16.mxu0 %v2837
    %6175 = vmatmul.mubr.bf16.gmra.mrb[0].mxu0 %v2836
    %v6176 = vpop.f32.mrb[0].mxu0
    %v6177 = vadd.f32 %v6136, %v6176
    %v6178 = vpop.f32.mrb[0].mxu0
    %v6179 = vadd.f32 %v6138, %v6178
    %v6180 = vpop.f32.mrb[0].mxu0
    %v6181 = vpop.f32.mrb[0].mxu0
    %6182 = vdwg.mxu0
    %6183 = vmatprep.subr.bf16.mxu0 0
    %6184 = vmatpush1.bf16.msra.mxu0 %v4801
    %6185 = vmatprep.subr.bf16.mxu0 0
    %6186 = vmatpush1.bf16.msra.mxu0 %v4808
    %6187 = vmatprep.subr.bf16.mxu0 0
    %6188 = vmatpush1.bf16.msra.mxu0 %v4815
    %6189 = vmatprep.subr.bf16.mxu0 0
    %6190 = vmatpush1.bf16.msra.mxu0 %v4822
    %6191 = vmatprep.subr.bf16.mxu0 0
    %6192 = vmatpush1.bf16.msra.mxu0 %v4829
    %6193 = vmatprep.subr.bf16.mxu0 0
    %6194 = vmatpush1.bf16.msra.mxu0 %v4836
    %6195 = vmatprep.subr.bf16.mxu0 0
    %6196 = vmatpush1.bf16.msra.mxu0 %v4843
    %6197 = vmatprep.subr.bf16.mxu0 0
    %6198 = vmatpush1.bf16.msra.mxu0 %v4850
    %6199 = vmatprep.subr.bf16.mxu0 0
    %6200 = vmatpush1.bf16.msra.mxu0 %v4857
    %6201 = vmatprep.subr.bf16.mxu0 0
    %6202 = vmatpush1.bf16.msra.mxu0 %v4864
    %6203 = vmatprep.subr.bf16.mxu0 0
    %6204 = vmatpush1.bf16.msra.mxu0 %v4871
    %6205 = vmatprep.subr.bf16.mxu0 0
    %6206 = vmatpush1.bf16.msra.mxu0 %v4878
    %6207 = vmatprep.subr.bf16.mxu0 0
    %6208 = vmatpush1.bf16.msra.mxu0 %v4885
    %6209 = vmatprep.subr.bf16.mxu0 0
    %6210 = vmatpush1.bf16.msra.mxu0 %v4892
    %6211 = vmatprep.subr.bf16.mxu0 0
    %6212 = vmatpush1.bf16.msra.mxu0 %v4899
    %6213 = vmatprep.subr.bf16.mxu0 0
    %6214 = vmatpush1.bf16.msra.mxu0 %v4906
    %6215 = vmatprep.mubr.bf16.mxu0 %v2831
    %6216 = vmatmul.mubr.bf16.gmra.mrb[0].mxu0 %v2830
    %v6217 = vpop.f32.mrb[0].mxu0
    %v6218 = vadd.f32 %v3379, %v6217
    %v6219 = vpop.f32.mrb[0].mxu0
    %v6220 = vpop.f32.mrb[0].mxu0
    %v6221 = vpop.f32.mrb[0].mxu0
    %6222 = vdwg.mxu0
    %6223 = vmatprep.subr.bf16.mxu0 0
    %6224 = vmatpush1.bf16.msra.mxu0 %v4913
    %6225 = vmatprep.subr.bf16.mxu0 0
    %6226 = vmatpush1.bf16.msra.mxu0 %v4920
    %6227 = vmatprep.subr.bf16.mxu0 0
    %6228 = vmatpush1.bf16.msra.mxu0 %v4927
    %6229 = vmatprep.subr.bf16.mxu0 0
    %6230 = vmatpush1.bf16.msra.mxu0 %v4934
    %6231 = vmatprep.subr.bf16.mxu0 0
    %6232 = vmatpush1.bf16.msra.mxu0 %v4941
    %6233 = vmatprep.subr.bf16.mxu0 0
    %6234 = vmatpush1.bf16.msra.mxu0 %v4948
    %6235 = vmatprep.subr.bf16.mxu0 0
    %6236 = vmatpush1.bf16.msra.mxu0 %v4955
    %6237 = vmatprep.subr.bf16.mxu0 0
    %6238 = vmatpush1.bf16.msra.mxu0 %v4962
    %6239 = vmatprep.subr.bf16.mxu0 0
    %6240 = vmatpush1.bf16.msra.mxu0 %v4969
    %6241 = vmatprep.subr.bf16.mxu0 0
    %6242 = vmatpush1.bf16.msra.mxu0 %v4976
    %6243 = vmatprep.subr.bf16.mxu0 0
    %6244 = vmatpush1.bf16.msra.mxu0 %v4983
    %6245 = vmatprep.subr.bf16.mxu0 0
    %6246 = vmatpush1.bf16.msra.mxu0 %v4990
    %6247 = vmatprep.subr.bf16.mxu0 0
    %6248 = vmatpush1.bf16.msra.mxu0 %v4997
    %6249 = vmatprep.subr.bf16.mxu0 0
    %6250 = vmatpush1.bf16.msra.mxu0 %v5004
    %6251 = vmatprep.subr.bf16.mxu0 0
    %6252 = vmatpush1.bf16.msra.mxu0 %v5011
    %6253 = vmatprep.subr.bf16.mxu0 0
    %6254 = vmatpush1.bf16.msra.mxu0 %v5018
    %6255 = vmatprep.mubr.bf16.mxu0 %v2833
    %6256 = vmatmul.mubr.bf16.gmra.mrb[0].mxu0 %v2832
    %v6257 = vpop.f32.mrb[0].mxu0
    %v6258 = vadd.f32 %v6218, %v6257
    %v6259 = vpop.f32.mrb[0].mxu0
    %v6260 = vpop.f32.mrb[0].mxu0
    %v6261 = vpop.f32.mrb[0].mxu0
    %6262 = vdwg.mxu0
    %6263 = vmatprep.subr.bf16.mxu0 0
    %6264 = vmatpush1.bf16.msra.mxu0 %v5025
    %6265 = vmatprep.subr.bf16.mxu0 0
    %6266 = vmatpush1.bf16.msra.mxu0 %v5032
    %6267 = vmatprep.subr.bf16.mxu0 0
    %6268 = vmatpush1.bf16.msra.mxu0 %v5039
    %6269 = vmatprep.subr.bf16.mxu0 0
    %6270 = vmatpush1.bf16.msra.mxu0 %v5046
    %6271 = vmatprep.subr.bf16.mxu0 0
    %6272 = vmatpush1.bf16.msra.mxu0 %v5053
    %6273 = vmatprep.subr.bf16.mxu0 0
    %6274 = vmatpush1.bf16.msra.mxu0 %v5060
    %6275 = vmatprep.subr.bf16.mxu0 0
    %6276 = vmatpush1.bf16.msra.mxu0 %v5067
    %6277 = vmatprep.subr.bf16.mxu0 0
    %6278 = vmatpush1.bf16.msra.mxu0 %v5074
    %6279 = vmatprep.subr.bf16.mxu0 0
    %6280 = vmatpush1.bf16.msra.mxu0 %v5081
    %6281 = vmatprep.subr.bf16.mxu0 0
    %6282 = vmatpush1.bf16.msra.mxu0 %v5088
    %6283 = vmatprep.subr.bf16.mxu0 0
    %6284 = vmatpush1.bf16.msra.mxu0 %v5095
    %6285 = vmatprep.subr.bf16.mxu0 0
    %6286 = vmatpush1.bf16.msra.mxu0 %v5102
    %6287 = vmatprep.subr.bf16.mxu0 0
    %6288 = vmatpush1.bf16.msra.mxu0 %v5109
    %6289 = vmatprep.subr.bf16.mxu0 0
    %6290 = vmatpush1.bf16.msra.mxu0 %v5116
    %6291 = vmatprep.subr.bf16.mxu0 0
    %6292 = vmatpush1.bf16.msra.mxu0 %v5123
    %6293 = vmatprep.subr.bf16.mxu0 0
    %6294 = vmatpush1.bf16.msra.mxu0 %v5130
    %6295 = vmatprep.mubr.bf16.mxu0 %v2835
    %6296 = vmatmul.mubr.bf16.gmra.mrb[0].mxu0 %v2834
    %v6297 = vpop.f32.mrb[0].mxu0
    %v6298 = vadd.f32 %v6258, %v6297
    %v6299 = vpop.f32.mrb[0].mxu0
    %v6300 = vpop.f32.mrb[0].mxu0
    %v6301 = vpop.f32.mrb[0].mxu0
    %6302 = vdwg.mxu0
    %6303 = vmatprep.subr.bf16.mxu0 0
    %6304 = vmatpush1.bf16.msra.mxu0 %v5137
    %6305 = vmatprep.subr.bf16.mxu0 0
    %6306 = vmatpush1.bf16.msra.mxu0 %v5144
    %6307 = vmatprep.subr.bf16.mxu0 0
    %6308 = vmatpush1.bf16.msra.mxu0 %v5151
    %6309 = vmatprep.subr.bf16.mxu0 0
    %6310 = vmatpush1.bf16.msra.mxu0 %v5158
    %6311 = vmatprep.subr.bf16.mxu0 0
    %6312 = vmatpush1.bf16.msra.mxu0 %v5165
    %6313 = vmatprep.subr.bf16.mxu0 0
    %6314 = vmatpush1.bf16.msra.mxu0 %v5172
    %6315 = vmatprep.subr.bf16.mxu0 0
    %6316 = vmatpush1.bf16.msra.mxu0 %v5179
    %6317 = vmatprep.subr.bf16.mxu0 0
    %6318 = vmatpush1.bf16.msra.mxu0 %v5186
    %6319 = vmatprep.subr.bf16.mxu0 0
    %6320 = vmatpush1.bf16.msra.mxu0 %v5193
    %6321 = vmatprep.subr.bf16.mxu0 0
    %6322 = vmatpush1.bf16.msra.mxu0 %v5200
    %6323 = vmatprep.subr.bf16.mxu0 0
    %6324 = vmatpush1.bf16.msra.mxu0 %v5207
    %6325 = vmatprep.subr.bf16.mxu0 0
    %6326 = vmatpush1.bf16.msra.mxu0 %v5214
    %6327 = vmatprep.subr.bf16.mxu0 0
    %6328 = vmatpush1.bf16.msra.mxu0 %v5221
    %6329 = vmatprep.subr.bf16.mxu0 0
    %6330 = vmatpush1.bf16.msra.mxu0 %v5228
    %6331 = vmatprep.subr.bf16.mxu0 0
    %6332 = vmatpush1.bf16.msra.mxu0 %v5235
    %6333 = vmatprep.subr.bf16.mxu0 0
    %6334 = vmatpush1.bf16.msra.mxu0 %v5242
    %6335 = vmatprep.mubr.bf16.mxu0 %v2837
    %6336 = vmatmul.mubr.bf16.gmra.mrb[0].mxu0 %v2836
    %v6337 = vpop.f32.mrb[0].mxu0
    %v6338 = vadd.f32 %v6298, %v6337
    %v6339 = vpop.f32.mrb[0].mxu0
    %v6340 = vpop.f32.mrb[0].mxu0
    %v6341 = vpop.f32.mrb[0].mxu0
    %6342 = vdwg.mxu0
    %v6343 = vsub.f32 0.0, %v5849
    %v6344 = vsub.f32 0.0, %v5851
    %v6345 = vsub.f32 0.0, %v6013
    %v6346 = vsub.f32 0.0, %v6015
    %v6347 = vsub.f32 0.0, %v6177
    %v6348 = vsub.f32 0.0, %v6179
    %v6349 = vsub.f32 0.0, %v6338
    %v6350 = vmul.f32 %v6343, 1.442695
    %v6351 = vpow.pop %v6350
    %v6352 = vmul.f32 %v6344, 1.442695
    %v6353 = vpow.pop %v6352
    %v6354 = vmul.f32 %v6345, 1.442695
    %v6355 = vpow.pop %v6354
    %v6356 = vmul.f32 %v6346, 1.442695
    %v6357 = vpow.pop %v6356
    %v6358 = vmul.f32 %v6347, 1.442695
    %v6359 = vpow.pop %v6358
    %v6360 = vmul.f32 %v6348, 1.442695
    %v6361 = vpow.pop %v6360
    %v6362 = vmul.f32 %v6349, 1.442695
    %v6363 = vpow.pop %v6362
    %v6364 = vadd.f32 %v6351, 1.0
    %v6365 = vadd.f32 %v6353, 1.0
    %v6366 = vadd.f32 %v6355, 1.0
    %v6367 = vadd.f32 %v6357, 1.0
    %v6368 = vadd.f32 %v6359, 1.0
    %v6369 = vadd.f32 %v6361, 1.0
    %v6370 = vadd.f32 %v6363, 1.0
    %v6371 = vrcp.pop %v6364
    %v6372 = vrcp.pop %v6365
    %v6373 = vrcp.pop %v6366
    %v6374 = vrcp.pop %v6367
    %v6375 = vrcp.pop %v6368
    %v6376 = vrcp.pop %v6369
    %v6377 = vrcp.pop %v6370
    %6378 = vst [vmem:[%s9] sm:$0xff] %v6371
    %6379 = vst [vmem:[%s9 + $0x8] sm:$0xff] %v6372
    %6380 = vst [vmem:[%s9 + $0x10] sm:$0xff] %v6373
    %6381 = vst [vmem:[%s9 + $0x18] sm:$0xff] %v6374
    %6382 = vst [vmem:[%s9 + $0x20] sm:$0xff] %v6375
    %6383 = vst [vmem:[%s9 + $0x28] sm:$0xff] %v6376
    %6384 = vst [vmem:[%s9 + $0x30] sm:$0xff] %v6377
    // Predicated region
    $region70: #{_forward_impl.1} parent=1 // pred_check
      _
    $region71: #{_forward_impl.1} parent=1 // pred_check_branch
      %6386 = sbr.rel (0) target = $region73
    $region72: #{_forward_impl.1} parent=1 // pred_region
      _
    $region73: #{_forward_impl.1} parent=1 // pred_fallthru
      _
    // Predicated region
    $region74: #{_forward_impl.1} parent=1 // pred_check
      _
    $region75: #{_forward_impl.1} parent=1 // pred_check_branch
      %6388 = sbr.rel (0) target = $region77
    $region76: #{_forward_impl.1} parent=1 // pred_region
      _
    $region77: #{_forward_impl.1} parent=1 // pred_fallthru
      _
    %6389 = vsyncpa [#allocation3], 1
    %6390 = vsyncpa [#allocation5], 1
    %6391 = vsyncpa [#allocation8], 1
    %6392 = vsyncpa [#allocation11], 1
    %6393 = vsyncpa [#allocation14], 1

// kernel: _forward_impl.1
$region0: #{_forward_impl.1}
  #allocation0 [shape = 'u32[]', space=smem, size = 0x4, offset = 0x4, fixed_abs, tag = 'smem constant byte address 0x4 - core index']
  #allocation1 [shape = 'u32[144,128]{1,0:T(1,128)}', space=vmem, size = 0x12000, scoped, tag = 'internal scratch']
  %s0 = inlined_call_operand.vmem [shape: bf16[8,256], index: 0, kind: input, shape index: {}]
  %s1 = inlined_call_operand.hbm [shape: bf16[256,256], index: 1, kind: input, shape index: {}]
  %s2 = inlined_call_operand.hbm [shape: f32[1,256], index: 2, kind: input, shape index: {}]
  %s3 = inlined_call_operand.hbm [shape: bf16[256,512], index: 3, kind: input, shape index: {}]
  %s4 = inlined_call_operand.hbm [shape: f32[1,512], index: 4, kind: input, shape index: {}]
  %s5 = inlined_call_operand.hbm [shape: bf16[512,1024], index: 5, kind: input, shape index: {}]
  %s6 = inlined_call_operand.hbm [shape: f32[1,1024], index: 6, kind: input, shape index: {}]
  %s7 = inlined_call_operand.hbm [shape: bf16[1024,896], index: 7, kind: input, shape index: {}]
  %s8 = inlined_call_operand.hbm [shape: f32[1,896], index: 8, kind: input, shape index: {}]
  %s9 = inlined_call_operand.vmem [shape: f32[8,896], index: 9, kind: output, shape index: {}]
  %s10 = sld [smem:[#allocation0]]
  $region78: #{_forward_impl.1} parent=0
    _
  %s12 = ssub.s32 1, %s10
  %s13 = scalar_select 0, %s12, %s10
  $region1: #{_forward_impl.1} parent=0
    #allocation2 [shape = 'u8[131072]{0}', space=vmem, size = 0x20000, scoped, tag = 'input window, operand 1, single buffered']
    #allocation3 [shape = 's32[1]{0}', space=sflag, size = 0x4, scoped, tag = 'scoped memory for _forward_impl.1']
    #allocation4 [shape = 'u8[1024]{0}', space=vmem, size = 0x400, scoped, tag = 'input window, operand 2, single buffered']
    #allocation5 [shape = 's32[1]{0}', space=sflag, size = 0x4, scoped, tag = 'scoped memory for _forward_impl.1']
    #allocation6 [shape = 'u8[262144]{0}', space=vmem, size = 0x40000, scoped, tag = 'input window, operand 3, single buffered']
    #allocation7 [shape = 'u8[2048]{0}', space=vmem, size = 0x800, scoped, tag = 'input window, operand 4, single buffered']
    #allocation8 [shape = 's32[1]{0}', space=sflag, size = 0x4, scoped, tag = 'scoped memory for _forward_impl.1']
    #allocation9 [shape = 'u8[1048576]{0}', space=vmem, size = 0x100000, scoped, tag = 'input window, operand 5, single buffered']
    #allocation10 [shape = 'u8[4096]{0}', space=vmem, size = 0x1000, scoped, tag = 'input window, operand 6, single buffered']
    #allocation11 [shape = 's32[1]{0}', space=sflag, size = 0x4, scoped, tag = 'scoped memory for _forward_impl.1']
    #allocation12 [shape = 'u8[1835008]{0}', space=vmem, size = 0x1c0000, scoped, tag = 'input window, operand 7, single buffered']
    #allocation13 [shape = 'u8[3584]{0}', space=vmem, size = 0x1000, scoped, tag = 'input window, operand 8, single buffered']
    #allocation14 [shape = 's32[1]{0}', space=sflag, size = 0x4, scoped, tag = 'scoped memory for _forward_impl.1']
    %14 = vsyncpa [#allocation3], 0
    %15 = vsyncpa [#allocation5], 0
    %16 = vsyncpa [#allocation8], 0
    %17 = vsyncpa [#allocation11], 0
    %18 = vsyncpa [#allocation14], 0
    // Predicated region
    $region2: #{_forward_impl.1} parent=1 // pred_check
      _
    $region3: #{_forward_impl.1} parent=1 // pred_check_branch
      %20 = sbr.rel (0) target = $region5
    $region4: #{_forward_impl.1} parent=1 // pred_region
      _
    $region5: #{_forward_impl.1} parent=1 // pred_fallthru
      _
    // Predicated region
    $region6: #{_forward_impl.1} parent=1 // pred_check
      _
    $region7: #{_forward_impl.1} parent=1 // pred_check_branch
      %22 = sbr.rel (0) target = $region9
    $region8: #{_forward_impl.1} parent=1 // pred_region
      %s24 = ssub.s32 4096, 4096
      %25 = vsyncadd [#allocation3], %s24
      %s26 = sshll.u32 [#allocation2], 4
      %s27 = int_to_ptr.vmem [resolvable:$true] %s26
      %32 = dma.hbm_to_vmem [thread:$0]  %s1, 4096, %s27, [#allocation3], 128, 128, 8
    $region9: #{_forward_impl.1} parent=1 // pred_fallthru
      _
    // Predicated region
    $region10: #{_forward_impl.1} parent=1 // pred_check
      _
    $region11: #{_forward_impl.1} parent=1 // pred_check_branch
      %34 = sbr.rel (0) target = $region13
    $region12: #{_forward_impl.1} parent=1 // pred_region
      %s36 = ssub.s32 32, 32
      %37 = vsyncadd [#allocation5], %s36
      %s39 = sshll.u32 [#allocation4], 4
      %s40 = int_to_ptr.vmem [resolvable:$true] %s39
      %42 = dma.hbm_to_vmem [thread:$0]  %s2, 32, %s40, [#allocation5]
    $region13: #{_forward_impl.1} parent=1 // pred_fallthru
      _
    // Predicated region
    $region14: #{_forward_impl.1} parent=1 // pred_check
      _
    $region15: #{_forward_impl.1} parent=1 // pred_check_branch
      %44 = sbr.rel (0) target = $region17
    $region16: #{_forward_impl.1} parent=1 // pred_region
      %s46 = ssub.s32 8192, 8192
      %47 = vsyncadd [#allocation5], %s46
      %s48 = sshll.u32 [#allocation6], 4
      %s49 = int_to_ptr.vmem [resolvable:$true] %s48
      %54 = dma.hbm_to_vmem [thread:$0]  %s3, 8192, %s49, [#allocation5], 256, 256, 16
    $region17: #{_forward_impl.1} parent=1 // pred_fallthru
      _
    // Predicated region
    $region18: #{_forward_impl.1} parent=1 // pred_check
      _
    $region19: #{_forward_impl.1} parent=1 // pred_check_branch
      %56 = sbr.rel (0) target = $region21
    $region20: #{_forward_impl.1} parent=1 // pred_region
      %s58 = ssub.s32 64, 64
      %59 = vsyncadd [#allocation8], %s58
      %s61 = sshll.u32 [#allocation7], 4
      %s62 = int_to_ptr.vmem [resolvable:$true] %s61
      %64 = dma.hbm_to_vmem [thread:$0]  %s4, 64, %s62, [#allocation8]
    $region21: #{_forward_impl.1} parent=1 // pred_fallthru
      _
    // Predicated region
    $region22: #{_forward_impl.1} parent=1 // pred_check
      _
    $region23: #{_forward_impl.1} parent=1 // pred_check_branch
      %66 = sbr.rel (0) target = $region25
    $region24: #{_forward_impl.1} parent=1 // pred_region
      %s68 = ssub.s32 32768, 32768
      %69 = vsyncadd [#allocation8], %s68
      %s70 = sshll.u32 [#allocation9], 4
      %s71 = int_to_ptr.vmem [resolvable:$true] %s70
      %76 = dma.hbm_to_vmem [thread:$0]  %s5, 32768, %s71, [#allocation8], 512, 512, 32
    $region25: #{_forward_impl.1} parent=1 // pred_fallthru
      _
    // Predicated region
    $region26: #{_forward_impl.1} parent=1 // pred_check
      _
    $region27: #{_forward_impl.1} parent=1 // pred_check_branch
      %78 = sbr.rel (0) target = $region29
    $region28: #{_forward_impl.1} parent=1 // pred_region
      %s80 = ssub.s32 128, 128
      %81 = vsyncadd [#allocation11], %s80
      %s83 = sshll.u32 [#allocation10], 4
      %s84 = int_to_ptr.vmem [resolvable:$true] %s83
      %86 = dma.hbm_to_vmem [thread:$0]  %s6, 128, %s84, [#allocation11]
    $region29: #{_forward_impl.1} parent=1 // pred_fallthru
      _
    // Predicated region
    $region30: #{_forward_impl.1} parent=1 // pred_check
      _
    $region31: #{_forward_impl.1} parent=1 // pred_check_branch
      %88 = sbr.rel (0) target = $region33
    $region32: #{_forward_impl.1} parent=1 // pred_region
      %s90 = ssub.s32 57344, 57344
      %91 = vsyncadd [#allocation11], %s90
      %s92 = sshll.u32 [#allocation12], 4
      %s93 = int_to_ptr.vmem [resolvable:$true] %s92
      %98 = dma.hbm_to_vmem [thread:$0]  %s7, 57344, %s93, [#allocation11], 448, 448, 28
    $region33: #{_forward_impl.1} parent=1 // pred_fallthru
      _
    // Predicated region
    $region34: #{_forward_impl.1} parent=1 // pred_check
      _
    $region35: #{_forward_impl.1} parent=1 // pred_check_branch
      %100 = sbr.rel (0) target = $region37
    $region36: #{_forward_impl.1} parent=1 // pred_region
      %s102 = ssub.s32 112, 112
      %103 = vsyncadd [#allocation14], %s102
      %s105 = sshll.u32 [#allocation13], 4
      %s106 = int_to_ptr.vmem [resolvable:$true] %s105
      %108 = dma.hbm_to_vmem [thread:$0]  %s8, 112, %s106, [#allocation14]
    $region37: #{_forward_impl.1} parent=1 // pred_fallthru
      _
    // Predicated region
    $region38: #{_forward_impl.1} parent=1 // pred_check
      _
    $region39: #{_forward_impl.1} parent=1 // pred_check_branch
      %110 = sbr.rel (0) target = $region41
    $region40: #{_forward_impl.1} parent=1 // pred_region
      %111 = dma.done [#allocation3], 4096
    $region41: #{_forward_impl.1} parent=1 // pred_fallthru
      _
    // Predicated region
    $region42: #{_forward_impl.1} parent=1 // pred_check
      _
    $region43: #{_forward_impl.1} parent=1 // pred_check_branch
      %113 = sbr.rel (0) target = $region45
    $region44: #{_forward_impl.1} parent=1 // pred_region
      %114 = dma.done [#allocation5], 32
    $region45: #{_forward_impl.1} parent=1 // pred_fallthru
      _
    // Predicated region
    $region46: #{_forward_impl.1} parent=1 // pred_check
      _
    $region47: #{_forward_impl.1} parent=1 // pred_check_branch
      %116 = sbr.rel (0) target = $region49
    $region48: #{_forward_impl.1} parent=1 // pred_region
      %117 = dma.done [#allocation5], 8192
    $region49: #{_forward_impl.1} parent=1 // pred_fallthru
      _
    // Predicated region
    $region50: #{_forward_impl.1} parent=1 // pred_check
      _
    $region51: #{_forward_impl.1} parent=1 // pred_check_branch
      %119 = sbr.rel (0) target = $region53
    $region52: #{_forward_impl.1} parent=1 // pred_region
      %120 = dma.done [#allocation8], 64
    $region53: #{_forward_impl.1} parent=1 // pred_fallthru
      _
    // Predicated region
    $region54: #{_forward_impl.1} parent=1 // pred_check
      _
    $region55: #{_forward_impl.1} parent=1 // pred_check_branch
      %122 = sbr.rel (0) target = $region57
    $region56: #{_forward_impl.1} parent=1 // pred_region
      %123 = dma.done [#allocation8], 32768
    $region57: #{_forward_impl.1} parent=1 // pred_fallthru
      _
    // Predicated region
    $region58: #{_forward_impl.1} parent=1 // pred_check
      _
    $region59: #{_forward_impl.1} parent=1 // pred_check_branch
      %125 = sbr.rel (0) target = $region61
    $region60: #{_forward_impl.1} parent=1 // pred_region
      %126 = dma.done [#allocation11], 128
    $region61: #{_forward_impl.1} parent=1 // pred_fallthru
      _
    // Predicated region
    $region62: #{_forward_impl.1} parent=1 // pred_check
      _
    $region63: #{_forward_impl.1} parent=1 // pred_check_branch
      %128 = sbr.rel (0) target = $region65
    $region64: #{_forward_impl.1} parent=1 // pred_region
      %129 = dma.done [#allocation11], 57344
    $region65: #{_forward_impl.1} parent=1 // pred_fallthru
      _
    // Predicated region
    $region66: #{_forward_impl.1} parent=1 // pred_check
      _
    $region67: #{_forward_impl.1} parent=1 // pred_check_branch
      %131 = sbr.rel (0) target = $region69
    $region68: #{_forward_impl.1} parent=1 // pred_region
      %132 = dma.done [#allocation14], 112
    $region69: #{_forward_impl.1} parent=1 // pred_fallthru
      _
    %v135 = vld [vmem:[%s0] sm:$0xff]
    %v136 = vld [vmem:[#allocation2] sm:$0xff]
    %v137 = vld [vmem:[#allocation2 + $0x8] sm:$0xff]
    %v138 = vld [vmem:[#allocation2 + $0x10] sm:$0xff]
    %v139 = vld [vmem:[#allocation2 + $0x18] sm:$0xff]
    %v140 = vld [vmem:[#allocation2 + $0x20] sm:$0xff]
    %v141 = vld [vmem:[#allocation2 + $0x28] sm:$0xff]
    %v142 = vld [vmem:[#allocation2 + $0x30] sm:$0xff]
    %v143 = vld [vmem:[#allocation2 + $0x38] sm:$0xff]
    %v144 = vld [vmem:[#allocation2 + $0x40] sm:$0xff]
    %v145 = vld [vmem:[#allocation2 + $0x48] sm:$0xff]
    %v146 = vld [vmem:[#allocation2 + $0x50] sm:$0xff]
    %v147 = vld [vmem:[#allocation2 + $0x58] sm:$0xff]
    %v148 = vld [vmem:[#allocation2 + $0x60] sm:$0xff]
    %v149 = vld [vmem:[#allocation2 + $0x68] sm:$0xff]
    %v150 = vld [vmem:[#allocation2 + $0x70] sm:$0xff]
    %v151 = vld [vmem:[#allocation2 + $0x78] sm:$0xff]
    %v152 = vld [vmem:[#allocation2 + $0x80] sm:$0xff]
    %v153 = vld [vmem:[#allocation2 + $0x88] sm:$0xff]
    %v154 = vld [vmem:[#allocation2 + $0x90] sm:$0xff]
    %v155 = vld [vmem:[#allocation2 + $0x98] sm:$0xff]
    %v156 = vld [vmem:[#allocation2 + $0xa0] sm:$0xff]
    %v157 = vld [vmem:[#allocation2 + $0xa8] sm:$0xff]
    %v158 = vld [vmem:[#allocation2 + $0xb0] sm:$0xff]
    %v159 = vld [vmem:[#allocation2 + $0xb8] sm:$0xff]
    %v160 = vld [vmem:[#allocation2 + $0xc0] sm:$0xff]
    %v161 = vld [vmem:[#allocation2 + $0xc8] sm:$0xff]
    %v162 = vld [vmem:[#allocation2 + $0xd0] sm:$0xff]
    %v163 = vld [vmem:[#allocation2 + $0xd8] sm:$0xff]
    %v164 = vld [vmem:[#allocation2 + $0xe0] sm:$0xff]
    %v165 = vld [vmem:[#allocation2 + $0xe8] sm:$0xff]
    %v166 = vld [vmem:[#allocation2 + $0xf0] sm:$0xff]
    %v167 = vld [vmem:[#allocation2 + $0xf8] sm:$0xff]
    %v168 = vld [vmem:[#allocation4] sm:$0x3]
    %v170 = vlaneseq
    %v171 = vshrl.u32 %v170, 7
    %v172 = vsub.s32 0, %v171
    %v173 = vrot.slane %v168, %v172
    %v174 = vlaneseq
    %v175 = vshrl.u32 %v174, 7
    %v176 = vsub.s32 1, %v175
    %v177 = vrot.slane %v168, %v176
    %v181 = vunpack.c.l.b16 %v135
    %v182 = vunpack.c.h.b16 %v135
    %v183 = vpack.c.b16 %v181, %v181
    %v184 = vpack.c.b16 %v182, %v182
    %v219 = vunpack.c.l.b16 %v136
    %v220 = vunpack.c.h.b16 %v136
    %v221 = vunpack.c.l.b16 %v137
    %v222 = vunpack.c.h.b16 %v137
    %v223 = vunpack.c.l.b16 %v138
    %v224 = vunpack.c.h.b16 %v138
    %v225 = vunpack.c.l.b16 %v139
    %v226 = vunpack.c.h.b16 %v139
    %v227 = vunpack.c.l.b16 %v140
    %v228 = vunpack.c.h.b16 %v140
    %v229 = vunpack.c.l.b16 %v141
    %v230 = vunpack.c.h.b16 %v141
    %v231 = vunpack.c.l.b16 %v142
    %v232 = vunpack.c.h.b16 %v142
    %v233 = vunpack.c.l.b16 %v143
    %v234 = vunpack.c.h.b16 %v143
    %v235 = vunpack.c.l.b16 %v144
    %v236 = vunpack.c.h.b16 %v144
    %v237 = vunpack.c.l.b16 %v145
    %v238 = vunpack.c.h.b16 %v145
    %v239 = vunpack.c.l.b16 %v146
    %v240 = vunpack.c.h.b16 %v146
    %v241 = vunpack.c.l.b16 %v147
    %v242 = vunpack.c.h.b16 %v147
    %v243 = vunpack.c.l.b16 %v148
    %v244 = vunpack.c.h.b16 %v148
    %v245 = vunpack.c.l.b16 %v149
    %v246 = vunpack.c.h.b16 %v149
    %v247 = vunpack.c.l.b16 %v150
    %v248 = vunpack.c.h.b16 %v150
    %v249 = vunpack.c.l.b16 %v151
    %v250 = vunpack.c.h.b16 %v151
    %v251 = vunpack.c.l.b16 %v152
    %v252 = vunpack.c.h.b16 %v152
    %v253 = vunpack.c.l.b16 %v153
    %v254 = vunpack.c.h.b16 %v153
    %v255 = vunpack.c.l.b16 %v154
    %v256 = vunpack.c.h.b16 %v154
    %v257 = vunpack.c.l.b16 %v155
    %v258 = vunpack.c.h.b16 %v155
    %v259 = vunpack.c.l.b16 %v156
    %v260 = vunpack.c.h.b16 %v156
    %v261 = vunpack.c.l.b16 %v157
    %v262 = vunpack.c.h.b16 %v157
    %v263 = vunpack.c.l.b16 %v158
    %v264 = vunpack.c.h.b16 %v158
    %v265 = vunpack.c.l.b16 %v159
    %v266 = vunpack.c.h.b16 %v159
    %v267 = vunpack.c.l.b16 %v160
    %v268 = vunpack.c.h.b16 %v160
    %v269 = vunpack.c.l.b16 %v161
    %v270 = vunpack.c.h.b16 %v161
    %v271 = vunpack.c.l.b16 %v162
    %v272 = vunpack.c.h.b16 %v162
    %v273 = vunpack.c.l.b16 %v163
    %v274 = vunpack.c.h.b16 %v163
    %v275 = vunpack.c.l.b16 %v164
    %v276 = vunpack.c.h.b16 %v164
    %v277 = vunpack.c.l.b16 %v165
    %v278 = vunpack.c.h.b16 %v165
    %v279 = vunpack.c.l.b16 %v166
    %v280 = vunpack.c.h.b16 %v166
    %v281 = vunpack.c.l.b16 %v167
    %v282 = vunpack.c.h.b16 %v167
    %v283 = vpack.c.b16 %v221, %v219
    %v284 = vpack.c.b16 %v222, %v220
    %v285 = vpack.c.b16 %v225, %v223
    %v286 = vpack.c.b16 %v226, %v224
    %v287 = vpack.c.b16 %v229, %v227
    %v288 = vpack.c.b16 %v230, %v228
    %v289 = vpack.c.b16 %v233, %v231
    %v290 = vpack.c.b16 %v234, %v232
    %v291 = vpack.c.b16 %v237, %v235
    %v292 = vpack.c.b16 %v238, %v236
    %v293 = vpack.c.b16 %v241, %v239
    %v294 = vpack.c.b16 %v242, %v240
    %v295 = vpack.c.b16 %v245, %v243
    %v296 = vpack.c.b16 %v246, %v244
    %v297 = vpack.c.b16 %v249, %v247
    %v298 = vpack.c.b16 %v250, %v248
    %v299 = vpack.c.b16 %v253, %v251
    %v300 = vpack.c.b16 %v254, %v252
    %v301 = vpack.c.b16 %v257, %v255
    %v302 = vpack.c.b16 %v258, %v256
    %v303 = vpack.c.b16 %v261, %v259
    %v304 = vpack.c.b16 %v262, %v260
    %v305 = vpack.c.b16 %v265, %v263
    %v306 = vpack.c.b16 %v266, %v264
    %v307 = vpack.c.b16 %v269, %v267
    %v308 = vpack.c.b16 %v270, %v268
    %v309 = vpack.c.b16 %v273, %v271
    %v310 = vpack.c.b16 %v274, %v272
    %v311 = vpack.c.b16 %v277, %v275
    %v312 = vpack.c.b16 %v278, %v276
    %v313 = vpack.c.b16 %v281, %v279
    %v314 = vpack.c.b16 %v282, %v280
    %347 = vmatprep.subr.bf16.mxu0 %v284
    %348 = vmatpush1.bf16.msra.mxu0 %v283
    %349 = vmatprep.subr.bf16.mxu0 %v286
    %350 = vmatpush1.bf16.msra.mxu0 %v285
    %351 = vmatprep.subr.bf16.mxu0 %v288
    %352 = vmatpush1.bf16.msra.mxu0 %v287
    %353 = vmatprep.subr.bf16.mxu0 %v290
    %354 = vmatpush1.bf16.msra.mxu0 %v289
    %355 = vmatprep.subr.bf16.mxu0 %v292
    %356 = vmatpush1.bf16.msra.mxu0 %v291
    %357 = vmatprep.subr.bf16.mxu0 %v294
    %358 = vmatpush1.bf16.msra.mxu0 %v293
    %359 = vmatprep.subr.bf16.mxu0 %v296
    %360 = vmatpush1.bf16.msra.mxu0 %v295
    %361 = vmatprep.subr.bf16.mxu0 %v298
    %362 = vmatpush1.bf16.msra.mxu0 %v297
    %363 = vmatprep.subr.bf16.mxu0 %v300
    %364 = vmatpush1.bf16.msra.mxu0 %v299
    %365 = vmatprep.subr.bf16.mxu0 %v302
    %366 = vmatpush1.bf16.msra.mxu0 %v301
    %367 = vmatprep.subr.bf16.mxu0 %v304
    %368 = vmatpush1.bf16.msra.mxu0 %v303
    %369 = vmatprep.subr.bf16.mxu0 %v306
    %370 = vmatpush1.bf16.msra.mxu0 %v305
    %371 = vmatprep.subr.bf16.mxu0 %v308
    %372 = vmatpush1.bf16.msra.mxu0 %v307
    %373 = vmatprep.subr.bf16.mxu0 %v310
    %374 = vmatpush1.bf16.msra.mxu0 %v309
    %375 = vmatprep.subr.bf16.mxu0 %v312
    %376 = vmatpush1.bf16.msra.mxu0 %v311
    %377 = vmatprep.subr.bf16.mxu0 %v314
    %378 = vmatpush1.bf16.msra.mxu0 %v313
    %379 = vmatprep.mubr.bf16.mxu0 %v184
    %380 = vmatmul.mubr.bf16.gmra.mrb[0].mxu0 %v183
    %v381 = vpop.f32.mrb[0].mxu0
    %v382 = vadd.f32 %v173, %v381
    %v383 = vpop.f32.mrb[0].mxu0
    %v384 = vadd.f32 %v177, %v383
    %v385 = vpop.f32.mrb[0].mxu0
    %v386 = vpop.f32.mrb[0].mxu0
    %387 = vdwg.mxu0
    %v388 = vpack.c.bf16 %v382, %v382
    %v389 = vpack.c.bf16 %v384, %v384
    %vm390 = vcmp.gt.bf16.partialorder %v388, 0
    %vm391 = vcmp.gt.bf16.partialorder %v389, 0
    %v392 = vmul.bf16 %v388, 1045249613
    %v393 = vmul.bf16 %v389, 1045249613
    %v394 = vsel %vm390, %v388, %v392
    %v395 = vsel %vm391, %v389, %v393
    %v396 = vld [vmem:[#allocation6] sm:$0xff]
    %v397 = vld [vmem:[#allocation6 + $0x8] sm:$0xff]
    %v398 = vld [vmem:[#allocation6 + $0x10] sm:$0xff]
    %v399 = vld [vmem:[#allocation6 + $0x18] sm:$0xff]
    %v400 = vld [vmem:[#allocation6 + $0x20] sm:$0xff]
    %v401 = vld [vmem:[#allocation6 + $0x28] sm:$0xff]
    %v402 = vld [vmem:[#allocation6 + $0x30] sm:$0xff]
    %v403 = vld [vmem:[#allocation6 + $0x38] sm:$0xff]
    %v404 = vld [vmem:[#allocation6 + $0x40] sm:$0xff]
    %v405 = vld [vmem:[#allocation6 + $0x48] sm:$0xff]
    %v406 = vld [vmem:[#allocation6 + $0x50] sm:$0xff]
    %v407 = vld [vmem:[#allocation6 + $0x58] sm:$0xff]
    %v408 = vld [vmem:[#allocation6 + $0x60] sm:$0xff]
    %v409 = vld [vmem:[#allocation6 + $0x68] sm:$0xff]
    %v410 = vld [vmem:[#allocation6 + $0x70] sm:$0xff]
    %v411 = vld [vmem:[#allocation6 + $0x78] sm:$0xff]
    %v412 = vld [vmem:[#allocation6 + $0x80] sm:$0xff]
    %v413 = vld [vmem:[#allocation6 + $0x88] sm:$0xff]
    %v414 = vld [vmem:[#allocation6 + $0x90] sm:$0xff]
    %v415 = vld [vmem:[#allocation6 + $0x98] sm:$0xff]
    %v416 = vld [vmem:[#allocation6 + $0xa0] sm:$0xff]
    %v417 = vld [vmem:[#allocation6 + $0xa8] sm:$0xff]
    %v418 = vld [vmem:[#allocation6 + $0xb0] sm:$0xff]
    %v419 = vld [vmem:[#allocation6 + $0xb8] sm:$0xff]
    %v420 = vld [vmem:[#allocation6 + $0xc0] sm:$0xff]
    %v421 = vld [vmem:[#allocation6 + $0xc8] sm:$0xff]
    %v422 = vld [vmem:[#allocation6 + $0xd0] sm:$0xff]
    %v423 = vld [vmem:[#allocation6 + $0xd8] sm:$0xff]
    %v424 = vld [vmem:[#allocation6 + $0xe0] sm:$0xff]
    %v425 = vld [vmem:[#allocation6 + $0xe8] sm:$0xff]
    %v426 = vld [vmem:[#allocation6 + $0xf0] sm:$0xff]
    %v427 = vld [vmem:[#allocation6 + $0xf8] sm:$0xff]
    %v428 = vld [vmem:[#allocation6 + $0x100] sm:$0xff]
    %v429 = vld [vmem:[#allocation6 + $0x108] sm:$0xff]
    %v430 = vld [vmem:[#allocation6 + $0x110] sm:$0xff]
    %v431 = vld [vmem:[#allocation6 + $0x118] sm:$0xff]
    %v432 = vld [vmem:[#allocation6 + $0x120] sm:$0xff]
    %v433 = vld [vmem:[#allocation6 + $0x128] sm:$0xff]
    %v434 = vld [vmem:[#allocation6 + $0x130] sm:$0xff]
    %v435 = vld [vmem:[#allocation6 + $0x138] sm:$0xff]
    %v436 = vld [vmem:[#allocation6 + $0x140] sm:$0xff]
    %v437 = vld [vmem:[#allocation6 + $0x148] sm:$0xff]
    %v438 = vld [vmem:[#allocation6 + $0x150] sm:$0xff]
    %v439 = vld [vmem:[#allocation6 + $0x158] sm:$0xff]
    %v440 = vld [vmem:[#allocation6 + $0x160] sm:$0xff]
    %v441 = vld [vmem:[#allocation6 + $0x168] sm:$0xff]
    %v442 = vld [vmem:[#allocation6 + $0x170] sm:$0xff]
    %v443 = vld [vmem:[#allocation6 + $0x178] sm:$0xff]
    %v444 = vld [vmem:[#allocation6 + $0x180] sm:$0xff]
    %v445 = vld [vmem:[#allocation6 + $0x188] sm:$0xff]
    %v446 = vld [vmem:[#allocation6 + $0x190] sm:$0xff]
    %v447 = vld [vmem:[#allocation6 + $0x198] sm:$0xff]
    %v448 = vld [vmem:[#allocation6 + $0x1a0] sm:$0xff]
    %v449 = vld [vmem:[#allocation6 + $0x1a8] sm:$0xff]
    %v450 = vld [vmem:[#allocation6 + $0x1b0] sm:$0xff]
    %v451 = vld [vmem:[#allocation6 + $0x1b8] sm:$0xff]
    %v452 = vld [vmem:[#allocation6 + $0x1c0] sm:$0xff]
    %v453 = vld [vmem:[#allocation6 + $0x1c8] sm:$0xff]
    %v454 = vld [vmem:[#allocation6 + $0x1d0] sm:$0xff]
    %v455 = vld [vmem:[#allocation6 + $0x1d8] sm:$0xff]
    %v456 = vld [vmem:[#allocation6 + $0x1e0] sm:$0xff]
    %v457 = vld [vmem:[#allocation6 + $0x1e8] sm:$0xff]
    %v458 = vld [vmem:[#allocation6 + $0x1f0] sm:$0xff]
    %v459 = vld [vmem:[#allocation6 + $0x1f8] sm:$0xff]
    %v460 = vld [vmem:[#allocation7] sm:$0xf]
    %v462 = vlaneseq
    %v463 = vshrl.u32 %v462, 7
    %v464 = vsub.s32 0, %v463
    %v465 = vrot.slane %v460, %v464
    %v466 = vlaneseq
    %v467 = vshrl.u32 %v466, 7
    %v468 = vsub.s32 1, %v467
    %v469 = vrot.slane %v460, %v468
    %v470 = vlaneseq
    %v471 = vshrl.u32 %v470, 7
    %v472 = vsub.s32 2, %v471
    %v473 = vrot.slane %v460, %v472
    %v474 = vlaneseq
    %v475 = vshrl.u32 %v474, 7
    %v476 = vsub.s32 3, %v475
    %v477 = vrot.slane %v460, %v476
    %v546 = vunpack.c.l.b16 %v396
    %v547 = vunpack.c.h.b16 %v396
    %v548 = vunpack.c.l.b16 %v397
    %v549 = vunpack.c.h.b16 %v397
    %v550 = vunpack.c.l.b16 %v398
    %v551 = vunpack.c.h.b16 %v398
    %v552 = vunpack.c.l.b16 %v399
    %v553 = vunpack.c.h.b16 %v399
    %v554 = vunpack.c.l.b16 %v400
    %v555 = vunpack.c.h.b16 %v400
    %v556 = vunpack.c.l.b16 %v401
    %v557 = vunpack.c.h.b16 %v401
    %v558 = vunpack.c.l.b16 %v402
    %v559 = vunpack.c.h.b16 %v402
    %v560 = vunpack.c.l.b16 %v403
    %v561 = vunpack.c.h.b16 %v403
    %v562 = vunpack.c.l.b16 %v404
    %v563 = vunpack.c.h.b16 %v404
    %v564 = vunpack.c.l.b16 %v405
    %v565 = vunpack.c.h.b16 %v405
    %v566 = vunpack.c.l.b16 %v406
    %v567 = vunpack.c.h.b16 %v406
    %v568 = vunpack.c.l.b16 %v407
    %v569 = vunpack.c.h.b16 %v407
    %v570 = vunpack.c.l.b16 %v408
    %v571 = vunpack.c.h.b16 %v408
    %v572 = vunpack.c.l.b16 %v409
    %v573 = vunpack.c.h.b16 %v409
    %v574 = vunpack.c.l.b16 %v410
    %v575 = vunpack.c.h.b16 %v410
    %v576 = vunpack.c.l.b16 %v411
    %v577 = vunpack.c.h.b16 %v411
    %v578 = vunpack.c.l.b16 %v412
    %v579 = vunpack.c.h.b16 %v412
    %v580 = vunpack.c.l.b16 %v413
    %v581 = vunpack.c.h.b16 %v413
    %v582 = vunpack.c.l.b16 %v414
    %v583 = vunpack.c.h.b16 %v414
    %v584 = vunpack.c.l.b16 %v415
    %v585 = vunpack.c.h.b16 %v415
    %v586 = vunpack.c.l.b16 %v416
    %v587 = vunpack.c.h.b16 %v416
    %v588 = vunpack.c.l.b16 %v417
    %v589 = vunpack.c.h.b16 %v417
    %v590 = vunpack.c.l.b16 %v418
    %v591 = vunpack.c.h.b16 %v418
    %v592 = vunpack.c.l.b16 %v419
    %v593 = vunpack.c.h.b16 %v419
    %v594 = vunpack.c.l.b16 %v420
    %v595 = vunpack.c.h.b16 %v420
    %v596 = vunpack.c.l.b16 %v421
    %v597 = vunpack.c.h.b16 %v421
    %v598 = vunpack.c.l.b16 %v422
    %v599 = vunpack.c.h.b16 %v422
    %v600 = vunpack.c.l.b16 %v423
    %v601 = vunpack.c.h.b16 %v423
    %v602 = vunpack.c.l.b16 %v424
    %v603 = vunpack.c.h.b16 %v424
    %v604 = vunpack.c.l.b16 %v425
    %v605 = vunpack.c.h.b16 %v425
    %v606 = vunpack.c.l.b16 %v426
    %v607 = vunpack.c.h.b16 %v426
    %v608 = vunpack.c.l.b16 %v427
    %v609 = vunpack.c.h.b16 %v427
    %v610 = vunpack.c.l.b16 %v428
    %v611 = vunpack.c.h.b16 %v428
    %v612 = vunpack.c.l.b16 %v429
    %v613 = vunpack.c.h.b16 %v429
    %v614 = vunpack.c.l.b16 %v430
    %v615 = vunpack.c.h.b16 %v430
    %v616 = vunpack.c.l.b16 %v431
    %v617 = vunpack.c.h.b16 %v431
    %v618 = vunpack.c.l.b16 %v432
    %v619 = vunpack.c.h.b16 %v432
    %v620 = vunpack.c.l.b16 %v433
    %v621 = vunpack.c.h.b16 %v433
    %v622 = vunpack.c.l.b16 %v434
    %v623 = vunpack.c.h.b16 %v434
    %v624 = vunpack.c.l.b16 %v435
    %v625 = vunpack.c.h.b16 %v435
    %v626 = vunpack.c.l.b16 %v436
    %v627 = vunpack.c.h.b16 %v436
    %v628 = vunpack.c.l.b16 %v437
    %v629 = vunpack.c.h.b16 %v437
    %v630 = vunpack.c.l.b16 %v438
    %v631 = vunpack.c.h.b16 %v438
    %v632 = vunpack.c.l.b16 %v439
    %v633 = vunpack.c.h.b16 %v439
    %v634 = vunpack.c.l.b16 %v440
    %v635 = vunpack.c.h.b16 %v440
    %v636 = vunpack.c.l.b16 %v441
    %v637 = vunpack.c.h.b16 %v441
    %v638 = vunpack.c.l.b16 %v442
    %v639 = vunpack.c.h.b16 %v442
    %v640 = vunpack.c.l.b16 %v443
    %v641 = vunpack.c.h.b16 %v443
    %v642 = vunpack.c.l.b16 %v444
    %v643 = vunpack.c.h.b16 %v444
    %v644 = vunpack.c.l.b16 %v445
    %v645 = vunpack.c.h.b16 %v445
    %v646 = vunpack.c.l.b16 %v446
    %v647 = vunpack.c.h.b16 %v446
    %v648 = vunpack.c.l.b16 %v447
    %v649 = vunpack.c.h.b16 %v447
    %v650 = vunpack.c.l.b16 %v448
    %v651 = vunpack.c.h.b16 %v448
    %v652 = vunpack.c.l.b16 %v449
    %v653 = vunpack.c.h.b16 %v449
    %v654 = vunpack.c.l.b16 %v450
    %v655 = vunpack.c.h.b16 %v450
    %v656 = vunpack.c.l.b16 %v451
    %v657 = vunpack.c.h.b16 %v451
    %v658 = vunpack.c.l.b16 %v452
    %v659 = vunpack.c.h.b16 %v452
    %v660 = vunpack.c.l.b16 %v453
    %v661 = vunpack.c.h.b16 %v453
    %v662 = vunpack.c.l.b16 %v454
    %v663 = vunpack.c.h.b16 %v454
    %v664 = vunpack.c.l.b16 %v455
    %v665 = vunpack.c.h.b16 %v455
    %v666 = vunpack.c.l.b16 %v456
    %v667 = vunpack.c.h.b16 %v456
    %v668 = vunpack.c.l.b16 %v457
    %v669 = vunpack.c.h.b16 %v457
    %v670 = vunpack.c.l.b16 %v458
    %v671 = vunpack.c.h.b16 %v458
    %v672 = vunpack.c.l.b16 %v459
    %v673 = vunpack.c.h.b16 %v459
    %v674 = vpack.c.b16 %v550, %v546
    %v675 = vpack.c.b16 %v551, %v547
    %v676 = vpack.c.b16 %v552, %v548
    %v677 = vpack.c.b16 %v553, %v549
    %v678 = vpack.c.b16 %v558, %v554
    %v679 = vpack.c.b16 %v559, %v555
    %v680 = vpack.c.b16 %v560, %v556
    %v681 = vpack.c.b16 %v561, %v557
    %v682 = vpack.c.b16 %v566, %v562
    %v683 = vpack.c.b16 %v567, %v563
    %v684 = vpack.c.b16 %v568, %v564
    %v685 = vpack.c.b16 %v569, %v565
    %v686 = vpack.c.b16 %v574, %v570
    %v687 = vpack.c.b16 %v575, %v571
    %v688 = vpack.c.b16 %v576, %v572
    %v689 = vpack.c.b16 %v577, %v573
    %v690 = vpack.c.b16 %v582, %v578
    %v691 = vpack.c.b16 %v583, %v579
    %v692 = vpack.c.b16 %v584, %v580
    %v693 = vpack.c.b16 %v585, %v581
    %v694 = vpack.c.b16 %v590, %v586
    %v695 = vpack.c.b16 %v591, %v587
    %v696 = vpack.c.b16 %v592, %v588
    %v697 = vpack.c.b16 %v593, %v589
    %v698 = vpack.c.b16 %v598, %v594
    %v699 = vpack.c.b16 %v599, %v595
    %v700 = vpack.c.b16 %v600, %v596
    %v701 = vpack.c.b16 %v601, %v597
    %v702 = vpack.c.b16 %v606, %v602
    %v703 = vpack.c.b16 %v607, %v603
    %v704 = vpack.c.b16 %v608, %v604
    %v705 = vpack.c.b16 %v609, %v605
    %v706 = vpack.c.b16 %v614, %v610
    %v707 = vpack.c.b16 %v615, %v611
    %v708 = vpack.c.b16 %v616, %v612
    %v709 = vpack.c.b16 %v617, %v613
    %v710 = vpack.c.b16 %v622, %v618
    %v711 = vpack.c.b16 %v623, %v619
    %v712 = vpack.c.b16 %v624, %v620
    %v713 = vpack.c.b16 %v625, %v621
    %v714 = vpack.c.b16 %v630, %v626
    %v715 = vpack.c.b16 %v631, %v627
    %v716 = vpack.c.b16 %v632, %v628
    %v717 = vpack.c.b16 %v633, %v629
    %v718 = vpack.c.b16 %v638, %v634
    %v719 = vpack.c.b16 %v639, %v635
    %v720 = vpack.c.b16 %v640, %v636
    %v721 = vpack.c.b16 %v641, %v637
    %v722 = vpack.c.b16 %v646, %v642
    %v723 = vpack.c.b16 %v647, %v643
    %v724 = vpack.c.b16 %v648, %v644
    %v725 = vpack.c.b16 %v649, %v645
    %v726 = vpack.c.b16 %v654, %v650
    %v727 = vpack.c.b16 %v655, %v651
    %v728 = vpack.c.b16 %v656, %v652
    %v729 = vpack.c.b16 %v657, %v653
    %v730 = vpack.c.b16 %v662, %v658
    %v731 = vpack.c.b16 %v663, %v659
    %v732 = vpack.c.b16 %v664, %v660
    %v733 = vpack.c.b16 %v665, %v661
    %v734 = vpack.c.b16 %v670, %v666
    %v735 = vpack.c.b16 %v671, %v667
    %v736 = vpack.c.b16 %v672, %v668
    %v737 = vpack.c.b16 %v673, %v669
    %802 = vmatprep.subr.bf16.mxu0 %v675
    %803 = vmatpush1.bf16.msra.mxu0 %v674
    %804 = vmatprep.subr.bf16.mxu0 %v679
    %805 = vmatpush1.bf16.msra.mxu0 %v678
    %806 = vmatprep.subr.bf16.mxu0 %v683
    %807 = vmatpush1.bf16.msra.mxu0 %v682
    %808 = vmatprep.subr.bf16.mxu0 %v687
    %809 = vmatpush1.bf16.msra.mxu0 %v686
    %810 = vmatprep.subr.bf16.mxu0 %v691
    %811 = vmatpush1.bf16.msra.mxu0 %v690
    %812 = vmatprep.subr.bf16.mxu0 %v695
    %813 = vmatpush1.bf16.msra.mxu0 %v694
    %814 = vmatprep.subr.bf16.mxu0 %v699
    %815 = vmatpush1.bf16.msra.mxu0 %v698
    %816 = vmatprep.subr.bf16.mxu0 %v703
    %817 = vmatpush1.bf16.msra.mxu0 %v702
    %818 = vmatprep.subr.bf16.mxu0 %v707
    %819 = vmatpush1.bf16.msra.mxu0 %v706
    %820 = vmatprep.subr.bf16.mxu0 %v711
    %821 = vmatpush1.bf16.msra.mxu0 %v710
    %822 = vmatprep.subr.bf16.mxu0 %v715
    %823 = vmatpush1.bf16.msra.mxu0 %v714
    %824 = vmatprep.subr.bf16.mxu0 %v719
    %825 = vmatpush1.bf16.msra.mxu0 %v718
    %826 = vmatprep.subr.bf16.mxu0 %v723
    %827 = vmatpush1.bf16.msra.mxu0 %v722
    %828 = vmatprep.subr.bf16.mxu0 %v727
    %829 = vmatpush1.bf16.msra.mxu0 %v726
    %830 = vmatprep.subr.bf16.mxu0 %v731
    %831 = vmatpush1.bf16.msra.mxu0 %v730
    %832 = vmatprep.subr.bf16.mxu0 %v735
    %833 = vmatpush1.bf16.msra.mxu0 %v734
    %834 = vmatprep.mubr.bf16.mxu0 %v395
    %835 = vmatmul.mubr.bf16.gmra.mrb[0].mxu0 %v394
    %v836 = vpop.f32.mrb[0].mxu0
    %v837 = vadd.f32 %v465, %v836
    %v838 = vpop.f32.mrb[0].mxu0
    %v839 = vadd.f32 %v469, %v838
    %v840 = vpop.f32.mrb[0].mxu0
    %v841 = vpop.f32.mrb[0].mxu0
    %842 = vdwg.mxu0
    %843 = vmatprep.subr.bf16.mxu0 %v677
    %844 = vmatpush1.bf16.msra.mxu0 %v676
    %845 = vmatprep.subr.bf16.mxu0 %v681
    %846 = vmatpush1.bf16.msra.mxu0 %v680
    %847 = vmatprep.subr.bf16.mxu0 %v685
    %848 = vmatpush1.bf16.msra.mxu0 %v684
    %849 = vmatprep.subr.bf16.mxu0 %v689
    %850 = vmatpush1.bf16.msra.mxu0 %v688
    %851 = vmatprep.subr.bf16.mxu0 %v693
    %852 = vmatpush1.bf16.msra.mxu0 %v692
    %853 = vmatprep.subr.bf16.mxu0 %v697
    %854 = vmatpush1.bf16.msra.mxu0 %v696
    %855 = vmatprep.subr.bf16.mxu0 %v701
    %856 = vmatpush1.bf16.msra.mxu0 %v700
    %857 = vmatprep.subr.bf16.mxu0 %v705
    %858 = vmatpush1.bf16.msra.mxu0 %v704
    %859 = vmatprep.subr.bf16.mxu0 %v709
    %860 = vmatpush1.bf16.msra.mxu0 %v708
    %861 = vmatprep.subr.bf16.mxu0 %v713
    %862 = vmatpush1.bf16.msra.mxu0 %v712
    %863 = vmatprep.subr.bf16.mxu0 %v717
    %864 = vmatpush1.bf16.msra.mxu0 %v716
    %865 = vmatprep.subr.bf16.mxu0 %v721
    %866 = vmatpush1.bf16.msra.mxu0 %v720
    %867 = vmatprep.subr.bf16.mxu0 %v725
    %868 = vmatpush1.bf16.msra.mxu0 %v724
    %869 = vmatprep.subr.bf16.mxu0 %v729
    %870 = vmatpush1.bf16.msra.mxu0 %v728
    %871 = vmatprep.subr.bf16.mxu0 %v733
    %872 = vmatpush1.bf16.msra.mxu0 %v732
    %873 = vmatprep.subr.bf16.mxu0 %v737
    %874 = vmatpush1.bf16.msra.mxu0 %v736
    %875 = vmatprep.mubr.bf16.mxu0 %v395
    %876 = vmatmul.mubr.bf16.gmra.mrb[0].mxu0 %v394
    %v877 = vpop.f32.mrb[0].mxu0
    %v878 = vadd.f32 %v473, %v877
    %v879 = vpop.f32.mrb[0].mxu0
    %v880 = vadd.f32 %v477, %v879
    %v881 = vpop.f32.mrb[0].mxu0
    %v882 = vpop.f32.mrb[0].mxu0
    %883 = vdwg.mxu0
    %v884 = vpack.c.bf16 %v837, %v837
    %v885 = vpack.c.bf16 %v839, %v839
    %v886 = vpack.c.bf16 %v878, %v878
    %v887 = vpack.c.bf16 %v880, %v880
    %vm888 = vcmp.gt.bf16.partialorder %v884, 0
    %vm889 = vcmp.gt.bf16.partialorder %v885, 0
    %vm890 = vcmp.gt.bf16.partialorder %v886, 0
    %vm891 = vcmp.gt.bf16.partialorder %v887, 0
    %v892 = vmul.bf16 %v884, 1045249613
    %v893 = vmul.bf16 %v885, 1045249613
    %v894 = vmul.bf16 %v886, 1045249613
    %v895 = vmul.bf16 %v887, 1045249613
    %v896 = vsel %vm888, %v884, %v892
    %v897 = vsel %vm889, %v885, %v893
    %v898 = vsel %vm890, %v886, %v894
    %v899 = vsel %vm891, %v887, %v895
    %v900 = vld [vmem:[#allocation9] sm:$0xff]
    %v901 = vld [vmem:[#allocation9 + $0x8] sm:$0xff]
    %v902 = vld [vmem:[#allocation9 + $0x10] sm:$0xff]
    %v903 = vld [vmem:[#allocation9 + $0x18] sm:$0xff]
    %v904 = vld [vmem:[#allocation9 + $0x20] sm:$0xff]
    %v905 = vld [vmem:[#allocation9 + $0x28] sm:$0xff]
    %v906 = vld [vmem:[#allocation9 + $0x30] sm:$0xff]
    %v907 = vld [vmem:[#allocation9 + $0x38] sm:$0xff]
    %v908 = vld [vmem:[#allocation9 + $0x40] sm:$0xff]
    %v909 = vld [vmem:[#allocation9 + $0x48] sm:$0xff]
    %v910 = vld [vmem:[#allocation9 + $0x50] sm:$0xff]
    %v911 = vld [vmem:[#allocation9 + $0x58] sm:$0xff]
    %v912 = vld [vmem:[#allocation9 + $0x60] sm:$0xff]
    %v913 = vld [vmem:[#allocation9 + $0x68] sm:$0xff]
    %v914 = vld [vmem:[#allocation9 + $0x70] sm:$0xff]
    %v915 = vld [vmem:[#allocation9 + $0x78] sm:$0xff]
    %v916 = vld [vmem:[#allocation9 + $0x80] sm:$0xff]
    %v917 = vld [vmem:[#allocation9 + $0x88] sm:$0xff]
    %v918 = vld [vmem:[#allocation9 + $0x90] sm:$0xff]
    %v919 = vld [vmem:[#allocation9 + $0x98] sm:$0xff]
    %v920 = vld [vmem:[#allocation9 + $0xa0] sm:$0xff]
    %v921 = vld [vmem:[#allocation9 + $0xa8] sm:$0xff]
    %v922 = vld [vmem:[#allocation9 + $0xb0] sm:$0xff]
    %v923 = vld [vmem:[#allocation9 + $0xb8] sm:$0xff]
    %v924 = vld [vmem:[#allocation9 + $0xc0] sm:$0xff]
    %v925 = vld [vmem:[#allocation9 + $0xc8] sm:$0xff]
    %v926 = vld [vmem:[#allocation9 + $0xd0] sm:$0xff]
    %v927 = vld [vmem:[#allocation9 + $0xd8] sm:$0xff]
    %v928 = vld [vmem:[#allocation9 + $0xe0] sm:$0xff]
    %v929 = vld [vmem:[#allocation9 + $0xe8] sm:$0xff]
    %v930 = vld [vmem:[#allocation9 + $0xf0] sm:$0xff]
    %v931 = vld [vmem:[#allocation9 + $0xf8] sm:$0xff]
    %v932 = vld [vmem:[#allocation9 + $0x100] sm:$0xff]
    %v933 = vld [vmem:[#allocation9 + $0x108] sm:$0xff]
    %v934 = vld [vmem:[#allocation9 + $0x110] sm:$0xff]
    %v935 = vld [vmem:[#allocation9 + $0x118] sm:$0xff]
    %v936 = vld [vmem:[#allocation9 + $0x120] sm:$0xff]
    %v937 = vld [vmem:[#allocation9 + $0x128] sm:$0xff]
    %v938 = vld [vmem:[#allocation9 + $0x130] sm:$0xff]
    %v939 = vld [vmem:[#allocation9 + $0x138] sm:$0xff]
    %v940 = vld [vmem:[#allocation9 + $0x140] sm:$0xff]
    %v941 = vld [vmem:[#allocation9 + $0x148] sm:$0xff]
    %v942 = vld [vmem:[#allocation9 + $0x150] sm:$0xff]
    %v943 = vld [vmem:[#allocation9 + $0x158] sm:$0xff]
    %v944 = vld [vmem:[#allocation9 + $0x160] sm:$0xff]
    %v945 = vld [vmem:[#allocation9 + $0x168] sm:$0xff]
    %v946 = vld [vmem:[#allocation9 + $0x170] sm:$0xff]
    %v947 = vld [vmem:[#allocation9 + $0x178] sm:$0xff]
    %v948 = vld [vmem:[#allocation9 + $0x180] sm:$0xff]
    %v949 = vld [vmem:[#allocation9 + $0x188] sm:$0xff]
    %v950 = vld [vmem:[#allocation9 + $0x190] sm:$0xff]
    %v951 = vld [vmem:[#allocation9 + $0x198] sm:$0xff]
    %v952 = vld [vmem:[#allocation9 + $0x1a0] sm:$0xff]
    %v953 = vld [vmem:[#allocation9 + $0x1a8] sm:$0xff]
    %v954 = vld [vmem:[#allocation9 + $0x1b0] sm:$0xff]
    %v955 = vld [vmem:[#allocation9 + $0x1b8] sm:$0xff]
    %v956 = vld [vmem:[#allocation9 + $0x1c0] sm:$0xff]
    %v957 = vld [vmem:[#allocation9 + $0x1c8] sm:$0xff]
    %v958 = vld [vmem:[#allocation9 + $0x1d0] sm:$0xff]
    %v959 = vld [vmem:[#allocation9 + $0x1d8] sm:$0xff]
    %v960 = vld [vmem:[#allocation9 + $0x1e0] sm:$0xff]
    %v961 = vld [vmem:[#allocation9 + $0x1e8] sm:$0xff]
    %v962 = vld [vmem:[#allocation9 + $0x1f0] sm:$0xff]
    %v963 = vld [vmem:[#allocation9 + $0x1f8] sm:$0xff]
    %v964 = vld [vmem:[#allocation9 + $0x200] sm:$0xff]
    %v965 = vld [vmem:[#allocation9 + $0x208] sm:$0xff]
    %v966 = vld [vmem:[#allocation9 + $0x210] sm:$0xff]
    %v967 = vld [vmem:[#allocation9 + $0x218] sm:$0xff]
    %v968 = vld [vmem:[#allocation9 + $0x220] sm:$0xff]
    %v969 = vld [vmem:[#allocation9 + $0x228] sm:$0xff]
    %v970 = vld [vmem:[#allocation9 + $0x230] sm:$0xff]
    %v971 = vld [vmem:[#allocation9 + $0x238] sm:$0xff]
    %v972 = vld [vmem:[#allocation9 + $0x240] sm:$0xff]
    %v973 = vld [vmem:[#allocation9 + $0x248] sm:$0xff]
    %v974 = vld [vmem:[#allocation9 + $0x250] sm:$0xff]
    %v975 = vld [vmem:[#allocation9 + $0x258] sm:$0xff]
    %v976 = vld [vmem:[#allocation9 + $0x260] sm:$0xff]
    %v977 = vld [vmem:[#allocation9 + $0x268] sm:$0xff]
    %v978 = vld [vmem:[#allocation9 + $0x270] sm:$0xff]
    %v979 = vld [vmem:[#allocation9 + $0x278] sm:$0xff]
    %v980 = vld [vmem:[#allocation9 + $0x280] sm:$0xff]
    %v981 = vld [vmem:[#allocation9 + $0x288] sm:$0xff]
    %v982 = vld [vmem:[#allocation9 + $0x290] sm:$0xff]
    %v983 = vld [vmem:[#allocation9 + $0x298] sm:$0xff]
    %v984 = vld [vmem:[#allocation9 + $0x2a0] sm:$0xff]
    %v985 = vld [vmem:[#allocation9 + $0x2a8] sm:$0xff]
    %v986 = vld [vmem:[#allocation9 + $0x2b0] sm:$0xff]
    %v987 = vld [vmem:[#allocation9 + $0x2b8] sm:$0xff]
    %v988 = vld [vmem:[#allocation9 + $0x2c0] sm:$0xff]
    %v989 = vld [vmem:[#allocation9 + $0x2c8] sm:$0xff]
    %v990 = vld [vmem:[#allocation9 + $0x2d0] sm:$0xff]
    %v991 = vld [vmem:[#allocation9 + $0x2d8] sm:$0xff]
    %v992 = vld [vmem:[#allocation9 + $0x2e0] sm:$0xff]
    %v993 = vld [vmem:[#allocation9 + $0x2e8] sm:$0xff]
    %v994 = vld [vmem:[#allocation9 + $0x2f0] sm:$0xff]
    %v995 = vld [vmem:[#allocation9 + $0x2f8] sm:$0xff]
    %v996 = vld [vmem:[#allocation9 + $0x300] sm:$0xff]
    %v997 = vld [vmem:[#allocation9 + $0x308] sm:$0xff]
    %v998 = vld [vmem:[#allocation9 + $0x310] sm:$0xff]
    %v999 = vld [vmem:[#allocation9 + $0x318] sm:$0xff]
    %v1000 = vld [vmem:[#allocation9 + $0x320] sm:$0xff]
    %v1001 = vld [vmem:[#allocation9 + $0x328] sm:$0xff]
    %v1002 = vld [vmem:[#allocation9 + $0x330] sm:$0xff]
    %v1003 = vld [vmem:[#allocation9 + $0x338] sm:$0xff]
    %v1004 = vld [vmem:[#allocation9 + $0x340] sm:$0xff]
    %v1005 = vld [vmem:[#allocation9 + $0x348] sm:$0xff]
    %v1006 = vld [vmem:[#allocation9 + $0x350] sm:$0xff]
    %v1007 = vld [vmem:[#allocation9 + $0x358] sm:$0xff]
    %v1008 = vld [vmem:[#allocation9 + $0x360] sm:$0xff]
    %v1009 = vld [vmem:[#allocation9 + $0x368] sm:$0xff]
    %v1010 = vld [vmem:[#allocation9 + $0x370] sm:$0xff]
    %v1011 = vld [vmem:[#allocation9 + $0x378] sm:$0xff]
    %v1012 = vld [vmem:[#allocation9 + $0x380] sm:$0xff]
    %v1013 = vld [vmem:[#allocation9 + $0x388] sm:$0xff]
    %v1014 = vld [vmem:[#allocation9 + $0x390] sm:$0xff]
    %v1015 = vld [vmem:[#allocation9 + $0x398] sm:$0xff]
    %v1016 = vld [vmem:[#allocation9 + $0x3a0] sm:$0xff]
    %v1017 = vld [vmem:[#allocation9 + $0x3a8] sm:$0xff]
    %v1018 = vld [vmem:[#allocation9 + $0x3b0] sm:$0xff]
    %v1019 = vld [vmem:[#allocation9 + $0x3b8] sm:$0xff]
    %v1020 = vld [vmem:[#allocation9 + $0x3c0] sm:$0xff]
    %v1021 = vld [vmem:[#allocation9 + $0x3c8] sm:$0xff]
    %v1022 = vld [vmem:[#allocation9 + $0x3d0] sm:$0xff]
    %v1023 = vld [vmem:[#allocation9 + $0x3d8] sm:$0xff]
    %v1024 = vld [vmem:[#allocation9 + $0x3e0] sm:$0xff]
    %v1025 = vld [vmem:[#allocation9 + $0x3e8] sm:$0xff]
    %v1026 = vld [vmem:[#allocation9 + $0x3f0] sm:$0xff]
    %v1027 = vld [vmem:[#allocation9 + $0x3f8] sm:$0xff]
    %v1028 = vld [vmem:[#allocation9 + $0x400] sm:$0xff]
    %v1029 = vld [vmem:[#allocation9 + $0x408] sm:$0xff]
    %v1030 = vld [vmem:[#allocation9 + $0x410] sm:$0xff]
    %v1031 = vld [vmem:[#allocation9 + $0x418] sm:$0xff]
    %v1032 = vld [vmem:[#allocation9 + $0x420] sm:$0xff]
    %v1033 = vld [vmem:[#allocation9 + $0x428] sm:$0xff]
    %v1034 = vld [vmem:[#allocation9 + $0x430] sm:$0xff]
    %v1035 = vld [vmem:[#allocation9 + $0x438] sm:$0xff]
    %v1036 = vld [vmem:[#allocation9 + $0x440] sm:$0xff]
    %v1037 = vld [vmem:[#allocation9 + $0x448] sm:$0xff]
    %v1038 = vld [vmem:[#allocation9 + $0x450] sm:$0xff]
    %v1039 = vld [vmem:[#allocation9 + $0x458] sm:$0xff]
    %v1040 = vld [vmem:[#allocation9 + $0x460] sm:$0xff]
    %v1041 = vld [vmem:[#allocation9 + $0x468] sm:$0xff]
    %v1042 = vld [vmem:[#allocation9 + $0x470] sm:$0xff]
    %v1043 = vld [vmem:[#allocation9 + $0x478] sm:$0xff]
    %v1044 = vld [vmem:[#allocation9 + $0x480] sm:$0xff]
    %v1045 = vld [vmem:[#allocation9 + $0x488] sm:$0xff]
    %v1046 = vld [vmem:[#allocation9 + $0x490] sm:$0xff]
    %v1047 = vld [vmem:[#allocation9 + $0x498] sm:$0xff]
    %v1048 = vld [vmem:[#allocation9 + $0x4a0] sm:$0xff]
    %v1049 = vld [vmem:[#allocation9 + $0x4a8] sm:$0xff]
    %v1050 = vld [vmem:[#allocation9 + $0x4b0] sm:$0xff]
    %v1051 = vld [vmem:[#allocation9 + $0x4b8] sm:$0xff]
    %v1052 = vld [vmem:[#allocation9 + $0x4c0] sm:$0xff]
    %v1053 = vld [vmem:[#allocation9 + $0x4c8] sm:$0xff]
    %v1054 = vld [vmem:[#allocation9 + $0x4d0] sm:$0xff]
    %v1055 = vld [vmem:[#allocation9 + $0x4d8] sm:$0xff]
    %v1056 = vld [vmem:[#allocation9 + $0x4e0] sm:$0xff]
    %v1057 = vld [vmem:[#allocation9 + $0x4e8] sm:$0xff]
    %v1058 = vld [vmem:[#allocation9 + $0x4f0] sm:$0xff]
    %v1059 = vld [vmem:[#allocation9 + $0x4f8] sm:$0xff]
    %v1060 = vld [vmem:[#allocation9 + $0x500] sm:$0xff]
    %v1061 = vld [vmem:[#allocation9 + $0x508] sm:$0xff]
    %v1062 = vld [vmem:[#allocation9 + $0x510] sm:$0xff]
    %v1063 = vld [vmem:[#allocation9 + $0x518] sm:$0xff]
    %v1064 = vld [vmem:[#allocation9 + $0x520] sm:$0xff]
    %v1065 = vld [vmem:[#allocation9 + $0x528] sm:$0xff]
    %v1066 = vld [vmem:[#allocation9 + $0x530] sm:$0xff]
    %v1067 = vld [vmem:[#allocation9 + $0x538] sm:$0xff]
    %v1068 = vld [vmem:[#allocation9 + $0x540] sm:$0xff]
    %v1069 = vld [vmem:[#allocation9 + $0x548] sm:$0xff]
    %v1070 = vld [vmem:[#allocation9 + $0x550] sm:$0xff]
    %v1071 = vld [vmem:[#allocation9 + $0x558] sm:$0xff]
    %v1072 = vld [vmem:[#allocation9 + $0x560] sm:$0xff]
    %v1073 = vld [vmem:[#allocation9 + $0x568] sm:$0xff]
    %v1074 = vld [vmem:[#allocation9 + $0x570] sm:$0xff]
    %v1075 = vld [vmem:[#allocation9 + $0x578] sm:$0xff]
    %v1076 = vld [vmem:[#allocation9 + $0x580] sm:$0xff]
    %v1077 = vld [vmem:[#allocation9 + $0x588] sm:$0xff]
    %v1078 = vld [vmem:[#allocation9 + $0x590] sm:$0xff]
    %v1079 = vld [vmem:[#allocation9 + $0x598] sm:$0xff]
    %v1080 = vld [vmem:[#allocation9 + $0x5a0] sm:$0xff]
    %v1081 = vld [vmem:[#allocation9 + $0x5a8] sm:$0xff]
    %v1082 = vld [vmem:[#allocation9 + $0x5b0] sm:$0xff]
    %v1083 = vld [vmem:[#allocation9 + $0x5b8] sm:$0xff]
    %v1084 = vld [vmem:[#allocation9 + $0x5c0] sm:$0xff]
    %v1085 = vld [vmem:[#allocation9 + $0x5c8] sm:$0xff]
    %v1086 = vld [vmem:[#allocation9 + $0x5d0] sm:$0xff]
    %v1087 = vld [vmem:[#allocation9 + $0x5d8] sm:$0xff]
    %v1088 = vld [vmem:[#allocation9 + $0x5e0] sm:$0xff]
    %v1089 = vld [vmem:[#allocation9 + $0x5e8] sm:$0xff]
    %v1090 = vld [vmem:[#allocation9 + $0x5f0] sm:$0xff]
    %v1091 = vld [vmem:[#allocation9 + $0x5f8] sm:$0xff]
    %v1092 = vld [vmem:[#allocation9 + $0x600] sm:$0xff]
    %v1093 = vld [vmem:[#allocation9 + $0x608] sm:$0xff]
    %v1094 = vld [vmem:[#allocation9 + $0x610] sm:$0xff]
    %v1095 = vld [vmem:[#allocation9 + $0x618] sm:$0xff]
    %v1096 = vld [vmem:[#allocation9 + $0x620] sm:$0xff]
    %v1097 = vld [vmem:[#allocation9 + $0x628] sm:$0xff]
    %v1098 = vld [vmem:[#allocation9 + $0x630] sm:$0xff]
    %v1099 = vld [vmem:[#allocation9 + $0x638] sm:$0xff]
    %v1100 = vld [vmem:[#allocation9 + $0x640] sm:$0xff]
    %v1101 = vld [vmem:[#allocation9 + $0x648] sm:$0xff]
    %v1102 = vld [vmem:[#allocation9 + $0x650] sm:$0xff]
    %v1103 = vld [vmem:[#allocation9 + $0x658] sm:$0xff]
    %v1104 = vld [vmem:[#allocation9 + $0x660] sm:$0xff]
    %v1105 = vld [vmem:[#allocation9 + $0x668] sm:$0xff]
    %v1106 = vld [vmem:[#allocation9 + $0x670] sm:$0xff]
    %v1107 = vld [vmem:[#allocation9 + $0x678] sm:$0xff]
    %v1108 = vld [vmem:[#allocation9 + $0x680] sm:$0xff]
    %v1109 = vld [vmem:[#allocation9 + $0x688] sm:$0xff]
    %v1110 = vld [vmem:[#allocation9 + $0x690] sm:$0xff]
    %v1111 = vld [vmem:[#allocation9 + $0x698] sm:$0xff]
    %v1112 = vld [vmem:[#allocation9 + $0x6a0] sm:$0xff]
    %v1113 = vld [vmem:[#allocation9 + $0x6a8] sm:$0xff]
    %v1114 = vld [vmem:[#allocation9 + $0x6b0] sm:$0xff]
    %v1115 = vld [vmem:[#allocation9 + $0x6b8] sm:$0xff]
    %v1116 = vld [vmem:[#allocation9 + $0x6c0] sm:$0xff]
    %v1117 = vld [vmem:[#allocation9 + $0x6c8] sm:$0xff]
    %v1118 = vld [vmem:[#allocation9 + $0x6d0] sm:$0xff]
    %v1119 = vld [vmem:[#allocation9 + $0x6d8] sm:$0xff]
    %v1120 = vld [vmem:[#allocation9 + $0x6e0] sm:$0xff]
    %v1121 = vld [vmem:[#allocation9 + $0x6e8] sm:$0xff]
    %v1122 = vld [vmem:[#allocation9 + $0x6f0] sm:$0xff]
    %v1123 = vld [vmem:[#allocation9 + $0x6f8] sm:$0xff]
    %v1124 = vld [vmem:[#allocation9 + $0x700] sm:$0xff]
    %v1125 = vld [vmem:[#allocation9 + $0x708] sm:$0xff]
    %v1126 = vld [vmem:[#allocation9 + $0x710] sm:$0xff]
    %v1127 = vld [vmem:[#allocation9 + $0x718] sm:$0xff]
    %v1128 = vld [vmem:[#allocation9 + $0x720] sm:$0xff]
    %v1129 = vld [vmem:[#allocation9 + $0x728] sm:$0xff]
    %v1130 = vld [vmem:[#allocation9 + $0x730] sm:$0xff]
    %v1131 = vld [vmem:[#allocation9 + $0x738] sm:$0xff]
    %v1132 = vld [vmem:[#allocation9 + $0x740] sm:$0xff]
    %v1133 = vld [vmem:[#allocation9 + $0x748] sm:$0xff]
    %v1134 = vld [vmem:[#allocation9 + $0x750] sm:$0xff]
    %v1135 = vld [vmem:[#allocation9 + $0x758] sm:$0xff]
    %v1136 = vld [vmem:[#allocation9 + $0x760] sm:$0xff]
    %v1137 = vld [vmem:[#allocation9 + $0x768] sm:$0xff]
    %v1138 = vld [vmem:[#allocation9 + $0x770] sm:$0xff]
    %v1139 = vld [vmem:[#allocation9 + $0x778] sm:$0xff]
    %v1140 = vld [vmem:[#allocation9 + $0x780] sm:$0xff]
    %v1141 = vld [vmem:[#allocation9 + $0x788] sm:$0xff]
    %v1142 = vld [vmem:[#allocation9 + $0x790] sm:$0xff]
    %v1143 = vld [vmem:[#allocation9 + $0x798] sm:$0xff]
    %v1144 = vld [vmem:[#allocation9 + $0x7a0] sm:$0xff]
    %v1145 = vld [vmem:[#allocation9 + $0x7a8] sm:$0xff]
    %v1146 = vld [vmem:[#allocation9 + $0x7b0] sm:$0xff]
    %v1147 = vld [vmem:[#allocation9 + $0x7b8] sm:$0xff]
    %v1148 = vld [vmem:[#allocation9 + $0x7c0] sm:$0xff]
    %v1149 = vld [vmem:[#allocation9 + $0x7c8] sm:$0xff]
    %v1150 = vld [vmem:[#allocation9 + $0x7d0] sm:$0xff]
    %v1151 = vld [vmem:[#allocation9 + $0x7d8] sm:$0xff]
    %v1152 = vld [vmem:[#allocation9 + $0x7e0] sm:$0xff]
    %v1153 = vld [vmem:[#allocation9 + $0x7e8] sm:$0xff]
    %v1154 = vld [vmem:[#allocation9 + $0x7f0] sm:$0xff]
    %v1155 = vld [vmem:[#allocation9 + $0x7f8] sm:$0xff]
    %v1156 = vld [vmem:[#allocation10] sm:$0xff]
    %v1158 = vlaneseq
    %v1159 = vshrl.u32 %v1158, 7
    %v1160 = vsub.s32 0, %v1159
    %v1161 = vrot.slane %v1156, %v1160
    %v1162 = vlaneseq
    %v1163 = vshrl.u32 %v1162, 7
    %v1164 = vsub.s32 1, %v1163
    %v1165 = vrot.slane %v1156, %v1164
    %v1166 = vlaneseq
    %v1167 = vshrl.u32 %v1166, 7
    %v1168 = vsub.s32 2, %v1167
    %v1169 = vrot.slane %v1156, %v1168
    %v1170 = vlaneseq
    %v1171 = vshrl.u32 %v1170, 7
    %v1172 = vsub.s32 3, %v1171
    %v1173 = vrot.slane %v1156, %v1172
    %v1174 = vlaneseq
    %v1175 = vshrl.u32 %v1174, 7
    %v1176 = vsub.s32 4, %v1175
    %v1177 = vrot.slane %v1156, %v1176
    %v1178 = vlaneseq
    %v1179 = vshrl.u32 %v1178, 7
    %v1180 = vsub.s32 5, %v1179
    %v1181 = vrot.slane %v1156, %v1180
    %v1182 = vlaneseq
    %v1183 = vshrl.u32 %v1182, 7
    %v1184 = vsub.s32 6, %v1183
    %v1185 = vrot.slane %v1156, %v1184
    %v1186 = vlaneseq
    %v1187 = vshrl.u32 %v1186, 7
    %v1188 = vsub.s32 7, %v1187
    %v1189 = vrot.slane %v1156, %v1188
    %v1454 = vunpack.c.l.b16 %v900
    %v1455 = vunpack.c.h.b16 %v900
    %v1456 = vunpack.c.l.b16 %v901
    %v1457 = vunpack.c.h.b16 %v901
    %v1458 = vunpack.c.l.b16 %v902
    %v1459 = vunpack.c.h.b16 %v902
    %v1460 = vunpack.c.l.b16 %v903
    %v1461 = vunpack.c.h.b16 %v903
    %v1462 = vunpack.c.l.b16 %v904
    %v1463 = vunpack.c.h.b16 %v904
    %v1464 = vunpack.c.l.b16 %v905
    %v1465 = vunpack.c.h.b16 %v905
    %v1466 = vunpack.c.l.b16 %v906
    %v1467 = vunpack.c.h.b16 %v906
    %v1468 = vunpack.c.l.b16 %v907
    %v1469 = vunpack.c.h.b16 %v907
    %v1470 = vunpack.c.l.b16 %v908
    %v1471 = vunpack.c.h.b16 %v908
    %v1472 = vunpack.c.l.b16 %v909
    %v1473 = vunpack.c.h.b16 %v909
    %v1474 = vunpack.c.l.b16 %v910
    %v1475 = vunpack.c.h.b16 %v910
    %v1476 = vunpack.c.l.b16 %v911
    %v1477 = vunpack.c.h.b16 %v911
    %v1478 = vunpack.c.l.b16 %v912
    %v1479 = vunpack.c.h.b16 %v912
    %v1480 = vunpack.c.l.b16 %v913
    %v1481 = vunpack.c.h.b16 %v913
    %v1482 = vunpack.c.l.b16 %v914
    %v1483 = vunpack.c.h.b16 %v914
    %v1484 = vunpack.c.l.b16 %v915
    %v1485 = vunpack.c.h.b16 %v915
    %v1486 = vunpack.c.l.b16 %v916
    %v1487 = vunpack.c.h.b16 %v916
    %v1488 = vunpack.c.l.b16 %v917
    %v1489 = vunpack.c.h.b16 %v917
    %v1490 = vunpack.c.l.b16 %v918
    %v1491 = vunpack.c.h.b16 %v918
    %v1492 = vunpack.c.l.b16 %v919
    %v1493 = vunpack.c.h.b16 %v919
    %v1494 = vunpack.c.l.b16 %v920
    %v1495 = vunpack.c.h.b16 %v920
    %v1496 = vunpack.c.l.b16 %v921
    %v1497 = vunpack.c.h.b16 %v921
    %v1498 = vunpack.c.l.b16 %v922
    %v1499 = vunpack.c.h.b16 %v922
    %v1500 = vunpack.c.l.b16 %v923
    %v1501 = vunpack.c.h.b16 %v923
    %v1502 = vunpack.c.l.b16 %v924
    %v1503 = vunpack.c.h.b16 %v924
    %v1504 = vunpack.c.l.b16 %v925
    %v1505 = vunpack.c.h.b16 %v925
    %v1506 = vunpack.c.l.b16 %v926
    %v1507 = vunpack.c.h.b16 %v926
    %v1508 = vunpack.c.l.b16 %v927
    %v1509 = vunpack.c.h.b16 %v927
    %v1510 = vunpack.c.l.b16 %v928
    %v1511 = vunpack.c.h.b16 %v928
    %v1512 = vunpack.c.l.b16 %v929
    %v1513 = vunpack.c.h.b16 %v929
    %v1514 = vunpack.c.l.b16 %v930
    %v1515 = vunpack.c.h.b16 %v930
    %v1516 = vunpack.c.l.b16 %v931
    %v1517 = vunpack.c.h.b16 %v931
    %v1518 = vunpack.c.l.b16 %v932
    %v1519 = vunpack.c.h.b16 %v932
    %v1520 = vunpack.c.l.b16 %v933
    %v1521 = vunpack.c.h.b16 %v933
    %v1522 = vunpack.c.l.b16 %v934
    %v1523 = vunpack.c.h.b16 %v934
    %v1524 = vunpack.c.l.b16 %v935
    %v1525 = vunpack.c.h.b16 %v935
    %v1526 = vunpack.c.l.b16 %v936
    %v1527 = vunpack.c.h.b16 %v936
    %v1528 = vunpack.c.l.b16 %v937
    %v1529 = vunpack.c.h.b16 %v937
    %v1530 = vunpack.c.l.b16 %v938
    %v1531 = vunpack.c.h.b16 %v938
    %v1532 = vunpack.c.l.b16 %v939
    %v1533 = vunpack.c.h.b16 %v939
    %v1534 = vunpack.c.l.b16 %v940
    %v1535 = vunpack.c.h.b16 %v940
    %v1536 = vunpack.c.l.b16 %v941
    %v1537 = vunpack.c.h.b16 %v941
    %v1538 = vunpack.c.l.b16 %v942
    %v1539 = vunpack.c.h.b16 %v942
    %v1540 = vunpack.c.l.b16 %v943
    %v1541 = vunpack.c.h.b16 %v943
    %v1542 = vunpack.c.l.b16 %v944
    %v1543 = vunpack.c.h.b16 %v944
    %v1544 = vunpack.c.l.b16 %v945
    %v1545 = vunpack.c.h.b16 %v945
    %v1546 = vunpack.c.l.b16 %v946
    %v1547 = vunpack.c.h.b16 %v946
    %v1548 = vunpack.c.l.b16 %v947
    %v1549 = vunpack.c.h.b16 %v947
    %v1550 = vunpack.c.l.b16 %v948
    %v1551 = vunpack.c.h.b16 %v948
    %v1552 = vunpack.c.l.b16 %v949
    %v1553 = vunpack.c.h.b16 %v949
    %v1554 = vunpack.c.l.b16 %v950
    %v1555 = vunpack.c.h.b16 %v950
    %v1556 = vunpack.c.l.b16 %v951
    %v1557 = vunpack.c.h.b16 %v951
    %v1558 = vunpack.c.l.b16 %v952
    %v1559 = vunpack.c.h.b16 %v952
    %v1560 = vunpack.c.l.b16 %v953
    %v1561 = vunpack.c.h.b16 %v953
    %v1562 = vunpack.c.l.b16 %v954
    %v1563 = vunpack.c.h.b16 %v954
    %v1564 = vunpack.c.l.b16 %v955
    %v1565 = vunpack.c.h.b16 %v955
    %v1566 = vunpack.c.l.b16 %v956
    %v1567 = vunpack.c.h.b16 %v956
    %v1568 = vunpack.c.l.b16 %v957
    %v1569 = vunpack.c.h.b16 %v957
    %v1570 = vunpack.c.l.b16 %v958
    %v1571 = vunpack.c.h.b16 %v958
    %v1572 = vunpack.c.l.b16 %v959
    %v1573 = vunpack.c.h.b16 %v959
    %v1574 = vunpack.c.l.b16 %v960
    %v1575 = vunpack.c.h.b16 %v960
    %v1576 = vunpack.c.l.b16 %v961
    %v1577 = vunpack.c.h.b16 %v961
    %v1578 = vunpack.c.l.b16 %v962
    %v1579 = vunpack.c.h.b16 %v962
    %v1580 = vunpack.c.l.b16 %v963
    %v1581 = vunpack.c.h.b16 %v963
    %v1582 = vunpack.c.l.b16 %v964
    %v1583 = vunpack.c.h.b16 %v964
    %v1584 = vunpack.c.l.b16 %v965
    %v1585 = vunpack.c.h.b16 %v965
    %v1586 = vunpack.c.l.b16 %v966
    %v1587 = vunpack.c.h.b16 %v966
    %v1588 = vunpack.c.l.b16 %v967
    %v1589 = vunpack.c.h.b16 %v967
    %v1590 = vunpack.c.l.b16 %v968
    %v1591 = vunpack.c.h.b16 %v968
    %v1592 = vunpack.c.l.b16 %v969
    %v1593 = vunpack.c.h.b16 %v969
    %v1594 = vunpack.c.l.b16 %v970
    %v1595 = vunpack.c.h.b16 %v970
    %v1596 = vunpack.c.l.b16 %v971
    %v1597 = vunpack.c.h.b16 %v971
    %v1598 = vunpack.c.l.b16 %v972
    %v1599 = vunpack.c.h.b16 %v972
    %v1600 = vunpack.c.l.b16 %v973
    %v1601 = vunpack.c.h.b16 %v973
    %v1602 = vunpack.c.l.b16 %v974
    %v1603 = vunpack.c.h.b16 %v974
    %v1604 = vunpack.c.l.b16 %v975
    %v1605 = vunpack.c.h.b16 %v975
    %v1606 = vunpack.c.l.b16 %v976
    %v1607 = vunpack.c.h.b16 %v976
    %v1608 = vunpack.c.l.b16 %v977
    %v1609 = vunpack.c.h.b16 %v977
    %v1610 = vunpack.c.l.b16 %v978
    %v1611 = vunpack.c.h.b16 %v978
    %v1612 = vunpack.c.l.b16 %v979
    %v1613 = vunpack.c.h.b16 %v979
    %v1614 = vunpack.c.l.b16 %v980
    %v1615 = vunpack.c.h.b16 %v980
    %v1616 = vunpack.c.l.b16 %v981
    %v1617 = vunpack.c.h.b16 %v981
    %v1618 = vunpack.c.l.b16 %v982
    %v1619 = vunpack.c.h.b16 %v982
    %v1620 = vunpack.c.l.b16 %v983
    %v1621 = vunpack.c.h.b16 %v983
    %v1622 = vunpack.c.l.b16 %v984
    %v1623 = vunpack.c.h.b16 %v984
    %v1624 = vunpack.c.l.b16 %v985
    %v1625 = vunpack.c.h.b16 %v985
    %v1626 = vunpack.c.l.b16 %v986
    %v1627 = vunpack.c.h.b16 %v986
    %v1628 = vunpack.c.l.b16 %v987
    %v1629 = vunpack.c.h.b16 %v987
    %v1630 = vunpack.c.l.b16 %v988
    %v1631 = vunpack.c.h.b16 %v988
    %v1632 = vunpack.c.l.b16 %v989
    %v1633 = vunpack.c.h.b16 %v989
    %v1634 = vunpack.c.l.b16 %v990
    %v1635 = vunpack.c.h.b16 %v990
    %v1636 = vunpack.c.l.b16 %v991
    %v1637 = vunpack.c.h.b16 %v991
    %v1638 = vunpack.c.l.b16 %v992
    %v1639 = vunpack.c.h.b16 %v992
    %v1640 = vunpack.c.l.b16 %v993
    %v1641 = vunpack.c.h.b16 %v993
    %v1642 = vunpack.c.l.b16 %v994
    %v1643 = vunpack.c.h.b16 %v994
    %v1644 = vunpack.c.l.b16 %v995
    %v1645 = vunpack.c.h.b16 %v995
    %v1646 = vunpack.c.l.b16 %v996
    %v1647 = vunpack.c.h.b16 %v996
    %v1648 = vunpack.c.l.b16 %v997
    %v1649 = vunpack.c.h.b16 %v997
    %v1650 = vunpack.c.l.b16 %v998
    %v1651 = vunpack.c.h.b16 %v998
    %v1652 = vunpack.c.l.b16 %v999
    %v1653 = vunpack.c.h.b16 %v999
    %v1654 = vunpack.c.l.b16 %v1000
    %v1655 = vunpack.c.h.b16 %v1000
    %v1656 = vunpack.c.l.b16 %v1001
    %v1657 = vunpack.c.h.b16 %v1001
    %v1658 = vunpack.c.l.b16 %v1002
    %v1659 = vunpack.c.h.b16 %v1002
    %v1660 = vunpack.c.l.b16 %v1003
    %v1661 = vunpack.c.h.b16 %v1003
    %v1662 = vunpack.c.l.b16 %v1004
    %v1663 = vunpack.c.h.b16 %v1004
    %v1664 = vunpack.c.l.b16 %v1005
    %v1665 = vunpack.c.h.b16 %v1005
    %v1666 = vunpack.c.l.b16 %v1006
    %v1667 = vunpack.c.h.b16 %v1006
    %v1668 = vunpack.c.l.b16 %v1007
    %v1669 = vunpack.c.h.b16 %v1007
    %v1670 = vunpack.c.l.b16 %v1008
    %v1671 = vunpack.c.h.b16 %v1008
    %v1672 = vunpack.c.l.b16 %v1009
    %v1673 = vunpack.c.h.b16 %v1009
    %v1674 = vunpack.c.l.b16 %v1010
    %v1675 = vunpack.c.h.b16 %v1010
    %v1676 = vunpack.c.l.b16 %v1011
    %v1677 = vunpack.c.h.b16 %v1011
    %v1678 = vunpack.c.l.b16 %v1012
    %v1679 = vunpack.c.h.b16 %v1012
    %v1680 = vunpack.c.l.b16 %v1013
    %v1681 = vunpack.c.h.b16 %v1013
    %v1682 = vunpack.c.l.b16 %v1014
    %v1683 = vunpack.c.h.b16 %v1014
    %v1684 = vunpack.c.l.b16 %v1015
    %v1685 = vunpack.c.h.b16 %v1015
    %v1686 = vunpack.c.l.b16 %v1016
    %v1687 = vunpack.c.h.b16 %v1016
    %v1688 = vunpack.c.l.b16 %v1017
    %v1689 = vunpack.c.h.b16 %v1017
    %v1690 = vunpack.c.l.b16 %v1018
    %v1691 = vunpack.c.h.b16 %v1018
    %v1692 = vunpack.c.l.b16 %v1019
    %v1693 = vunpack.c.h.b16 %v1019
    %v1694 = vunpack.c.l.b16 %v1020
    %v1695 = vunpack.c.h.b16 %v1020
    %v1696 = vunpack.c.l.b16 %v1021
    %v1697 = vunpack.c.h.b16 %v1021
    %v1698 = vunpack.c.l.b16 %v1022
    %v1699 = vunpack.c.h.b16 %v1022
    %v1700 = vunpack.c.l.b16 %v1023
    %v1701 = vunpack.c.h.b16 %v1023
    %v1702 = vunpack.c.l.b16 %v1024
    %v1703 = vunpack.c.h.b16 %v1024
    %v1704 = vunpack.c.l.b16 %v1025
    %v1705 = vunpack.c.h.b16 %v1025
    %v1706 = vunpack.c.l.b16 %v1026
    %v1707 = vunpack.c.h.b16 %v1026
    %v1708 = vunpack.c.l.b16 %v1027
    %v1709 = vunpack.c.h.b16 %v1027
    %v1710 = vunpack.c.l.b16 %v1028
    %v1711 = vunpack.c.h.b16 %v1028
    %v1712 = vunpack.c.l.b16 %v1029
    %v1713 = vunpack.c.h.b16 %v1029
    %v1714 = vunpack.c.l.b16 %v1030
    %v1715 = vunpack.c.h.b16 %v1030
    %v1716 = vunpack.c.l.b16 %v1031
    %v1717 = vunpack.c.h.b16 %v1031
    %v1718 = vunpack.c.l.b16 %v1032
    %v1719 = vunpack.c.h.b16 %v1032
    %v1720 = vunpack.c.l.b16 %v1033
    %v1721 = vunpack.c.h.b16 %v1033
    %v1722 = vunpack.c.l.b16 %v1034
    %v1723 = vunpack.c.h.b16 %v1034
    %v1724 = vunpack.c.l.b16 %v1035
    %v1725 = vunpack.c.h.b16 %v1035
    %v1726 = vunpack.c.l.b16 %v1036
    %v1727 = vunpack.c.h.b16 %v1036
    %v1728 = vunpack.c.l.b16 %v1037
    %v1729 = vunpack.c.h.b16 %v1037
    %v1730 = vunpack.c.l.b16 %v1038
    %v1731 = vunpack.c.h.b16 %v1038
    %v1732 = vunpack.c.l.b16 %v1039
    %v1733 = vunpack.c.h.b16 %v1039
    %v1734 = vunpack.c.l.b16 %v1040
    %v1735 = vunpack.c.h.b16 %v1040
    %v1736 = vunpack.c.l.b16 %v1041
    %v1737 = vunpack.c.h.b16 %v1041
    %v1738 = vunpack.c.l.b16 %v1042
    %v1739 = vunpack.c.h.b16 %v1042
    %v1740 = vunpack.c.l.b16 %v1043
    %v1741 = vunpack.c.h.b16 %v1043
    %v1742 = vunpack.c.l.b16 %v1044
    %v1743 = vunpack.c.h.b16 %v1044
    %v1744 = vunpack.c.l.b16 %v1045
    %v1745 = vunpack.c.h.b16 %v1045
    %v1746 = vunpack.c.l.b16 %v1046
    %v1747 = vunpack.c.h.b16 %v1046
    %v1748 = vunpack.c.l.b16 %v1047
    %v1749 = vunpack.c.h.b16 %v1047
    %v1750 = vunpack.c.l.b16 %v1048
    %v1751 = vunpack.c.h.b16 %v1048
    %v1752 = vunpack.c.l.b16 %v1049
    %v1753 = vunpack.c.h.b16 %v1049
    %v1754 = vunpack.c.l.b16 %v1050
    %v1755 = vunpack.c.h.b16 %v1050
    %v1756 = vunpack.c.l.b16 %v1051
    %v1757 = vunpack.c.h.b16 %v1051
    %v1758 = vunpack.c.l.b16 %v1052
    %v1759 = vunpack.c.h.b16 %v1052
    %v1760 = vunpack.c.l.b16 %v1053
    %v1761 = vunpack.c.h.b16 %v1053
    %v1762 = vunpack.c.l.b16 %v1054
    %v1763 = vunpack.c.h.b16 %v1054
    %v1764 = vunpack.c.l.b16 %v1055
    %v1765 = vunpack.c.h.b16 %v1055
    %v1766 = vunpack.c.l.b16 %v1056
    %v1767 = vunpack.c.h.b16 %v1056
    %v1768 = vunpack.c.l.b16 %v1057
    %v1769 = vunpack.c.h.b16 %v1057
    %v1770 = vunpack.c.l.b16 %v1058
    %v1771 = vunpack.c.h.b16 %v1058
    %v1772 = vunpack.c.l.b16 %v1059
    %v1773 = vunpack.c.h.b16 %v1059
    %v1774 = vunpack.c.l.b16 %v1060
    %v1775 = vunpack.c.h.b16 %v1060
    %v1776 = vunpack.c.l.b16 %v1061
    %v1777 = vunpack.c.h.b16 %v1061
    %v1778 = vunpack.c.l.b16 %v1062
    %v1779 = vunpack.c.h.b16 %v1062
    %v1780 = vunpack.c.l.b16 %v1063
    %v1781 = vunpack.c.h.b16 %v1063
    %v1782 = vunpack.c.l.b16 %v1064
    %v1783 = vunpack.c.h.b16 %v1064
    %v1784 = vunpack.c.l.b16 %v1065
    %v1785 = vunpack.c.h.b16 %v1065
    %v1786 = vunpack.c.l.b16 %v1066
    %v1787 = vunpack.c.h.b16 %v1066
    %v1788 = vunpack.c.l.b16 %v1067
    %v1789 = vunpack.c.h.b16 %v1067
    %v1790 = vunpack.c.l.b16 %v1068
    %v1791 = vunpack.c.h.b16 %v1068
    %v1792 = vunpack.c.l.b16 %v1069
    %v1793 = vunpack.c.h.b16 %v1069
    %v1794 = vunpack.c.l.b16 %v1070
    %v1795 = vunpack.c.h.b16 %v1070
    %v1796 = vunpack.c.l.b16 %v1071
    %v1797 = vunpack.c.h.b16 %v1071
    %v1798 = vunpack.c.l.b16 %v1072
    %v1799 = vunpack.c.h.b16 %v1072
    %v1800 = vunpack.c.l.b16 %v1073
    %v1801 = vunpack.c.h.b16 %v1073
    %v1802 = vunpack.c.l.b16 %v1074
    %v1803 = vunpack.c.h.b16 %v1074
    %v1804 = vunpack.c.l.b16 %v1075
    %v1805 = vunpack.c.h.b16 %v1075
    %v1806 = vunpack.c.l.b16 %v1076
    %v1807 = vunpack.c.h.b16 %v1076
    %v1808 = vunpack.c.l.b16 %v1077
    %v1809 = vunpack.c.h.b16 %v1077
    %v1810 = vunpack.c.l.b16 %v1078
    %v1811 = vunpack.c.h.b16 %v1078
    %v1812 = vunpack.c.l.b16 %v1079
    %v1813 = vunpack.c.h.b16 %v1079
    %v1814 = vunpack.c.l.b16 %v1080
    %v1815 = vunpack.c.h.b16 %v1080
    %v1816 = vunpack.c.l.b16 %v1081
    %v1817 = vunpack.c.h.b16 %v1081
    %v1818 = vunpack.c.l.b16 %v1082
    %v1819 = vunpack.c.h.b16 %v1082
    %v1820 = vunpack.c.l.b16 %v1083
    %v1821 = vunpack.c.h.b16 %v1083
    %v1822 = vunpack.c.l.b16 %v1084
    %v1823 = vunpack.c.h.b16 %v1084
    %v1824 = vunpack.c.l.b16 %v1085
    %v1825 = vunpack.c.h.b16 %v1085
    %v1826 = vunpack.c.l.b16 %v1086
    %v1827 = vunpack.c.h.b16 %v1086
    %v1828 = vunpack.c.l.b16 %v1087
    %v1829 = vunpack.c.h.b16 %v1087
    %v1830 = vunpack.c.l.b16 %v1088
    %v1831 = vunpack.c.h.b16 %v1088
    %v1832 = vunpack.c.l.b16 %v1089
    %v1833 = vunpack.c.h.b16 %v1089
    %v1834 = vunpack.c.l.b16 %v1090
    %v1835 = vunpack.c.h.b16 %v1090
    %v1836 = vunpack.c.l.b16 %v1091
    %v1837 = vunpack.c.h.b16 %v1091
    %v1838 = vunpack.c.l.b16 %v1092
    %v1839 = vunpack.c.h.b16 %v1092
    %v1840 = vunpack.c.l.b16 %v1093
    %v1841 = vunpack.c.h.b16 %v1093
    %v1842 = vunpack.c.l.b16 %v1094
    %v1843 = vunpack.c.h.b16 %v1094
    %v1844 = vunpack.c.l.b16 %v1095
    %v1845 = vunpack.c.h.b16 %v1095
    %v1846 = vunpack.c.l.b16 %v1096
    %v1847 = vunpack.c.h.b16 %v1096
    %v1848 = vunpack.c.l.b16 %v1097
    %v1849 = vunpack.c.h.b16 %v1097
    %v1850 = vunpack.c.l.b16 %v1098
    %v1851 = vunpack.c.h.b16 %v1098
    %v1852 = vunpack.c.l.b16 %v1099
    %v1853 = vunpack.c.h.b16 %v1099
    %v1854 = vunpack.c.l.b16 %v1100
    %v1855 = vunpack.c.h.b16 %v1100
    %v1856 = vunpack.c.l.b16 %v1101
    %v1857 = vunpack.c.h.b16 %v1101
    %v1858 = vunpack.c.l.b16 %v1102
    %v1859 = vunpack.c.h.b16 %v1102
    %v1860 = vunpack.c.l.b16 %v1103
    %v1861 = vunpack.c.h.b16 %v1103
    %v1862 = vunpack.c.l.b16 %v1104
    %v1863 = vunpack.c.h.b16 %v1104
    %v1864 = vunpack.c.l.b16 %v1105
    %v1865 = vunpack.c.h.b16 %v1105
    %v1866 = vunpack.c.l.b16 %v1106
    %v1867 = vunpack.c.h.b16 %v1106
    %v1868 = vunpack.c.l.b16 %v1107
    %v1869 = vunpack.c.h.b16 %v1107
    %v1870 = vunpack.c.l.b16 %v1108
    %v1871 = vunpack.c.h.b16 %v1108
    %v1872 = vunpack.c.l.b16 %v1109
    %v1873 = vunpack.c.h.b16 %v1109
    %v1874 = vunpack.c.l.b16 %v1110
    %v1875 = vunpack.c.h.b16 %v1110
    %v1876 = vunpack.c.l.b16 %v1111
    %v1877 = vunpack.c.h.b16 %v1111
    %v1878 = vunpack.c.l.b16 %v1112
    %v1879 = vunpack.c.h.b16 %v1112
    %v1880 = vunpack.c.l.b16 %v1113
    %v1881 = vunpack.c.h.b16 %v1113
    %v1882 = vunpack.c.l.b16 %v1114
    %v1883 = vunpack.c.h.b16 %v1114
    %v1884 = vunpack.c.l.b16 %v1115
    %v1885 = vunpack.c.h.b16 %v1115
    %v1886 = vunpack.c.l.b16 %v1116
    %v1887 = vunpack.c.h.b16 %v1116
    %v1888 = vunpack.c.l.b16 %v1117
    %v1889 = vunpack.c.h.b16 %v1117
    %v1890 = vunpack.c.l.b16 %v1118
    %v1891 = vunpack.c.h.b16 %v1118
    %v1892 = vunpack.c.l.b16 %v1119
    %v1893 = vunpack.c.h.b16 %v1119
    %v1894 = vunpack.c.l.b16 %v1120
    %v1895 = vunpack.c.h.b16 %v1120
    %v1896 = vunpack.c.l.b16 %v1121
    %v1897 = vunpack.c.h.b16 %v1121
    %v1898 = vunpack.c.l.b16 %v1122
    %v1899 = vunpack.c.h.b16 %v1122
    %v1900 = vunpack.c.l.b16 %v1123
    %v1901 = vunpack.c.h.b16 %v1123
    %v1902 = vunpack.c.l.b16 %v1124
    %v1903 = vunpack.c.h.b16 %v1124
    %v1904 = vunpack.c.l.b16 %v1125
    %v1905 = vunpack.c.h.b16 %v1125
    %v1906 = vunpack.c.l.b16 %v1126
    %v1907 = vunpack.c.h.b16 %v1126
    %v1908 = vunpack.c.l.b16 %v1127
    %v1909 = vunpack.c.h.b16 %v1127
    %v1910 = vunpack.c.l.b16 %v1128
    %v1911 = vunpack.c.h.b16 %v1128
    %v1912 = vunpack.c.l.b16 %v1129
    %v1913 = vunpack.c.h.b16 %v1129
    %v1914 = vunpack.c.l.b16 %v1130
    %v1915 = vunpack.c.h.b16 %v1130
    %v1916 = vunpack.c.l.b16 %v1131
    %v1917 = vunpack.c.h.b16 %v1131
    %v1918 = vunpack.c.l.b16 %v1132
    %v1919 = vunpack.c.h.b16 %v1132
    %v1920 = vunpack.c.l.b16 %v1133
    %v1921 = vunpack.c.h.b16 %v1133
    %v1922 = vunpack.c.l.b16 %v1134
    %v1923 = vunpack.c.h.b16 %v1134
    %v1924 = vunpack.c.l.b16 %v1135
    %v1925 = vunpack.c.h.b16 %v1135
    %v1926 = vunpack.c.l.b16 %v1136
    %v1927 = vunpack.c.h.b16 %v1136
    %v1928 = vunpack.c.l.b16 %v1137
    %v1929 = vunpack.c.h.b16 %v1137
    %v1930 = vunpack.c.l.b16 %v1138
    %v1931 = vunpack.c.h.b16 %v1138
    %v1932 = vunpack.c.l.b16 %v1139
    %v1933 = vunpack.c.h.b16 %v1139
    %v1934 = vunpack.c.l.b16 %v1140
    %v1935 = vunpack.c.h.b16 %v1140
    %v1936 = vunpack.c.l.b16 %v1141
    %v1937 = vunpack.c.h.b16 %v1141
    %v1938 = vunpack.c.l.b16 %v1142
    %v1939 = vunpack.c.h.b16 %v1142
    %v1940 = vunpack.c.l.b16 %v1143
    %v1941 = vunpack.c.h.b16 %v1143
    %v1942 = vunpack.c.l.b16 %v1144
    %v1943 = vunpack.c.h.b16 %v1144
    %v1944 = vunpack.c.l.b16 %v1145
    %v1945 = vunpack.c.h.b16 %v1145
    %v1946 = vunpack.c.l.b16 %v1146
    %v1947 = vunpack.c.h.b16 %v1146
    %v1948 = vunpack.c.l.b16 %v1147
    %v1949 = vunpack.c.h.b16 %v1147
    %v1950 = vunpack.c.l.b16 %v1148
    %v1951 = vunpack.c.h.b16 %v1148
    %v1952 = vunpack.c.l.b16 %v1149
    %v1953 = vunpack.c.h.b16 %v1149
    %v1954 = vunpack.c.l.b16 %v1150
    %v1955 = vunpack.c.h.b16 %v1150
    %v1956 = vunpack.c.l.b16 %v1151
    %v1957 = vunpack.c.h.b16 %v1151
    %v1958 = vunpack.c.l.b16 %v1152
    %v1959 = vunpack.c.h.b16 %v1152
    %v1960 = vunpack.c.l.b16 %v1153
    %v1961 = vunpack.c.h.b16 %v1153
    %v1962 = vunpack.c.l.b16 %v1154
    %v1963 = vunpack.c.h.b16 %v1154
    %v1964 = vunpack.c.l.b16 %v1155
    %v1965 = vunpack.c.h.b16 %v1155
    %v1966 = vpack.c.b16 %v1462, %v1454
    %v1967 = vpack.c.b16 %v1463, %v1455
    %v1968 = vpack.c.b16 %v1464, %v1456
    %v1969 = vpack.c.b16 %v1465, %v1457
    %v1970 = vpack.c.b16 %v1466, %v1458
    %v1971 = vpack.c.b16 %v1467, %v1459
    %v1972 = vpack.c.b16 %v1468, %v1460
    %v1973 = vpack.c.b16 %v1469, %v1461
    %v1974 = vpack.c.b16 %v1478, %v1470
    %v1975 = vpack.c.b16 %v1479, %v1471
    %v1976 = vpack.c.b16 %v1480, %v1472
    %v1977 = vpack.c.b16 %v1481, %v1473
    %v1978 = vpack.c.b16 %v1482, %v1474
    %v1979 = vpack.c.b16 %v1483, %v1475
    %v1980 = vpack.c.b16 %v1484, %v1476
    %v1981 = vpack.c.b16 %v1485, %v1477
    %v1982 = vpack.c.b16 %v1494, %v1486
    %v1983 = vpack.c.b16 %v1495, %v1487
    %v1984 = vpack.c.b16 %v1496, %v1488
    %v1985 = vpack.c.b16 %v1497, %v1489
    %v1986 = vpack.c.b16 %v1498, %v1490
    %v1987 = vpack.c.b16 %v1499, %v1491
    %v1988 = vpack.c.b16 %v1500, %v1492
    %v1989 = vpack.c.b16 %v1501, %v1493
    %v1990 = vpack.c.b16 %v1510, %v1502
    %v1991 = vpack.c.b16 %v1511, %v1503
    %v1992 = vpack.c.b16 %v1512, %v1504
    %v1993 = vpack.c.b16 %v1513, %v1505
    %v1994 = vpack.c.b16 %v1514, %v1506
    %v1995 = vpack.c.b16 %v1515, %v1507
    %v1996 = vpack.c.b16 %v1516, %v1508
    %v1997 = vpack.c.b16 %v1517, %v1509
    %v1998 = vpack.c.b16 %v1526, %v1518
    %v1999 = vpack.c.b16 %v1527, %v1519
    %v2000 = vpack.c.b16 %v1528, %v1520
    %v2001 = vpack.c.b16 %v1529, %v1521
    %v2002 = vpack.c.b16 %v1530, %v1522
    %v2003 = vpack.c.b16 %v1531, %v1523
    %v2004 = vpack.c.b16 %v1532, %v1524
    %v2005 = vpack.c.b16 %v1533, %v1525
    %v2006 = vpack.c.b16 %v1542, %v1534
    %v2007 = vpack.c.b16 %v1543, %v1535
    %v2008 = vpack.c.b16 %v1544, %v1536
    %v2009 = vpack.c.b16 %v1545, %v1537
    %v2010 = vpack.c.b16 %v1546, %v1538
    %v2011 = vpack.c.b16 %v1547, %v1539
    %v2012 = vpack.c.b16 %v1548, %v1540
    %v2013 = vpack.c.b16 %v1549, %v1541
    %v2014 = vpack.c.b16 %v1558, %v1550
    %v2015 = vpack.c.b16 %v1559, %v1551
    %v2016 = vpack.c.b16 %v1560, %v1552
    %v2017 = vpack.c.b16 %v1561, %v1553
    %v2018 = vpack.c.b16 %v1562, %v1554
    %v2019 = vpack.c.b16 %v1563, %v1555
    %v2020 = vpack.c.b16 %v1564, %v1556
    %v2021 = vpack.c.b16 %v1565, %v1557
    %v2022 = vpack.c.b16 %v1574, %v1566
    %v2023 = vpack.c.b16 %v1575, %v1567
    %v2024 = vpack.c.b16 %v1576, %v1568
    %v2025 = vpack.c.b16 %v1577, %v1569
    %v2026 = vpack.c.b16 %v1578, %v1570
    %v2027 = vpack.c.b16 %v1579, %v1571
    %v2028 = vpack.c.b16 %v1580, %v1572
    %v2029 = vpack.c.b16 %v1581, %v1573
    %v2030 = vpack.c.b16 %v1590, %v1582
    %v2031 = vpack.c.b16 %v1591, %v1583
    %v2032 = vpack.c.b16 %v1592, %v1584
    %v2033 = vpack.c.b16 %v1593, %v1585
    %v2034 = vpack.c.b16 %v1594, %v1586
    %v2035 = vpack.c.b16 %v1595, %v1587
    %v2036 = vpack.c.b16 %v1596, %v1588
    %v2037 = vpack.c.b16 %v1597, %v1589
    %v2038 = vpack.c.b16 %v1606, %v1598
    %v2039 = vpack.c.b16 %v1607, %v1599
    %v2040 = vpack.c.b16 %v1608, %v1600
    %v2041 = vpack.c.b16 %v1609, %v1601
    %v2042 = vpack.c.b16 %v1610, %v1602
    %v2043 = vpack.c.b16 %v1611, %v1603
    %v2044 = vpack.c.b16 %v1612, %v1604
    %v2045 = vpack.c.b16 %v1613, %v1605
    %v2046 = vpack.c.b16 %v1622, %v1614
    %v2047 = vpack.c.b16 %v1623, %v1615
    %v2048 = vpack.c.b16 %v1624, %v1616
    %v2049 = vpack.c.b16 %v1625, %v1617
    %v2050 = vpack.c.b16 %v1626, %v1618
    %v2051 = vpack.c.b16 %v1627, %v1619
    %v2052 = vpack.c.b16 %v1628, %v1620
    %v2053 = vpack.c.b16 %v1629, %v1621
    %v2054 = vpack.c.b16 %v1638, %v1630
    %v2055 = vpack.c.b16 %v1639, %v1631
    %v2056 = vpack.c.b16 %v1640, %v1632
    %v2057 = vpack.c.b16 %v1641, %v1633
    %v2058 = vpack.c.b16 %v1642, %v1634
    %v2059 = vpack.c.b16 %v1643, %v1635
    %v2060 = vpack.c.b16 %v1644, %v1636
    %v2061 = vpack.c.b16 %v1645, %v1637
    %v2062 = vpack.c.b16 %v1654, %v1646
    %v2063 = vpack.c.b16 %v1655, %v1647
    %v2064 = vpack.c.b16 %v1656, %v1648
    %v2065 = vpack.c.b16 %v1657, %v1649
    %v2066 = vpack.c.b16 %v1658, %v1650
    %v2067 = vpack.c.b16 %v1659, %v1651
    %v2068 = vpack.c.b16 %v1660, %v1652
    %v2069 = vpack.c.b16 %v1661, %v1653
    %v2070 = vpack.c.b16 %v1670, %v1662
    %v2071 = vpack.c.b16 %v1671, %v1663
    %v2072 = vpack.c.b16 %v1672, %v1664
    %v2073 = vpack.c.b16 %v1673, %v1665
    %v2074 = vpack.c.b16 %v1674, %v1666
    %v2075 = vpack.c.b16 %v1675, %v1667
    %v2076 = vpack.c.b16 %v1676, %v1668
    %v2077 = vpack.c.b16 %v1677, %v1669
    %v2078 = vpack.c.b16 %v1686, %v1678
    %v2079 = vpack.c.b16 %v1687, %v1679
    %v2080 = vpack.c.b16 %v1688, %v1680
    %v2081 = vpack.c.b16 %v1689, %v1681
    %v2082 = vpack.c.b16 %v1690, %v1682
    %v2083 = vpack.c.b16 %v1691, %v1683
    %v2084 = vpack.c.b16 %v1692, %v1684
    %v2085 = vpack.c.b16 %v1693, %v1685
    %v2086 = vpack.c.b16 %v1702, %v1694
    %v2087 = vpack.c.b16 %v1703, %v1695
    %v2088 = vpack.c.b16 %v1704, %v1696
    %v2089 = vpack.c.b16 %v1705, %v1697
    %v2090 = vpack.c.b16 %v1706, %v1698
    %v2091 = vpack.c.b16 %v1707, %v1699
    %v2092 = vpack.c.b16 %v1708, %v1700
    %v2093 = vpack.c.b16 %v1709, %v1701
    %v2094 = vpack.c.b16 %v1718, %v1710
    %v2095 = vpack.c.b16 %v1719, %v1711
    %v2096 = vpack.c.b16 %v1720, %v1712
    %v2097 = vpack.c.b16 %v1721, %v1713
    %v2098 = vpack.c.b16 %v1722, %v1714
    %v2099 = vpack.c.b16 %v1723, %v1715
    %v2100 = vpack.c.b16 %v1724, %v1716
    %v2101 = vpack.c.b16 %v1725, %v1717
    %v2102 = vpack.c.b16 %v1734, %v1726
    %v2103 = vpack.c.b16 %v1735, %v1727
    %v2104 = vpack.c.b16 %v1736, %v1728
    %v2105 = vpack.c.b16 %v1737, %v1729
    %v2106 = vpack.c.b16 %v1738, %v1730
    %v2107 = vpack.c.b16 %v1739, %v1731
    %v2108 = vpack.c.b16 %v1740, %v1732
    %v2109 = vpack.c.b16 %v1741, %v1733
    %v2110 = vpack.c.b16 %v1750, %v1742
    %v2111 = vpack.c.b16 %v1751, %v1743
    %v2112 = vpack.c.b16 %v1752, %v1744
    %v2113 = vpack.c.b16 %v1753, %v1745
    %v2114 = vpack.c.b16 %v1754, %v1746
    %v2115 = vpack.c.b16 %v1755, %v1747
    %v2116 = vpack.c.b16 %v1756, %v1748
    %v2117 = vpack.c.b16 %v1757, %v1749
    %v2118 = vpack.c.b16 %v1766, %v1758
    %v2119 = vpack.c.b16 %v1767, %v1759
    %v2120 = vpack.c.b16 %v1768, %v1760
    %v2121 = vpack.c.b16 %v1769, %v1761
    %v2122 = vpack.c.b16 %v1770, %v1762
    %v2123 = vpack.c.b16 %v1771, %v1763
    %v2124 = vpack.c.b16 %v1772, %v1764
    %v2125 = vpack.c.b16 %v1773, %v1765
    %v2126 = vpack.c.b16 %v1782, %v1774
    %v2127 = vpack.c.b16 %v1783, %v1775
    %v2128 = vpack.c.b16 %v1784, %v1776
    %v2129 = vpack.c.b16 %v1785, %v1777
    %v2130 = vpack.c.b16 %v1786, %v1778
    %v2131 = vpack.c.b16 %v1787, %v1779
    %v2132 = vpack.c.b16 %v1788, %v1780
    %v2133 = vpack.c.b16 %v1789, %v1781
    %v2134 = vpack.c.b16 %v1798, %v1790
    %v2135 = vpack.c.b16 %v1799, %v1791
    %v2136 = vpack.c.b16 %v1800, %v1792
    %v2137 = vpack.c.b16 %v1801, %v1793
    %v2138 = vpack.c.b16 %v1802, %v1794
    %v2139 = vpack.c.b16 %v1803, %v1795
    %v2140 = vpack.c.b16 %v1804, %v1796
    %v2141 = vpack.c.b16 %v1805, %v1797
    %v2142 = vpack.c.b16 %v1814, %v1806
    %v2143 = vpack.c.b16 %v1815, %v1807
    %v2144 = vpack.c.b16 %v1816, %v1808
    %v2145 = vpack.c.b16 %v1817, %v1809
    %v2146 = vpack.c.b16 %v1818, %v1810
    %v2147 = vpack.c.b16 %v1819, %v1811
    %v2148 = vpack.c.b16 %v1820, %v1812
    %v2149 = vpack.c.b16 %v1821, %v1813
    %v2150 = vpack.c.b16 %v1830, %v1822
    %v2151 = vpack.c.b16 %v1831, %v1823
    %v2152 = vpack.c.b16 %v1832, %v1824
    %v2153 = vpack.c.b16 %v1833, %v1825
    %v2154 = vpack.c.b16 %v1834, %v1826
    %v2155 = vpack.c.b16 %v1835, %v1827
    %v2156 = vpack.c.b16 %v1836, %v1828
    %v2157 = vpack.c.b16 %v1837, %v1829
    %v2158 = vpack.c.b16 %v1846, %v1838
    %v2159 = vpack.c.b16 %v1847, %v1839
    %v2160 = vpack.c.b16 %v1848, %v1840
    %v2161 = vpack.c.b16 %v1849, %v1841
    %v2162 = vpack.c.b16 %v1850, %v1842
    %v2163 = vpack.c.b16 %v1851, %v1843
    %v2164 = vpack.c.b16 %v1852, %v1844
    %v2165 = vpack.c.b16 %v1853, %v1845
    %v2166 = vpack.c.b16 %v1862, %v1854
    %v2167 = vpack.c.b16 %v1863, %v1855
    %v2168 = vpack.c.b16 %v1864, %v1856
    %v2169 = vpack.c.b16 %v1865, %v1857
    %v2170 = vpack.c.b16 %v1866, %v1858
    %v2171 = vpack.c.b16 %v1867, %v1859
    %v2172 = vpack.c.b16 %v1868, %v1860
    %v2173 = vpack.c.b16 %v1869, %v1861
    %v2174 = vpack.c.b16 %v1878, %v1870
    %v2175 = vpack.c.b16 %v1879, %v1871
    %v2176 = vpack.c.b16 %v1880, %v1872
    %v2177 = vpack.c.b16 %v1881, %v1873
    %v2178 = vpack.c.b16 %v1882, %v1874
    %v2179 = vpack.c.b16 %v1883, %v1875
    %v2180 = vpack.c.b16 %v1884, %v1876
    %v2181 = vpack.c.b16 %v1885, %v1877
    %v2182 = vpack.c.b16 %v1894, %v1886
    %v2183 = vpack.c.b16 %v1895, %v1887
    %v2184 = vpack.c.b16 %v1896, %v1888
    %v2185 = vpack.c.b16 %v1897, %v1889
    %v2186 = vpack.c.b16 %v1898, %v1890
    %v2187 = vpack.c.b16 %v1899, %v1891
    %v2188 = vpack.c.b16 %v1900, %v1892
    %v2189 = vpack.c.b16 %v1901, %v1893
    %v2190 = vpack.c.b16 %v1910, %v1902
    %v2191 = vpack.c.b16 %v1911, %v1903
    %v2192 = vpack.c.b16 %v1912, %v1904
    %v2193 = vpack.c.b16 %v1913, %v1905
    %v2194 = vpack.c.b16 %v1914, %v1906
    %v2195 = vpack.c.b16 %v1915, %v1907
    %v2196 = vpack.c.b16 %v1916, %v1908
    %v2197 = vpack.c.b16 %v1917, %v1909
    %v2198 = vpack.c.b16 %v1926, %v1918
    %v2199 = vpack.c.b16 %v1927, %v1919
    %v2200 = vpack.c.b16 %v1928, %v1920
    %v2201 = vpack.c.b16 %v1929, %v1921
    %v2202 = vpack.c.b16 %v1930, %v1922
    %v2203 = vpack.c.b16 %v1931, %v1923
    %v2204 = vpack.c.b16 %v1932, %v1924
    %v2205 = vpack.c.b16 %v1933, %v1925
    %v2206 = vpack.c.b16 %v1942, %v1934
    %v2207 = vpack.c.b16 %v1943, %v1935
    %v2208 = vpack.c.b16 %v1944, %v1936
    %v2209 = vpack.c.b16 %v1945, %v1937
    %v2210 = vpack.c.b16 %v1946, %v1938
    %v2211 = vpack.c.b16 %v1947, %v1939
    %v2212 = vpack.c.b16 %v1948, %v1940
    %v2213 = vpack.c.b16 %v1949, %v1941
    %v2214 = vpack.c.b16 %v1958, %v1950
    %v2215 = vpack.c.b16 %v1959, %v1951
    %v2216 = vpack.c.b16 %v1960, %v1952
    %v2217 = vpack.c.b16 %v1961, %v1953
    %v2218 = vpack.c.b16 %v1962, %v1954
    %v2219 = vpack.c.b16 %v1963, %v1955
    %v2220 = vpack.c.b16 %v1964, %v1956
    %v2221 = vpack.c.b16 %v1965, %v1957
    %2478 = vmatprep.subr.bf16.mxu0 %v1967
    %2479 = vmatpush1.bf16.msra.mxu0 %v1966
    %2480 = vmatprep.subr.bf16.mxu0 %v1975
    %2481 = vmatpush1.bf16.msra.mxu0 %v1974
    %2482 = vmatprep.subr.bf16.mxu0 %v1983
    %2483 = vmatpush1.bf16.msra.mxu0 %v1982
    %2484 = vmatprep.subr.bf16.mxu0 %v1991
    %2485 = vmatpush1.bf16.msra.mxu0 %v1990
    %2486 = vmatprep.subr.bf16.mxu0 %v1999
    %2487 = vmatpush1.bf16.msra.mxu0 %v1998
    %2488 = vmatprep.subr.bf16.mxu0 %v2007
    %2489 = vmatpush1.bf16.msra.mxu0 %v2006
    %2490 = vmatprep.subr.bf16.mxu0 %v2015
    %2491 = vmatpush1.bf16.msra.mxu0 %v2014
    %2492 = vmatprep.subr.bf16.mxu0 %v2023
    %2493 = vmatpush1.bf16.msra.mxu0 %v2022
    %2494 = vmatprep.subr.bf16.mxu0 %v2031
    %2495 = vmatpush1.bf16.msra.mxu0 %v2030
    %2496 = vmatprep.subr.bf16.mxu0 %v2039
    %2497 = vmatpush1.bf16.msra.mxu0 %v2038
    %2498 = vmatprep.subr.bf16.mxu0 %v2047
    %2499 = vmatpush1.bf16.msra.mxu0 %v2046
    %2500 = vmatprep.subr.bf16.mxu0 %v2055
    %2501 = vmatpush1.bf16.msra.mxu0 %v2054
    %2502 = vmatprep.subr.bf16.mxu0 %v2063
    %2503 = vmatpush1.bf16.msra.mxu0 %v2062
    %2504 = vmatprep.subr.bf16.mxu0 %v2071
    %2505 = vmatpush1.bf16.msra.mxu0 %v2070
    %2506 = vmatprep.subr.bf16.mxu0 %v2079
    %2507 = vmatpush1.bf16.msra.mxu0 %v2078
    %2508 = vmatprep.subr.bf16.mxu0 %v2087
    %2509 = vmatpush1.bf16.msra.mxu0 %v2086
    %2510 = vmatprep.mubr.bf16.mxu0 %v897
    %2511 = vmatmul.mubr.bf16.gmra.mrb[0].mxu0 %v896
    %v2512 = vpop.f32.mrb[0].mxu0
    %v2513 = vadd.f32 %v1161, %v2512
    %v2514 = vpop.f32.mrb[0].mxu0
    %v2515 = vadd.f32 %v1165, %v2514
    %v2516 = vpop.f32.mrb[0].mxu0
    %v2517 = vpop.f32.mrb[0].mxu0
    %2518 = vdwg.mxu0
    %2519 = vmatprep.subr.bf16.mxu0 %v2095
    %2520 = vmatpush1.bf16.msra.mxu0 %v2094
    %2521 = vmatprep.subr.bf16.mxu0 %v2103
    %2522 = vmatpush1.bf16.msra.mxu0 %v2102
    %2523 = vmatprep.subr.bf16.mxu0 %v2111
    %2524 = vmatpush1.bf16.msra.mxu0 %v2110
    %2525 = vmatprep.subr.bf16.mxu0 %v2119
    %2526 = vmatpush1.bf16.msra.mxu0 %v2118
    %2527 = vmatprep.subr.bf16.mxu0 %v2127
    %2528 = vmatpush1.bf16.msra.mxu0 %v2126
    %2529 = vmatprep.subr.bf16.mxu0 %v2135
    %2530 = vmatpush1.bf16.msra.mxu0 %v2134
    %2531 = vmatprep.subr.bf16.mxu0 %v2143
    %2532 = vmatpush1.bf16.msra.mxu0 %v2142
    %2533 = vmatprep.subr.bf16.mxu0 %v2151
    %2534 = vmatpush1.bf16.msra.mxu0 %v2150
    %2535 = vmatprep.subr.bf16.mxu0 %v2159
    %2536 = vmatpush1.bf16.msra.mxu0 %v2158
    %2537 = vmatprep.subr.bf16.mxu0 %v2167
    %2538 = vmatpush1.bf16.msra.mxu0 %v2166
    %2539 = vmatprep.subr.bf16.mxu0 %v2175
    %2540 = vmatpush1.bf16.msra.mxu0 %v2174
    %2541 = vmatprep.subr.bf16.mxu0 %v2183
    %2542 = vmatpush1.bf16.msra.mxu0 %v2182
    %2543 = vmatprep.subr.bf16.mxu0 %v2191
    %2544 = vmatpush1.bf16.msra.mxu0 %v2190
    %2545 = vmatprep.subr.bf16.mxu0 %v2199
    %2546 = vmatpush1.bf16.msra.mxu0 %v2198
    %2547 = vmatprep.subr.bf16.mxu0 %v2207
    %2548 = vmatpush1.bf16.msra.mxu0 %v2206
    %2549 = vmatprep.subr.bf16.mxu0 %v2215
    %2550 = vmatpush1.bf16.msra.mxu0 %v2214
    %2551 = vmatprep.mubr.bf16.mxu0 %v899
    %2552 = vmatmul.mubr.bf16.gmra.mrb[0].mxu0 %v898
    %v2553 = vpop.f32.mrb[0].mxu0
    %v2554 = vadd.f32 %v2513, %v2553
    %v2555 = vpop.f32.mrb[0].mxu0
    %v2556 = vadd.f32 %v2515, %v2555
    %v2557 = vpop.f32.mrb[0].mxu0
    %v2558 = vpop.f32.mrb[0].mxu0
    %2559 = vdwg.mxu0
    %2560 = vmatprep.subr.bf16.mxu0 %v1969
    %2561 = vmatpush1.bf16.msra.mxu0 %v1968
    %2562 = vmatprep.subr.bf16.mxu0 %v1977
    %2563 = vmatpush1.bf16.msra.mxu0 %v1976
    %2564 = vmatprep.subr.bf16.mxu0 %v1985
    %2565 = vmatpush1.bf16.msra.mxu0 %v1984
    %2566 = vmatprep.subr.bf16.mxu0 %v1993
    %2567 = vmatpush1.bf16.msra.mxu0 %v1992
    %2568 = vmatprep.subr.bf16.mxu0 %v2001
    %2569 = vmatpush1.bf16.msra.mxu0 %v2000
    %2570 = vmatprep.subr.bf16.mxu0 %v2009
    %2571 = vmatpush1.bf16.msra.mxu0 %v2008
    %2572 = vmatprep.subr.bf16.mxu0 %v2017
    %2573 = vmatpush1.bf16.msra.mxu0 %v2016
    %2574 = vmatprep.subr.bf16.mxu0 %v2025
    %2575 = vmatpush1.bf16.msra.mxu0 %v2024
    %2576 = vmatprep.subr.bf16.mxu0 %v2033
    %2577 = vmatpush1.bf16.msra.mxu0 %v2032
    %2578 = vmatprep.subr.bf16.mxu0 %v2041
    %2579 = vmatpush1.bf16.msra.mxu0 %v2040
    %2580 = vmatprep.subr.bf16.mxu0 %v2049
    %2581 = vmatpush1.bf16.msra.mxu0 %v2048
    %2582 = vmatprep.subr.bf16.mxu0 %v2057
    %2583 = vmatpush1.bf16.msra.mxu0 %v2056
    %2584 = vmatprep.subr.bf16.mxu0 %v2065
    %2585 = vmatpush1.bf16.msra.mxu0 %v2064
    %2586 = vmatprep.subr.bf16.mxu0 %v2073
    %2587 = vmatpush1.bf16.msra.mxu0 %v2072
    %2588 = vmatprep.subr.bf16.mxu0 %v2081
    %2589 = vmatpush1.bf16.msra.mxu0 %v2080
    %2590 = vmatprep.subr.bf16.mxu0 %v2089
    %2591 = vmatpush1.bf16.msra.mxu0 %v2088
    %2592 = vmatprep.mubr.bf16.mxu0 %v897
    %2593 = vmatmul.mubr.bf16.gmra.mrb[0].mxu0 %v896
    %v2594 = vpop.f32.mrb[0].mxu0
    %v2595 = vadd.f32 %v1169, %v2594
    %v2596 = vpop.f32.mrb[0].mxu0
    %v2597 = vadd.f32 %v1173, %v2596
    %v2598 = vpop.f32.mrb[0].mxu0
    %v2599 = vpop.f32.mrb[0].mxu0
    %2600 = vdwg.mxu0
    %2601 = vmatprep.subr.bf16.mxu0 %v2097
    %2602 = vmatpush1.bf16.msra.mxu0 %v2096
    %2603 = vmatprep.subr.bf16.mxu0 %v2105
    %2604 = vmatpush1.bf16.msra.mxu0 %v2104
    %2605 = vmatprep.subr.bf16.mxu0 %v2113
    %2606 = vmatpush1.bf16.msra.mxu0 %v2112
    %2607 = vmatprep.subr.bf16.mxu0 %v2121
    %2608 = vmatpush1.bf16.msra.mxu0 %v2120
    %2609 = vmatprep.subr.bf16.mxu0 %v2129
    %2610 = vmatpush1.bf16.msra.mxu0 %v2128
    %2611 = vmatprep.subr.bf16.mxu0 %v2137
    %2612 = vmatpush1.bf16.msra.mxu0 %v2136
    %2613 = vmatprep.subr.bf16.mxu0 %v2145
    %2614 = vmatpush1.bf16.msra.mxu0 %v2144
    %2615 = vmatprep.subr.bf16.mxu0 %v2153
    %2616 = vmatpush1.bf16.msra.mxu0 %v2152
    %2617 = vmatprep.subr.bf16.mxu0 %v2161
    %2618 = vmatpush1.bf16.msra.mxu0 %v2160
    %2619 = vmatprep.subr.bf16.mxu0 %v2169
    %2620 = vmatpush1.bf16.msra.mxu0 %v2168
    %2621 = vmatprep.subr.bf16.mxu0 %v2177
    %2622 = vmatpush1.bf16.msra.mxu0 %v2176
    %2623 = vmatprep.subr.bf16.mxu0 %v2185
    %2624 = vmatpush1.bf16.msra.mxu0 %v2184
    %2625 = vmatprep.subr.bf16.mxu0 %v2193
    %2626 = vmatpush1.bf16.msra.mxu0 %v2192
    %2627 = vmatprep.subr.bf16.mxu0 %v2201
    %2628 = vmatpush1.bf16.msra.mxu0 %v2200
    %2629 = vmatprep.subr.bf16.mxu0 %v2209
    %2630 = vmatpush1.bf16.msra.mxu0 %v2208
    %2631 = vmatprep.subr.bf16.mxu0 %v2217
    %2632 = vmatpush1.bf16.msra.mxu0 %v2216
    %2633 = vmatprep.mubr.bf16.mxu0 %v899
    %2634 = vmatmul.mubr.bf16.gmra.mrb[0].mxu0 %v898
    %v2635 = vpop.f32.mrb[0].mxu0
    %v2636 = vadd.f32 %v2595, %v2635
    %v2637 = vpop.f32.mrb[0].mxu0
    %v2638 = vadd.f32 %v2597, %v2637
    %v2639 = vpop.f32.mrb[0].mxu0
    %v2640 = vpop.f32.mrb[0].mxu0
    %2641 = vdwg.mxu0
    %2642 = vmatprep.subr.bf16.mxu0 %v1971
    %2643 = vmatpush1.bf16.msra.mxu0 %v1970
    %2644 = vmatprep.subr.bf16.mxu0 %v1979
    %2645 = vmatpush1.bf16.msra.mxu0 %v1978
    %2646 = vmatprep.subr.bf16.mxu0 %v1987
    %2647 = vmatpush1.bf16.msra.mxu0 %v1986
    %2648 = vmatprep.subr.bf16.mxu0 %v1995
    %2649 = vmatpush1.bf16.msra.mxu0 %v1994
    %2650 = vmatprep.subr.bf16.mxu0 %v2003
    %2651 = vmatpush1.bf16.msra.mxu0 %v2002
    %2652 = vmatprep.subr.bf16.mxu0 %v2011
    %2653 = vmatpush1.bf16.msra.mxu0 %v2010
    %2654 = vmatprep.subr.bf16.mxu0 %v2019
    %2655 = vmatpush1.bf16.msra.mxu0 %v2018
    %2656 = vmatprep.subr.bf16.mxu0 %v2027
    %2657 = vmatpush1.bf16.msra.mxu0 %v2026
    %2658 = vmatprep.subr.bf16.mxu0 %v2035
    %2659 = vmatpush1.bf16.msra.mxu0 %v2034
    %2660 = vmatprep.subr.bf16.mxu0 %v2043
    %2661 = vmatpush1.bf16.msra.mxu0 %v2042
    %2662 = vmatprep.subr.bf16.mxu0 %v2051
    %2663 = vmatpush1.bf16.msra.mxu0 %v2050
    %2664 = vmatprep.subr.bf16.mxu0 %v2059
    %2665 = vmatpush1.bf16.msra.mxu0 %v2058
    %2666 = vmatprep.subr.bf16.mxu0 %v2067
    %2667 = vmatpush1.bf16.msra.mxu0 %v2066
    %2668 = vmatprep.subr.bf16.mxu0 %v2075
    %2669 = vmatpush1.bf16.msra.mxu0 %v2074
    %2670 = vmatprep.subr.bf16.mxu0 %v2083
    %2671 = vmatpush1.bf16.msra.mxu0 %v2082
    %2672 = vmatprep.subr.bf16.mxu0 %v2091
    %2673 = vmatpush1.bf16.msra.mxu0 %v2090
    %2674 = vmatprep.mubr.bf16.mxu0 %v897
    %2675 = vmatmul.mubr.bf16.gmra.mrb[0].mxu0 %v896
    %v2676 = vpop.f32.mrb[0].mxu0
    %v2677 = vadd.f32 %v1177, %v2676
    %v2678 = vpop.f32.mrb[0].mxu0
    %v2679 = vadd.f32 %v1181, %v2678
    %v2680 = vpop.f32.mrb[0].mxu0
    %v2681 = vpop.f32.mrb[0].mxu0
    %2682 = vdwg.mxu0
    %2683 = vmatprep.subr.bf16.mxu0 %v2099
    %2684 = vmatpush1.bf16.msra.mxu0 %v2098
    %2685 = vmatprep.subr.bf16.mxu0 %v2107
    %2686 = vmatpush1.bf16.msra.mxu0 %v2106
    %2687 = vmatprep.subr.bf16.mxu0 %v2115
    %2688 = vmatpush1.bf16.msra.mxu0 %v2114
    %2689 = vmatprep.subr.bf16.mxu0 %v2123
    %2690 = vmatpush1.bf16.msra.mxu0 %v2122
    %2691 = vmatprep.subr.bf16.mxu0 %v2131
    %2692 = vmatpush1.bf16.msra.mxu0 %v2130
    %2693 = vmatprep.subr.bf16.mxu0 %v2139
    %2694 = vmatpush1.bf16.msra.mxu0 %v2138
    %2695 = vmatprep.subr.bf16.mxu0 %v2147
    %2696 = vmatpush1.bf16.msra.mxu0 %v2146
    %2697 = vmatprep.subr.bf16.mxu0 %v2155
    %2698 = vmatpush1.bf16.msra.mxu0 %v2154
    %2699 = vmatprep.subr.bf16.mxu0 %v2163
    %2700 = vmatpush1.bf16.msra.mxu0 %v2162
    %2701 = vmatprep.subr.bf16.mxu0 %v2171
    %2702 = vmatpush1.bf16.msra.mxu0 %v2170
    %2703 = vmatprep.subr.bf16.mxu0 %v2179
    %2704 = vmatpush1.bf16.msra.mxu0 %v2178
    %2705 = vmatprep.subr.bf16.mxu0 %v2187
    %2706 = vmatpush1.bf16.msra.mxu0 %v2186
    %2707 = vmatprep.subr.bf16.mxu0 %v2195
    %2708 = vmatpush1.bf16.msra.mxu0 %v2194
    %2709 = vmatprep.subr.bf16.mxu0 %v2203
    %2710 = vmatpush1.bf16.msra.mxu0 %v2202
    %2711 = vmatprep.subr.bf16.mxu0 %v2211
    %2712 = vmatpush1.bf16.msra.mxu0 %v2210
    %2713 = vmatprep.subr.bf16.mxu0 %v2219
    %2714 = vmatpush1.bf16.msra.mxu0 %v2218
    %2715 = vmatprep.mubr.bf16.mxu0 %v899
    %2716 = vmatmul.mubr.bf16.gmra.mrb[0].mxu0 %v898
    %v2717 = vpop.f32.mrb[0].mxu0
    %v2718 = vadd.f32 %v2677, %v2717
    %v2719 = vpop.f32.mrb[0].mxu0
    %v2720 = vadd.f32 %v2679, %v2719
    %v2721 = vpop.f32.mrb[0].mxu0
    %v2722 = vpop.f32.mrb[0].mxu0
    %2723 = vdwg.mxu0
    %2724 = vmatprep.subr.bf16.mxu0 %v1973
    %2725 = vmatpush1.bf16.msra.mxu0 %v1972
    %2726 = vmatprep.subr.bf16.mxu0 %v1981
    %2727 = vmatpush1.bf16.msra.mxu0 %v1980
    %2728 = vmatprep.subr.bf16.mxu0 %v1989
    %2729 = vmatpush1.bf16.msra.mxu0 %v1988
    %2730 = vmatprep.subr.bf16.mxu0 %v1997
    %2731 = vmatpush1.bf16.msra.mxu0 %v1996
    %2732 = vmatprep.subr.bf16.mxu0 %v2005
    %2733 = vmatpush1.bf16.msra.mxu0 %v2004
    %2734 = vmatprep.subr.bf16.mxu0 %v2013
    %2735 = vmatpush1.bf16.msra.mxu0 %v2012
    %2736 = vmatprep.subr.bf16.mxu0 %v2021
    %2737 = vmatpush1.bf16.msra.mxu0 %v2020
    %2738 = vmatprep.subr.bf16.mxu0 %v2029
    %2739 = vmatpush1.bf16.msra.mxu0 %v2028
    %2740 = vmatprep.subr.bf16.mxu0 %v2037
    %2741 = vmatpush1.bf16.msra.mxu0 %v2036
    %2742 = vmatprep.subr.bf16.mxu0 %v2045
    %2743 = vmatpush1.bf16.msra.mxu0 %v2044
    %2744 = vmatprep.subr.bf16.mxu0 %v2053
    %2745 = vmatpush1.bf16.msra.mxu0 %v2052
    %2746 = vmatprep.subr.bf16.mxu0 %v2061
    %2747 = vmatpush1.bf16.msra.mxu0 %v2060
    %2748 = vmatprep.subr.bf16.mxu0 %v2069
    %2749 = vmatpush1.bf16.msra.mxu0 %v2068
    %2750 = vmatprep.subr.bf16.mxu0 %v2077
    %2751 = vmatpush1.bf16.msra.mxu0 %v2076
    %2752 = vmatprep.subr.bf16.mxu0 %v2085
    %2753 = vmatpush1.bf16.msra.mxu0 %v2084
    %2754 = vmatprep.subr.bf16.mxu0 %v2093
    %2755 = vmatpush1.bf16.msra.mxu0 %v2092
    %2756 = vmatprep.mubr.bf16.mxu0 %v897
    %2757 = vmatmul.mubr.bf16.gmra.mrb[0].mxu0 %v896
    %v2758 = vpop.f32.mrb[0].mxu0
    %v2759 = vadd.f32 %v1185, %v2758
    %v2760 = vpop.f32.mrb[0].mxu0
    %v2761 = vadd.f32 %v1189, %v2760
    %v2762 = vpop.f32.mrb[0].mxu0
    %v2763 = vpop.f32.mrb[0].mxu0
    %2764 = vdwg.mxu0
    %2765 = vmatprep.subr.bf16.mxu0 %v2101
    %2766 = vmatpush1.bf16.msra.mxu0 %v2100
    %2767 = vmatprep.subr.bf16.mxu0 %v2109
    %2768 = vmatpush1.bf16.msra.mxu0 %v2108
    %2769 = vmatprep.subr.bf16.mxu0 %v2117
    %2770 = vmatpush1.bf16.msra.mxu0 %v2116
    %2771 = vmatprep.subr.bf16.mxu0 %v2125
    %2772 = vmatpush1.bf16.msra.mxu0 %v2124
    %2773 = vmatprep.subr.bf16.mxu0 %v2133
    %2774 = vmatpush1.bf16.msra.mxu0 %v2132
    %2775 = vmatprep.subr.bf16.mxu0 %v2141
    %2776 = vmatpush1.bf16.msra.mxu0 %v2140
    %2777 = vmatprep.subr.bf16.mxu0 %v2149
    %2778 = vmatpush1.bf16.msra.mxu0 %v2148
    %2779 = vmatprep.subr.bf16.mxu0 %v2157
    %2780 = vmatpush1.bf16.msra.mxu0 %v2156
    %2781 = vmatprep.subr.bf16.mxu0 %v2165
    %2782 = vmatpush1.bf16.msra.mxu0 %v2164
    %2783 = vmatprep.subr.bf16.mxu0 %v2173
    %2784 = vmatpush1.bf16.msra.mxu0 %v2172
    %2785 = vmatprep.subr.bf16.mxu0 %v2181
    %2786 = vmatpush1.bf16.msra.mxu0 %v2180
    %2787 = vmatprep.subr.bf16.mxu0 %v2189
    %2788 = vmatpush1.bf16.msra.mxu0 %v2188
    %2789 = vmatprep.subr.bf16.mxu0 %v2197
    %2790 = vmatpush1.bf16.msra.mxu0 %v2196
    %2791 = vmatprep.subr.bf16.mxu0 %v2205
    %2792 = vmatpush1.bf16.msra.mxu0 %v2204
    %2793 = vmatprep.subr.bf16.mxu0 %v2213
    %2794 = vmatpush1.bf16.msra.mxu0 %v2212
    %2795 = vmatprep.subr.bf16.mxu0 %v2221
    %2796 = vmatpush1.bf16.msra.mxu0 %v2220
    %2797 = vmatprep.mubr.bf16.mxu0 %v899
    %2798 = vmatmul.mubr.bf16.gmra.mrb[0].mxu0 %v898
    %v2799 = vpop.f32.mrb[0].mxu0
    %v2800 = vadd.f32 %v2759, %v2799
    %v2801 = vpop.f32.mrb[0].mxu0
    %v2802 = vadd.f32 %v2761, %v2801
    %v2803 = vpop.f32.mrb[0].mxu0
    %v2804 = vpop.f32.mrb[0].mxu0
    %2805 = vdwg.mxu0
    %v2806 = vpack.c.bf16 %v2554, %v2554
    %v2807 = vpack.c.bf16 %v2556, %v2556
    %v2808 = vpack.c.bf16 %v2636, %v2636
    %v2809 = vpack.c.bf16 %v2638, %v2638
    %v2810 = vpack.c.bf16 %v2718, %v2718
    %v2811 = vpack.c.bf16 %v2720, %v2720
    %v2812 = vpack.c.bf16 %v2800, %v2800
    %v2813 = vpack.c.bf16 %v2802, %v2802
    %vm2814 = vcmp.gt.bf16.partialorder %v2806, 0
    %vm2815 = vcmp.gt.bf16.partialorder %v2807, 0
    %vm2816 = vcmp.gt.bf16.partialorder %v2808, 0
    %vm2817 = vcmp.gt.bf16.partialorder %v2809, 0
    %vm2818 = vcmp.gt.bf16.partialorder %v2810, 0
    %vm2819 = vcmp.gt.bf16.partialorder %v2811, 0
    %vm2820 = vcmp.gt.bf16.partialorder %v2812, 0
    %vm2821 = vcmp.gt.bf16.partialorder %v2813, 0
    %v2822 = vmul.bf16 %v2806, 1045249613
    %v2823 = vmul.bf16 %v2807, 1045249613
    %v2824 = vmul.bf16 %v2808, 1045249613
    %v2825 = vmul.bf16 %v2809, 1045249613
    %v2826 = vmul.bf16 %v2810, 1045249613
    %v2827 = vmul.bf16 %v2811, 1045249613
    %v2828 = vmul.bf16 %v2812, 1045249613
    %v2829 = vmul.bf16 %v2813, 1045249613
    %v2830 = vsel %vm2814, %v2806, %v2822
    %v2831 = vsel %vm2815, %v2807, %v2823
    %v2832 = vsel %vm2816, %v2808, %v2824
    %v2833 = vsel %vm2817, %v2809, %v2825
    %v2834 = vsel %vm2818, %v2810, %v2826
    %v2835 = vsel %vm2819, %v2811, %v2827
    %v2836 = vsel %vm2820, %v2812, %v2828
    %v2837 = vsel %vm2821, %v2813, %v2829
    %v2838 = vld [vmem:[#allocation12] sm:$0xff]
    %v2839 = vld [vmem:[#allocation12 + $0x8] sm:$0xff]
    %v2840 = vld [vmem:[#allocation12 + $0x10] sm:$0xff]
    %v2841 = vld [vmem:[#allocation12 + $0x18] sm:$0xf]
    %v2842 = vld [vmem:[#allocation12 + $0x1c] sm:$0xff]
    %v2843 = vld [vmem:[#allocation12 + $0x24] sm:$0xff]
    %v2844 = vld [vmem:[#allocation12 + $0x2c] sm:$0xff]
    %v2845 = vld [vmem:[#allocation12 + $0x34] sm:$0xf]
    %v2846 = vld [vmem:[#allocation12 + $0x38] sm:$0xff]
    %v2847 = vld [vmem:[#allocation12 + $0x40] sm:$0xff]
    %v2848 = vld [vmem:[#allocation12 + $0x48] sm:$0xff]
    %v2849 = vld [vmem:[#allocation12 + $0x50] sm:$0xf]
    %v2850 = vld [vmem:[#allocation12 + $0x54] sm:$0xff]
    %v2851 = vld [vmem:[#allocation12 + $0x5c] sm:$0xff]
    %v2852 = vld [vmem:[#allocation12 + $0x64] sm:$0xff]
    %v2853 = vld [vmem:[#allocation12 + $0x6c] sm:$0xf]
    %v2854 = vld [vmem:[#allocation12 + $0x70] sm:$0xff]
    %v2855 = vld [vmem:[#allocation12 + $0x78] sm:$0xff]
    %v2856 = vld [vmem:[#allocation12 + $0x80] sm:$0xff]
    %v2857 = vld [vmem:[#allocation12 + $0x88] sm:$0xf]
    %v2858 = vld [vmem:[#allocation12 + $0x8c] sm:$0xff]
    %v2859 = vld [vmem:[#allocation12 + $0x94] sm:$0xff]
    %v2860 = vld [vmem:[#allocation12 + $0x9c] sm:$0xff]
    %v2861 = vld [vmem:[#allocation12 + $0xa4] sm:$0xf]
    %v2862 = vld [vmem:[#allocation12 + $0xa8] sm:$0xff]
    %v2863 = vld [vmem:[#allocation12 + $0xb0] sm:$0xff]
    %v2864 = vld [vmem:[#allocation12 + $0xb8] sm:$0xff]
    %v2865 = vld [vmem:[#allocation12 + $0xc0] sm:$0xf]
    %v2866 = vld [vmem:[#allocation12 + $0xc4] sm:$0xff]
    %v2867 = vld [vmem:[#allocation12 + $0xcc] sm:$0xff]
    %v2868 = vld [vmem:[#allocation12 + $0xd4] sm:$0xff]
    %v2869 = vld [vmem:[#allocation12 + $0xdc] sm:$0xf]
    %v2870 = vld [vmem:[#allocation12 + $0xe0] sm:$0xff]
    %v2871 = vld [vmem:[#allocation12 + $0xe8] sm:$0xff]
    %v2872 = vld [vmem:[#allocation12 + $0xf0] sm:$0xff]
    %v2873 = vld [vmem:[#allocation12 + $0xf8] sm:$0xf]
    %v2874 = vld [vmem:[#allocation12 + $0xfc] sm:$0xff]
    %v2875 = vld [vmem:[#allocation12 + $0x104] sm:$0xff]
    %v2876 = vld [vmem:[#allocation12 + $0x10c] sm:$0xff]
    %v2877 = vld [vmem:[#allocation12 + $0x114] sm:$0xf]
    %v2878 = vld [vmem:[#allocation12 + $0x118] sm:$0xff]
    %v2879 = vld [vmem:[#allocation12 + $0x120] sm:$0xff]
    %v2880 = vld [vmem:[#allocation12 + $0x128] sm:$0xff]
    %v2881 = vld [vmem:[#allocation12 + $0x130] sm:$0xf]
    %v2882 = vld [vmem:[#allocation12 + $0x134] sm:$0xff]
    %v2883 = vld [vmem:[#allocation12 + $0x13c] sm:$0xff]
    %v2884 = vld [vmem:[#allocation12 + $0x144] sm:$0xff]
    %v2885 = vld [vmem:[#allocation12 + $0x14c] sm:$0xf]
    %v2886 = vld [vmem:[#allocation12 + $0x150] sm:$0xff]
    %v2887 = vld [vmem:[#allocation12 + $0x158] sm:$0xff]
    %v2888 = vld [vmem:[#allocation12 + $0x160] sm:$0xff]
    %v2889 = vld [vmem:[#allocation12 + $0x168] sm:$0xf]
    %v2890 = vld [vmem:[#allocation12 + $0x16c] sm:$0xff]
    %v2891 = vld [vmem:[#allocation12 + $0x174] sm:$0xff]
    %v2892 = vld [vmem:[#allocation12 + $0x17c] sm:$0xff]
    %v2893 = vld [vmem:[#allocation12 + $0x184] sm:$0xf]
    %v2894 = vld [vmem:[#allocation12 + $0x188] sm:$0xff]
    %v2895 = vld [vmem:[#allocation12 + $0x190] sm:$0xff]
    %v2896 = vld [vmem:[#allocation12 + $0x198] sm:$0xff]
    %v2897 = vld [vmem:[#allocation12 + $0x1a0] sm:$0xf]
    %v2898 = vld [vmem:[#allocation12 + $0x1a4] sm:$0xff]
    %v2899 = vld [vmem:[#allocation12 + $0x1ac] sm:$0xff]
    %v2900 = vld [vmem:[#allocation12 + $0x1b4] sm:$0xff]
    %v2901 = vld [vmem:[#allocation12 + $0x1bc] sm:$0xf]
    %v2902 = vld [vmem:[#allocation12 + $0x1c0] sm:$0xff]
    %v2903 = vld [vmem:[#allocation12 + $0x1c8] sm:$0xff]
    %v2904 = vld [vmem:[#allocation12 + $0x1d0] sm:$0xff]
    %v2905 = vld [vmem:[#allocation12 + $0x1d8] sm:$0xf]
    %v2906 = vld [vmem:[#allocation12 + $0x1dc] sm:$0xff]
    %v2907 = vld [vmem:[#allocation12 + $0x1e4] sm:$0xff]
    %v2908 = vld [vmem:[#allocation12 + $0x1ec] sm:$0xff]
    %v2909 = vld [vmem:[#allocation12 + $0x1f4] sm:$0xf]
    %v2910 = vld [vmem:[#allocation12 + $0x1f8] sm:$0xff]
    %v2911 = vld [vmem:[#allocation12 + $0x200] sm:$0xff]
    %v2912 = vld [vmem:[#allocation12 + $0x208] sm:$0xff]
    %v2913 = vld [vmem:[#allocation12 + $0x210] sm:$0xf]
    %v2914 = vld [vmem:[#allocation12 + $0x214] sm:$0xff]
    %v2915 = vld [vmem:[#allocation12 + $0x21c] sm:$0xff]
    %v2916 = vld [vmem:[#allocation12 + $0x224] sm:$0xff]
    %v2917 = vld [vmem:[#allocation12 + $0x22c] sm:$0xf]
    %v2918 = vld [vmem:[#allocation12 + $0x230] sm:$0xff]
    %v2919 = vld [vmem:[#allocation12 + $0x238] sm:$0xff]
    %v2920 = vld [vmem:[#allocation12 + $0x240] sm:$0xff]
    %v2921 = vld [vmem:[#allocation12 + $0x248] sm:$0xf]
    %v2922 = vld [vmem:[#allocation12 + $0x24c] sm:$0xff]
    %v2923 = vld [vmem:[#allocation12 + $0x254] sm:$0xff]
    %v2924 = vld [vmem:[#allocation12 + $0x25c] sm:$0xff]
    %v2925 = vld [vmem:[#allocation12 + $0x264] sm:$0xf]
    %v2926 = vld [vmem:[#allocation12 + $0x268] sm:$0xff]
    %v2927 = vld [vmem:[#allocation12 + $0x270] sm:$0xff]
    %v2928 = vld [vmem:[#allocation12 + $0x278] sm:$0xff]
    %v2929 = vld [vmem:[#allocation12 + $0x280] sm:$0xf]
    %v2930 = vld [vmem:[#allocation12 + $0x284] sm:$0xff]
    %v2931 = vld [vmem:[#allocation12 + $0x28c] sm:$0xff]
    %v2932 = vld [vmem:[#allocation12 + $0x294] sm:$0xff]
    %v2933 = vld [vmem:[#allocation12 + $0x29c] sm:$0xf]
    %v2934 = vld [vmem:[#allocation12 + $0x2a0] sm:$0xff]
    %v2935 = vld [vmem:[#allocation12 + $0x2a8] sm:$0xff]
    %v2936 = vld [vmem:[#allocation12 + $0x2b0] sm:$0xff]
    %v2937 = vld [vmem:[#allocation12 + $0x2b8] sm:$0xf]
    %v2938 = vld [vmem:[#allocation12 + $0x2bc] sm:$0xff]
    %v2939 = vld [vmem:[#allocation12 + $0x2c4] sm:$0xff]
    %v2940 = vld [vmem:[#allocation12 + $0x2cc] sm:$0xff]
    %v2941 = vld [vmem:[#allocation12 + $0x2d4] sm:$0xf]
    %v2942 = vld [vmem:[#allocation12 + $0x2d8] sm:$0xff]
    %v2943 = vld [vmem:[#allocation12 + $0x2e0] sm:$0xff]
    %v2944 = vld [vmem:[#allocation12 + $0x2e8] sm:$0xff]
    %v2945 = vld [vmem:[#allocation12 + $0x2f0] sm:$0xf]
    %v2946 = vld [vmem:[#allocation12 + $0x2f4] sm:$0xff]
    %v2947 = vld [vmem:[#allocation12 + $0x2fc] sm:$0xff]
    %v2948 = vld [vmem:[#allocation12 + $0x304] sm:$0xff]
    %v2949 = vld [vmem:[#allocation12 + $0x30c] sm:$0xf]
    %v2950 = vld [vmem:[#allocation12 + $0x310] sm:$0xff]
    %v2951 = vld [vmem:[#allocation12 + $0x318] sm:$0xff]
    %v2952 = vld [vmem:[#allocation12 + $0x320] sm:$0xff]
    %v2953 = vld [vmem:[#allocation12 + $0x328] sm:$0xf]
    %v2954 = vld [vmem:[#allocation12 + $0x32c] sm:$0xff]
    %v2955 = vld [vmem:[#allocation12 + $0x334] sm:$0xff]
    %v2956 = vld [vmem:[#allocation12 + $0x33c] sm:$0xff]
    %v2957 = vld [vmem:[#allocation12 + $0x344] sm:$0xf]
    %v2958 = vld [vmem:[#allocation12 + $0x348] sm:$0xff]
    %v2959 = vld [vmem:[#allocation12 + $0x350] sm:$0xff]
    %v2960 = vld [vmem:[#allocation12 + $0x358] sm:$0xff]
    %v2961 = vld [vmem:[#allocation12 + $0x360] sm:$0xf]
    %v2962 = vld [vmem:[#allocation12 + $0x364] sm:$0xff]
    %v2963 = vld [vmem:[#allocation12 + $0x36c] sm:$0xff]
    %v2964 = vld [vmem:[#allocation12 + $0x374] sm:$0xff]
    %v2965 = vld [vmem:[#allocation12 + $0x37c] sm:$0xf]
    %v2966 = vld [vmem:[#allocation12 + $0x380] sm:$0xff]
    %v2967 = vld [vmem:[#allocation12 + $0x388] sm:$0xff]
    %v2968 = vld [vmem:[#allocation12 + $0x390] sm:$0xff]
    %v2969 = vld [vmem:[#allocation12 + $0x398] sm:$0xf]
    %v2970 = vld [vmem:[#allocation12 + $0x39c] sm:$0xff]
    %v2971 = vld [vmem:[#allocation12 + $0x3a4] sm:$0xff]
    %v2972 = vld [vmem:[#allocation12 + $0x3ac] sm:$0xff]
    %v2973 = vld [vmem:[#allocation12 + $0x3b4] sm:$0xf]
    %v2974 = vld [vmem:[#allocation12 + $0x3b8] sm:$0xff]
    %v2975 = vld [vmem:[#allocation12 + $0x3c0] sm:$0xff]
    %v2976 = vld [vmem:[#allocation12 + $0x3c8] sm:$0xff]
    %v2977 = vld [vmem:[#allocation12 + $0x3d0] sm:$0xf]
    %v2978 = vld [vmem:[#allocation12 + $0x3d4] sm:$0xff]
    %v2979 = vld [vmem:[#allocation12 + $0x3dc] sm:$0xff]
    %v2980 = vld [vmem:[#allocation12 + $0x3e4] sm:$0xff]
    %v2981 = vld [vmem:[#allocation12 + $0x3ec] sm:$0xf]
    %v2982 = vld [vmem:[#allocation12 + $0x3f0] sm:$0xff]
    %v2983 = vld [vmem:[#allocation12 + $0x3f8] sm:$0xff]
    %v2984 = vld [vmem:[#allocation12 + $0x400] sm:$0xff]
    %v2985 = vld [vmem:[#allocation12 + $0x408] sm:$0xf]
    %v2986 = vld [vmem:[#allocation12 + $0x40c] sm:$0xff]
    %v2987 = vld [vmem:[#allocation12 + $0x414] sm:$0xff]
    %v2988 = vld [vmem:[#allocation12 + $0x41c] sm:$0xff]
    %v2989 = vld [vmem:[#allocation12 + $0x424] sm:$0xf]
    %v2990 = vld [vmem:[#allocation12 + $0x428] sm:$0xff]
    %v2991 = vld [vmem:[#allocation12 + $0x430] sm:$0xff]
    %v2992 = vld [vmem:[#allocation12 + $0x438] sm:$0xff]
    %v2993 = vld [vmem:[#allocation12 + $0x440] sm:$0xf]
    %v2994 = vld [vmem:[#allocation12 + $0x444] sm:$0xff]
    %v2995 = vld [vmem:[#allocation12 + $0x44c] sm:$0xff]
    %v2996 = vld [vmem:[#allocation12 + $0x454] sm:$0xff]
    %v2997 = vld [vmem:[#allocation12 + $0x45c] sm:$0xf]
    %v2998 = vld [vmem:[#allocation12 + $0x460] sm:$0xff]
    %v2999 = vld [vmem:[#allocation12 + $0x468] sm:$0xff]
    %v3000 = vld [vmem:[#allocation12 + $0x470] sm:$0xff]
    %v3001 = vld [vmem:[#allocation12 + $0x478] sm:$0xf]
    %v3002 = vld [vmem:[#allocation12 + $0x47c] sm:$0xff]
    %v3003 = vld [vmem:[#allocation12 + $0x484] sm:$0xff]
    %v3004 = vld [vmem:[#allocation12 + $0x48c] sm:$0xff]
    %v3005 = vld [vmem:[#allocation12 + $0x494] sm:$0xf]
    %v3006 = vld [vmem:[#allocation12 + $0x498] sm:$0xff]
    %v3007 = vld [vmem:[#allocation12 + $0x4a0] sm:$0xff]
    %v3008 = vld [vmem:[#allocation12 + $0x4a8] sm:$0xff]
    %v3009 = vld [vmem:[#allocation12 + $0x4b0] sm:$0xf]
    %v3010 = vld [vmem:[#allocation12 + $0x4b4] sm:$0xff]
    %v3011 = vld [vmem:[#allocation12 + $0x4bc] sm:$0xff]
    %v3012 = vld [vmem:[#allocation12 + $0x4c4] sm:$0xff]
    %v3013 = vld [vmem:[#allocation12 + $0x4cc] sm:$0xf]
    %v3014 = vld [vmem:[#allocation12 + $0x4d0] sm:$0xff]
    %v3015 = vld [vmem:[#allocation12 + $0x4d8] sm:$0xff]
    %v3016 = vld [vmem:[#allocation12 + $0x4e0] sm:$0xff]
    %v3017 = vld [vmem:[#allocation12 + $0x4e8] sm:$0xf]
    %v3018 = vld [vmem:[#allocation12 + $0x4ec] sm:$0xff]
    %v3019 = vld [vmem:[#allocation12 + $0x4f4] sm:$0xff]
    %v3020 = vld [vmem:[#allocation12 + $0x4fc] sm:$0xff]
    %v3021 = vld [vmem:[#allocation12 + $0x504] sm:$0xf]
    %v3022 = vld [vmem:[#allocation12 + $0x508] sm:$0xff]
    %v3023 = vld [vmem:[#allocation12 + $0x510] sm:$0xff]
    %v3024 = vld [vmem:[#allocation12 + $0x518] sm:$0xff]
    %v3025 = vld [vmem:[#allocation12 + $0x520] sm:$0xf]
    %v3026 = vld [vmem:[#allocation12 + $0x524] sm:$0xff]
    %v3027 = vld [vmem:[#allocation12 + $0x52c] sm:$0xff]
    %v3028 = vld [vmem:[#allocation12 + $0x534] sm:$0xff]
    %v3029 = vld [vmem:[#allocation12 + $0x53c] sm:$0xf]
    %v3030 = vld [vmem:[#allocation12 + $0x540] sm:$0xff]
    %v3031 = vld [vmem:[#allocation12 + $0x548] sm:$0xff]
    %v3032 = vld [vmem:[#allocation12 + $0x550] sm:$0xff]
    %v3033 = vld [vmem:[#allocation12 + $0x558] sm:$0xf]
    %v3034 = vld [vmem:[#allocation12 + $0x55c] sm:$0xff]
    %v3035 = vld [vmem:[#allocation12 + $0x564] sm:$0xff]
    %v3036 = vld [vmem:[#allocation12 + $0x56c] sm:$0xff]
    %v3037 = vld [vmem:[#allocation12 + $0x574] sm:$0xf]
    %v3038 = vld [vmem:[#allocation12 + $0x578] sm:$0xff]
    %v3039 = vld [vmem:[#allocation12 + $0x580] sm:$0xff]
    %v3040 = vld [vmem:[#allocation12 + $0x588] sm:$0xff]
    %v3041 = vld [vmem:[#allocation12 + $0x590] sm:$0xf]
    %v3042 = vld [vmem:[#allocation12 + $0x594] sm:$0xff]
    %v3043 = vld [vmem:[#allocation12 + $0x59c] sm:$0xff]
    %v3044 = vld [vmem:[#allocation12 + $0x5a4] sm:$0xff]
    %v3045 = vld [vmem:[#allocation12 + $0x5ac] sm:$0xf]
    %v3046 = vld [vmem:[#allocation12 + $0x5b0] sm:$0xff]
    %v3047 = vld [vmem:[#allocation12 + $0x5b8] sm:$0xff]
    %v3048 = vld [vmem:[#allocation12 + $0x5c0] sm:$0xff]
    %v3049 = vld [vmem:[#allocation12 + $0x5c8] sm:$0xf]
    %v3050 = vld [vmem:[#allocation12 + $0x5cc] sm:$0xff]
    %v3051 = vld [vmem:[#allocation12 + $0x5d4] sm:$0xff]
    %v3052 = vld [vmem:[#allocation12 + $0x5dc] sm:$0xff]
    %v3053 = vld [vmem:[#allocation12 + $0x5e4] sm:$0xf]
    %v3054 = vld [vmem:[#allocation12 + $0x5e8] sm:$0xff]
    %v3055 = vld [vmem:[#allocation12 + $0x5f0] sm:$0xff]
    %v3056 = vld [vmem:[#allocation12 + $0x5f8] sm:$0xff]
    %v3057 = vld [vmem:[#allocation12 + $0x600] sm:$0xf]
    %v3058 = vld [vmem:[#allocation12 + $0x604] sm:$0xff]
    %v3059 = vld [vmem:[#allocation12 + $0x60c] sm:$0xff]
    %v3060 = vld [vmem:[#allocation12 + $0x614] sm:$0xff]
    %v3061 = vld [vmem:[#allocation12 + $0x61c] sm:$0xf]
    %v3062 = vld [vmem:[#allocation12 + $0x620] sm:$0xff]
    %v3063 = vld [vmem:[#allocation12 + $0x628] sm:$0xff]
    %v3064 = vld [vmem:[#allocation12 + $0x630] sm:$0xff]
    %v3065 = vld [vmem:[#allocation12 + $0x638] sm:$0xf]
    %v3066 = vld [vmem:[#allocation12 + $0x63c] sm:$0xff]
    %v3067 = vld [vmem:[#allocation12 + $0x644] sm:$0xff]
    %v3068 = vld [vmem:[#allocation12 + $0x64c] sm:$0xff]
    %v3069 = vld [vmem:[#allocation12 + $0x654] sm:$0xf]
    %v3070 = vld [vmem:[#allocation12 + $0x658] sm:$0xff]
    %v3071 = vld [vmem:[#allocation12 + $0x660] sm:$0xff]
    %v3072 = vld [vmem:[#allocation12 + $0x668] sm:$0xff]
    %v3073 = vld [vmem:[#allocation12 + $0x670] sm:$0xf]
    %v3074 = vld [vmem:[#allocation12 + $0x674] sm:$0xff]
    %v3075 = vld [vmem:[#allocation12 + $0x67c] sm:$0xff]
    %v3076 = vld [vmem:[#allocation12 + $0x684] sm:$0xff]
    %v3077 = vld [vmem:[#allocation12 + $0x68c] sm:$0xf]
    %v3078 = vld [vmem:[#allocation12 + $0x690] sm:$0xff]
    %v3079 = vld [vmem:[#allocation12 + $0x698] sm:$0xff]
    %v3080 = vld [vmem:[#allocation12 + $0x6a0] sm:$0xff]
    %v3081 = vld [vmem:[#allocation12 + $0x6a8] sm:$0xf]
    %v3082 = vld [vmem:[#allocation12 + $0x6ac] sm:$0xff]
    %v3083 = vld [vmem:[#allocation12 + $0x6b4] sm:$0xff]
    %v3084 = vld [vmem:[#allocation12 + $0x6bc] sm:$0xff]
    %v3085 = vld [vmem:[#allocation12 + $0x6c4] sm:$0xf]
    %v3086 = vld [vmem:[#allocation12 + $0x6c8] sm:$0xff]
    %v3087 = vld [vmem:[#allocation12 + $0x6d0] sm:$0xff]
    %v3088 = vld [vmem:[#allocation12 + $0x6d8] sm:$0xff]
    %v3089 = vld [vmem:[#allocation12 + $0x6e0] sm:$0xf]
    %v3090 = vld [vmem:[#allocation12 + $0x6e4] sm:$0xff]
    %v3091 = vld [vmem:[#allocation12 + $0x6ec] sm:$0xff]
    %v3092 = vld [vmem:[#allocation12 + $0x6f4] sm:$0xff]
    %v3093 = vld [vmem:[#allocation12 + $0x6fc] sm:$0xf]
    %v3094 = vld [vmem:[#allocation12 + $0x700] sm:$0xff]
    %v3095 = vld [vmem:[#allocation12 + $0x708] sm:$0xff]
    %v3096 = vld [vmem:[#allocation12 + $0x710] sm:$0xff]
    %v3097 = vld [vmem:[#allocation12 + $0x718] sm:$0xf]
    %v3098 = vld [vmem:[#allocation12 + $0x71c] sm:$0xff]
    %v3099 = vld [vmem:[#allocation12 + $0x724] sm:$0xff]
    %v3100 = vld [vmem:[#allocation12 + $0x72c] sm:$0xff]
    %v3101 = vld [vmem:[#allocation12 + $0x734] sm:$0xf]
    %v3102 = vld [vmem:[#allocation12 + $0x738] sm:$0xff]
    %v3103 = vld [vmem:[#allocation12 + $0x740] sm:$0xff]
    %v3104 = vld [vmem:[#allocation12 + $0x748] sm:$0xff]
    %v3105 = vld [vmem:[#allocation12 + $0x750] sm:$0xf]
    %v3106 = vld [vmem:[#allocation12 + $0x754] sm:$0xff]
    %v3107 = vld [vmem:[#allocation12 + $0x75c] sm:$0xff]
    %v3108 = vld [vmem:[#allocation12 + $0x764] sm:$0xff]
    %v3109 = vld [vmem:[#allocation12 + $0x76c] sm:$0xf]
    %v3110 = vld [vmem:[#allocation12 + $0x770] sm:$0xff]
    %v3111 = vld [vmem:[#allocation12 + $0x778] sm:$0xff]
    %v3112 = vld [vmem:[#allocation12 + $0x780] sm:$0xff]
    %v3113 = vld [vmem:[#allocation12 + $0x788] sm:$0xf]
    %v3114 = vld [vmem:[#allocation12 + $0x78c] sm:$0xff]
    %v3115 = vld [vmem:[#allocation12 + $0x794] sm:$0xff]
    %v3116 = vld [vmem:[#allocation12 + $0x79c] sm:$0xff]
    %v3117 = vld [vmem:[#allocation12 + $0x7a4] sm:$0xf]
    %v3118 = vld [vmem:[#allocation12 + $0x7a8] sm:$0xff]
    %v3119 = vld [vmem:[#allocation12 + $0x7b0] sm:$0xff]
    %v3120 = vld [vmem:[#allocation12 + $0x7b8] sm:$0xff]
    %v3121 = vld [vmem:[#allocation12 + $0x7c0] sm:$0xf]
    %v3122 = vld [vmem:[#allocation12 + $0x7c4] sm:$0xff]
    %v3123 = vld [vmem:[#allocation12 + $0x7cc] sm:$0xff]
    %v3124 = vld [vmem:[#allocation12 + $0x7d4] sm:$0xff]
    %v3125 = vld [vmem:[#allocation12 + $0x7dc] sm:$0xf]
    %v3126 = vld [vmem:[#allocation12 + $0x7e0] sm:$0xff]
    %v3127 = vld [vmem:[#allocation12 + $0x7e8] sm:$0xff]
    %v3128 = vld [vmem:[#allocation12 + $0x7f0] sm:$0xff]
    %v3129 = vld [vmem:[#allocation12 + $0x7f8] sm:$0xf]
    %v3130 = vld [vmem:[#allocation12 + $0x7fc] sm:$0xff]
    %v3131 = vld [vmem:[#allocation12 + $0x804] sm:$0xff]
    %v3132 = vld [vmem:[#allocation12 + $0x80c] sm:$0xff]
    %v3133 = vld [vmem:[#allocation12 + $0x814] sm:$0xf]
    %v3134 = vld [vmem:[#allocation12 + $0x818] sm:$0xff]
    %v3135 = vld [vmem:[#allocation12 + $0x820] sm:$0xff]
    %v3136 = vld [vmem:[#allocation12 + $0x828] sm:$0xff]
    %v3137 = vld [vmem:[#allocation12 + $0x830] sm:$0xf]
    %v3138 = vld [vmem:[#allocation12 + $0x834] sm:$0xff]
    %v3139 = vld [vmem:[#allocation12 + $0x83c] sm:$0xff]
    %v3140 = vld [vmem:[#allocation12 + $0x844] sm:$0xff]
    %v3141 = vld [vmem:[#allocation12 + $0x84c] sm:$0xf]
    %v3142 = vld [vmem:[#allocation12 + $0x850] sm:$0xff]
    %v3143 = vld [vmem:[#allocation12 + $0x858] sm:$0xff]
    %v3144 = vld [vmem:[#allocation12 + $0x860] sm:$0xff]
    %v3145 = vld [vmem:[#allocation12 + $0x868] sm:$0xf]
    %v3146 = vld [vmem:[#allocation12 + $0x86c] sm:$0xff]
    %v3147 = vld [vmem:[#allocation12 + $0x874] sm:$0xff]
    %v3148 = vld [vmem:[#allocation12 + $0x87c] sm:$0xff]
    %v3149 = vld [vmem:[#allocation12 + $0x884] sm:$0xf]
    %v3150 = vld [vmem:[#allocation12 + $0x888] sm:$0xff]
    %v3151 = vld [vmem:[#allocation12 + $0x890] sm:$0xff]
    %v3152 = vld [vmem:[#allocation12 + $0x898] sm:$0xff]
    %v3153 = vld [vmem:[#allocation12 + $0x8a0] sm:$0xf]
    %v3154 = vld [vmem:[#allocation12 + $0x8a4] sm:$0xff]
    %v3155 = vld [vmem:[#allocation12 + $0x8ac] sm:$0xff]
    %v3156 = vld [vmem:[#allocation12 + $0x8b4] sm:$0xff]
    %v3157 = vld [vmem:[#allocation12 + $0x8bc] sm:$0xf]
    %v3158 = vld [vmem:[#allocation12 + $0x8c0] sm:$0xff]
    %v3159 = vld [vmem:[#allocation12 + $0x8c8] sm:$0xff]
    %v3160 = vld [vmem:[#allocation12 + $0x8d0] sm:$0xff]
    %v3161 = vld [vmem:[#allocation12 + $0x8d8] sm:$0xf]
    %v3162 = vld [vmem:[#allocation12 + $0x8dc] sm:$0xff]
    %v3163 = vld [vmem:[#allocation12 + $0x8e4] sm:$0xff]
    %v3164 = vld [vmem:[#allocation12 + $0x8ec] sm:$0xff]
    %v3165 = vld [vmem:[#allocation12 + $0x8f4] sm:$0xf]
    %v3166 = vld [vmem:[#allocation12 + $0x8f8] sm:$0xff]
    %v3167 = vld [vmem:[#allocation12 + $0x900] sm:$0xff]
    %v3168 = vld [vmem:[#allocation12 + $0x908] sm:$0xff]
    %v3169 = vld [vmem:[#allocation12 + $0x910] sm:$0xf]
    %v3170 = vld [vmem:[#allocation12 + $0x914] sm:$0xff]
    %v3171 = vld [vmem:[#allocation12 + $0x91c] sm:$0xff]
    %v3172 = vld [vmem:[#allocation12 + $0x924] sm:$0xff]
    %v3173 = vld [vmem:[#allocation12 + $0x92c] sm:$0xf]
    %v3174 = vld [vmem:[#allocation12 + $0x930] sm:$0xff]
    %v3175 = vld [vmem:[#allocation12 + $0x938] sm:$0xff]
    %v3176 = vld [vmem:[#allocation12 + $0x940] sm:$0xff]
    %v3177 = vld [vmem:[#allocation12 + $0x948] sm:$0xf]
    %v3178 = vld [vmem:[#allocation12 + $0x94c] sm:$0xff]
    %v3179 = vld [vmem:[#allocation12 + $0x954] sm:$0xff]
    %v3180 = vld [vmem:[#allocation12 + $0x95c] sm:$0xff]
    %v3181 = vld [vmem:[#allocation12 + $0x964] sm:$0xf]
    %v3182 = vld [vmem:[#allocation12 + $0x968] sm:$0xff]
    %v3183 = vld [vmem:[#allocation12 + $0x970] sm:$0xff]
    %v3184 = vld [vmem:[#allocation12 + $0x978] sm:$0xff]
    %v3185 = vld [vmem:[#allocation12 + $0x980] sm:$0xf]
    %v3186 = vld [vmem:[#allocation12 + $0x984] sm:$0xff]
    %v3187 = vld [vmem:[#allocation12 + $0x98c] sm:$0xff]
    %v3188 = vld [vmem:[#allocation12 + $0x994] sm:$0xff]
    %v3189 = vld [vmem:[#allocation12 + $0x99c] sm:$0xf]
    %v3190 = vld [vmem:[#allocation12 + $0x9a0] sm:$0xff]
    %v3191 = vld [vmem:[#allocation12 + $0x9a8] sm:$0xff]
    %v3192 = vld [vmem:[#allocation12 + $0x9b0] sm:$0xff]
    %v3193 = vld [vmem:[#allocation12 + $0x9b8] sm:$0xf]
    %v3194 = vld [vmem:[#allocation12 + $0x9bc] sm:$0xff]
    %v3195 = vld [vmem:[#allocation12 + $0x9c4] sm:$0xff]
    %v3196 = vld [vmem:[#allocation12 + $0x9cc] sm:$0xff]
    %v3197 = vld [vmem:[#allocation12 + $0x9d4] sm:$0xf]
    %v3198 = vld [vmem:[#allocation12 + $0x9d8] sm:$0xff]
    %v3199 = vld [vmem:[#allocation12 + $0x9e0] sm:$0xff]
    %v3200 = vld [vmem:[#allocation12 + $0x9e8] sm:$0xff]
    %v3201 = vld [vmem:[#allocation12 + $0x9f0] sm:$0xf]
    %v3202 = vld [vmem:[#allocation12 + $0x9f4] sm:$0xff]
    %v3203 = vld [vmem:[#allocation12 + $0x9fc] sm:$0xff]
    %v3204 = vld [vmem:[#allocation12 + $0xa04] sm:$0xff]
    %v3205 = vld [vmem:[#allocation12 + $0xa0c] sm:$0xf]
    %v3206 = vld [vmem:[#allocation12 + $0xa10] sm:$0xff]
    %v3207 = vld [vmem:[#allocation12 + $0xa18] sm:$0xff]
    %v3208 = vld [vmem:[#allocation12 + $0xa20] sm:$0xff]
    %v3209 = vld [vmem:[#allocation12 + $0xa28] sm:$0xf]
    %v3210 = vld [vmem:[#allocation12 + $0xa2c] sm:$0xff]
    %v3211 = vld [vmem:[#allocation12 + $0xa34] sm:$0xff]
    %v3212 = vld [vmem:[#allocation12 + $0xa3c] sm:$0xff]
    %v3213 = vld [vmem:[#allocation12 + $0xa44] sm:$0xf]
    %v3214 = vld [vmem:[#allocation12 + $0xa48] sm:$0xff]
    %v3215 = vld [vmem:[#allocation12 + $0xa50] sm:$0xff]
    %v3216 = vld [vmem:[#allocation12 + $0xa58] sm:$0xff]
    %v3217 = vld [vmem:[#allocation12 + $0xa60] sm:$0xf]
    %v3218 = vld [vmem:[#allocation12 + $0xa64] sm:$0xff]
    %v3219 = vld [vmem:[#allocation12 + $0xa6c] sm:$0xff]
    %v3220 = vld [vmem:[#allocation12 + $0xa74] sm:$0xff]
    %v3221 = vld [vmem:[#allocation12 + $0xa7c] sm:$0xf]
    %v3222 = vld [vmem:[#allocation12 + $0xa80] sm:$0xff]
    %v3223 = vld [vmem:[#allocation12 + $0xa88] sm:$0xff]
    %v3224 = vld [vmem:[#allocation12 + $0xa90] sm:$0xff]
    %v3225 = vld [vmem:[#allocation12 + $0xa98] sm:$0xf]
    %v3226 = vld [vmem:[#allocation12 + $0xa9c] sm:$0xff]
    %v3227 = vld [vmem:[#allocation12 + $0xaa4] sm:$0xff]
    %v3228 = vld [vmem:[#allocation12 + $0xaac] sm:$0xff]
    %v3229 = vld [vmem:[#allocation12 + $0xab4] sm:$0xf]
    %v3230 = vld [vmem:[#allocation12 + $0xab8] sm:$0xff]
    %v3231 = vld [vmem:[#allocation12 + $0xac0] sm:$0xff]
    %v3232 = vld [vmem:[#allocation12 + $0xac8] sm:$0xff]
    %v3233 = vld [vmem:[#allocation12 + $0xad0] sm:$0xf]
    %v3234 = vld [vmem:[#allocation12 + $0xad4] sm:$0xff]
    %v3235 = vld [vmem:[#allocation12 + $0xadc] sm:$0xff]
    %v3236 = vld [vmem:[#allocation12 + $0xae4] sm:$0xff]
    %v3237 = vld [vmem:[#allocation12 + $0xaec] sm:$0xf]
    %v3238 = vld [vmem:[#allocation12 + $0xaf0] sm:$0xff]
    %v3239 = vld [vmem:[#allocation12 + $0xaf8] sm:$0xff]
    %v3240 = vld [vmem:[#allocation12 + $0xb00] sm:$0xff]
    %v3241 = vld [vmem:[#allocation12 + $0xb08] sm:$0xf]
    %v3242 = vld [vmem:[#allocation12 + $0xb0c] sm:$0xff]
    %v3243 = vld [vmem:[#allocation12 + $0xb14] sm:$0xff]
    %v3244 = vld [vmem:[#allocation12 + $0xb1c] sm:$0xff]
    %v3245 = vld [vmem:[#allocation12 + $0xb24] sm:$0xf]
    %v3246 = vld [vmem:[#allocation12 + $0xb28] sm:$0xff]
    %v3247 = vld [vmem:[#allocation12 + $0xb30] sm:$0xff]
    %v3248 = vld [vmem:[#allocation12 + $0xb38] sm:$0xff]
    %v3249 = vld [vmem:[#allocation12 + $0xb40] sm:$0xf]
    %v3250 = vld [vmem:[#allocation12 + $0xb44] sm:$0xff]
    %v3251 = vld [vmem:[#allocation12 + $0xb4c] sm:$0xff]
    %v3252 = vld [vmem:[#allocation12 + $0xb54] sm:$0xff]
    %v3253 = vld [vmem:[#allocation12 + $0xb5c] sm:$0xf]
    %v3254 = vld [vmem:[#allocation12 + $0xb60] sm:$0xff]
    %v3255 = vld [vmem:[#allocation12 + $0xb68] sm:$0xff]
    %v3256 = vld [vmem:[#allocation12 + $0xb70] sm:$0xff]
    %v3257 = vld [vmem:[#allocation12 + $0xb78] sm:$0xf]
    %v3258 = vld [vmem:[#allocation12 + $0xb7c] sm:$0xff]
    %v3259 = vld [vmem:[#allocation12 + $0xb84] sm:$0xff]
    %v3260 = vld [vmem:[#allocation12 + $0xb8c] sm:$0xff]
    %v3261 = vld [vmem:[#allocation12 + $0xb94] sm:$0xf]
    %v3262 = vld [vmem:[#allocation12 + $0xb98] sm:$0xff]
    %v3263 = vld [vmem:[#allocation12 + $0xba0] sm:$0xff]
    %v3264 = vld [vmem:[#allocation12 + $0xba8] sm:$0xff]
    %v3265 = vld [vmem:[#allocation12 + $0xbb0] sm:$0xf]
    %v3266 = vld [vmem:[#allocation12 + $0xbb4] sm:$0xff]
    %v3267 = vld [vmem:[#allocation12 + $0xbbc] sm:$0xff]
    %v3268 = vld [vmem:[#allocation12 + $0xbc4] sm:$0xff]
    %v3269 = vld [vmem:[#allocation12 + $0xbcc] sm:$0xf]
    %v3270 = vld [vmem:[#allocation12 + $0xbd0] sm:$0xff]
    %v3271 = vld [vmem:[#allocation12 + $0xbd8] sm:$0xff]
    %v3272 = vld [vmem:[#allocation12 + $0xbe0] sm:$0xff]
    %v3273 = vld [vmem:[#allocation12 + $0xbe8] sm:$0xf]
    %v3274 = vld [vmem:[#allocation12 + $0xbec] sm:$0xff]
    %v3275 = vld [vmem:[#allocation12 + $0xbf4] sm:$0xff]
    %v3276 = vld [vmem:[#allocation12 + $0xbfc] sm:$0xff]
    %v3277 = vld [vmem:[#allocation12 + $0xc04] sm:$0xf]
    %v3278 = vld [vmem:[#allocation12 + $0xc08] sm:$0xff]
    %v3279 = vld [vmem:[#allocation12 + $0xc10] sm:$0xff]
    %v3280 = vld [vmem:[#allocation12 + $0xc18] sm:$0xff]
    %v3281 = vld [vmem:[#allocation12 + $0xc20] sm:$0xf]
    %v3282 = vld [vmem:[#allocation12 + $0xc24] sm:$0xff]
    %v3283 = vld [vmem:[#allocation12 + $0xc2c] sm:$0xff]
    %v3284 = vld [vmem:[#allocation12 + $0xc34] sm:$0xff]
    %v3285 = vld [vmem:[#allocation12 + $0xc3c] sm:$0xf]
    %v3286 = vld [vmem:[#allocation12 + $0xc40] sm:$0xff]
    %v3287 = vld [vmem:[#allocation12 + $0xc48] sm:$0xff]
    %v3288 = vld [vmem:[#allocation12 + $0xc50] sm:$0xff]
    %v3289 = vld [vmem:[#allocation12 + $0xc58] sm:$0xf]
    %v3290 = vld [vmem:[#allocation12 + $0xc5c] sm:$0xff]
    %v3291 = vld [vmem:[#allocation12 + $0xc64] sm:$0xff]
    %v3292 = vld [vmem:[#allocation12 + $0xc6c] sm:$0xff]
    %v3293 = vld [vmem:[#allocation12 + $0xc74] sm:$0xf]
    %v3294 = vld [vmem:[#allocation12 + $0xc78] sm:$0xff]
    %v3295 = vld [vmem:[#allocation12 + $0xc80] sm:$0xff]
    %v3296 = vld [vmem:[#allocation12 + $0xc88] sm:$0xff]
    %v3297 = vld [vmem:[#allocation12 + $0xc90] sm:$0xf]
    %v3298 = vld [vmem:[#allocation12 + $0xc94] sm:$0xff]
    %v3299 = vld [vmem:[#allocation12 + $0xc9c] sm:$0xff]
    %v3300 = vld [vmem:[#allocation12 + $0xca4] sm:$0xff]
    %v3301 = vld [vmem:[#allocation12 + $0xcac] sm:$0xf]
    %v3302 = vld [vmem:[#allocation12 + $0xcb0] sm:$0xff]
    %v3303 = vld [vmem:[#allocation12 + $0xcb8] sm:$0xff]
    %v3304 = vld [vmem:[#allocation12 + $0xcc0] sm:$0xff]
    %v3305 = vld [vmem:[#allocation12 + $0xcc8] sm:$0xf]
    %v3306 = vld [vmem:[#allocation12 + $0xccc] sm:$0xff]
    %v3307 = vld [vmem:[#allocation12 + $0xcd4] sm:$0xff]
    %v3308 = vld [vmem:[#allocation12 + $0xcdc] sm:$0xff]
    %v3309 = vld [vmem:[#allocation12 + $0xce4] sm:$0xf]
    %v3310 = vld [vmem:[#allocation12 + $0xce8] sm:$0xff]
    %v3311 = vld [vmem:[#allocation12 + $0xcf0] sm:$0xff]
    %v3312 = vld [vmem:[#allocation12 + $0xcf8] sm:$0xff]
    %v3313 = vld [vmem:[#allocation12 + $0xd00] sm:$0xf]
    %v3314 = vld [vmem:[#allocation12 + $0xd04] sm:$0xff]
    %v3315 = vld [vmem:[#allocation12 + $0xd0c] sm:$0xff]
    %v3316 = vld [vmem:[#allocation12 + $0xd14] sm:$0xff]
    %v3317 = vld [vmem:[#allocation12 + $0xd1c] sm:$0xf]
    %v3318 = vld [vmem:[#allocation12 + $0xd20] sm:$0xff]
    %v3319 = vld [vmem:[#allocation12 + $0xd28] sm:$0xff]
    %v3320 = vld [vmem:[#allocation12 + $0xd30] sm:$0xff]
    %v3321 = vld [vmem:[#allocation12 + $0xd38] sm:$0xf]
    %v3322 = vld [vmem:[#allocation12 + $0xd3c] sm:$0xff]
    %v3323 = vld [vmem:[#allocation12 + $0xd44] sm:$0xff]
    %v3324 = vld [vmem:[#allocation12 + $0xd4c] sm:$0xff]
    %v3325 = vld [vmem:[#allocation12 + $0xd54] sm:$0xf]
    %v3326 = vld [vmem:[#allocation12 + $0xd58] sm:$0xff]
    %v3327 = vld [vmem:[#allocation12 + $0xd60] sm:$0xff]
    %v3328 = vld [vmem:[#allocation12 + $0xd68] sm:$0xff]
    %v3329 = vld [vmem:[#allocation12 + $0xd70] sm:$0xf]
    %v3330 = vld [vmem:[#allocation12 + $0xd74] sm:$0xff]
    %v3331 = vld [vmem:[#allocation12 + $0xd7c] sm:$0xff]
    %v3332 = vld [vmem:[#allocation12 + $0xd84] sm:$0xff]
    %v3333 = vld [vmem:[#allocation12 + $0xd8c] sm:$0xf]
    %v3334 = vld [vmem:[#allocation12 + $0xd90] sm:$0xff]
    %v3335 = vld [vmem:[#allocation12 + $0xd98] sm:$0xff]
    %v3336 = vld [vmem:[#allocation12 + $0xda0] sm:$0xff]
    %v3337 = vld [vmem:[#allocation12 + $0xda8] sm:$0xf]
    %v3338 = vld [vmem:[#allocation12 + $0xdac] sm:$0xff]
    %v3339 = vld [vmem:[#allocation12 + $0xdb4] sm:$0xff]
    %v3340 = vld [vmem:[#allocation12 + $0xdbc] sm:$0xff]
    %v3341 = vld [vmem:[#allocation12 + $0xdc4] sm:$0xf]
    %v3342 = vld [vmem:[#allocation12 + $0xdc8] sm:$0xff]
    %v3343 = vld [vmem:[#allocation12 + $0xdd0] sm:$0xff]
    %v3344 = vld [vmem:[#allocation12 + $0xdd8] sm:$0xff]
    %v3345 = vld [vmem:[#allocation12 + $0xde0] sm:$0xf]
    %v3346 = vld [vmem:[#allocation12 + $0xde4] sm:$0xff]
    %v3347 = vld [vmem:[#allocation12 + $0xdec] sm:$0xff]
    %v3348 = vld [vmem:[#allocation12 + $0xdf4] sm:$0xff]
    %v3349 = vld [vmem:[#allocation12 + $0xdfc] sm:$0xf]
    %v3350 = vld [vmem:[#allocation13] sm:$0xff]
    %v3352 = vlaneseq
    %v3353 = vshrl.u32 %v3352, 7
    %v3354 = vsub.s32 0, %v3353
    %v3355 = vrot.slane %v3350, %v3354
    %v3356 = vlaneseq
    %v3357 = vshrl.u32 %v3356, 7
    %v3358 = vsub.s32 1, %v3357
    %v3359 = vrot.slane %v3350, %v3358
    %v3360 = vlaneseq
    %v3361 = vshrl.u32 %v3360, 7
    %v3362 = vsub.s32 2, %v3361
    %v3363 = vrot.slane %v3350, %v3362
    %v3364 = vlaneseq
    %v3365 = vshrl.u32 %v3364, 7
    %v3366 = vsub.s32 3, %v3365
    %v3367 = vrot.slane %v3350, %v3366
    %v3368 = vlaneseq
    %v3369 = vshrl.u32 %v3368, 7
    %v3370 = vsub.s32 4, %v3369
    %v3371 = vrot.slane %v3350, %v3370
    %v3372 = vlaneseq
    %v3373 = vshrl.u32 %v3372, 7
    %v3374 = vsub.s32 5, %v3373
    %v3375 = vrot.slane %v3350, %v3374
    %v3376 = vlaneseq
    %v3377 = vshrl.u32 %v3376, 7
    %v3378 = vsub.s32 6, %v3377
    %v3379 = vrot.slane %v3350, %v3378
    %v3899 = vunpack.c.l.b16 %v2838
    %v3900 = vunpack.c.h.b16 %v2838
    %v3901 = vunpack.c.l.b16 %v2839
    %v3902 = vunpack.c.h.b16 %v2839
    %v3903 = vunpack.c.l.b16 %v2840
    %v3904 = vunpack.c.h.b16 %v2840
    %v3905 = vunpack.c.l.b16 %v2841
    %v3906 = vunpack.c.l.b16 %v2842
    %v3907 = vunpack.c.h.b16 %v2842
    %v3908 = vunpack.c.l.b16 %v2843
    %v3909 = vunpack.c.h.b16 %v2843
    %v3910 = vunpack.c.l.b16 %v2844
    %v3911 = vunpack.c.h.b16 %v2844
    %v3912 = vunpack.c.l.b16 %v2845
    %v3913 = vunpack.c.l.b16 %v2846
    %v3914 = vunpack.c.h.b16 %v2846
    %v3915 = vunpack.c.l.b16 %v2847
    %v3916 = vunpack.c.h.b16 %v2847
    %v3917 = vunpack.c.l.b16 %v2848
    %v3918 = vunpack.c.h.b16 %v2848
    %v3919 = vunpack.c.l.b16 %v2849
    %v3920 = vunpack.c.l.b16 %v2850
    %v3921 = vunpack.c.h.b16 %v2850
    %v3922 = vunpack.c.l.b16 %v2851
    %v3923 = vunpack.c.h.b16 %v2851
    %v3924 = vunpack.c.l.b16 %v2852
    %v3925 = vunpack.c.h.b16 %v2852
    %v3926 = vunpack.c.l.b16 %v2853
    %v3927 = vunpack.c.l.b16 %v2854
    %v3928 = vunpack.c.h.b16 %v2854
    %v3929 = vunpack.c.l.b16 %v2855
    %v3930 = vunpack.c.h.b16 %v2855
    %v3931 = vunpack.c.l.b16 %v2856
    %v3932 = vunpack.c.h.b16 %v2856
    %v3933 = vunpack.c.l.b16 %v2857
    %v3934 = vunpack.c.l.b16 %v2858
    %v3935 = vunpack.c.h.b16 %v2858
    %v3936 = vunpack.c.l.b16 %v2859
    %v3937 = vunpack.c.h.b16 %v2859
    %v3938 = vunpack.c.l.b16 %v2860
    %v3939 = vunpack.c.h.b16 %v2860
    %v3940 = vunpack.c.l.b16 %v2861
    %v3941 = vunpack.c.l.b16 %v2862
    %v3942 = vunpack.c.h.b16 %v2862
    %v3943 = vunpack.c.l.b16 %v2863
    %v3944 = vunpack.c.h.b16 %v2863
    %v3945 = vunpack.c.l.b16 %v2864
    %v3946 = vunpack.c.h.b16 %v2864
    %v3947 = vunpack.c.l.b16 %v2865
    %v3948 = vunpack.c.l.b16 %v2866
    %v3949 = vunpack.c.h.b16 %v2866
    %v3950 = vunpack.c.l.b16 %v2867
    %v3951 = vunpack.c.h.b16 %v2867
    %v3952 = vunpack.c.l.b16 %v2868
    %v3953 = vunpack.c.h.b16 %v2868
    %v3954 = vunpack.c.l.b16 %v2869
    %v3955 = vunpack.c.l.b16 %v2870
    %v3956 = vunpack.c.h.b16 %v2870
    %v3957 = vunpack.c.l.b16 %v2871
    %v3958 = vunpack.c.h.b16 %v2871
    %v3959 = vunpack.c.l.b16 %v2872
    %v3960 = vunpack.c.h.b16 %v2872
    %v3961 = vunpack.c.l.b16 %v2873
    %v3962 = vunpack.c.l.b16 %v2874
    %v3963 = vunpack.c.h.b16 %v2874
    %v3964 = vunpack.c.l.b16 %v2875
    %v3965 = vunpack.c.h.b16 %v2875
    %v3966 = vunpack.c.l.b16 %v2876
    %v3967 = vunpack.c.h.b16 %v2876
    %v3968 = vunpack.c.l.b16 %v2877
    %v3969 = vunpack.c.l.b16 %v2878
    %v3970 = vunpack.c.h.b16 %v2878
    %v3971 = vunpack.c.l.b16 %v2879
    %v3972 = vunpack.c.h.b16 %v2879
    %v3973 = vunpack.c.l.b16 %v2880
    %v3974 = vunpack.c.h.b16 %v2880
    %v3975 = vunpack.c.l.b16 %v2881
    %v3976 = vunpack.c.l.b16 %v2882
    %v3977 = vunpack.c.h.b16 %v2882
    %v3978 = vunpack.c.l.b16 %v2883
    %v3979 = vunpack.c.h.b16 %v2883
    %v3980 = vunpack.c.l.b16 %v2884
    %v3981 = vunpack.c.h.b16 %v2884
    %v3982 = vunpack.c.l.b16 %v2885
    %v3983 = vunpack.c.l.b16 %v2886
    %v3984 = vunpack.c.h.b16 %v2886
    %v3985 = vunpack.c.l.b16 %v2887
    %v3986 = vunpack.c.h.b16 %v2887
    %v3987 = vunpack.c.l.b16 %v2888
    %v3988 = vunpack.c.h.b16 %v2888
    %v3989 = vunpack.c.l.b16 %v2889
    %v3990 = vunpack.c.l.b16 %v2890
    %v3991 = vunpack.c.h.b16 %v2890
    %v3992 = vunpack.c.l.b16 %v2891
    %v3993 = vunpack.c.h.b16 %v2891
    %v3994 = vunpack.c.l.b16 %v2892
    %v3995 = vunpack.c.h.b16 %v2892
    %v3996 = vunpack.c.l.b16 %v2893
    %v3997 = vunpack.c.l.b16 %v2894
    %v3998 = vunpack.c.h.b16 %v2894
    %v3999 = vunpack.c.l.b16 %v2895
    %v4000 = vunpack.c.h.b16 %v2895
    %v4001 = vunpack.c.l.b16 %v2896
    %v4002 = vunpack.c.h.b16 %v2896
    %v4003 = vunpack.c.l.b16 %v2897
    %v4004 = vunpack.c.l.b16 %v2898
    %v4005 = vunpack.c.h.b16 %v2898
    %v4006 = vunpack.c.l.b16 %v2899
    %v4007 = vunpack.c.h.b16 %v2899
    %v4008 = vunpack.c.l.b16 %v2900
    %v4009 = vunpack.c.h.b16 %v2900
    %v4010 = vunpack.c.l.b16 %v2901
    %v4011 = vunpack.c.l.b16 %v2902
    %v4012 = vunpack.c.h.b16 %v2902
    %v4013 = vunpack.c.l.b16 %v2903
    %v4014 = vunpack.c.h.b16 %v2903
    %v4015 = vunpack.c.l.b16 %v2904
    %v4016 = vunpack.c.h.b16 %v2904
    %v4017 = vunpack.c.l.b16 %v2905
    %v4018 = vunpack.c.l.b16 %v2906
    %v4019 = vunpack.c.h.b16 %v2906
    %v4020 = vunpack.c.l.b16 %v2907
    %v4021 = vunpack.c.h.b16 %v2907
    %v4022 = vunpack.c.l.b16 %v2908
    %v4023 = vunpack.c.h.b16 %v2908
    %v4024 = vunpack.c.l.b16 %v2909
    %v4025 = vunpack.c.l.b16 %v2910
    %v4026 = vunpack.c.h.b16 %v2910
    %v4027 = vunpack.c.l.b16 %v2911
    %v4028 = vunpack.c.h.b16 %v2911
    %v4029 = vunpack.c.l.b16 %v2912
    %v4030 = vunpack.c.h.b16 %v2912
    %v4031 = vunpack.c.l.b16 %v2913
    %v4032 = vunpack.c.l.b16 %v2914
    %v4033 = vunpack.c.h.b16 %v2914
    %v4034 = vunpack.c.l.b16 %v2915
    %v4035 = vunpack.c.h.b16 %v2915
    %v4036 = vunpack.c.l.b16 %v2916
    %v4037 = vunpack.c.h.b16 %v2916
    %v4038 = vunpack.c.l.b16 %v2917
    %v4039 = vunpack.c.l.b16 %v2918
    %v4040 = vunpack.c.h.b16 %v2918
    %v4041 = vunpack.c.l.b16 %v2919
    %v4042 = vunpack.c.h.b16 %v2919
    %v4043 = vunpack.c.l.b16 %v2920
    %v4044 = vunpack.c.h.b16 %v2920
    %v4045 = vunpack.c.l.b16 %v2921
    %v4046 = vunpack.c.l.b16 %v2922
    %v4047 = vunpack.c.h.b16 %v2922
    %v4048 = vunpack.c.l.b16 %v2923
    %v4049 = vunpack.c.h.b16 %v2923
    %v4050 = vunpack.c.l.b16 %v2924
    %v4051 = vunpack.c.h.b16 %v2924
    %v4052 = vunpack.c.l.b16 %v2925
    %v4053 = vunpack.c.l.b16 %v2926
    %v4054 = vunpack.c.h.b16 %v2926
    %v4055 = vunpack.c.l.b16 %v2927
    %v4056 = vunpack.c.h.b16 %v2927
    %v4057 = vunpack.c.l.b16 %v2928
    %v4058 = vunpack.c.h.b16 %v2928
    %v4059 = vunpack.c.l.b16 %v2929
    %v4060 = vunpack.c.l.b16 %v2930
    %v4061 = vunpack.c.h.b16 %v2930
    %v4062 = vunpack.c.l.b16 %v2931
    %v4063 = vunpack.c.h.b16 %v2931
    %v4064 = vunpack.c.l.b16 %v2932
    %v4065 = vunpack.c.h.b16 %v2932
    %v4066 = vunpack.c.l.b16 %v2933
    %v4067 = vunpack.c.l.b16 %v2934
    %v4068 = vunpack.c.h.b16 %v2934
    %v4069 = vunpack.c.l.b16 %v2935
    %v4070 = vunpack.c.h.b16 %v2935
    %v4071 = vunpack.c.l.b16 %v2936
    %v4072 = vunpack.c.h.b16 %v2936
    %v4073 = vunpack.c.l.b16 %v2937
    %v4074 = vunpack.c.l.b16 %v2938
    %v4075 = vunpack.c.h.b16 %v2938
    %v4076 = vunpack.c.l.b16 %v2939
    %v4077 = vunpack.c.h.b16 %v2939
    %v4078 = vunpack.c.l.b16 %v2940
    %v4079 = vunpack.c.h.b16 %v2940
    %v4080 = vunpack.c.l.b16 %v2941
    %v4081 = vunpack.c.l.b16 %v2942
    %v4082 = vunpack.c.h.b16 %v2942
    %v4083 = vunpack.c.l.b16 %v2943
    %v4084 = vunpack.c.h.b16 %v2943
    %v4085 = vunpack.c.l.b16 %v2944
    %v4086 = vunpack.c.h.b16 %v2944
    %v4087 = vunpack.c.l.b16 %v2945
    %v4088 = vunpack.c.l.b16 %v2946
    %v4089 = vunpack.c.h.b16 %v2946
    %v4090 = vunpack.c.l.b16 %v2947
    %v4091 = vunpack.c.h.b16 %v2947
    %v4092 = vunpack.c.l.b16 %v2948
    %v4093 = vunpack.c.h.b16 %v2948
    %v4094 = vunpack.c.l.b16 %v2949
    %v4095 = vunpack.c.l.b16 %v2950
    %v4096 = vunpack.c.h.b16 %v2950
    %v4097 = vunpack.c.l.b16 %v2951
    %v4098 = vunpack.c.h.b16 %v2951
    %v4099 = vunpack.c.l.b16 %v2952
    %v4100 = vunpack.c.h.b16 %v2952
    %v4101 = vunpack.c.l.b16 %v2953
    %v4102 = vunpack.c.l.b16 %v2954
    %v4103 = vunpack.c.h.b16 %v2954
    %v4104 = vunpack.c.l.b16 %v2955
    %v4105 = vunpack.c.h.b16 %v2955
    %v4106 = vunpack.c.l.b16 %v2956
    %v4107 = vunpack.c.h.b16 %v2956
    %v4108 = vunpack.c.l.b16 %v2957
    %v4109 = vunpack.c.l.b16 %v2958
    %v4110 = vunpack.c.h.b16 %v2958
    %v4111 = vunpack.c.l.b16 %v2959
    %v4112 = vunpack.c.h.b16 %v2959
    %v4113 = vunpack.c.l.b16 %v2960
    %v4114 = vunpack.c.h.b16 %v2960
    %v4115 = vunpack.c.l.b16 %v2961
    %v4116 = vunpack.c.l.b16 %v2962
    %v4117 = vunpack.c.h.b16 %v2962
    %v4118 = vunpack.c.l.b16 %v2963
    %v4119 = vunpack.c.h.b16 %v2963
    %v4120 = vunpack.c.l.b16 %v2964
    %v4121 = vunpack.c.h.b16 %v2964
    %v4122 = vunpack.c.l.b16 %v2965
    %v4123 = vunpack.c.l.b16 %v2966
    %v4124 = vunpack.c.h.b16 %v2966
    %v4125 = vunpack.c.l.b16 %v2967
    %v4126 = vunpack.c.h.b16 %v2967
    %v4127 = vunpack.c.l.b16 %v2968
    %v4128 = vunpack.c.h.b16 %v2968
    %v4129 = vunpack.c.l.b16 %v2969
    %v4130 = vunpack.c.l.b16 %v2970
    %v4131 = vunpack.c.h.b16 %v2970
    %v4132 = vunpack.c.l.b16 %v2971
    %v4133 = vunpack.c.h.b16 %v2971
    %v4134 = vunpack.c.l.b16 %v2972
    %v4135 = vunpack.c.h.b16 %v2972
    %v4136 = vunpack.c.l.b16 %v2973
    %v4137 = vunpack.c.l.b16 %v2974
    %v4138 = vunpack.c.h.b16 %v2974
    %v4139 = vunpack.c.l.b16 %v2975
    %v4140 = vunpack.c.h.b16 %v2975
    %v4141 = vunpack.c.l.b16 %v2976
    %v4142 = vunpack.c.h.b16 %v2976
    %v4143 = vunpack.c.l.b16 %v2977
    %v4144 = vunpack.c.l.b16 %v2978
    %v4145 = vunpack.c.h.b16 %v2978
    %v4146 = vunpack.c.l.b16 %v2979
    %v4147 = vunpack.c.h.b16 %v2979
    %v4148 = vunpack.c.l.b16 %v2980
    %v4149 = vunpack.c.h.b16 %v2980
    %v4150 = vunpack.c.l.b16 %v2981
    %v4151 = vunpack.c.l.b16 %v2982
    %v4152 = vunpack.c.h.b16 %v2982
    %v4153 = vunpack.c.l.b16 %v2983
    %v4154 = vunpack.c.h.b16 %v2983
    %v4155 = vunpack.c.l.b16 %v2984
    %v4156 = vunpack.c.h.b16 %v2984
    %v4157 = vunpack.c.l.b16 %v2985
    %v4158 = vunpack.c.l.b16 %v2986
    %v4159 = vunpack.c.h.b16 %v2986
    %v4160 = vunpack.c.l.b16 %v2987
    %v4161 = vunpack.c.h.b16 %v2987
    %v4162 = vunpack.c.l.b16 %v2988
    %v4163 = vunpack.c.h.b16 %v2988
    %v4164 = vunpack.c.l.b16 %v2989
    %v4165 = vunpack.c.l.b16 %v2990
    %v4166 = vunpack.c.h.b16 %v2990
    %v4167 = vunpack.c.l.b16 %v2991
    %v4168 = vunpack.c.h.b16 %v2991
    %v4169 = vunpack.c.l.b16 %v2992
    %v4170 = vunpack.c.h.b16 %v2992
    %v4171 = vunpack.c.l.b16 %v2993
    %v4172 = vunpack.c.l.b16 %v2994
    %v4173 = vunpack.c.h.b16 %v2994
    %v4174 = vunpack.c.l.b16 %v2995
    %v4175 = vunpack.c.h.b16 %v2995
    %v4176 = vunpack.c.l.b16 %v2996
    %v4177 = vunpack.c.h.b16 %v2996
    %v4178 = vunpack.c.l.b16 %v2997
    %v4179 = vunpack.c.l.b16 %v2998
    %v4180 = vunpack.c.h.b16 %v2998
    %v4181 = vunpack.c.l.b16 %v2999
    %v4182 = vunpack.c.h.b16 %v2999
    %v4183 = vunpack.c.l.b16 %v3000
    %v4184 = vunpack.c.h.b16 %v3000
    %v4185 = vunpack.c.l.b16 %v3001
    %v4186 = vunpack.c.l.b16 %v3002
    %v4187 = vunpack.c.h.b16 %v3002
    %v4188 = vunpack.c.l.b16 %v3003
    %v4189 = vunpack.c.h.b16 %v3003
    %v4190 = vunpack.c.l.b16 %v3004
    %v4191 = vunpack.c.h.b16 %v3004
    %v4192 = vunpack.c.l.b16 %v3005
    %v4193 = vunpack.c.l.b16 %v3006
    %v4194 = vunpack.c.h.b16 %v3006
    %v4195 = vunpack.c.l.b16 %v3007
    %v4196 = vunpack.c.h.b16 %v3007
    %v4197 = vunpack.c.l.b16 %v3008
    %v4198 = vunpack.c.h.b16 %v3008
    %v4199 = vunpack.c.l.b16 %v3009
    %v4200 = vunpack.c.l.b16 %v3010
    %v4201 = vunpack.c.h.b16 %v3010
    %v4202 = vunpack.c.l.b16 %v3011
    %v4203 = vunpack.c.h.b16 %v3011
    %v4204 = vunpack.c.l.b16 %v3012
    %v4205 = vunpack.c.h.b16 %v3012
    %v4206 = vunpack.c.l.b16 %v3013
    %v4207 = vunpack.c.l.b16 %v3014
    %v4208 = vunpack.c.h.b16 %v3014
    %v4209 = vunpack.c.l.b16 %v3015
    %v4210 = vunpack.c.h.b16 %v3015
    %v4211 = vunpack.c.l.b16 %v3016
    %v4212 = vunpack.c.h.b16 %v3016
    %v4213 = vunpack.c.l.b16 %v3017
    %v4214 = vunpack.c.l.b16 %v3018
    %v4215 = vunpack.c.h.b16 %v3018
    %v4216 = vunpack.c.l.b16 %v3019
    %v4217 = vunpack.c.h.b16 %v3019
    %v4218 = vunpack.c.l.b16 %v3020
    %v4219 = vunpack.c.h.b16 %v3020
    %v4220 = vunpack.c.l.b16 %v3021
    %v4221 = vunpack.c.l.b16 %v3022
    %v4222 = vunpack.c.h.b16 %v3022
    %v4223 = vunpack.c.l.b16 %v3023
    %v4224 = vunpack.c.h.b16 %v3023
    %v4225 = vunpack.c.l.b16 %v3024
    %v4226 = vunpack.c.h.b16 %v3024
    %v4227 = vunpack.c.l.b16 %v3025
    %v4228 = vunpack.c.l.b16 %v3026
    %v4229 = vunpack.c.h.b16 %v3026
    %v4230 = vunpack.c.l.b16 %v3027
    %v4231 = vunpack.c.h.b16 %v3027
    %v4232 = vunpack.c.l.b16 %v3028
    %v4233 = vunpack.c.h.b16 %v3028
    %v4234 = vunpack.c.l.b16 %v3029
    %v4235 = vunpack.c.l.b16 %v3030
    %v4236 = vunpack.c.h.b16 %v3030
    %v4237 = vunpack.c.l.b16 %v3031
    %v4238 = vunpack.c.h.b16 %v3031
    %v4239 = vunpack.c.l.b16 %v3032
    %v4240 = vunpack.c.h.b16 %v3032
    %v4241 = vunpack.c.l.b16 %v3033
    %v4242 = vunpack.c.l.b16 %v3034
    %v4243 = vunpack.c.h.b16 %v3034
    %v4244 = vunpack.c.l.b16 %v3035
    %v4245 = vunpack.c.h.b16 %v3035
    %v4246 = vunpack.c.l.b16 %v3036
    %v4247 = vunpack.c.h.b16 %v3036
    %v4248 = vunpack.c.l.b16 %v3037
    %v4249 = vunpack.c.l.b16 %v3038
    %v4250 = vunpack.c.h.b16 %v3038
    %v4251 = vunpack.c.l.b16 %v3039
    %v4252 = vunpack.c.h.b16 %v3039
    %v4253 = vunpack.c.l.b16 %v3040
    %v4254 = vunpack.c.h.b16 %v3040
    %v4255 = vunpack.c.l.b16 %v3041
    %v4256 = vunpack.c.l.b16 %v3042
    %v4257 = vunpack.c.h.b16 %v3042
    %v4258 = vunpack.c.l.b16 %v3043
    %v4259 = vunpack.c.h.b16 %v3043
    %v4260 = vunpack.c.l.b16 %v3044
    %v4261 = vunpack.c.h.b16 %v3044
    %v4262 = vunpack.c.l.b16 %v3045
    %v4263 = vunpack.c.l.b16 %v3046
    %v4264 = vunpack.c.h.b16 %v3046
    %v4265 = vunpack.c.l.b16 %v3047
    %v4266 = vunpack.c.h.b16 %v3047
    %v4267 = vunpack.c.l.b16 %v3048
    %v4268 = vunpack.c.h.b16 %v3048
    %v4269 = vunpack.c.l.b16 %v3049
    %v4270 = vunpack.c.l.b16 %v3050
    %v4271 = vunpack.c.h.b16 %v3050
    %v4272 = vunpack.c.l.b16 %v3051
    %v4273 = vunpack.c.h.b16 %v3051
    %v4274 = vunpack.c.l.b16 %v3052
    %v4275 = vunpack.c.h.b16 %v3052
    %v4276 = vunpack.c.l.b16 %v3053
    %v4277 = vunpack.c.l.b16 %v3054
    %v4278 = vunpack.c.h.b16 %v3054
    %v4279 = vunpack.c.l.b16 %v3055
    %v4280 = vunpack.c.h.b16 %v3055
    %v4281 = vunpack.c.l.b16 %v3056
    %v4282 = vunpack.c.h.b16 %v3056
    %v4283 = vunpack.c.l.b16 %v3057
    %v4284 = vunpack.c.l.b16 %v3058
    %v4285 = vunpack.c.h.b16 %v3058
    %v4286 = vunpack.c.l.b16 %v3059
    %v4287 = vunpack.c.h.b16 %v3059
    %v4288 = vunpack.c.l.b16 %v3060
    %v4289 = vunpack.c.h.b16 %v3060
    %v4290 = vunpack.c.l.b16 %v3061
    %v4291 = vunpack.c.l.b16 %v3062
    %v4292 = vunpack.c.h.b16 %v3062
    %v4293 = vunpack.c.l.b16 %v3063
    %v4294 = vunpack.c.h.b16 %v3063
    %v4295 = vunpack.c.l.b16 %v3064
    %v4296 = vunpack.c.h.b16 %v3064
    %v4297 = vunpack.c.l.b16 %v3065
    %v4298 = vunpack.c.l.b16 %v3066
    %v4299 = vunpack.c.h.b16 %v3066
    %v4300 = vunpack.c.l.b16 %v3067
    %v4301 = vunpack.c.h.b16 %v3067
    %v4302 = vunpack.c.l.b16 %v3068
    %v4303 = vunpack.c.h.b16 %v3068
    %v4304 = vunpack.c.l.b16 %v3069
    %v4305 = vunpack.c.l.b16 %v3070
    %v4306 = vunpack.c.h.b16 %v3070
    %v4307 = vunpack.c.l.b16 %v3071
    %v4308 = vunpack.c.h.b16 %v3071
    %v4309 = vunpack.c.l.b16 %v3072
    %v4310 = vunpack.c.h.b16 %v3072
    %v4311 = vunpack.c.l.b16 %v3073
    %v4312 = vunpack.c.l.b16 %v3074
    %v4313 = vunpack.c.h.b16 %v3074
    %v4314 = vunpack.c.l.b16 %v3075
    %v4315 = vunpack.c.h.b16 %v3075
    %v4316 = vunpack.c.l.b16 %v3076
    %v4317 = vunpack.c.h.b16 %v3076
    %v4318 = vunpack.c.l.b16 %v3077
    %v4319 = vunpack.c.l.b16 %v3078
    %v4320 = vunpack.c.h.b16 %v3078
    %v4321 = vunpack.c.l.b16 %v3079
    %v4322 = vunpack.c.h.b16 %v3079
    %v4323 = vunpack.c.l.b16 %v3080
    %v4324 = vunpack.c.h.b16 %v3080
    %v4325 = vunpack.c.l.b16 %v3081
    %v4326 = vunpack.c.l.b16 %v3082
    %v4327 = vunpack.c.h.b16 %v3082
    %v4328 = vunpack.c.l.b16 %v3083
    %v4329 = vunpack.c.h.b16 %v3083
    %v4330 = vunpack.c.l.b16 %v3084
    %v4331 = vunpack.c.h.b16 %v3084
    %v4332 = vunpack.c.l.b16 %v3085
    %v4333 = vunpack.c.l.b16 %v3086
    %v4334 = vunpack.c.h.b16 %v3086
    %v4335 = vunpack.c.l.b16 %v3087
    %v4336 = vunpack.c.h.b16 %v3087
    %v4337 = vunpack.c.l.b16 %v3088
    %v4338 = vunpack.c.h.b16 %v3088
    %v4339 = vunpack.c.l.b16 %v3089
    %v4340 = vunpack.c.l.b16 %v3090
    %v4341 = vunpack.c.h.b16 %v3090
    %v4342 = vunpack.c.l.b16 %v3091
    %v4343 = vunpack.c.h.b16 %v3091
    %v4344 = vunpack.c.l.b16 %v3092
    %v4345 = vunpack.c.h.b16 %v3092
    %v4346 = vunpack.c.l.b16 %v3093
    %v4347 = vunpack.c.l.b16 %v3094
    %v4348 = vunpack.c.h.b16 %v3094
    %v4349 = vunpack.c.l.b16 %v3095
    %v4350 = vunpack.c.h.b16 %v3095
    %v4351 = vunpack.c.l.b16 %v3096
    %v4352 = vunpack.c.h.b16 %v3096
    %v4353 = vunpack.c.l.b16 %v3097
    %v4354 = vunpack.c.l.b16 %v3098
    %v4355 = vunpack.c.h.b16 %v3098
    %v4356 = vunpack.c.l.b16 %v3099
    %v4357 = vunpack.c.h.b16 %v3099
    %v4358 = vunpack.c.l.b16 %v3100
    %v4359 = vunpack.c.h.b16 %v3100
    %v4360 = vunpack.c.l.b16 %v3101
    %v4361 = vunpack.c.l.b16 %v3102
    %v4362 = vunpack.c.h.b16 %v3102
    %v4363 = vunpack.c.l.b16 %v3103
    %v4364 = vunpack.c.h.b16 %v3103
    %v4365 = vunpack.c.l.b16 %v3104
    %v4366 = vunpack.c.h.b16 %v3104
    %v4367 = vunpack.c.l.b16 %v3105
    %v4368 = vunpack.c.l.b16 %v3106
    %v4369 = vunpack.c.h.b16 %v3106
    %v4370 = vunpack.c.l.b16 %v3107
    %v4371 = vunpack.c.h.b16 %v3107
    %v4372 = vunpack.c.l.b16 %v3108
    %v4373 = vunpack.c.h.b16 %v3108
    %v4374 = vunpack.c.l.b16 %v3109
    %v4375 = vunpack.c.l.b16 %v3110
    %v4376 = vunpack.c.h.b16 %v3110
    %v4377 = vunpack.c.l.b16 %v3111
    %v4378 = vunpack.c.h.b16 %v3111
    %v4379 = vunpack.c.l.b16 %v3112
    %v4380 = vunpack.c.h.b16 %v3112
    %v4381 = vunpack.c.l.b16 %v3113
    %v4382 = vunpack.c.l.b16 %v3114
    %v4383 = vunpack.c.h.b16 %v3114
    %v4384 = vunpack.c.l.b16 %v3115
    %v4385 = vunpack.c.h.b16 %v3115
    %v4386 = vunpack.c.l.b16 %v3116
    %v4387 = vunpack.c.h.b16 %v3116
    %v4388 = vunpack.c.l.b16 %v3117
    %v4389 = vunpack.c.l.b16 %v3118
    %v4390 = vunpack.c.h.b16 %v3118
    %v4391 = vunpack.c.l.b16 %v3119
    %v4392 = vunpack.c.h.b16 %v3119
    %v4393 = vunpack.c.l.b16 %v3120
    %v4394 = vunpack.c.h.b16 %v3120
    %v4395 = vunpack.c.l.b16 %v3121
    %v4396 = vunpack.c.l.b16 %v3122
    %v4397 = vunpack.c.h.b16 %v3122
    %v4398 = vunpack.c.l.b16 %v3123
    %v4399 = vunpack.c.h.b16 %v3123
    %v4400 = vunpack.c.l.b16 %v3124
    %v4401 = vunpack.c.h.b16 %v3124
    %v4402 = vunpack.c.l.b16 %v3125
    %v4403 = vunpack.c.l.b16 %v3126
    %v4404 = vunpack.c.h.b16 %v3126
    %v4405 = vunpack.c.l.b16 %v3127
    %v4406 = vunpack.c.h.b16 %v3127
    %v4407 = vunpack.c.l.b16 %v3128
    %v4408 = vunpack.c.h.b16 %v3128
    %v4409 = vunpack.c.l.b16 %v3129
    %v4410 = vunpack.c.l.b16 %v3130
    %v4411 = vunpack.c.h.b16 %v3130
    %v4412 = vunpack.c.l.b16 %v3131
    %v4413 = vunpack.c.h.b16 %v3131
    %v4414 = vunpack.c.l.b16 %v3132
    %v4415 = vunpack.c.h.b16 %v3132
    %v4416 = vunpack.c.l.b16 %v3133
    %v4417 = vunpack.c.l.b16 %v3134
    %v4418 = vunpack.c.h.b16 %v3134
    %v4419 = vunpack.c.l.b16 %v3135
    %v4420 = vunpack.c.h.b16 %v3135
    %v4421 = vunpack.c.l.b16 %v3136
    %v4422 = vunpack.c.h.b16 %v3136
    %v4423 = vunpack.c.l.b16 %v3137
    %v4424 = vunpack.c.l.b16 %v3138
    %v4425 = vunpack.c.h.b16 %v3138
    %v4426 = vunpack.c.l.b16 %v3139
    %v4427 = vunpack.c.h.b16 %v3139
    %v4428 = vunpack.c.l.b16 %v3140
    %v4429 = vunpack.c.h.b16 %v3140
    %v4430 = vunpack.c.l.b16 %v3141
    %v4431 = vunpack.c.l.b16 %v3142
    %v4432 = vunpack.c.h.b16 %v3142
    %v4433 = vunpack.c.l.b16 %v3143
    %v4434 = vunpack.c.h.b16 %v3143
    %v4435 = vunpack.c.l.b16 %v3144
    %v4436 = vunpack.c.h.b16 %v3144
    %v4437 = vunpack.c.l.b16 %v3145
    %v4438 = vunpack.c.l.b16 %v3146
    %v4439 = vunpack.c.h.b16 %v3146
    %v4440 = vunpack.c.l.b16 %v3147
    %v4441 = vunpack.c.h.b16 %v3147
    %v4442 = vunpack.c.l.b16 %v3148
    %v4443 = vunpack.c.h.b16 %v3148
    %v4444 = vunpack.c.l.b16 %v3149
    %v4445 = vunpack.c.l.b16 %v3150
    %v4446 = vunpack.c.h.b16 %v3150
    %v4447 = vunpack.c.l.b16 %v3151
    %v4448 = vunpack.c.h.b16 %v3151
    %v4449 = vunpack.c.l.b16 %v3152
    %v4450 = vunpack.c.h.b16 %v3152
    %v4451 = vunpack.c.l.b16 %v3153
    %v4452 = vunpack.c.l.b16 %v3154
    %v4453 = vunpack.c.h.b16 %v3154
    %v4454 = vunpack.c.l.b16 %v3155
    %v4455 = vunpack.c.h.b16 %v3155
    %v4456 = vunpack.c.l.b16 %v3156
    %v4457 = vunpack.c.h.b16 %v3156
    %v4458 = vunpack.c.l.b16 %v3157
    %v4459 = vunpack.c.l.b16 %v3158
    %v4460 = vunpack.c.h.b16 %v3158
    %v4461 = vunpack.c.l.b16 %v3159
    %v4462 = vunpack.c.h.b16 %v3159
    %v4463 = vunpack.c.l.b16 %v3160
    %v4464 = vunpack.c.h.b16 %v3160
    %v4465 = vunpack.c.l.b16 %v3161
    %v4466 = vunpack.c.l.b16 %v3162
    %v4467 = vunpack.c.h.b16 %v3162
    %v4468 = vunpack.c.l.b16 %v3163
    %v4469 = vunpack.c.h.b16 %v3163
    %v4470 = vunpack.c.l.b16 %v3164
    %v4471 = vunpack.c.h.b16 %v3164
    %v4472 = vunpack.c.l.b16 %v3165
    %v4473 = vunpack.c.l.b16 %v3166
    %v4474 = vunpack.c.h.b16 %v3166
    %v4475 = vunpack.c.l.b16 %v3167
    %v4476 = vunpack.c.h.b16 %v3167
    %v4477 = vunpack.c.l.b16 %v3168
    %v4478 = vunpack.c.h.b16 %v3168
    %v4479 = vunpack.c.l.b16 %v3169
    %v4480 = vunpack.c.l.b16 %v3170
    %v4481 = vunpack.c.h.b16 %v3170
    %v4482 = vunpack.c.l.b16 %v3171
    %v4483 = vunpack.c.h.b16 %v3171
    %v4484 = vunpack.c.l.b16 %v3172
    %v4485 = vunpack.c.h.b16 %v3172
    %v4486 = vunpack.c.l.b16 %v3173
    %v4487 = vunpack.c.l.b16 %v3174
    %v4488 = vunpack.c.h.b16 %v3174
    %v4489 = vunpack.c.l.b16 %v3175
    %v4490 = vunpack.c.h.b16 %v3175
    %v4491 = vunpack.c.l.b16 %v3176
    %v4492 = vunpack.c.h.b16 %v3176
    %v4493 = vunpack.c.l.b16 %v3177
    %v4494 = vunpack.c.l.b16 %v3178
    %v4495 = vunpack.c.h.b16 %v3178
    %v4496 = vunpack.c.l.b16 %v3179
    %v4497 = vunpack.c.h.b16 %v3179
    %v4498 = vunpack.c.l.b16 %v3180
    %v4499 = vunpack.c.h.b16 %v3180
    %v4500 = vunpack.c.l.b16 %v3181
    %v4501 = vunpack.c.l.b16 %v3182
    %v4502 = vunpack.c.h.b16 %v3182
    %v4503 = vunpack.c.l.b16 %v3183
    %v4504 = vunpack.c.h.b16 %v3183
    %v4505 = vunpack.c.l.b16 %v3184
    %v4506 = vunpack.c.h.b16 %v3184
    %v4507 = vunpack.c.l.b16 %v3185
    %v4508 = vunpack.c.l.b16 %v3186
    %v4509 = vunpack.c.h.b16 %v3186
    %v4510 = vunpack.c.l.b16 %v3187
    %v4511 = vunpack.c.h.b16 %v3187
    %v4512 = vunpack.c.l.b16 %v3188
    %v4513 = vunpack.c.h.b16 %v3188
    %v4514 = vunpack.c.l.b16 %v3189
    %v4515 = vunpack.c.l.b16 %v3190
    %v4516 = vunpack.c.h.b16 %v3190
    %v4517 = vunpack.c.l.b16 %v3191
    %v4518 = vunpack.c.h.b16 %v3191
    %v4519 = vunpack.c.l.b16 %v3192
    %v4520 = vunpack.c.h.b16 %v3192
    %v4521 = vunpack.c.l.b16 %v3193
    %v4522 = vunpack.c.l.b16 %v3194
    %v4523 = vunpack.c.h.b16 %v3194
    %v4524 = vunpack.c.l.b16 %v3195
    %v4525 = vunpack.c.h.b16 %v3195
    %v4526 = vunpack.c.l.b16 %v3196
    %v4527 = vunpack.c.h.b16 %v3196
    %v4528 = vunpack.c.l.b16 %v3197
    %v4529 = vunpack.c.l.b16 %v3198
    %v4530 = vunpack.c.h.b16 %v3198
    %v4531 = vunpack.c.l.b16 %v3199
    %v4532 = vunpack.c.h.b16 %v3199
    %v4533 = vunpack.c.l.b16 %v3200
    %v4534 = vunpack.c.h.b16 %v3200
    %v4535 = vunpack.c.l.b16 %v3201
    %v4536 = vunpack.c.l.b16 %v3202
    %v4537 = vunpack.c.h.b16 %v3202
    %v4538 = vunpack.c.l.b16 %v3203
    %v4539 = vunpack.c.h.b16 %v3203
    %v4540 = vunpack.c.l.b16 %v3204
    %v4541 = vunpack.c.h.b16 %v3204
    %v4542 = vunpack.c.l.b16 %v3205
    %v4543 = vunpack.c.l.b16 %v3206
    %v4544 = vunpack.c.h.b16 %v3206
    %v4545 = vunpack.c.l.b16 %v3207
    %v4546 = vunpack.c.h.b16 %v3207
    %v4547 = vunpack.c.l.b16 %v3208
    %v4548 = vunpack.c.h.b16 %v3208
    %v4549 = vunpack.c.l.b16 %v3209
    %v4550 = vunpack.c.l.b16 %v3210
    %v4551 = vunpack.c.h.b16 %v3210
    %v4552 = vunpack.c.l.b16 %v3211
    %v4553 = vunpack.c.h.b16 %v3211
    %v4554 = vunpack.c.l.b16 %v3212
    %v4555 = vunpack.c.h.b16 %v3212
    %v4556 = vunpack.c.l.b16 %v3213
    %v4557 = vunpack.c.l.b16 %v3214
    %v4558 = vunpack.c.h.b16 %v3214
    %v4559 = vunpack.c.l.b16 %v3215
    %v4560 = vunpack.c.h.b16 %v3215
    %v4561 = vunpack.c.l.b16 %v3216
    %v4562 = vunpack.c.h.b16 %v3216
    %v4563 = vunpack.c.l.b16 %v3217
    %v4564 = vunpack.c.l.b16 %v3218
    %v4565 = vunpack.c.h.b16 %v3218
    %v4566 = vunpack.c.l.b16 %v3219
    %v4567 = vunpack.c.h.b16 %v3219
    %v4568 = vunpack.c.l.b16 %v3220
    %v4569 = vunpack.c.h.b16 %v3220
    %v4570 = vunpack.c.l.b16 %v3221
    %v4571 = vunpack.c.l.b16 %v3222
    %v4572 = vunpack.c.h.b16 %v3222
    %v4573 = vunpack.c.l.b16 %v3223
    %v4574 = vunpack.c.h.b16 %v3223
    %v4575 = vunpack.c.l.b16 %v3224
    %v4576 = vunpack.c.h.b16 %v3224
    %v4577 = vunpack.c.l.b16 %v3225
    %v4578 = vunpack.c.l.b16 %v3226
    %v4579 = vunpack.c.h.b16 %v3226
    %v4580 = vunpack.c.l.b16 %v3227
    %v4581 = vunpack.c.h.b16 %v3227
    %v4582 = vunpack.c.l.b16 %v3228
    %v4583 = vunpack.c.h.b16 %v3228
    %v4584 = vunpack.c.l.b16 %v3229
    %v4585 = vunpack.c.l.b16 %v3230
    %v4586 = vunpack.c.h.b16 %v3230
    %v4587 = vunpack.c.l.b16 %v3231
    %v4588 = vunpack.c.h.b16 %v3231
    %v4589 = vunpack.c.l.b16 %v3232
    %v4590 = vunpack.c.h.b16 %v3232
    %v4591 = vunpack.c.l.b16 %v3233
    %v4592 = vunpack.c.l.b16 %v3234
    %v4593 = vunpack.c.h.b16 %v3234
    %v4594 = vunpack.c.l.b16 %v3235
    %v4595 = vunpack.c.h.b16 %v3235
    %v4596 = vunpack.c.l.b16 %v3236
    %v4597 = vunpack.c.h.b16 %v3236
    %v4598 = vunpack.c.l.b16 %v3237
    %v4599 = vunpack.c.l.b16 %v3238
    %v4600 = vunpack.c.h.b16 %v3238
    %v4601 = vunpack.c.l.b16 %v3239
    %v4602 = vunpack.c.h.b16 %v3239
    %v4603 = vunpack.c.l.b16 %v3240
    %v4604 = vunpack.c.h.b16 %v3240
    %v4605 = vunpack.c.l.b16 %v3241
    %v4606 = vunpack.c.l.b16 %v3242
    %v4607 = vunpack.c.h.b16 %v3242
    %v4608 = vunpack.c.l.b16 %v3243
    %v4609 = vunpack.c.h.b16 %v3243
    %v4610 = vunpack.c.l.b16 %v3244
    %v4611 = vunpack.c.h.b16 %v3244
    %v4612 = vunpack.c.l.b16 %v3245
    %v4613 = vunpack.c.l.b16 %v3246
    %v4614 = vunpack.c.h.b16 %v3246
    %v4615 = vunpack.c.l.b16 %v3247
    %v4616 = vunpack.c.h.b16 %v3247
    %v4617 = vunpack.c.l.b16 %v3248
    %v4618 = vunpack.c.h.b16 %v3248
    %v4619 = vunpack.c.l.b16 %v3249
    %v4620 = vunpack.c.l.b16 %v3250
    %v4621 = vunpack.c.h.b16 %v3250
    %v4622 = vunpack.c.l.b16 %v3251
    %v4623 = vunpack.c.h.b16 %v3251
    %v4624 = vunpack.c.l.b16 %v3252
    %v4625 = vunpack.c.h.b16 %v3252
    %v4626 = vunpack.c.l.b16 %v3253
    %v4627 = vunpack.c.l.b16 %v3254
    %v4628 = vunpack.c.h.b16 %v3254
    %v4629 = vunpack.c.l.b16 %v3255
    %v4630 = vunpack.c.h.b16 %v3255
    %v4631 = vunpack.c.l.b16 %v3256
    %v4632 = vunpack.c.h.b16 %v3256
    %v4633 = vunpack.c.l.b16 %v3257
    %v4634 = vunpack.c.l.b16 %v3258
    %v4635 = vunpack.c.h.b16 %v3258
    %v4636 = vunpack.c.l.b16 %v3259
    %v4637 = vunpack.c.h.b16 %v3259
    %v4638 = vunpack.c.l.b16 %v3260
    %v4639 = vunpack.c.h.b16 %v3260
    %v4640 = vunpack.c.l.b16 %v3261
    %v4641 = vunpack.c.l.b16 %v3262
    %v4642 = vunpack.c.h.b16 %v3262
    %v4643 = vunpack.c.l.b16 %v3263
    %v4644 = vunpack.c.h.b16 %v3263
    %v4645 = vunpack.c.l.b16 %v3264
    %v4646 = vunpack.c.h.b16 %v3264
    %v4647 = vunpack.c.l.b16 %v3265
    %v4648 = vunpack.c.l.b16 %v3266
    %v4649 = vunpack.c.h.b16 %v3266
    %v4650 = vunpack.c.l.b16 %v3267
    %v4651 = vunpack.c.h.b16 %v3267
    %v4652 = vunpack.c.l.b16 %v3268
    %v4653 = vunpack.c.h.b16 %v3268
    %v4654 = vunpack.c.l.b16 %v3269
    %v4655 = vunpack.c.l.b16 %v3270
    %v4656 = vunpack.c.h.b16 %v3270
    %v4657 = vunpack.c.l.b16 %v3271
    %v4658 = vunpack.c.h.b16 %v3271
    %v4659 = vunpack.c.l.b16 %v3272
    %v4660 = vunpack.c.h.b16 %v3272
    %v4661 = vunpack.c.l.b16 %v3273
    %v4662 = vunpack.c.l.b16 %v3274
    %v4663 = vunpack.c.h.b16 %v3274
    %v4664 = vunpack.c.l.b16 %v3275
    %v4665 = vunpack.c.h.b16 %v3275
    %v4666 = vunpack.c.l.b16 %v3276
    %v4667 = vunpack.c.h.b16 %v3276
    %v4668 = vunpack.c.l.b16 %v3277
    %v4669 = vunpack.c.l.b16 %v3278
    %v4670 = vunpack.c.h.b16 %v3278
    %v4671 = vunpack.c.l.b16 %v3279
    %v4672 = vunpack.c.h.b16 %v3279
    %v4673 = vunpack.c.l.b16 %v3280
    %v4674 = vunpack.c.h.b16 %v3280
    %v4675 = vunpack.c.l.b16 %v3281
    %v4676 = vunpack.c.l.b16 %v3282
    %v4677 = vunpack.c.h.b16 %v3282
    %v4678 = vunpack.c.l.b16 %v3283
    %v4679 = vunpack.c.h.b16 %v3283
    %v4680 = vunpack.c.l.b16 %v3284
    %v4681 = vunpack.c.h.b16 %v3284
    %v4682 = vunpack.c.l.b16 %v3285
    %v4683 = vunpack.c.l.b16 %v3286
    %v4684 = vunpack.c.h.b16 %v3286
    %v4685 = vunpack.c.l.b16 %v3287
    %v4686 = vunpack.c.h.b16 %v3287
    %v4687 = vunpack.c.l.b16 %v3288
    %v4688 = vunpack.c.h.b16 %v3288
    %v4689 = vunpack.c.l.b16 %v3289
    %v4690 = vunpack.c.l.b16 %v3290
    %v4691 = vunpack.c.h.b16 %v3290
    %v4692 = vunpack.c.l.b16 %v3291
    %v4693 = vunpack.c.h.b16 %v3291
    %v4694 = vunpack.c.l.b16 %v3292
    %v4695 = vunpack.c.h.b16 %v3292
    %v4696 = vunpack.c.l.b16 %v3293
    %v4697 = vunpack.c.l.b16 %v3294
    %v4698 = vunpack.c.h.b16 %v3294
    %v4699 = vunpack.c.l.b16 %v3295
    %v4700 = vunpack.c.h.b16 %v3295
    %v4701 = vunpack.c.l.b16 %v3296
    %v4702 = vunpack.c.h.b16 %v3296
    %v4703 = vunpack.c.l.b16 %v3297
    %v4704 = vunpack.c.l.b16 %v3298
    %v4705 = vunpack.c.h.b16 %v3298
    %v4706 = vunpack.c.l.b16 %v3299
    %v4707 = vunpack.c.h.b16 %v3299
    %v4708 = vunpack.c.l.b16 %v3300
    %v4709 = vunpack.c.h.b16 %v3300
    %v4710 = vunpack.c.l.b16 %v3301
    %v4711 = vunpack.c.l.b16 %v3302
    %v4712 = vunpack.c.h.b16 %v3302
    %v4713 = vunpack.c.l.b16 %v3303
    %v4714 = vunpack.c.h.b16 %v3303
    %v4715 = vunpack.c.l.b16 %v3304
    %v4716 = vunpack.c.h.b16 %v3304
    %v4717 = vunpack.c.l.b16 %v3305
    %v4718 = vunpack.c.l.b16 %v3306
    %v4719 = vunpack.c.h.b16 %v3306
    %v4720 = vunpack.c.l.b16 %v3307
    %v4721 = vunpack.c.h.b16 %v3307
    %v4722 = vunpack.c.l.b16 %v3308
    %v4723 = vunpack.c.h.b16 %v3308
    %v4724 = vunpack.c.l.b16 %v3309
    %v4725 = vunpack.c.l.b16 %v3310
    %v4726 = vunpack.c.h.b16 %v3310
    %v4727 = vunpack.c.l.b16 %v3311
    %v4728 = vunpack.c.h.b16 %v3311
    %v4729 = vunpack.c.l.b16 %v3312
    %v4730 = vunpack.c.h.b16 %v3312
    %v4731 = vunpack.c.l.b16 %v3313
    %v4732 = vunpack.c.l.b16 %v3314
    %v4733 = vunpack.c.h.b16 %v3314
    %v4734 = vunpack.c.l.b16 %v3315
    %v4735 = vunpack.c.h.b16 %v3315
    %v4736 = vunpack.c.l.b16 %v3316
    %v4737 = vunpack.c.h.b16 %v3316
    %v4738 = vunpack.c.l.b16 %v3317
    %v4739 = vunpack.c.l.b16 %v3318
    %v4740 = vunpack.c.h.b16 %v3318
    %v4741 = vunpack.c.l.b16 %v3319
    %v4742 = vunpack.c.h.b16 %v3319
    %v4743 = vunpack.c.l.b16 %v3320
    %v4744 = vunpack.c.h.b16 %v3320
    %v4745 = vunpack.c.l.b16 %v3321
    %v4746 = vunpack.c.l.b16 %v3322
    %v4747 = vunpack.c.h.b16 %v3322
    %v4748 = vunpack.c.l.b16 %v3323
    %v4749 = vunpack.c.h.b16 %v3323
    %v4750 = vunpack.c.l.b16 %v3324
    %v4751 = vunpack.c.h.b16 %v3324
    %v4752 = vunpack.c.l.b16 %v3325
    %v4753 = vunpack.c.l.b16 %v3326
    %v4754 = vunpack.c.h.b16 %v3326
    %v4755 = vunpack.c.l.b16 %v3327
    %v4756 = vunpack.c.h.b16 %v3327
    %v4757 = vunpack.c.l.b16 %v3328
    %v4758 = vunpack.c.h.b16 %v3328
    %v4759 = vunpack.c.l.b16 %v3329
    %v4760 = vunpack.c.l.b16 %v3330
    %v4761 = vunpack.c.h.b16 %v3330
    %v4762 = vunpack.c.l.b16 %v3331
    %v4763 = vunpack.c.h.b16 %v3331
    %v4764 = vunpack.c.l.b16 %v3332
    %v4765 = vunpack.c.h.b16 %v3332
    %v4766 = vunpack.c.l.b16 %v3333
    %v4767 = vunpack.c.l.b16 %v3334
    %v4768 = vunpack.c.h.b16 %v3334
    %v4769 = vunpack.c.l.b16 %v3335
    %v4770 = vunpack.c.h.b16 %v3335
    %v4771 = vunpack.c.l.b16 %v3336
    %v4772 = vunpack.c.h.b16 %v3336
    %v4773 = vunpack.c.l.b16 %v3337
    %v4774 = vunpack.c.l.b16 %v3338
    %v4775 = vunpack.c.h.b16 %v3338
    %v4776 = vunpack.c.l.b16 %v3339
    %v4777 = vunpack.c.h.b16 %v3339
    %v4778 = vunpack.c.l.b16 %v3340
    %v4779 = vunpack.c.h.b16 %v3340
    %v4780 = vunpack.c.l.b16 %v3341
    %v4781 = vunpack.c.l.b16 %v3342
    %v4782 = vunpack.c.h.b16 %v3342
    %v4783 = vunpack.c.l.b16 %v3343
    %v4784 = vunpack.c.h.b16 %v3343
    %v4785 = vunpack.c.l.b16 %v3344
    %v4786 = vunpack.c.h.b16 %v3344
    %v4787 = vunpack.c.l.b16 %v3345
    %v4788 = vunpack.c.l.b16 %v3346
    %v4789 = vunpack.c.h.b16 %v3346
    %v4790 = vunpack.c.l.b16 %v3347
    %v4791 = vunpack.c.h.b16 %v3347
    %v4792 = vunpack.c.l.b16 %v3348
    %v4793 = vunpack.c.h.b16 %v3348
    %v4794 = vunpack.c.l.b16 %v3349
    %v4795 = vpack.c.b16 %v3906, %v3899
    %v4796 = vpack.c.b16 %v3907, %v3900
    %v4797 = vpack.c.b16 %v3908, %v3901
    %v4798 = vpack.c.b16 %v3909, %v3902
    %v4799 = vpack.c.b16 %v3910, %v3903
    %v4800 = vpack.c.b16 %v3911, %v3904
    %v4801 = vpack.c.b16 %v3912, %v3905
    %v4802 = vpack.c.b16 %v3920, %v3913
    %v4803 = vpack.c.b16 %v3921, %v3914
    %v4804 = vpack.c.b16 %v3922, %v3915
    %v4805 = vpack.c.b16 %v3923, %v3916
    %v4806 = vpack.c.b16 %v3924, %v3917
    %v4807 = vpack.c.b16 %v3925, %v3918
    %v4808 = vpack.c.b16 %v3926, %v3919
    %v4809 = vpack.c.b16 %v3934, %v3927
    %v4810 = vpack.c.b16 %v3935, %v3928
    %v4811 = vpack.c.b16 %v3936, %v3929
    %v4812 = vpack.c.b16 %v3937, %v3930
    %v4813 = vpack.c.b16 %v3938, %v3931
    %v4814 = vpack.c.b16 %v3939, %v3932
    %v4815 = vpack.c.b16 %v3940, %v3933
    %v4816 = vpack.c.b16 %v3948, %v3941
    %v4817 = vpack.c.b16 %v3949, %v3942
    %v4818 = vpack.c.b16 %v3950, %v3943
    %v4819 = vpack.c.b16 %v3951, %v3944
    %v4820 = vpack.c.b16 %v3952, %v3945
    %v4821 = vpack.c.b16 %v3953, %v3946
    %v4822 = vpack.c.b16 %v3954, %v3947
    %v4823 = vpack.c.b16 %v3962, %v3955
    %v4824 = vpack.c.b16 %v3963, %v3956
    %v4825 = vpack.c.b16 %v3964, %v3957
    %v4826 = vpack.c.b16 %v3965, %v3958
    %v4827 = vpack.c.b16 %v3966, %v3959
    %v4828 = vpack.c.b16 %v3967, %v3960
    %v4829 = vpack.c.b16 %v3968, %v3961
    %v4830 = vpack.c.b16 %v3976, %v3969
    %v4831 = vpack.c.b16 %v3977, %v3970
    %v4832 = vpack.c.b16 %v3978, %v3971
    %v4833 = vpack.c.b16 %v3979, %v3972
    %v4834 = vpack.c.b16 %v3980, %v3973
    %v4835 = vpack.c.b16 %v3981, %v3974
    %v4836 = vpack.c.b16 %v3982, %v3975
    %v4837 = vpack.c.b16 %v3990, %v3983
    %v4838 = vpack.c.b16 %v3991, %v3984
    %v4839 = vpack.c.b16 %v3992, %v3985
    %v4840 = vpack.c.b16 %v3993, %v3986
    %v4841 = vpack.c.b16 %v3994, %v3987
    %v4842 = vpack.c.b16 %v3995, %v3988
    %v4843 = vpack.c.b16 %v3996, %v3989
    %v4844 = vpack.c.b16 %v4004, %v3997
    %v4845 = vpack.c.b16 %v4005, %v3998
    %v4846 = vpack.c.b16 %v4006, %v3999
    %v4847 = vpack.c.b16 %v4007, %v4000
    %v4848 = vpack.c.b16 %v4008, %v4001
    %v4849 = vpack.c.b16 %v4009, %v4002
    %v4850 = vpack.c.b16 %v4010, %v4003
    %v4851 = vpack.c.b16 %v4018, %v4011
    %v4852 = vpack.c.b16 %v4019, %v4012
    %v4853 = vpack.c.b16 %v4020, %v4013
    %v4854 = vpack.c.b16 %v4021, %v4014
    %v4855 = vpack.c.b16 %v4022, %v4015
    %v4856 = vpack.c.b16 %v4023, %v4016
    %v4857 = vpack.c.b16 %v4024, %v4017
    %v4858 = vpack.c.b16 %v4032, %v4025
    %v4859 = vpack.c.b16 %v4033, %v4026
    %v4860 = vpack.c.b16 %v4034, %v4027
    %v4861 = vpack.c.b16 %v4035, %v4028
    %v4862 = vpack.c.b16 %v4036, %v4029
    %v4863 = vpack.c.b16 %v4037, %v4030
    %v4864 = vpack.c.b16 %v4038, %v4031
    %v4865 = vpack.c.b16 %v4046, %v4039
    %v4866 = vpack.c.b16 %v4047, %v4040
    %v4867 = vpack.c.b16 %v4048, %v4041
    %v4868 = vpack.c.b16 %v4049, %v4042
    %v4869 = vpack.c.b16 %v4050, %v4043
    %v4870 = vpack.c.b16 %v4051, %v4044
    %v4871 = vpack.c.b16 %v4052, %v4045
    %v4872 = vpack.c.b16 %v4060, %v4053
    %v4873 = vpack.c.b16 %v4061, %v4054
    %v4874 = vpack.c.b16 %v4062, %v4055
    %v4875 = vpack.c.b16 %v4063, %v4056
    %v4876 = vpack.c.b16 %v4064, %v4057
    %v4877 = vpack.c.b16 %v4065, %v4058
    %v4878 = vpack.c.b16 %v4066, %v4059
    %v4879 = vpack.c.b16 %v4074, %v4067
    %v4880 = vpack.c.b16 %v4075, %v4068
    %v4881 = vpack.c.b16 %v4076, %v4069
    %v4882 = vpack.c.b16 %v4077, %v4070
    %v4883 = vpack.c.b16 %v4078, %v4071
    %v4884 = vpack.c.b16 %v4079, %v4072
    %v4885 = vpack.c.b16 %v4080, %v4073
    %v4886 = vpack.c.b16 %v4088, %v4081
    %v4887 = vpack.c.b16 %v4089, %v4082
    %v4888 = vpack.c.b16 %v4090, %v4083
    %v4889 = vpack.c.b16 %v4091, %v4084
    %v4890 = vpack.c.b16 %v4092, %v4085
    %v4891 = vpack.c.b16 %v4093, %v4086
    %v4892 = vpack.c.b16 %v4094, %v4087
    %v4893 = vpack.c.b16 %v4102, %v4095
    %v4894 = vpack.c.b16 %v4103, %v4096
    %v4895 = vpack.c.b16 %v4104, %v4097
    %v4896 = vpack.c.b16 %v4105, %v4098
    %v4897 = vpack.c.b16 %v4106, %v4099
    %v4898 = vpack.c.b16 %v4107, %v4100
    %v4899 = vpack.c.b16 %v4108, %v4101
    %v4900 = vpack.c.b16 %v4116, %v4109
    %v4901 = vpack.c.b16 %v4117, %v4110
    %v4902 = vpack.c.b16 %v4118, %v4111
    %v4903 = vpack.c.b16 %v4119, %v4112
    %v4904 = vpack.c.b16 %v4120, %v4113
    %v4905 = vpack.c.b16 %v4121, %v4114
    %v4906 = vpack.c.b16 %v4122, %v4115
    %v4907 = vpack.c.b16 %v4130, %v4123
    %v4908 = vpack.c.b16 %v4131, %v4124
    %v4909 = vpack.c.b16 %v4132, %v4125
    %v4910 = vpack.c.b16 %v4133, %v4126
    %v4911 = vpack.c.b16 %v4134, %v4127
    %v4912 = vpack.c.b16 %v4135, %v4128
    %v4913 = vpack.c.b16 %v4136, %v4129
    %v4914 = vpack.c.b16 %v4144, %v4137
    %v4915 = vpack.c.b16 %v4145, %v4138
    %v4916 = vpack.c.b16 %v4146, %v4139
    %v4917 = vpack.c.b16 %v4147, %v4140
    %v4918 = vpack.c.b16 %v4148, %v4141
    %v4919 = vpack.c.b16 %v4149, %v4142
    %v4920 = vpack.c.b16 %v4150, %v4143
    %v4921 = vpack.c.b16 %v4158, %v4151
    %v4922 = vpack.c.b16 %v4159, %v4152
    %v4923 = vpack.c.b16 %v4160, %v4153
    %v4924 = vpack.c.b16 %v4161, %v4154
    %v4925 = vpack.c.b16 %v4162, %v4155
    %v4926 = vpack.c.b16 %v4163, %v4156
    %v4927 = vpack.c.b16 %v4164, %v4157
    %v4928 = vpack.c.b16 %v4172, %v4165
    %v4929 = vpack.c.b16 %v4173, %v4166
    %v4930 = vpack.c.b16 %v4174, %v4167
    %v4931 = vpack.c.b16 %v4175, %v4168
    %v4932 = vpack.c.b16 %v4176, %v4169
    %v4933 = vpack.c.b16 %v4177, %v4170
    %v4934 = vpack.c.b16 %v4178, %v4171
    %v4935 = vpack.c.b16 %v4186, %v4179
    %v4936 = vpack.c.b16 %v4187, %v4180
    %v4937 = vpack.c.b16 %v4188, %v4181
    %v4938 = vpack.c.b16 %v4189, %v4182
    %v4939 = vpack.c.b16 %v4190, %v4183
    %v4940 = vpack.c.b16 %v4191, %v4184
    %v4941 = vpack.c.b16 %v4192, %v4185
    %v4942 = vpack.c.b16 %v4200, %v4193
    %v4943 = vpack.c.b16 %v4201, %v4194
    %v4944 = vpack.c.b16 %v4202, %v4195
    %v4945 = vpack.c.b16 %v4203, %v4196
    %v4946 = vpack.c.b16 %v4204, %v4197
    %v4947 = vpack.c.b16 %v4205, %v4198
    %v4948 = vpack.c.b16 %v4206, %v4199
    %v4949 = vpack.c.b16 %v4214, %v4207
    %v4950 = vpack.c.b16 %v4215, %v4208
    %v4951 = vpack.c.b16 %v4216, %v4209
    %v4952 = vpack.c.b16 %v4217, %v4210
    %v4953 = vpack.c.b16 %v4218, %v4211
    %v4954 = vpack.c.b16 %v4219, %v4212
    %v4955 = vpack.c.b16 %v4220, %v4213
    %v4956 = vpack.c.b16 %v4228, %v4221
    %v4957 = vpack.c.b16 %v4229, %v4222
    %v4958 = vpack.c.b16 %v4230, %v4223
    %v4959 = vpack.c.b16 %v4231, %v4224
    %v4960 = vpack.c.b16 %v4232, %v4225
    %v4961 = vpack.c.b16 %v4233, %v4226
    %v4962 = vpack.c.b16 %v4234, %v4227
    %v4963 = vpack.c.b16 %v4242, %v4235
    %v4964 = vpack.c.b16 %v4243, %v4236
    %v4965 = vpack.c.b16 %v4244, %v4237
    %v4966 = vpack.c.b16 %v4245, %v4238
    %v4967 = vpack.c.b16 %v4246, %v4239
    %v4968 = vpack.c.b16 %v4247, %v4240
    %v4969 = vpack.c.b16 %v4248, %v4241
    %v4970 = vpack.c.b16 %v4256, %v4249
    %v4971 = vpack.c.b16 %v4257, %v4250
    %v4972 = vpack.c.b16 %v4258, %v4251
    %v4973 = vpack.c.b16 %v4259, %v4252
    %v4974 = vpack.c.b16 %v4260, %v4253
    %v4975 = vpack.c.b16 %v4261, %v4254
    %v4976 = vpack.c.b16 %v4262, %v4255
    %v4977 = vpack.c.b16 %v4270, %v4263
    %v4978 = vpack.c.b16 %v4271, %v4264
    %v4979 = vpack.c.b16 %v4272, %v4265
    %v4980 = vpack.c.b16 %v4273, %v4266
    %v4981 = vpack.c.b16 %v4274, %v4267
    %v4982 = vpack.c.b16 %v4275, %v4268
    %v4983 = vpack.c.b16 %v4276, %v4269
    %v4984 = vpack.c.b16 %v4284, %v4277
    %v4985 = vpack.c.b16 %v4285, %v4278
    %v4986 = vpack.c.b16 %v4286, %v4279
    %v4987 = vpack.c.b16 %v4287, %v4280
    %v4988 = vpack.c.b16 %v4288, %v4281
    %v4989 = vpack.c.b16 %v4289, %v4282
    %v4990 = vpack.c.b16 %v4290, %v4283
    %v4991 = vpack.c.b16 %v4298, %v4291
    %v4992 = vpack.c.b16 %v4299, %v4292
    %v4993 = vpack.c.b16 %v4300, %v4293
    %v4994 = vpack.c.b16 %v4301, %v4294
    %v4995 = vpack.c.b16 %v4302, %v4295
    %v4996 = vpack.c.b16 %v4303, %v4296
    %v4997 = vpack.c.b16 %v4304, %v4297
    %v4998 = vpack.c.b16 %v4312, %v4305
    %v4999 = vpack.c.b16 %v4313, %v4306
    %v5000 = vpack.c.b16 %v4314, %v4307
    %v5001 = vpack.c.b16 %v4315, %v4308
    %v5002 = vpack.c.b16 %v4316, %v4309
    %v5003 = vpack.c.b16 %v4317, %v4310
    %v5004 = vpack.c.b16 %v4318, %v4311
    %v5005 = vpack.c.b16 %v4326, %v4319
    %v5006 = vpack.c.b16 %v4327, %v4320
    %v5007 = vpack.c.b16 %v4328, %v4321
    %v5008 = vpack.c.b16 %v4329, %v4322
    %v5009 = vpack.c.b16 %v4330, %v4323
    %v5010 = vpack.c.b16 %v4331, %v4324
    %v5011 = vpack.c.b16 %v4332, %v4325
    %v5012 = vpack.c.b16 %v4340, %v4333
    %v5013 = vpack.c.b16 %v4341, %v4334
    %v5014 = vpack.c.b16 %v4342, %v4335
    %v5015 = vpack.c.b16 %v4343, %v4336
    %v5016 = vpack.c.b16 %v4344, %v4337
    %v5017 = vpack.c.b16 %v4345, %v4338
    %v5018 = vpack.c.b16 %v4346, %v4339
    %v5019 = vpack.c.b16 %v4354, %v4347
    %v5020 = vpack.c.b16 %v4355, %v4348
    %v5021 = vpack.c.b16 %v4356, %v4349
    %v5022 = vpack.c.b16 %v4357, %v4350
    %v5023 = vpack.c.b16 %v4358, %v4351
    %v5024 = vpack.c.b16 %v4359, %v4352
    %v5025 = vpack.c.b16 %v4360, %v4353
    %v5026 = vpack.c.b16 %v4368, %v4361
    %v5027 = vpack.c.b16 %v4369, %v4362
    %v5028 = vpack.c.b16 %v4370, %v4363
    %v5029 = vpack.c.b16 %v4371, %v4364
    %v5030 = vpack.c.b16 %v4372, %v4365
    %v5031 = vpack.c.b16 %v4373, %v4366
    %v5032 = vpack.c.b16 %v4374, %v4367
    %v5033 = vpack.c.b16 %v4382, %v4375
    %v5034 = vpack.c.b16 %v4383, %v4376
    %v5035 = vpack.c.b16 %v4384, %v4377
    %v5036 = vpack.c.b16 %v4385, %v4378
    %v5037 = vpack.c.b16 %v4386, %v4379
    %v5038 = vpack.c.b16 %v4387, %v4380
    %v5039 = vpack.c.b16 %v4388, %v4381
    %v5040 = vpack.c.b16 %v4396, %v4389
    %v5041 = vpack.c.b16 %v4397, %v4390
    %v5042 = vpack.c.b16 %v4398, %v4391
    %v5043 = vpack.c.b16 %v4399, %v4392
    %v5044 = vpack.c.b16 %v4400, %v4393
    %v5045 = vpack.c.b16 %v4401, %v4394
    %v5046 = vpack.c.b16 %v4402, %v4395
    %v5047 = vpack.c.b16 %v4410, %v4403
    %v5048 = vpack.c.b16 %v4411, %v4404
    %v5049 = vpack.c.b16 %v4412, %v4405
    %v5050 = vpack.c.b16 %v4413, %v4406
    %v5051 = vpack.c.b16 %v4414, %v4407
    %v5052 = vpack.c.b16 %v4415, %v4408
    %v5053 = vpack.c.b16 %v4416, %v4409
    %v5054 = vpack.c.b16 %v4424, %v4417
    %v5055 = vpack.c.b16 %v4425, %v4418
    %v5056 = vpack.c.b16 %v4426, %v4419
    %v5057 = vpack.c.b16 %v4427, %v4420
    %v5058 = vpack.c.b16 %v4428, %v4421
    %v5059 = vpack.c.b16 %v4429, %v4422
    %v5060 = vpack.c.b16 %v4430, %v4423
    %v5061 = vpack.c.b16 %v4438, %v4431
    %v5062 = vpack.c.b16 %v4439, %v4432
    %v5063 = vpack.c.b16 %v4440, %v4433
    %v5064 = vpack.c.b16 %v4441, %v4434
    %v5065 = vpack.c.b16 %v4442, %v4435
    %v5066 = vpack.c.b16 %v4443, %v4436
    %v5067 = vpack.c.b16 %v4444, %v4437
    %v5068 = vpack.c.b16 %v4452, %v4445
    %v5069 = vpack.c.b16 %v4453, %v4446
    %v5070 = vpack.c.b16 %v4454, %v4447
    %v5071 = vpack.c.b16 %v4455, %v4448
    %v5072 = vpack.c.b16 %v4456, %v4449
    %v5073 = vpack.c.b16 %v4457, %v4450
    %v5074 = vpack.c.b16 %v4458, %v4451
    %v5075 = vpack.c.b16 %v4466, %v4459
    %v5076 = vpack.c.b16 %v4467, %v4460
    %v5077 = vpack.c.b16 %v4468, %v4461
    %v5078 = vpack.c.b16 %v4469, %v4462
    %v5079 = vpack.c.b16 %v4470, %v4463
    %v5080 = vpack.c.b16 %v4471, %v4464
    %v5081 = vpack.c.b16 %v4472, %v4465
    %v5082 = vpack.c.b16 %v4480, %v4473
    %v5083 = vpack.c.b16 %v4481, %v4474
    %v5084 = vpack.c.b16 %v4482, %v4475
    %v5085 = vpack.c.b16 %v4483, %v4476
    %v5086 = vpack.c.b16 %v4484, %v4477
    %v5087 = vpack.c.b16 %v4485, %v4478
    %v5088 = vpack.c.b16 %v4486, %v4479
    %v5089 = vpack.c.b16 %v4494, %v4487
    %v5090 = vpack.c.b16 %v4495, %v4488
    %v5091 = vpack.c.b16 %v4496, %v4489
    %v5092 = vpack.c.b16 %v4497, %v4490
    %v5093 = vpack.c.b16 %v4498, %v4491
    %v5094 = vpack.c.b16 %v4499, %v4492
    %v5095 = vpack.c.b16 %v4500, %v4493
    %v5096 = vpack.c.b16 %v4508, %v4501
    %v5097 = vpack.c.b16 %v4509, %v4502
    %v5098 = vpack.c.b16 %v4510, %v4503
    %v5099 = vpack.c.b16 %v4511, %v4504
    %v5100 = vpack.c.b16 %v4512, %v4505
    %v5101 = vpack.c.b16 %v4513, %v4506
    %v5102 = vpack.c.b16 %v4514, %v4507
    %v5103 = vpack.c.b16 %v4522, %v4515
    %v5104 = vpack.c.b16 %v4523, %v4516
    %v5105 = vpack.c.b16 %v4524, %v4517
    %v5106 = vpack.c.b16 %v4525, %v4518
    %v5107 = vpack.c.b16 %v4526, %v4519
    %v5108 = vpack.c.b16 %v4527, %v4520
    %v5109 = vpack.c.b16 %v4528, %v4521
    %v5110 = vpack.c.b16 %v4536, %v4529
    %v5111 = vpack.c.b16 %v4537, %v4530
    %v5112 = vpack.c.b16 %v4538, %v4531
    %v5113 = vpack.c.b16 %v4539, %v4532
    %v5114 = vpack.c.b16 %v4540, %v4533
    %v5115 = vpack.c.b16 %v4541, %v4534
    %v5116 = vpack.c.b16 %v4542, %v4535
    %v5117 = vpack.c.b16 %v4550, %v4543
    %v5118 = vpack.c.b16 %v4551, %v4544
    %v5119 = vpack.c.b16 %v4552, %v4545
    %v5120 = vpack.c.b16 %v4553, %v4546
    %v5121 = vpack.c.b16 %v4554, %v4547
    %v5122 = vpack.c.b16 %v4555, %v4548
    %v5123 = vpack.c.b16 %v4556, %v4549
    %v5124 = vpack.c.b16 %v4564, %v4557
    %v5125 = vpack.c.b16 %v4565, %v4558
    %v5126 = vpack.c.b16 %v4566, %v4559
    %v5127 = vpack.c.b16 %v4567, %v4560
    %v5128 = vpack.c.b16 %v4568, %v4561
    %v5129 = vpack.c.b16 %v4569, %v4562
    %v5130 = vpack.c.b16 %v4570, %v4563
    %v5131 = vpack.c.b16 %v4578, %v4571
    %v5132 = vpack.c.b16 %v4579, %v4572
    %v5133 = vpack.c.b16 %v4580, %v4573
    %v5134 = vpack.c.b16 %v4581, %v4574
    %v5135 = vpack.c.b16 %v4582, %v4575
    %v5136 = vpack.c.b16 %v4583, %v4576
    %v5137 = vpack.c.b16 %v4584, %v4577
    %v5138 = vpack.c.b16 %v4592, %v4585
    %v5139 = vpack.c.b16 %v4593, %v4586
    %v5140 = vpack.c.b16 %v4594, %v4587
    %v5141 = vpack.c.b16 %v4595, %v4588
    %v5142 = vpack.c.b16 %v4596, %v4589
    %v5143 = vpack.c.b16 %v4597, %v4590
    %v5144 = vpack.c.b16 %v4598, %v4591
    %v5145 = vpack.c.b16 %v4606, %v4599
    %v5146 = vpack.c.b16 %v4607, %v4600
    %v5147 = vpack.c.b16 %v4608, %v4601
    %v5148 = vpack.c.b16 %v4609, %v4602
    %v5149 = vpack.c.b16 %v4610, %v4603
    %v5150 = vpack.c.b16 %v4611, %v4604
    %v5151 = vpack.c.b16 %v4612, %v4605
    %v5152 = vpack.c.b16 %v4620, %v4613
    %v5153 = vpack.c.b16 %v4621, %v4614
    %v5154 = vpack.c.b16 %v4622, %v4615
    %v5155 = vpack.c.b16 %v4623, %v4616
    %v5156 = vpack.c.b16 %v4624, %v4617
    %v5157 = vpack.c.b16 %v4625, %v4618
    %v5158 = vpack.c.b16 %v4626, %v4619
    %v5159 = vpack.c.b16 %v4634, %v4627
    %v5160 = vpack.c.b16 %v4635, %v4628
    %v5161 = vpack.c.b16 %v4636, %v4629
    %v5162 = vpack.c.b16 %v4637, %v4630
    %v5163 = vpack.c.b16 %v4638, %v4631
    %v5164 = vpack.c.b16 %v4639, %v4632
    %v5165 = vpack.c.b16 %v4640, %v4633
    %v5166 = vpack.c.b16 %v4648, %v4641
    %v5167 = vpack.c.b16 %v4649, %v4642
    %v5168 = vpack.c.b16 %v4650, %v4643
    %v5169 = vpack.c.b16 %v4651, %v4644
    %v5170 = vpack.c.b16 %v4652, %v4645
    %v5171 = vpack.c.b16 %v4653, %v4646
    %v5172 = vpack.c.b16 %v4654, %v4647
    %v5173 = vpack.c.b16 %v4662, %v4655
    %v5174 = vpack.c.b16 %v4663, %v4656
    %v5175 = vpack.c.b16 %v4664, %v4657
    %v5176 = vpack.c.b16 %v4665, %v4658
    %v5177 = vpack.c.b16 %v4666, %v4659
    %v5178 = vpack.c.b16 %v4667, %v4660
    %v5179 = vpack.c.b16 %v4668, %v4661
    %v5180 = vpack.c.b16 %v4676, %v4669
    %v5181 = vpack.c.b16 %v4677, %v4670
    %v5182 = vpack.c.b16 %v4678, %v4671
    %v5183 = vpack.c.b16 %v4679, %v4672
    %v5184 = vpack.c.b16 %v4680, %v4673
    %v5185 = vpack.c.b16 %v4681, %v4674
    %v5186 = vpack.c.b16 %v4682, %v4675
    %v5187 = vpack.c.b16 %v4690, %v4683
    %v5188 = vpack.c.b16 %v4691, %v4684
    %v5189 = vpack.c.b16 %v4692, %v4685
    %v5190 = vpack.c.b16 %v4693, %v4686
    %v5191 = vpack.c.b16 %v4694, %v4687
    %v5192 = vpack.c.b16 %v4695, %v4688
    %v5193 = vpack.c.b16 %v4696, %v4689
    %v5194 = vpack.c.b16 %v4704, %v4697
    %v5195 = vpack.c.b16 %v4705, %v4698
    %v5196 = vpack.c.b16 %v4706, %v4699
    %v5197 = vpack.c.b16 %v4707, %v4700
    %v5198 = vpack.c.b16 %v4708, %v4701
    %v5199 = vpack.c.b16 %v4709, %v4702
    %v5200 = vpack.c.b16 %v4710, %v4703
    %v5201 = vpack.c.b16 %v4718, %v4711
    %v5202 = vpack.c.b16 %v4719, %v4712
    %v5203 = vpack.c.b16 %v4720, %v4713
    %v5204 = vpack.c.b16 %v4721, %v4714
    %v5205 = vpack.c.b16 %v4722, %v4715
    %v5206 = vpack.c.b16 %v4723, %v4716
    %v5207 = vpack.c.b16 %v4724, %v4717
    %v5208 = vpack.c.b16 %v4732, %v4725
    %v5209 = vpack.c.b16 %v4733, %v4726
    %v5210 = vpack.c.b16 %v4734, %v4727
    %v5211 = vpack.c.b16 %v4735, %v4728
    %v5212 = vpack.c.b16 %v4736, %v4729
    %v5213 = vpack.c.b16 %v4737, %v4730
    %v5214 = vpack.c.b16 %v4738, %v4731
    %v5215 = vpack.c.b16 %v4746, %v4739
    %v5216 = vpack.c.b16 %v4747, %v4740
    %v5217 = vpack.c.b16 %v4748, %v4741
    %v5218 = vpack.c.b16 %v4749, %v4742
    %v5219 = vpack.c.b16 %v4750, %v4743
    %v5220 = vpack.c.b16 %v4751, %v4744
    %v5221 = vpack.c.b16 %v4752, %v4745
    %v5222 = vpack.c.b16 %v4760, %v4753
    %v5223 = vpack.c.b16 %v4761, %v4754
    %v5224 = vpack.c.b16 %v4762, %v4755
    %v5225 = vpack.c.b16 %v4763, %v4756
    %v5226 = vpack.c.b16 %v4764, %v4757
    %v5227 = vpack.c.b16 %v4765, %v4758
    %v5228 = vpack.c.b16 %v4766, %v4759
    %v5229 = vpack.c.b16 %v4774, %v4767
    %v5230 = vpack.c.b16 %v4775, %v4768
    %v5231 = vpack.c.b16 %v4776, %v4769
    %v5232 = vpack.c.b16 %v4777, %v4770
    %v5233 = vpack.c.b16 %v4778, %v4771
    %v5234 = vpack.c.b16 %v4779, %v4772
    %v5235 = vpack.c.b16 %v4780, %v4773
    %v5236 = vpack.c.b16 %v4788, %v4781
    %v5237 = vpack.c.b16 %v4789, %v4782
    %v5238 = vpack.c.b16 %v4790, %v4783
    %v5239 = vpack.c.b16 %v4791, %v4784
    %v5240 = vpack.c.b16 %v4792, %v4785
    %v5241 = vpack.c.b16 %v4793, %v4786
    %v5242 = vpack.c.b16 %v4794, %v4787
    %5691 = vmatprep.subr.bf16.mxu0 %v4796
    %5692 = vmatpush1.bf16.msra.mxu0 %v4795
    %5693 = vmatprep.subr.bf16.mxu0 %v4803
    %5694 = vmatpush1.bf16.msra.mxu0 %v4802
    %5695 = vmatprep.subr.bf16.mxu0 %v4810
    %5696 = vmatpush1.bf16.msra.mxu0 %v4809
    %5697 = vmatprep.subr.bf16.mxu0 %v4817
    %5698 = vmatpush1.bf16.msra.mxu0 %v4816
    %5699 = vmatprep.subr.bf16.mxu0 %v4824
    %5700 = vmatpush1.bf16.msra.mxu0 %v4823
    %5701 = vmatprep.subr.bf16.mxu0 %v4831
    %5702 = vmatpush1.bf16.msra.mxu0 %v4830
    %5703 = vmatprep.subr.bf16.mxu0 %v4838
    %5704 = vmatpush1.bf16.msra.mxu0 %v4837
    %5705 = vmatprep.subr.bf16.mxu0 %v4845
    %5706 = vmatpush1.bf16.msra.mxu0 %v4844
    %5707 = vmatprep.subr.bf16.mxu0 %v4852
    %5708 = vmatpush1.bf16.msra.mxu0 %v4851
    %5709 = vmatprep.subr.bf16.mxu0 %v4859
    %5710 = vmatpush1.bf16.msra.mxu0 %v4858
    %5711 = vmatprep.subr.bf16.mxu0 %v4866
    %5712 = vmatpush1.bf16.msra.mxu0 %v4865
    %5713 = vmatprep.subr.bf16.mxu0 %v4873
    %5714 = vmatpush1.bf16.msra.mxu0 %v4872
    %5715 = vmatprep.subr.bf16.mxu0 %v4880
    %5716 = vmatpush1.bf16.msra.mxu0 %v4879
    %5717 = vmatprep.subr.bf16.mxu0 %v4887
    %5718 = vmatpush1.bf16.msra.mxu0 %v4886
    %5719 = vmatprep.subr.bf16.mxu0 %v4894
    %5720 = vmatpush1.bf16.msra.mxu0 %v4893
    %5721 = vmatprep.subr.bf16.mxu0 %v4901
    %5722 = vmatpush1.bf16.msra.mxu0 %v4900
    %5723 = vmatprep.mubr.bf16.mxu0 %v2831
    %5724 = vmatmul.mubr.bf16.gmra.mrb[0].mxu0 %v2830
    %v5725 = vpop.f32.mrb[0].mxu0
    %v5726 = vadd.f32 %v3355, %v5725
    %v5727 = vpop.f32.mrb[0].mxu0
    %v5728 = vadd.f32 %v3359, %v5727
    %v5729 = vpop.f32.mrb[0].mxu0
    %v5730 = vpop.f32.mrb[0].mxu0
    %5731 = vdwg.mxu0
    %5732 = vmatprep.subr.bf16.mxu0 %v4908
    %5733 = vmatpush1.bf16.msra.mxu0 %v4907
    %5734 = vmatprep.subr.bf16.mxu0 %v4915
    %5735 = vmatpush1.bf16.msra.mxu0 %v4914
    %5736 = vmatprep.subr.bf16.mxu0 %v4922
    %5737 = vmatpush1.bf16.msra.mxu0 %v4921
    %5738 = vmatprep.subr.bf16.mxu0 %v4929
    %5739 = vmatpush1.bf16.msra.mxu0 %v4928
    %5740 = vmatprep.subr.bf16.mxu0 %v4936
    %5741 = vmatpush1.bf16.msra.mxu0 %v4935
    %5742 = vmatprep.subr.bf16.mxu0 %v4943
    %5743 = vmatpush1.bf16.msra.mxu0 %v4942
    %5744 = vmatprep.subr.bf16.mxu0 %v4950
    %5745 = vmatpush1.bf16.msra.mxu0 %v4949
    %5746 = vmatprep.subr.bf16.mxu0 %v4957
    %5747 = vmatpush1.bf16.msra.mxu0 %v4956
    %5748 = vmatprep.subr.bf16.mxu0 %v4964
    %5749 = vmatpush1.bf16.msra.mxu0 %v4963
    %5750 = vmatprep.subr.bf16.mxu0 %v4971
    %5751 = vmatpush1.bf16.msra.mxu0 %v4970
    %5752 = vmatprep.subr.bf16.mxu0 %v4978
    %5753 = vmatpush1.bf16.msra.mxu0 %v4977
    %5754 = vmatprep.subr.bf16.mxu0 %v4985
    %5755 = vmatpush1.bf16.msra.mxu0 %v4984
    %5756 = vmatprep.subr.bf16.mxu0 %v4992
    %5757 = vmatpush1.bf16.msra.mxu0 %v4991
    %5758 = vmatprep.subr.bf16.mxu0 %v4999
    %5759 = vmatpush1.bf16.msra.mxu0 %v4998
    %5760 = vmatprep.subr.bf16.mxu0 %v5006
    %5761 = vmatpush1.bf16.msra.mxu0 %v5005
    %5762 = vmatprep.subr.bf16.mxu0 %v5013
    %5763 = vmatpush1.bf16.msra.mxu0 %v5012
    %5764 = vmatprep.mubr.bf16.mxu0 %v2833
    %5765 = vmatmul.mubr.bf16.gmra.mrb[0].mxu0 %v2832
    %v5766 = vpop.f32.mrb[0].mxu0
    %v5767 = vadd.f32 %v5726, %v5766
    %v5768 = vpop.f32.mrb[0].mxu0
    %v5769 = vadd.f32 %v5728, %v5768
    %v5770 = vpop.f32.mrb[0].mxu0
    %v5771 = vpop.f32.mrb[0].mxu0
    %5772 = vdwg.mxu0
    %5773 = vmatprep.subr.bf16.mxu0 %v5020
    %5774 = vmatpush1.bf16.msra.mxu0 %v5019
    %5775 = vmatprep.subr.bf16.mxu0 %v5027
    %5776 = vmatpush1.bf16.msra.mxu0 %v5026
    %5777 = vmatprep.subr.bf16.mxu0 %v5034
    %5778 = vmatpush1.bf16.msra.mxu0 %v5033
    %5779 = vmatprep.subr.bf16.mxu0 %v5041
    %5780 = vmatpush1.bf16.msra.mxu0 %v5040
    %5781 = vmatprep.subr.bf16.mxu0 %v5048
    %5782 = vmatpush1.bf16.msra.mxu0 %v5047
    %5783 = vmatprep.subr.bf16.mxu0 %v5055
    %5784 = vmatpush1.bf16.msra.mxu0 %v5054
    %5785 = vmatprep.subr.bf16.mxu0 %v5062
    %5786 = vmatpush1.bf16.msra.mxu0 %v5061
    %5787 = vmatprep.subr.bf16.mxu0 %v5069
    %5788 = vmatpush1.bf16.msra.mxu0 %v5068
    %5789 = vmatprep.subr.bf16.mxu0 %v5076
    %5790 = vmatpush1.bf16.msra.mxu0 %v5075
    %5791 = vmatprep.subr.bf16.mxu0 %v5083
    %5792 = vmatpush1.bf16.msra.mxu0 %v5082
    %5793 = vmatprep.subr.bf16.mxu0 %v5090
    %5794 = vmatpush1.bf16.msra.mxu0 %v5089
    %5795 = vmatprep.subr.bf16.mxu0 %v5097
    %5796 = vmatpush1.bf16.msra.mxu0 %v5096
    %5797 = vmatprep.subr.bf16.mxu0 %v5104
    %5798 = vmatpush1.bf16.msra.mxu0 %v5103
    %5799 = vmatprep.subr.bf16.mxu0 %v5111
    %5800 = vmatpush1.bf16.msra.mxu0 %v5110
    %5801 = vmatprep.subr.bf16.mxu0 %v5118
    %5802 = vmatpush1.bf16.msra.mxu0 %v5117
    %5803 = vmatprep.subr.bf16.mxu0 %v5125
    %5804 = vmatpush1.bf16.msra.mxu0 %v5124
    %5805 = vmatprep.mubr.bf16.mxu0 %v2835
    %5806 = vmatmul.mubr.bf16.gmra.mrb[0].mxu0 %v2834
    %v5807 = vpop.f32.mrb[0].mxu0
    %v5808 = vadd.f32 %v5767, %v5807
    %v5809 = vpop.f32.mrb[0].mxu0
    %v5810 = vadd.f32 %v5769, %v5809
    %v5811 = vpop.f32.mrb[0].mxu0
    %v5812 = vpop.f32.mrb[0].mxu0
    %5813 = vdwg.mxu0
    %5814 = vmatprep.subr.bf16.mxu0 %v5132
    %5815 = vmatpush1.bf16.msra.mxu0 %v5131
    %5816 = vmatprep.subr.bf16.mxu0 %v5139
    %5817 = vmatpush1.bf16.msra.mxu0 %v5138
    %5818 = vmatprep.subr.bf16.mxu0 %v5146
    %5819 = vmatpush1.bf16.msra.mxu0 %v5145
    %5820 = vmatprep.subr.bf16.mxu0 %v5153
    %5821 = vmatpush1.bf16.msra.mxu0 %v5152
    %5822 = vmatprep.subr.bf16.mxu0 %v5160
    %5823 = vmatpush1.bf16.msra.mxu0 %v5159
    %5824 = vmatprep.subr.bf16.mxu0 %v5167
    %5825 = vmatpush1.bf16.msra.mxu0 %v5166
    %5826 = vmatprep.subr.bf16.mxu0 %v5174
    %5827 = vmatpush1.bf16.msra.mxu0 %v5173
    %5828 = vmatprep.subr.bf16.mxu0 %v5181
    %5829 = vmatpush1.bf16.msra.mxu0 %v5180
    %5830 = vmatprep.subr.bf16.mxu0 %v5188
    %5831 = vmatpush1.bf16.msra.mxu0 %v5187
    %5832 = vmatprep.subr.bf16.mxu0 %v5195
    %5833 = vmatpush1.bf16.msra.mxu0 %v5194
    %5834 = vmatprep.subr.bf16.mxu0 %v5202
    %5835 = vmatpush1.bf16.msra.mxu0 %v5201
    %5836 = vmatprep.subr.bf16.mxu0 %v5209
    %5837 = vmatpush1.bf16.msra.mxu0 %v5208
    %5838 = vmatprep.subr.bf16.mxu0 %v5216
    %5839 = vmatpush1.bf16.msra.mxu0 %v5215
    %5840 = vmatprep.subr.bf16.mxu0 %v5223
    %5841 = vmatpush1.bf16.msra.mxu0 %v5222
    %5842 = vmatprep.subr.bf16.mxu0 %v5230
    %5843 = vmatpush1.bf16.msra.mxu0 %v5229
    %5844 = vmatprep.subr.bf16.mxu0 %v5237
    %5845 = vmatpush1.bf16.msra.mxu0 %v5236
    %5846 = vmatprep.mubr.bf16.mxu0 %v2837
    %5847 = vmatmul.mubr.bf16.gmra.mrb[0].mxu0 %v2836
    %v5848 = vpop.f32.mrb[0].mxu0
    %v5849 = vadd.f32 %v5808, %v5848
    %v5850 = vpop.f32.mrb[0].mxu0
    %v5851 = vadd.f32 %v5810, %v5850
    %v5852 = vpop.f32.mrb[0].mxu0
    %v5853 = vpop.f32.mrb[0].mxu0
    %5854 = vdwg.mxu0
    %5855 = vmatprep.subr.bf16.mxu0 %v4798
    %5856 = vmatpush1.bf16.msra.mxu0 %v4797
    %5857 = vmatprep.subr.bf16.mxu0 %v4805
    %5858 = vmatpush1.bf16.msra.mxu0 %v4804
    %5859 = vmatprep.subr.bf16.mxu0 %v4812
    %5860 = vmatpush1.bf16.msra.mxu0 %v4811
    %5861 = vmatprep.subr.bf16.mxu0 %v4819
    %5862 = vmatpush1.bf16.msra.mxu0 %v4818
    %5863 = vmatprep.subr.bf16.mxu0 %v4826
    %5864 = vmatpush1.bf16.msra.mxu0 %v4825
    %5865 = vmatprep.subr.bf16.mxu0 %v4833
    %5866 = vmatpush1.bf16.msra.mxu0 %v4832
    %5867 = vmatprep.subr.bf16.mxu0 %v4840
    %5868 = vmatpush1.bf16.msra.mxu0 %v4839
    %5869 = vmatprep.subr.bf16.mxu0 %v4847
    %5870 = vmatpush1.bf16.msra.mxu0 %v4846
    %5871 = vmatprep.subr.bf16.mxu0 %v4854
    %5872 = vmatpush1.bf16.msra.mxu0 %v4853
    %5873 = vmatprep.subr.bf16.mxu0 %v4861
    %5874 = vmatpush1.bf16.msra.mxu0 %v4860
    %5875 = vmatprep.subr.bf16.mxu0 %v4868
    %5876 = vmatpush1.bf16.msra.mxu0 %v4867
    %5877 = vmatprep.subr.bf16.mxu0 %v4875
    %5878 = vmatpush1.bf16.msra.mxu0 %v4874
    %5879 = vmatprep.subr.bf16.mxu0 %v4882
    %5880 = vmatpush1.bf16.msra.mxu0 %v4881
    %5881 = vmatprep.subr.bf16.mxu0 %v4889
    %5882 = vmatpush1.bf16.msra.mxu0 %v4888
    %5883 = vmatprep.subr.bf16.mxu0 %v4896
    %5884 = vmatpush1.bf16.msra.mxu0 %v4895
    %5885 = vmatprep.subr.bf16.mxu0 %v4903
    %5886 = vmatpush1.bf16.msra.mxu0 %v4902
    %5887 = vmatprep.mubr.bf16.mxu0 %v2831
    %5888 = vmatmul.mubr.bf16.gmra.mrb[0].mxu0 %v2830
    %v5889 = vpop.f32.mrb[0].mxu0
    %v5890 = vadd.f32 %v3363, %v5889
    %v5891 = vpop.f32.mrb[0].mxu0
    %v5892 = vadd.f32 %v3367, %v5891
    %v5893 = vpop.f32.mrb[0].mxu0
    %v5894 = vpop.f32.mrb[0].mxu0
    %5895 = vdwg.mxu0
    %5896 = vmatprep.subr.bf16.mxu0 %v4910
    %5897 = vmatpush1.bf16.msra.mxu0 %v4909
    %5898 = vmatprep.subr.bf16.mxu0 %v4917
    %5899 = vmatpush1.bf16.msra.mxu0 %v4916
    %5900 = vmatprep.subr.bf16.mxu0 %v4924
    %5901 = vmatpush1.bf16.msra.mxu0 %v4923
    %5902 = vmatprep.subr.bf16.mxu0 %v4931
    %5903 = vmatpush1.bf16.msra.mxu0 %v4930
    %5904 = vmatprep.subr.bf16.mxu0 %v4938
    %5905 = vmatpush1.bf16.msra.mxu0 %v4937
    %5906 = vmatprep.subr.bf16.mxu0 %v4945
    %5907 = vmatpush1.bf16.msra.mxu0 %v4944
    %5908 = vmatprep.subr.bf16.mxu0 %v4952
    %5909 = vmatpush1.bf16.msra.mxu0 %v4951
    %5910 = vmatprep.subr.bf16.mxu0 %v4959
    %5911 = vmatpush1.bf16.msra.mxu0 %v4958
    %5912 = vmatprep.subr.bf16.mxu0 %v4966
    %5913 = vmatpush1.bf16.msra.mxu0 %v4965
    %5914 = vmatprep.subr.bf16.mxu0 %v4973
    %5915 = vmatpush1.bf16.msra.mxu0 %v4972
    %5916 = vmatprep.subr.bf16.mxu0 %v4980
    %5917 = vmatpush1.bf16.msra.mxu0 %v4979
    %5918 = vmatprep.subr.bf16.mxu0 %v4987
    %5919 = vmatpush1.bf16.msra.mxu0 %v4986
    %5920 = vmatprep.subr.bf16.mxu0 %v4994
    %5921 = vmatpush1.bf16.msra.mxu0 %v4993
    %5922 = vmatprep.subr.bf16.mxu0 %v5001
    %5923 = vmatpush1.bf16.msra.mxu0 %v5000
    %5924 = vmatprep.subr.bf16.mxu0 %v5008
    %5925 = vmatpush1.bf16.msra.mxu0 %v5007
    %5926 = vmatprep.subr.bf16.mxu0 %v5015
    %5927 = vmatpush1.bf16.msra.mxu0 %v5014
    %5928 = vmatprep.mubr.bf16.mxu0 %v2833
    %5929 = vmatmul.mubr.bf16.gmra.mrb[0].mxu0 %v2832
    %v5930 = vpop.f32.mrb[0].mxu0
    %v5931 = vadd.f32 %v5890, %v5930
    %v5932 = vpop.f32.mrb[0].mxu0
    %v5933 = vadd.f32 %v5892, %v5932
    %v5934 = vpop.f32.mrb[0].mxu0
    %v5935 = vpop.f32.mrb[0].mxu0
    %5936 = vdwg.mxu0
    %5937 = vmatprep.subr.bf16.mxu0 %v5022
    %5938 = vmatpush1.bf16.msra.mxu0 %v5021
    %5939 = vmatprep.subr.bf16.mxu0 %v5029
    %5940 = vmatpush1.bf16.msra.mxu0 %v5028
    %5941 = vmatprep.subr.bf16.mxu0 %v5036
    %5942 = vmatpush1.bf16.msra.mxu0 %v5035
    %5943 = vmatprep.subr.bf16.mxu0 %v5043
    %5944 = vmatpush1.bf16.msra.mxu0 %v5042
    %5945 = vmatprep.subr.bf16.mxu0 %v5050
    %5946 = vmatpush1.bf16.msra.mxu0 %v5049
    %5947 = vmatprep.subr.bf16.mxu0 %v5057
    %5948 = vmatpush1.bf16.msra.mxu0 %v5056
    %5949 = vmatprep.subr.bf16.mxu0 %v5064
    %5950 = vmatpush1.bf16.msra.mxu0 %v5063
    %5951 = vmatprep.subr.bf16.mxu0 %v5071
    %5952 = vmatpush1.bf16.msra.mxu0 %v5070
    %5953 = vmatprep.subr.bf16.mxu0 %v5078
    %5954 = vmatpush1.bf16.msra.mxu0 %v5077
    %5955 = vmatprep.subr.bf16.mxu0 %v5085
    %5956 = vmatpush1.bf16.msra.mxu0 %v5084
    %5957 = vmatprep.subr.bf16.mxu0 %v5092
    %5958 = vmatpush1.bf16.msra.mxu0 %v5091
    %5959 = vmatprep.subr.bf16.mxu0 %v5099
    %5960 = vmatpush1.bf16.msra.mxu0 %v5098
    %5961 = vmatprep.subr.bf16.mxu0 %v5106
    %5962 = vmatpush1.bf16.msra.mxu0 %v5105
    %5963 = vmatprep.subr.bf16.mxu0 %v5113
    %5964 = vmatpush1.bf16.msra.mxu0 %v5112
    %5965 = vmatprep.subr.bf16.mxu0 %v5120
    %5966 = vmatpush1.bf16.msra.mxu0 %v5119
    %5967 = vmatprep.subr.bf16.mxu0 %v5127
    %5968 = vmatpush1.bf16.msra.mxu0 %v5126
    %5969 = vmatprep.mubr.bf16.mxu0 %v2835
    %5970 = vmatmul.mubr.bf16.gmra.mrb[0].mxu0 %v2834
    %v5971 = vpop.f32.mrb[0].mxu0
    %v5972 = vadd.f32 %v5931, %v5971
    %v5973 = vpop.f32.mrb[0].mxu0
    %v5974 = vadd.f32 %v5933, %v5973
    %v5975 = vpop.f32.mrb[0].mxu0
    %v5976 = vpop.f32.mrb[0].mxu0
    %5977 = vdwg.mxu0
    %5978 = vmatprep.subr.bf16.mxu0 %v5134
    %5979 = vmatpush1.bf16.msra.mxu0 %v5133
    %5980 = vmatprep.subr.bf16.mxu0 %v5141
    %5981 = vmatpush1.bf16.msra.mxu0 %v5140
    %5982 = vmatprep.subr.bf16.mxu0 %v5148
    %5983 = vmatpush1.bf16.msra.mxu0 %v5147
    %5984 = vmatprep.subr.bf16.mxu0 %v5155
    %5985 = vmatpush1.bf16.msra.mxu0 %v5154
    %5986 = vmatprep.subr.bf16.mxu0 %v5162
    %5987 = vmatpush1.bf16.msra.mxu0 %v5161
    %5988 = vmatprep.subr.bf16.mxu0 %v5169
    %5989 = vmatpush1.bf16.msra.mxu0 %v5168
    %5990 = vmatprep.subr.bf16.mxu0 %v5176
    %5991 = vmatpush1.bf16.msra.mxu0 %v5175
    %5992 = vmatprep.subr.bf16.mxu0 %v5183
    %5993 = vmatpush1.bf16.msra.mxu0 %v5182
    %5994 = vmatprep.subr.bf16.mxu0 %v5190
    %5995 = vmatpush1.bf16.msra.mxu0 %v5189
    %5996 = vmatprep.subr.bf16.mxu0 %v5197
    %5997 = vmatpush1.bf16.msra.mxu0 %v5196
    %5998 = vmatprep.subr.bf16.mxu0 %v5204
    %5999 = vmatpush1.bf16.msra.mxu0 %v5203
    %6000 = vmatprep.subr.bf16.mxu0 %v5211
    %6001 = vmatpush1.bf16.msra.mxu0 %v5210
    %6002 = vmatprep.subr.bf16.mxu0 %v5218
    %6003 = vmatpush1.bf16.msra.mxu0 %v5217
    %6004 = vmatprep.subr.bf16.mxu0 %v5225
    %6005 = vmatpush1.bf16.msra.mxu0 %v5224
    %6006 = vmatprep.subr.bf16.mxu0 %v5232
    %6007 = vmatpush1.bf16.msra.mxu0 %v5231
    %6008 = vmatprep.subr.bf16.mxu0 %v5239
    %6009 = vmatpush1.bf16.msra.mxu0 %v5238
    %6010 = vmatprep.mubr.bf16.mxu0 %v2837
    %6011 = vmatmul.mubr.bf16.gmra.mrb[0].mxu0 %v2836
    %v6012 = vpop.f32.mrb[0].mxu0
    %v6013 = vadd.f32 %v5972, %v6012
    %v6014 = vpop.f32.mrb[0].mxu0
    %v6015 = vadd.f32 %v5974, %v6014
    %v6016 = vpop.f32.mrb[0].mxu0
    %v6017 = vpop.f32.mrb[0].mxu0
    %6018 = vdwg.mxu0
    %6019 = vmatprep.subr.bf16.mxu0 %v4800
    %6020 = vmatpush1.bf16.msra.mxu0 %v4799
    %6021 = vmatprep.subr.bf16.mxu0 %v4807
    %6022 = vmatpush1.bf16.msra.mxu0 %v4806
    %6023 = vmatprep.subr.bf16.mxu0 %v4814
    %6024 = vmatpush1.bf16.msra.mxu0 %v4813
    %6025 = vmatprep.subr.bf16.mxu0 %v4821
    %6026 = vmatpush1.bf16.msra.mxu0 %v4820
    %6027 = vmatprep.subr.bf16.mxu0 %v4828
    %6028 = vmatpush1.bf16.msra.mxu0 %v4827
    %6029 = vmatprep.subr.bf16.mxu0 %v4835
    %6030 = vmatpush1.bf16.msra.mxu0 %v4834
    %6031 = vmatprep.subr.bf16.mxu0 %v4842
    %6032 = vmatpush1.bf16.msra.mxu0 %v4841
    %6033 = vmatprep.subr.bf16.mxu0 %v4849
    %6034 = vmatpush1.bf16.msra.mxu0 %v4848
    %6035 = vmatprep.subr.bf16.mxu0 %v4856
    %6036 = vmatpush1.bf16.msra.mxu0 %v4855
    %6037 = vmatprep.subr.bf16.mxu0 %v4863
    %6038 = vmatpush1.bf16.msra.mxu0 %v4862
    %6039 = vmatprep.subr.bf16.mxu0 %v4870
    %6040 = vmatpush1.bf16.msra.mxu0 %v4869
    %6041 = vmatprep.subr.bf16.mxu0 %v4877
    %6042 = vmatpush1.bf16.msra.mxu0 %v4876
    %6043 = vmatprep.subr.bf16.mxu0 %v4884
    %6044 = vmatpush1.bf16.msra.mxu0 %v4883
    %6045 = vmatprep.subr.bf16.mxu0 %v4891
    %6046 = vmatpush1.bf16.msra.mxu0 %v4890
    %6047 = vmatprep.subr.bf16.mxu0 %v4898
    %6048 = vmatpush1.bf16.msra.mxu0 %v4897
    %6049 = vmatprep.subr.bf16.mxu0 %v4905
    %6050 = vmatpush1.bf16.msra.mxu0 %v4904
    %6051 = vmatprep.mubr.bf16.mxu0 %v2831
    %6052 = vmatmul.mubr.bf16.gmra.mrb[0].mxu0 %v2830
    %v6053 = vpop.f32.mrb[0].mxu0
    %v6054 = vadd.f32 %v3371, %v6053
    %v6055 = vpop.f32.mrb[0].mxu0
    %v6056 = vadd.f32 %v3375, %v6055
    %v6057 = vpop.f32.mrb[0].mxu0
    %v6058 = vpop.f32.mrb[0].mxu0
    %6059 = vdwg.mxu0
    %6060 = vmatprep.subr.bf16.mxu0 %v4912
    %6061 = vmatpush1.bf16.msra.mxu0 %v4911
    %6062 = vmatprep.subr.bf16.mxu0 %v4919
    %6063 = vmatpush1.bf16.msra.mxu0 %v4918
    %6064 = vmatprep.subr.bf16.mxu0 %v4926
    %6065 = vmatpush1.bf16.msra.mxu0 %v4925
    %6066 = vmatprep.subr.bf16.mxu0 %v4933
    %6067 = vmatpush1.bf16.msra.mxu0 %v4932
    %6068 = vmatprep.subr.bf16.mxu0 %v4940
    %6069 = vmatpush1.bf16.msra.mxu0 %v4939
    %6070 = vmatprep.subr.bf16.mxu0 %v4947
    %6071 = vmatpush1.bf16.msra.mxu0 %v4946
    %6072 = vmatprep.subr.bf16.mxu0 %v4954
    %6073 = vmatpush1.bf16.msra.mxu0 %v4953
    %6074 = vmatprep.subr.bf16.mxu0 %v4961
    %6075 = vmatpush1.bf16.msra.mxu0 %v4960
    %6076 = vmatprep.subr.bf16.mxu0 %v4968
    %6077 = vmatpush1.bf16.msra.mxu0 %v4967
    %6078 = vmatprep.subr.bf16.mxu0 %v4975
    %6079 = vmatpush1.bf16.msra.mxu0 %v4974
    %6080 = vmatprep.subr.bf16.mxu0 %v4982
    %6081 = vmatpush1.bf16.msra.mxu0 %v4981
    %6082 = vmatprep.subr.bf16.mxu0 %v4989
    %6083 = vmatpush1.bf16.msra.mxu0 %v4988
    %6084 = vmatprep.subr.bf16.mxu0 %v4996
    %6085 = vmatpush1.bf16.msra.mxu0 %v4995
    %6086 = vmatprep.subr.bf16.mxu0 %v5003
    %6087 = vmatpush1.bf16.msra.mxu0 %v5002
    %6088 = vmatprep.subr.bf16.mxu0 %v5010
    %6089 = vmatpush1.bf16.msra.mxu0 %v5009
    %6090 = vmatprep.subr.bf16.mxu0 %v5017
    %6091 = vmatpush1.bf16.msra.mxu0 %v5016
    %6092 = vmatprep.mubr.bf16.mxu0 %v2833
    %6093 = vmatmul.mubr.bf16.gmra.mrb[0].mxu0 %v2832
    %v6094 = vpop.f32.mrb[0].mxu0
    %v6095 = vadd.f32 %v6054, %v6094
    %v6096 = vpop.f32.mrb[0].mxu0
    %v6097 = vadd.f32 %v6056, %v6096
    %v6098 = vpop.f32.mrb[0].mxu0
    %v6099 = vpop.f32.mrb[0].mxu0
    %6100 = vdwg.mxu0
    %6101 = vmatprep.subr.bf16.mxu0 %v5024
    %6102 = vmatpush1.bf16.msra.mxu0 %v5023
    %6103 = vmatprep.subr.bf16.mxu0 %v5031
    %6104 = vmatpush1.bf16.msra.mxu0 %v5030
    %6105 = vmatprep.subr.bf16.mxu0 %v5038
    %6106 = vmatpush1.bf16.msra.mxu0 %v5037
    %6107 = vmatprep.subr.bf16.mxu0 %v5045
    %6108 = vmatpush1.bf16.msra.mxu0 %v5044
    %6109 = vmatprep.subr.bf16.mxu0 %v5052
    %6110 = vmatpush1.bf16.msra.mxu0 %v5051
    %6111 = vmatprep.subr.bf16.mxu0 %v5059
    %6112 = vmatpush1.bf16.msra.mxu0 %v5058
    %6113 = vmatprep.subr.bf16.mxu0 %v5066
    %6114 = vmatpush1.bf16.msra.mxu0 %v5065
    %6115 = vmatprep.subr.bf16.mxu0 %v5073
    %6116 = vmatpush1.bf16.msra.mxu0 %v5072
    %6117 = vmatprep.subr.bf16.mxu0 %v5080
    %6118 = vmatpush1.bf16.msra.mxu0 %v5079
    %6119 = vmatprep.subr.bf16.mxu0 %v5087
    %6120 = vmatpush1.bf16.msra.mxu0 %v5086
    %6121 = vmatprep.subr.bf16.mxu0 %v5094
    %6122 = vmatpush1.bf16.msra.mxu0 %v5093
    %6123 = vmatprep.subr.bf16.mxu0 %v5101
    %6124 = vmatpush1.bf16.msra.mxu0 %v5100
    %6125 = vmatprep.subr.bf16.mxu0 %v5108
    %6126 = vmatpush1.bf16.msra.mxu0 %v5107
    %6127 = vmatprep.subr.bf16.mxu0 %v5115
    %6128 = vmatpush1.bf16.msra.mxu0 %v5114
    %6129 = vmatprep.subr.bf16.mxu0 %v5122
    %6130 = vmatpush1.bf16.msra.mxu0 %v5121
    %6131 = vmatprep.subr.bf16.mxu0 %v5129
    %6132 = vmatpush1.bf16.msra.mxu0 %v5128
    %6133 = vmatprep.mubr.bf16.mxu0 %v2835
    %6134 = vmatmul.mubr.bf16.gmra.mrb[0].mxu0 %v2834
    %v6135 = vpop.f32.mrb[0].mxu0
    %v6136 = vadd.f32 %v6095, %v6135
    %v6137 = vpop.f32.mrb[0].mxu0
    %v6138 = vadd.f32 %v6097, %v6137
    %v6139 = vpop.f32.mrb[0].mxu0
    %v6140 = vpop.f32.mrb[0].mxu0
    %6141 = vdwg.mxu0
    %6142 = vmatprep.subr.bf16.mxu0 %v5136
    %6143 = vmatpush1.bf16.msra.mxu0 %v5135
    %6144 = vmatprep.subr.bf16.mxu0 %v5143
    %6145 = vmatpush1.bf16.msra.mxu0 %v5142
    %6146 = vmatprep.subr.bf16.mxu0 %v5150
    %6147 = vmatpush1.bf16.msra.mxu0 %v5149
    %6148 = vmatprep.subr.bf16.mxu0 %v5157
    %6149 = vmatpush1.bf16.msra.mxu0 %v5156
    %6150 = vmatprep.subr.bf16.mxu0 %v5164
    %6151 = vmatpush1.bf16.msra.mxu0 %v5163
    %6152 = vmatprep.subr.bf16.mxu0 %v5171
    %6153 = vmatpush1.bf16.msra.mxu0 %v5170
    %6154 = vmatprep.subr.bf16.mxu0 %v5178
    %6155 = vmatpush1.bf16.msra.mxu0 %v5177
    %6156 = vmatprep.subr.bf16.mxu0 %v5185
    %6157 = vmatpush1.bf16.msra.mxu0 %v5184
    %6158 = vmatprep.subr.bf16.mxu0 %v5192
    %6159 = vmatpush1.bf16.msra.mxu0 %v5191
    %6160 = vmatprep.subr.bf16.mxu0 %v5199
    %6161 = vmatpush1.bf16.msra.mxu0 %v5198
    %6162 = vmatprep.subr.bf16.mxu0 %v5206
    %6163 = vmatpush1.bf16.msra.mxu0 %v5205
    %6164 = vmatprep.subr.bf16.mxu0 %v5213
    %6165 = vmatpush1.bf16.msra.mxu0 %v5212
    %6166 = vmatprep.subr.bf16.mxu0 %v5220
    %6167 = vmatpush1.bf16.msra.mxu0 %v5219
    %6168 = vmatprep.subr.bf16.mxu0 %v5227
    %6169 = vmatpush1.bf16.msra.mxu0 %v5226
    %6170 = vmatprep.subr.bf16.mxu0 %v5234
    %6171 = vmatpush1.bf16.msra.mxu0 %v5233
    %6172 = vmatprep.subr.bf16.mxu0 %v5241
    %6173 = vmatpush1.bf16.msra.mxu0 %v5240
    %6174 = vmatprep.mubr.bf16.mxu0 %v2837
    %6175 = vmatmul.mubr.bf16.gmra.mrb[0].mxu0 %v2836
    %v6176 = vpop.f32.mrb[0].mxu0
    %v6177 = vadd.f32 %v6136, %v6176
    %v6178 = vpop.f32.mrb[0].mxu0
    %v6179 = vadd.f32 %v6138, %v6178
    %v6180 = vpop.f32.mrb[0].mxu0
    %v6181 = vpop.f32.mrb[0].mxu0
    %6182 = vdwg.mxu0
    %6183 = vmatprep.subr.bf16.mxu0 0
    %6184 = vmatpush1.bf16.msra.mxu0 %v4801
    %6185 = vmatprep.subr.bf16.mxu0 0
    %6186 = vmatpush1.bf16.msra.mxu0 %v4808
    %6187 = vmatprep.subr.bf16.mxu0 0
    %6188 = vmatpush1.bf16.msra.mxu0 %v4815
    %6189 = vmatprep.subr.bf16.mxu0 0
    %6190 = vmatpush1.bf16.msra.mxu0 %v4822
    %6191 = vmatprep.subr.bf16.mxu0 0
    %6192 = vmatpush1.bf16.msra.mxu0 %v4829
    %6193 = vmatprep.subr.bf16.mxu0 0
    %6194 = vmatpush1.bf16.msra.mxu0 %v4836
    %6195 = vmatprep.subr.bf16.mxu0 0
    %6196 = vmatpush1.bf16.msra.mxu0 %v4843
    %6197 = vmatprep.subr.bf16.mxu0 0
    %6198 = vmatpush1.bf16.msra.mxu0 %v4850
    %6199 = vmatprep.subr.bf16.mxu0 0
    %6200 = vmatpush1.bf16.msra.mxu0 %v4857
    %6201 = vmatprep.subr.bf16.mxu0 0
    %6202 = vmatpush1.bf16.msra.mxu0 %v4864
    %6203 = vmatprep.subr.bf16.mxu0 0
    %6204 = vmatpush1.bf16.msra.mxu0 %v4871
    %6205 = vmatprep.subr.bf16.mxu0 0
    %6206 = vmatpush1.bf16.msra.mxu0 %v4878
    %6207 = vmatprep.subr.bf16.mxu0 0
    %6208 = vmatpush1.bf16.msra.mxu0 %v4885
    %6209 = vmatprep.subr.bf16.mxu0 0
    %6210 = vmatpush1.bf16.msra.mxu0 %v4892
    %6211 = vmatprep.subr.bf16.mxu0 0
    %6212 = vmatpush1.bf16.msra.mxu0 %v4899
    %6213 = vmatprep.subr.bf16.mxu0 0
    %6214 = vmatpush1.bf16.msra.mxu0 %v4906
    %6215 = vmatprep.mubr.bf16.mxu0 %v2831
    %6216 = vmatmul.mubr.bf16.gmra.mrb[0].mxu0 %v2830
    %v6217 = vpop.f32.mrb[0].mxu0
    %v6218 = vadd.f32 %v3379, %v6217
    %v6219 = vpop.f32.mrb[0].mxu0
    %v6220 = vpop.f32.mrb[0].mxu0
    %v6221 = vpop.f32.mrb[0].mxu0
    %6222 = vdwg.mxu0
    %6223 = vmatprep.subr.bf16.mxu0 0
    %6224 = vmatpush1.bf16.msra.mxu0 %v4913
    %6225 = vmatprep.subr.bf16.mxu0 0
    %6226 = vmatpush1.bf16.msra.mxu0 %v4920
    %6227 = vmatprep.subr.bf16.mxu0 0
    %6228 = vmatpush1.bf16.msra.mxu0 %v4927
    %6229 = vmatprep.subr.bf16.mxu0 0
    %6230 = vmatpush1.bf16.msra.mxu0 %v4934
    %6231 = vmatprep.subr.bf16.mxu0 0
    %6232 = vmatpush1.bf16.msra.mxu0 %v4941
    %6233 = vmatprep.subr.bf16.mxu0 0
    %6234 = vmatpush1.bf16.msra.mxu0 %v4948
    %6235 = vmatprep.subr.bf16.mxu0 0
    %6236 = vmatpush1.bf16.msra.mxu0 %v4955
    %6237 = vmatprep.subr.bf16.mxu0 0
    %6238 = vmatpush1.bf16.msra.mxu0 %v4962
    %6239 = vmatprep.subr.bf16.mxu0 0
    %6240 = vmatpush1.bf16.msra.mxu0 %v4969
    %6241 = vmatprep.subr.bf16.mxu0 0
    %6242 = vmatpush1.bf16.msra.mxu0 %v4976
    %6243 = vmatprep.subr.bf16.mxu0 0
    %6244 = vmatpush1.bf16.msra.mxu0 %v4983
    %6245 = vmatprep.subr.bf16.mxu0 0
    %6246 = vmatpush1.bf16.msra.mxu0 %v4990
    %6247 = vmatprep.subr.bf16.mxu0 0
    %6248 = vmatpush1.bf16.msra.mxu0 %v4997
    %6249 = vmatprep.subr.bf16.mxu0 0
    %6250 = vmatpush1.bf16.msra.mxu0 %v5004
    %6251 = vmatprep.subr.bf16.mxu0 0
    %6252 = vmatpush1.bf16.msra.mxu0 %v5011
    %6253 = vmatprep.subr.bf16.mxu0 0
    %6254 = vmatpush1.bf16.msra.mxu0 %v5018
    %6255 = vmatprep.mubr.bf16.mxu0 %v2833
    %6256 = vmatmul.mubr.bf16.gmra.mrb[0].mxu0 %v2832
    %v6257 = vpop.f32.mrb[0].mxu0
    %v6258 = vadd.f32 %v6218, %v6257
    %v6259 = vpop.f32.mrb[0].mxu0
    %v6260 = vpop.f32.mrb[0].mxu0
    %v6261 = vpop.f32.mrb[0].mxu0
    %6262 = vdwg.mxu0
    %6263 = vmatprep.subr.bf16.mxu0 0
    %6264 = vmatpush1.bf16.msra.mxu0 %v5025
    %6265 = vmatprep.subr.bf16.mxu0 0
    %6266 = vmatpush1.bf16.msra.mxu0 %v5032
    %6267 = vmatprep.subr.bf16.mxu0 0
    %6268 = vmatpush1.bf16.msra.mxu0 %v5039
    %6269 = vmatprep.subr.bf16.mxu0 0
    %6270 = vmatpush1.bf16.msra.mxu0 %v5046
    %6271 = vmatprep.subr.bf16.mxu0 0
    %6272 = vmatpush1.bf16.msra.mxu0 %v5053
    %6273 = vmatprep.subr.bf16.mxu0 0
    %6274 = vmatpush1.bf16.msra.mxu0 %v5060
    %6275 = vmatprep.subr.bf16.mxu0 0
    %6276 = vmatpush1.bf16.msra.mxu0 %v5067
    %6277 = vmatprep.subr.bf16.mxu0 0
    %6278 = vmatpush1.bf16.msra.mxu0 %v5074
    %6279 = vmatprep.subr.bf16.mxu0 0
    %6280 = vmatpush1.bf16.msra.mxu0 %v5081
    %6281 = vmatprep.subr.bf16.mxu0 0
    %6282 = vmatpush1.bf16.msra.mxu0 %v5088
    %6283 = vmatprep.subr.bf16.mxu0 0
    %6284 = vmatpush1.bf16.msra.mxu0 %v5095
    %6285 = vmatprep.subr.bf16.mxu0 0
    %6286 = vmatpush1.bf16.msra.mxu0 %v5102
    %6287 = vmatprep.subr.bf16.mxu0 0
    %6288 = vmatpush1.bf16.msra.mxu0 %v5109
    %6289 = vmatprep.subr.bf16.mxu0 0
    %6290 = vmatpush1.bf16.msra.mxu0 %v5116
    %6291 = vmatprep.subr.bf16.mxu0 0
    %6292 = vmatpush1.bf16.msra.mxu0 %v5123
    %6293 = vmatprep.subr.bf16.mxu0 0
    %6294 = vmatpush1.bf16.msra.mxu0 %v5130
    %6295 = vmatprep.mubr.bf16.mxu0 %v2835
    %6296 = vmatmul.mubr.bf16.gmra.mrb[0].mxu0 %v2834
    %v6297 = vpop.f32.mrb[0].mxu0
    %v6298 = vadd.f32 %v6258, %v6297
    %v6299 = vpop.f32.mrb[0].mxu0
    %v6300 = vpop.f32.mrb[0].mxu0
    %v6301 = vpop.f32.mrb[0].mxu0
    %6302 = vdwg.mxu0
    %6303 = vmatprep.subr.bf16.mxu0 0
    %6304 = vmatpush1.bf16.msra.mxu0 %v5137
    %6305 = vmatprep.subr.bf16.mxu0 0
    %6306 = vmatpush1.bf16.msra.mxu0 %v5144
    %6307 = vmatprep.subr.bf16.mxu0 0
    %6308 = vmatpush1.bf16.msra.mxu0 %v5151
    %6309 = vmatprep.subr.bf16.mxu0 0
    %6310 = vmatpush1.bf16.msra.mxu0 %v5158
    %6311 = vmatprep.subr.bf16.mxu0 0
    %6312 = vmatpush1.bf16.msra.mxu0 %v5165
    %6313 = vmatprep.subr.bf16.mxu0 0
    %6314 = vmatpush1.bf16.msra.mxu0 %v5172
    %6315 = vmatprep.subr.bf16.mxu0 0
    %6316 = vmatpush1.bf16.msra.mxu0 %v5179
    %6317 = vmatprep.subr.bf16.mxu0 0
    %6318 = vmatpush1.bf16.msra.mxu0 %v5186
    %6319 = vmatprep.subr.bf16.mxu0 0
    %6320 = vmatpush1.bf16.msra.mxu0 %v5193
    %6321 = vmatprep.subr.bf16.mxu0 0
    %6322 = vmatpush1.bf16.msra.mxu0 %v5200
    %6323 = vmatprep.subr.bf16.mxu0 0
    %6324 = vmatpush1.bf16.msra.mxu0 %v5207
    %6325 = vmatprep.subr.bf16.mxu0 0
    %6326 = vmatpush1.bf16.msra.mxu0 %v5214
    %6327 = vmatprep.subr.bf16.mxu0 0
    %6328 = vmatpush1.bf16.msra.mxu0 %v5221
    %6329 = vmatprep.subr.bf16.mxu0 0
    %6330 = vmatpush1.bf16.msra.mxu0 %v5228
    %6331 = vmatprep.subr.bf16.mxu0 0
    %6332 = vmatpush1.bf16.msra.mxu0 %v5235
    %6333 = vmatprep.subr.bf16.mxu0 0
    %6334 = vmatpush1.bf16.msra.mxu0 %v5242
    %6335 = vmatprep.mubr.bf16.mxu0 %v2837
    %6336 = vmatmul.mubr.bf16.gmra.mrb[0].mxu0 %v2836
    %v6337 = vpop.f32.mrb[0].mxu0
    %v6338 = vadd.f32 %v6298, %v6337
    %v6339 = vpop.f32.mrb[0].mxu0
    %v6340 = vpop.f32.mrb[0].mxu0
    %v6341 = vpop.f32.mrb[0].mxu0
    %6342 = vdwg.mxu0
    %v6343 = vsub.f32 0.0, %v5849
    %v6344 = vsub.f32 0.0, %v5851
    %v6345 = vsub.f32 0.0, %v6013
    %v6346 = vsub.f32 0.0, %v6015
    %v6347 = vsub.f32 0.0, %v6177
    %v6348 = vsub.f32 0.0, %v6179
    %v6349 = vsub.f32 0.0, %v6338
    %v6350 = vmul.f32 %v6343, 1.442695
    %v6351 = vpow.pop %v6350
    %v6352 = vmul.f32 %v6344, 1.442695
    %v6353 = vpow.pop %v6352
    %v6354 = vmul.f32 %v6345, 1.442695
    %v6355 = vpow.pop %v6354
    %v6356 = vmul.f32 %v6346, 1.442695
    %v6357 = vpow.pop %v6356
    %v6358 = vmul.f32 %v6347, 1.442695
    %v6359 = vpow.pop %v6358
    %v6360 = vmul.f32 %v6348, 1.442695
    %v6361 = vpow.pop %v6360
    %v6362 = vmul.f32 %v6349, 1.442695
    %v6363 = vpow.pop %v6362
    %v6364 = vadd.f32 %v6351, 1.0
    %v6365 = vadd.f32 %v6353, 1.0
    %v6366 = vadd.f32 %v6355, 1.0
    %v6367 = vadd.f32 %v6357, 1.0
    %v6368 = vadd.f32 %v6359, 1.0
    %v6369 = vadd.f32 %v6361, 1.0
    %v6370 = vadd.f32 %v6363, 1.0
    %v6371 = vrcp.pop %v6364
    %v6372 = vrcp.pop %v6365
    %v6373 = vrcp.pop %v6366
    %v6374 = vrcp.pop %v6367
    %v6375 = vrcp.pop %v6368
    %v6376 = vrcp.pop %v6369
    %v6377 = vrcp.pop %v6370
    %6378 = vst [vmem:[%s9] sm:$0xff] %v6371
    %6379 = vst [vmem:[%s9 + $0x8] sm:$0xff] %v6372
    %6380 = vst [vmem:[%s9 + $0x10] sm:$0xff] %v6373
    %6381 = vst [vmem:[%s9 + $0x18] sm:$0xff] %v6374
    %6382 = vst [vmem:[%s9 + $0x20] sm:$0xff] %v6375
    %6383 = vst [vmem:[%s9 + $0x28] sm:$0xff] %v6376
    %6384 = vst [vmem:[%s9 + $0x30] sm:$0xff] %v6377
    // Predicated region
    $region70: #{_forward_impl.1} parent=1 // pred_check
      _
    $region71: #{_forward_impl.1} parent=1 // pred_check_branch
      %6386 = sbr.rel (0) target = $region73
    $region72: #{_forward_impl.1} parent=1 // pred_region
      _
    $region73: #{_forward_impl.1} parent=1 // pred_fallthru
      _
    // Predicated region
    $region74: #{_forward_impl.1} parent=1 // pred_check
      _
    $region75: #{_forward_impl.1} parent=1 // pred_check_branch
      %6388 = sbr.rel (0) target = $region77
    $region76: #{_forward_impl.1} parent=1 // pred_region
      _
    $region77: #{_forward_impl.1} parent=1 // pred_fallthru
      _
    %6389 = vsyncpa [#allocation3], 1
    %6390 = vsyncpa [#allocation5], 1
    %6391 = vsyncpa [#allocation8], 1
    %6392 = vsyncpa [#allocation11], 1
    %6393 = vsyncpa [#allocation14], 1

</llo_original>
